<compile_context>
chip_gen: v7x
topology: tpu7x:2x2x1
jax: 0.10.0
libtpu: 0.0.40
codegen_flags: <defaults>
</compile_context>

<pallas_src>
import math
import numpy as np
import jax
import jax.numpy as jnp
from jax.experimental import pallas as pl
from jax.experimental.pallas import tpu as pltpu


# ----------------------------------------------------------------------------
# Deterministic "parameter" setup (same as gaussian()/create_window()).
# ----------------------------------------------------------------------------
def _gaussian_1d(window_size: int, sigma: float = 1.5) -> np.ndarray:
    g = np.array(
        [math.exp(-((x - window_size // 2) ** 2) / float(2 * sigma ** 2))
         for x in range(window_size)],
        dtype=np.float64,
    )
    return (g / g.sum()).astype(np.float32)


def _conv_toeplitz(full: int, win: int, taps: np.ndarray, transpose: bool) -> np.ndarray:
    """Banded Toeplitz for a 'valid' 1-D correlation with `taps`.

    transpose=False -> shape (out, full): left-multiply  (vertical pass)
    transpose=True  -> shape (full, out): right-multiply (horizontal pass)
    """
    out = full - win + 1
    m = np.zeros((out, full), dtype=np.float32)
    idx = np.arange(out)
    for k in range(win):
        m[idx, idx + k] = taps[k]
    return np.ascontiguousarray(m.T) if transpose else m


def _pool_matrices(H: int, W: int):
    """Matrices such that Pv @ x @ Ph == F.avg_pool2d(x, (2,2)) (floor)."""
    Hp, Wp = H // 2, W // 2
    pv = np.zeros((Hp, H), dtype=np.float32)
    ph = np.zeros((W, Wp), dtype=np.float32)
    ih = np.arange(Hp)
    iw = np.arange(Wp)
    pv[ih, 2 * ih] = 0.5
    pv[ih, 2 * ih + 1] = 0.5
    ph[2 * iw, iw] = 0.5
    ph[2 * iw + 1, iw] = 0.5
    return pv, ph


def _level_geometry(H: int, W: int, window_size: int):
    win = min(window_size, H, W)          # real_size = min(window_size, H, W)
    Ho, Wo = H - win + 1, W - win + 1
    g = _gaussian_1d(win)
    tv = _conv_toeplitz(H, win, g, transpose=False)   # (Ho, H)
    th = _conv_toeplitz(W, win, g, transpose=True)    # (W, Wo)
    return Ho, Wo, tv, th


# ----------------------------------------------------------------------------
# Kernel bodies (one (batch, channel) plane per grid step).
# ----------------------------------------------------------------------------
def _ssim_maps(params_ref, img1_ref, img2_ref, tv_ref, th_ref):
    c1 = params_ref[0]          # (0.01 * L) ** 2
    c2 = params_ref[1]          # (0.03 * L) ** 2

    a = img1_ref[0]             # (H, W)
    b = img2_ref[0]             # (H, W)
    tv = tv_ref[...]            # (Ho, H)  vertical-pass Toeplitz
    th = th_ref[...]            # (W, Wo)  horizontal-pass Toeplitz

    def gconv(x):
        # Separable Gaussian conv: both 1-D passes run on the MXU.
        y = jnp.dot(x, th, preferred_element_type=jnp.float32)      # (H, Wo)
        return jnp.dot(tv, y, preferred_element_type=jnp.float32)   # (Ho, Wo)

    mu1 = gconv(a)
    mu2 = gconv(b)
    e11 = gconv(a * a)
    e22 = gconv(b * b)
    e12 = gconv(a * b)

    mu1_sq = mu1 * mu1
    mu2_sq = mu2 * mu2
    mu1_mu2 = mu1 * mu2
    sigma1_sq = e11 - mu1_sq
    sigma2_sq = e22 - mu2_sq
    sigma12 = e12 - mu1_mu2

    v1 = 2.0 * sigma12 + c2
    v2 = sigma1_sq + sigma2_sq + c2
    inv_v2 = pl.reciprocal(v2, approx=False)                  # reused twice
    cs_map = v1 * inv_v2
    inv_d1 = pl.reciprocal(mu1_sq + mu2_sq + c1, approx=False)
    ssim_map = (2.0 * mu1_mu2 + c1) * inv_d1 * cs_map
    return a, b, ssim_map, cs_map


def _ssim_pool_kernel(params_ref, img1_ref, img2_ref, tv_ref, th_ref,
                      pv_ref, ph_ref,
                      ssim_ref, cs_ref, pool1_ref, pool2_ref,
                      pmax_ref, pmin_ref):
    a, b, ssim_map, cs_map = _ssim_maps(params_ref, img1_ref, img2_ref,
                                        tv_ref, th_ref)

    # Per-plane partial sums; global mean (size_average=True) done outside.
    ssim_ref[...] = jnp.sum(ssim_map).reshape(1, 1, 1)
    cs_ref[...] = jnp.sum(cs_map).reshape(1, 1, 1)

    # Fused 2x2 average pool for the next pyramid level (MXU matmuls too).
    pv = pv_ref[...]            # (Hp, H)
    ph = ph_ref[...]            # (W, Wp)
    p1 = jnp.dot(jnp.dot(pv, a, preferred_element_type=jnp.float32),
                 ph, preferred_element_type=jnp.float32)
    p2 = jnp.dot(jnp.dot(pv, b, preferred_element_type=jnp.float32),
                 ph, preferred_element_type=jnp.float32)
    pool1_ref[0] = p1
    pool2_ref[0] = p2

    # Per-plane max/min of the next level's img1 (= p1): feeds the dynamic
    # range (L -> C1, C2) of the next level without re-reading p1 from HBM.
    pmax_ref[...] = jnp.max(p1).reshape(1, 1, 1)
    pmin_ref[...] = jnp.min(p1).reshape(1, 1, 1)


def _ssim_final_kernel(params_ref, img1_ref, img2_ref, tv_ref, th_ref,
                       ssim_ref, cs_ref):
    _, _, ssim_map, cs_map = _ssim_maps(params_ref, img1_ref, img2_ref,
                                        tv_ref, th_ref)
    ssim_ref[...] = jnp.sum(ssim_map).reshape(1, 1, 1)
    cs_ref[...] = jnp.sum(cs_map).reshape(1, 1, 1)


# ----------------------------------------------------------------------------
# Per-level wrappers.
# ----------------------------------------------------------------------------
_COMPILER_PARAMS = pltpu.CompilerParams(
    dimension_semantics=("parallel",),
    vmem_limit_bytes=32 * 1024 * 1024,
)


def _ssim_level_pool(x1, x2, params, window_size):
    """ssim(..., full=True) + fused avg_pool2d + next-level range stats."""
    N, H, W = x1.shape
    Ho, Wo, tv, th = _level_geometry(H, W, window_size)
    Hp, Wp = H // 2, W // 2
    pv, ph = _pool_matrices(H, W)

    plane_spec = pl.BlockSpec((1, H, W), lambda n: (n, 0, 0))
    sum_spec = pl.BlockSpec((1, 1, 1), lambda n: (n, 0, 0))
    pool_spec = pl.BlockSpec((1, Hp, Wp), lambda n: (n, 0, 0))

    def const_spec(shape):
        return pl.BlockSpec(shape, lambda n: (0, 0))

    ssim_sums, cs_sums, p1, p2, pmax, pmin = pl.pallas_call(
        _ssim_pool_kernel,
        grid=(N,),
        in_specs=[
            pl.BlockSpec(memory_space=pltpu.MemorySpace.SMEM),   # [C1, C2]
            plane_spec, plane_spec,
            const_spec((Ho, H)), const_spec((W, Wo)),
            const_spec((Hp, H)), const_spec((W, Wp)),
        ],
        out_specs=(sum_spec, sum_spec, pool_spec, pool_spec, sum_spec, sum_spec),
        out_shape=(
            jax.ShapeDtypeStruct((N, 1, 1), jnp.float32),
            jax.ShapeDtypeStruct((N, 1, 1), jnp.float32),
            jax.ShapeDtypeStruct((N, Hp, Wp), jnp.float32),
            jax.ShapeDtypeStruct((N, Hp, Wp), jnp.float32),
            jax.ShapeDtypeStruct((N, 1, 1), jnp.float32),
            jax.ShapeDtypeStruct((N, 1, 1), jnp.float32),
        ),
        compiler_params=_COMPILER_PARAMS,
    )(params, x1, x2,
      jnp.asarray(tv), jnp.asarray(th), jnp.asarray(pv), jnp.asarray(ph))

    denom = float(N * Ho * Wo)
    return (jnp.sum(ssim_sums) / denom,
            jnp.sum(cs_sums) / denom,
            p1, p2,
            jnp.max(pmax), jnp.min(pmin))


def _ssim_level_final(x1, x2, params, window_size):
    """Last pyramid level: no pooled outputs needed (reference discards them)."""
    N, H, W = x1.shape
    Ho, Wo, tv, th = _level_geometry(H, W, window_size)

    plane_spec = pl.BlockSpec((1, H, W), lambda n: (n, 0, 0))
    sum_spec = pl.BlockSpec((1, 1, 1), lambda n: (n, 0, 0))

    def const_spec(shape):
        return pl.BlockSpec(shape, lambda n: (0, 0))

    ssim_sums, cs_sums = pl.pallas_call(
        _ssim_final_kernel,
        grid=(N,),
        in_specs=[
            pl.BlockSpec(memory_space=pltpu.MemorySpace.SMEM),   # [C1, C2]
            plane_spec, plane_spec,
            const_spec((Ho, H)), const_spec((W, Wo)),
        ],
        out_specs=(sum_spec, sum_spec),
        out_shape=(
            jax.ShapeDtypeStruct((N, 1, 1), jnp.float32),
            jax.ShapeDtypeStruct((N, 1, 1), jnp.float32),
        ),
        compiler_params=_COMPILER_PARAMS,
    )(params, x1, x2, jnp.asarray(tv), jnp.asarray(th))

    denom = float(N * Ho * Wo)
    return jnp.sum(ssim_sums) / denom, jnp.sum(cs_sums) / denom


# ----------------------------------------------------------------------------
# MS-SSIM pyramid: 5 levels, weighted product (normalize=None path).
# ----------------------------------------------------------------------------
def msssim_pallas(img1, img2, window_size=11):
    weights = jnp.array([0.0448, 0.2856, 0.3001, 0.2363, 0.1333], jnp.float32)
    levels = int(weights.shape[0])

    B, C, H, W = img1.shape
    N = B * C
    x1 = img1.astype(jnp.float32).reshape(N, H, W)
    x2 = img2.astype(jnp.float32).reshape(N, H, W)

    # Dynamic range of level 0 (val_range=None branch) from the raw input;
    # subsequent levels get max/min fused out of the previous level's kernel.
    cur_max = jnp.max(x1)
    cur_min = jnp.min(x1)

    ssims, mcs = [], []
    for lvl in range(levels):
        max_val = jnp.where(cur_max > 128.0, 255.0, 1.0)
        min_val = jnp.where(cur_min < -0.5, -1.0, 0.0)
        L = max_val - min_val
        params = jnp.stack([(0.01 * L) ** 2, (0.03 * L) ** 2]).astype(jnp.float32)

        if lvl == levels - 1:
            s, c = _ssim_level_final(x1, x2, params, window_size)
        else:
            s, c, x1, x2, cur_max, cur_min = _ssim_level_pool(
                x1, x2, params, window_size)
        ssims.append(s)
        mcs.append(c)

    ssims = jnp.stack(ssims)
    mcs = jnp.stack(mcs)
    pow1 = mcs ** weights
    pow2 = ssims ** weights
    return jnp.prod(pow1[:-1]) * pow2[-1]


class MSSSIM:
    """Mirror of the PyTorch MSSSIM module (forward only)."""

    def __init__(self, window_size=11, size_average=True, channel=3):
        assert size_average, "only size_average=True path implemented"
        self.window_size = window_size
        self.size_average = size_average
        self.channel = channel

    def __call__(self, img1, img2):
        return msssim_pallas(img1, img2, window_size=self.window_size)


if __name__ == "__main__":
    # Small, deterministic inputs.  Spatial = 32 so the 5-level pyramid has
    # a sane geometry at every level, matching typical PyTorch usage.
    key = jax.random.PRNGKey(0)
    k1, k2 = jax.random.split(key)
    B, C, H, W = 2, 3, 32, 32
    img1 = jax.random.uniform(k1, (B, C, H, W), dtype=jnp.float32)
    noise = 0.05 * jax.random.normal(k2, (B, C, H, W), dtype=jnp.float32)
    img2 = jnp.clip(img1 + noise, 0.0, 1.0)

    model = MSSSIM(window_size=11, size_average=True, channel=C)
    out = jax.jit(model.__call__)(img1, img2)
    out = jax.block_until_ready(out)
    assert out.shape == () and out.dtype == jnp.float32
    print("KERNEL_OK")
</pallas_src>

<mosaic_0001>
module attributes {stable_mosaic.version = 11 : i64} {
  func.func @_ssim_pool_kernel(%arg0: i32, %arg1: memref<2xf32, #tpu.memory_space<smem>>, %arg2: memref<1x32x32xf32, #tpu.memory_space<vmem>>, %arg3: memref<1x32x32xf32, #tpu.memory_space<vmem>>, %arg4: memref<22x32xf32, #tpu.memory_space<vmem>>, %arg5: memref<32x22xf32, #tpu.memory_space<vmem>>, %arg6: memref<16x32xf32, #tpu.memory_space<vmem>>, %arg7: memref<32x16xf32, #tpu.memory_space<vmem>>, %arg8: memref<1x1x1xf32, #tpu.memory_space<vmem>>, %arg9: memref<1x1x1xf32, #tpu.memory_space<vmem>>, %arg10: memref<1x16x16xf32, #tpu.memory_space<vmem>>, %arg11: memref<1x16x16xf32, #tpu.memory_space<vmem>>, %arg12: memref<1x1x1xf32, #tpu.memory_space<vmem>>, %arg13: memref<1x1x1xf32, #tpu.memory_space<vmem>>) attributes {dimension_semantics = [#tpu.dimension_semantics<parallel>], iteration_bounds = array<i64: 6>, scalar_prefetch = 0 : i64, scratch_operands = 0 : i64, tpu.core_type = #tpu.core_type<tc>, window_params = [{transform_indices = @transform_0, window_bounds = array<i64: 2>}, {transform_indices = @transform_1, window_bounds = array<i64: 1, 32, 32>}, {transform_indices = @transform_2, window_bounds = array<i64: 1, 32, 32>}, {pipeline_mode = #tpu.pipeline_mode<synchronous>, transform_indices = @transform_3, window_bounds = array<i64: 22, 32>}, {pipeline_mode = #tpu.pipeline_mode<synchronous>, transform_indices = @transform_4, window_bounds = array<i64: 32, 22>}, {pipeline_mode = #tpu.pipeline_mode<synchronous>, transform_indices = @transform_5, window_bounds = array<i64: 16, 32>}, {pipeline_mode = #tpu.pipeline_mode<synchronous>, transform_indices = @transform_6, window_bounds = array<i64: 32, 16>}, {transform_indices = @transform_7, window_bounds = array<i64: 1, 1, 1>}, {transform_indices = @transform_8, window_bounds = array<i64: 1, 1, 1>}, {transform_indices = @transform_9, window_bounds = array<i64: 1, 16, 16>}, {transform_indices = @transform_10, window_bounds = array<i64: 1, 16, 16>}, {transform_indices = @transform_11, window_bounds = array<i64: 1, 1, 1>}, {transform_indices = @transform_12, window_bounds = array<i64: 1, 1, 1>}]} {
    %c0 = arith.constant 0 : index
    %0 = memref.load %arg1[%c0] : memref<2xf32, #tpu.memory_space<smem>>
    %c1 = arith.constant 1 : index
    %1 = memref.load %arg1[%c1] : memref<2xf32, #tpu.memory_space<smem>>
    %c0_0 = arith.constant 0 : index
    %c0_1 = arith.constant 0 : index
    %c0_2 = arith.constant 0 : index
    %2 = vector.load %arg2[%c0_0, %c0_1, %c0_2] : memref<1x32x32xf32, #tpu.memory_space<vmem>>, vector<1x32x32xf32>
    %3 = vector.shape_cast %2 : vector<1x32x32xf32> to vector<32x32xf32>
    %c0_3 = arith.constant 0 : index
    %c0_4 = arith.constant 0 : index
    %c0_5 = arith.constant 0 : index
    %4 = vector.load %arg3[%c0_3, %c0_4, %c0_5] : memref<1x32x32xf32, #tpu.memory_space<vmem>>, vector<1x32x32xf32>
    %5 = vector.shape_cast %4 : vector<1x32x32xf32> to vector<32x32xf32>
    %c0_6 = arith.constant 0 : index
    %c0_7 = arith.constant 0 : index
    %6 = vector.load %arg4[%c0_6, %c0_7] : memref<22x32xf32, #tpu.memory_space<vmem>>, vector<22x32xf32>
    %c0_8 = arith.constant 0 : index
    %c0_9 = arith.constant 0 : index
    %7 = vector.load %arg5[%c0_8, %c0_9] : memref<32x22xf32, #tpu.memory_space<vmem>>, vector<32x22xf32>
    %cst = arith.constant dense<0.000000e+00> : vector<32x22xf32>
    %8 = tpu.matmul %3, %7, %cst {dimension_numbers = #tpu.dot_dimension_numbers<[1], [0], [0], [1], [0, 0, 1, 1], [], []>} : vector<32x32xf32>, vector<32x22xf32>, vector<32x22xf32> -> vector<32x22xf32>
    %cst_10 = arith.constant dense<0.000000e+00> : vector<22x22xf32>
    %9 = tpu.matmul %6, %8, %cst_10 {dimension_numbers = #tpu.dot_dimension_numbers<[1], [0], [0], [1], [0, 0, 1, 1], [], []>} : vector<22x32xf32>, vector<32x22xf32>, vector<22x22xf32> -> vector<22x22xf32>
    %cst_11 = arith.constant dense<0.000000e+00> : vector<32x22xf32>
    %10 = tpu.matmul %5, %7, %cst_11 {dimension_numbers = #tpu.dot_dimension_numbers<[1], [0], [0], [1], [0, 0, 1, 1], [], []>} : vector<32x32xf32>, vector<32x22xf32>, vector<32x22xf32> -> vector<32x22xf32>
    %cst_12 = arith.constant dense<0.000000e+00> : vector<22x22xf32>
    %11 = tpu.matmul %6, %10, %cst_12 {dimension_numbers = #tpu.dot_dimension_numbers<[1], [0], [0], [1], [0, 0, 1, 1], [], []>} : vector<22x32xf32>, vector<32x22xf32>, vector<22x22xf32> -> vector<22x22xf32>
    %12 = arith.mulf %3, %3 : vector<32x32xf32>
    %cst_13 = arith.constant dense<0.000000e+00> : vector<32x22xf32>
    %13 = tpu.matmul %12, %7, %cst_13 {dimension_numbers = #tpu.dot_dimension_numbers<[1], [0], [0], [1], [0, 0, 1, 1], [], []>} : vector<32x32xf32>, vector<32x22xf32>, vector<32x22xf32> -> vector<32x22xf32>
    %cst_14 = arith.constant dense<0.000000e+00> : vector<22x22xf32>
    %14 = tpu.matmul %6, %13, %cst_14 {dimension_numbers = #tpu.dot_dimension_numbers<[1], [0], [0], [1], [0, 0, 1, 1], [], []>} : vector<22x32xf32>, vector<32x22xf32>, vector<22x22xf32> -> vector<22x22xf32>
    %15 = arith.mulf %5, %5 : vector<32x32xf32>
    %cst_15 = arith.constant dense<0.000000e+00> : vector<32x22xf32>
    %16 = tpu.matmul %15, %7, %cst_15 {dimension_numbers = #tpu.dot_dimension_numbers<[1], [0], [0], [1], [0, 0, 1, 1], [], []>} : vector<32x32xf32>, vector<32x22xf32>, vector<32x22xf32> -> vector<32x22xf32>
    %cst_16 = arith.constant dense<0.000000e+00> : vector<22x22xf32>
    %17 = tpu.matmul %6, %16, %cst_16 {dimension_numbers = #tpu.dot_dimension_numbers<[1], [0], [0], [1], [0, 0, 1, 1], [], []>} : vector<22x32xf32>, vector<32x22xf32>, vector<22x22xf32> -> vector<22x22xf32>
    %18 = arith.mulf %3, %5 : vector<32x32xf32>
    %cst_17 = arith.constant dense<0.000000e+00> : vector<32x22xf32>
    %19 = tpu.matmul %18, %7, %cst_17 {dimension_numbers = #tpu.dot_dimension_numbers<[1], [0], [0], [1], [0, 0, 1, 1], [], []>} : vector<32x32xf32>, vector<32x22xf32>, vector<32x22xf32> -> vector<32x22xf32>
    %cst_18 = arith.constant dense<0.000000e+00> : vector<22x22xf32>
    %20 = tpu.matmul %6, %19, %cst_18 {dimension_numbers = #tpu.dot_dimension_numbers<[1], [0], [0], [1], [0, 0, 1, 1], [], []>} : vector<22x32xf32>, vector<32x22xf32>, vector<22x22xf32> -> vector<22x22xf32>
    %21 = arith.mulf %9, %9 : vector<22x22xf32>
    %22 = arith.mulf %11, %11 : vector<22x22xf32>
    %23 = arith.mulf %9, %11 : vector<22x22xf32>
    %24 = arith.subf %14, %21 : vector<22x22xf32>
    %25 = arith.subf %17, %22 : vector<22x22xf32>
    %26 = arith.subf %20, %23 : vector<22x22xf32>
    %cst_19 = arith.constant 2.000000e+00 : f32
    %27 = vector.broadcast %cst_19 : f32 to vector<22x22xf32>
    %28 = arith.mulf %27, %26 : vector<22x22xf32>
    %29 = vector.broadcast %1 : f32 to vector<22x22xf32>
    %30 = arith.addf %28, %29 : vector<22x22xf32>
    %31 = arith.addf %24, %25 : vector<22x22xf32>
    %32 = vector.broadcast %1 : f32 to vector<22x22xf32>
    %33 = arith.addf %31, %32 : vector<22x22xf32>
    %34 = tpu.reciprocal %33 : vector<22x22xf32> -> vector<22x22xf32>
    %35 = arith.mulf %30, %34 : vector<22x22xf32>
    %36 = arith.addf %21, %22 : vector<22x22xf32>
    %37 = vector.broadcast %0 : f32 to vector<22x22xf32>
    %38 = arith.addf %36, %37 : vector<22x22xf32>
    %39 = tpu.reciprocal %38 : vector<22x22xf32> -> vector<22x22xf32>
    %cst_20 = arith.constant 2.000000e+00 : f32
    %40 = vector.broadcast %cst_20 : f32 to vector<22x22xf32>
    %41 = arith.mulf %40, %23 : vector<22x22xf32>
    %42 = vector.broadcast %0 : f32 to vector<22x22xf32>
    %43 = arith.addf %41, %42 : vector<22x22xf32>
    %44 = arith.mulf %43, %39 : vector<22x22xf32>
    %45 = arith.mulf %44, %35 : vector<22x22xf32>
    %46 = vector.shape_cast %45 : vector<22x22xf32> to vector<1x22x22xf32>
    %cst_21 = arith.constant dense<0.000000e+00> : vector<1xf32>
    %47 = vector.multi_reduction <add>, %46, %cst_21 [1, 2] : vector<1x22x22xf32> to vector<1xf32>
    %48 = vector.shape_cast %47 : vector<1xf32> to vector<1x1x1xf32>
    %49 = vector.extract %48[0, 0, 0] : f32 from vector<1x1x1xf32>
    %50 = vector.broadcast %49 : f32 to vector<1x1x1xf32>
    %c0_22 = arith.constant 0 : index
    %c0_23 = arith.constant 0 : index
    %c0_24 = arith.constant 0 : index
    %51 = vector.load %arg8[%c0_22, %c0_23, %c0_24] : memref<1x1x1xf32, #tpu.memory_space<vmem>>, vector<1x1x1xf32>
    tpu.vector_store %arg8[%c0_22, %c0_23, %c0_24], %50 {strides = array<i32>} : memref<1x1x1xf32, #tpu.memory_space<vmem>>, vector<1x1x1xf32>,
    %52 = vector.shape_cast %35 : vector<22x22xf32> to vector<1x22x22xf32>
    %cst_25 = arith.constant dense<0.000000e+00> : vector<1xf32>
    %53 = vector.multi_reduction <add>, %52, %cst_25 [1, 2] : vector<1x22x22xf32> to vector<1xf32>
    %54 = vector.shape_cast %53 : vector<1xf32> to vector<1x1x1xf32>
    %55 = vector.extract %54[0, 0, 0] : f32 from vector<1x1x1xf32>
    %56 = vector.broadcast %55 : f32 to vector<1x1x1xf32>
    %c0_26 = arith.constant 0 : index
    %c0_27 = arith.constant 0 : index
    %c0_28 = arith.constant 0 : index
    %57 = vector.load %arg9[%c0_26, %c0_27, %c0_28] : memref<1x1x1xf32, #tpu.memory_space<vmem>>, vector<1x1x1xf32>
    tpu.vector_store %arg9[%c0_26, %c0_27, %c0_28], %56 {strides = array<i32>} : memref<1x1x1xf32, #tpu.memory_space<vmem>>, vector<1x1x1xf32>,
    %c0_29 = arith.constant 0 : index
    %c0_30 = arith.constant 0 : index
    %58 = vector.load %arg6[%c0_29, %c0_30] : memref<16x32xf32, #tpu.memory_space<vmem>>, vector<16x32xf32>
    %c0_31 = arith.constant 0 : index
    %c0_32 = arith.constant 0 : index
    %59 = vector.load %arg7[%c0_31, %c0_32] : memref<32x16xf32, #tpu.memory_space<vmem>>, vector<32x16xf32>
    %cst_33 = arith.constant dense<0.000000e+00> : vector<16x32xf32>
    %60 = tpu.matmul %58, %3, %cst_33 {dimension_numbers = #tpu.dot_dimension_numbers<[1], [0], [0], [1], [0, 0, 1, 1], [], []>} : vector<16x32xf32>, vector<32x32xf32>, vector<16x32xf32> -> vector<16x32xf32>
    %cst_34 = arith.constant dense<0.000000e+00> : vector<16x16xf32>
    %61 = tpu.matmul %60, %59, %cst_34 {dimension_numbers = #tpu.dot_dimension_numbers<[1], [0], [0], [1], [0, 0, 1, 1], [], []>} : vector<16x32xf32>, vector<32x16xf32>, vector<16x16xf32> -> vector<16x16xf32>
    %cst_35 = arith.constant dense<0.000000e+00> : vector<16x32xf32>
    %62 = tpu.matmul %58, %5, %cst_35 {dimension_numbers = #tpu.dot_dimension_numbers<[1], [0], [0], [1], [0, 0, 1, 1], [], []>} : vector<16x32xf32>, vector<32x32xf32>, vector<16x32xf32> -> vector<16x32xf32>
    %cst_36 = arith.constant dense<0.000000e+00> : vector<16x16xf32>
    %63 = tpu.matmul %62, %59, %cst_36 {dimension_numbers = #tpu.dot_dimension_numbers<[1], [0], [0], [1], [0, 0, 1, 1], [], []>} : vector<16x32xf32>, vector<32x16xf32>, vector<16x16xf32> -> vector<16x16xf32>
    %c0_37 = arith.constant 0 : index
    %c0_38 = arith.constant 0 : index
    %c0_39 = arith.constant 0 : index
    %64 = vector.load %arg10[%c0_37, %c0_38, %c0_39] : memref<1x16x16xf32, #tpu.memory_space<vmem>>, vector<1x16x16xf32>
    %65 = vector.shape_cast %64 : vector<1x16x16xf32> to vector<16x16xf32>
    %66 = vector.shape_cast %61 : vector<16x16xf32> to vector<1x16x16xf32>
    tpu.vector_store %arg10[%c0_37, %c0_38, %c0_39], %66 {strides = array<i32>} : memref<1x16x16xf32, #tpu.memory_space<vmem>>, vector<1x16x16xf32>,
    %c0_40 = arith.constant 0 : index
    %c0_41 = arith.constant 0 : index
    %c0_42 = arith.constant 0 : index
    %67 = vector.load %arg11[%c0_40, %c0_41, %c0_42] : memref<1x16x16xf32, #tpu.memory_space<vmem>>, vector<1x16x16xf32>
    %68 = vector.shape_cast %67 : vector<1x16x16xf32> to vector<16x16xf32>
    %69 = vector.shape_cast %63 : vector<16x16xf32> to vector<1x16x16xf32>
    tpu.vector_store %arg11[%c0_40, %c0_41, %c0_42], %69 {strides = array<i32>} : memref<1x16x16xf32, #tpu.memory_space<vmem>>, vector<1x16x16xf32>,
    %70 = vector.shape_cast %61 : vector<16x16xf32> to vector<1x16x16xf32>
    %cst_43 = arith.constant dense<0xFF800000> : vector<1xf32>
    %71 = vector.multi_reduction <maximumf>, %70, %cst_43 [1, 2] : vector<1x16x16xf32> to vector<1xf32>
    %72 = vector.shape_cast %71 : vector<1xf32> to vector<1x1x1xf32>
    %73 = vector.extract %72[0, 0, 0] : f32 from vector<1x1x1xf32>
    %74 = vector.broadcast %73 : f32 to vector<1x1x1xf32>
    %c0_44 = arith.constant 0 : index
    %c0_45 = arith.constant 0 : index
    %c0_46 = arith.constant 0 : index
    %75 = vector.load %arg12[%c0_44, %c0_45, %c0_46] : memref<1x1x1xf32, #tpu.memory_space<vmem>>, vector<1x1x1xf32>
    tpu.vector_store %arg12[%c0_44, %c0_45, %c0_46], %74 {strides = array<i32>} : memref<1x1x1xf32, #tpu.memory_space<vmem>>, vector<1x1x1xf32>,
    %76 = vector.shape_cast %61 : vector<16x16xf32> to vector<1x16x16xf32>
    %cst_47 = arith.constant dense<0x7F800000> : vector<1xf32>
    %77 = vector.multi_reduction <minimumf>, %76, %cst_47 [1, 2] : vector<1x16x16xf32> to vector<1xf32>
    %78 = vector.shape_cast %77 : vector<1xf32> to vector<1x1x1xf32>
    %79 = vector.extract %78[0, 0, 0] : f32 from vector<1x1x1xf32>
    %80 = vector.broadcast %79 : f32 to vector<1x1x1xf32>
    %c0_48 = arith.constant 0 : index
    %c0_49 = arith.constant 0 : index
    %c0_50 = arith.constant 0 : index
    %81 = vector.load %arg13[%c0_48, %c0_49, %c0_50] : memref<1x1x1xf32, #tpu.memory_space<vmem>>, vector<1x1x1xf32>
    tpu.vector_store %arg13[%c0_48, %c0_49, %c0_50], %80 {strides = array<i32>} : memref<1x1x1xf32, #tpu.memory_space<vmem>>, vector<1x1x1xf32>,
    return
  }
  func.func @transform_0(%arg0: i32) -> i32 {
    %c0_i32 = arith.constant 0 : i32
    %c0_i32_0 = arith.constant 0 : i32
    return %c0_i32 : i32
  }
  func.func @transform_1(%arg0: i32) -> (i32, i32, i32) {
    %c0_i32 = arith.constant 0 : i32
    %c0_i32_0 = arith.constant 0 : i32
    %c0_i32_1 = arith.constant 0 : i32
    return %arg0, %c0_i32, %c0_i32_0 : i32, i32, i32
  }
  func.func @transform_2(%arg0: i32) -> (i32, i32, i32) {
    %c0_i32 = arith.constant 0 : i32
    %c0_i32_0 = arith.constant 0 : i32
    %c0_i32_1 = arith.constant 0 : i32
    return %arg0, %c0_i32, %c0_i32_0 : i32, i32, i32
  }
  func.func @transform_3(%arg0: i32) -> (i32, i32) {
    %c0_i32 = arith.constant 0 : i32
    %c0_i32_0 = arith.constant 0 : i32
    %c0_i32_1 = arith.constant 0 : i32
    return %c0_i32, %c0_i32_0 : i32, i32
  }
  func.func @transform_4(%arg0: i32) -> (i32, i32) {
    %c0_i32 = arith.constant 0 : i32
    %c0_i32_0 = arith.constant 0 : i32
    %c0_i32_1 = arith.constant 0 : i32
    return %c0_i32, %c0_i32_0 : i32, i32
  }
  func.func @transform_5(%arg0: i32) -> (i32, i32) {
    %c0_i32 = arith.constant 0 : i32
    %c0_i32_0 = arith.constant 0 : i32
    %c0_i32_1 = arith.constant 0 : i32
    return %c0_i32, %c0_i32_0 : i32, i32
  }
  func.func @transform_6(%arg0: i32) -> (i32, i32) {
    %c0_i32 = arith.constant 0 : i32
    %c0_i32_0 = arith.constant 0 : i32
    %c0_i32_1 = arith.constant 0 : i32
    return %c0_i32, %c0_i32_0 : i32, i32
  }
  func.func @transform_7(%arg0: i32) -> (i32, i32, i32) {
    %c0_i32 = arith.constant 0 : i32
    %c0_i32_0 = arith.constant 0 : i32
    %c0_i32_1 = arith.constant 0 : i32
    return %arg0, %c0_i32, %c0_i32_0 : i32, i32, i32
  }
  func.func @transform_8(%arg0: i32) -> (i32, i32, i32) {
    %c0_i32 = arith.constant 0 : i32
    %c0_i32_0 = arith.constant 0 : i32
    %c0_i32_1 = arith.constant 0 : i32
    return %arg0, %c0_i32, %c0_i32_0 : i32, i32, i32
  }
  func.func @transform_9(%arg0: i32) -> (i32, i32, i32) {
    %c0_i32 = arith.constant 0 : i32
    %c0_i32_0 = arith.constant 0 : i32
    %c0_i32_1 = arith.constant 0 : i32
    return %arg0, %c0_i32, %c0_i32_0 : i32, i32, i32
  }
  func.func @transform_10(%arg0: i32) -> (i32, i32, i32) {
    %c0_i32 = arith.constant 0 : i32
    %c0_i32_0 = arith.constant 0 : i32
    %c0_i32_1 = arith.constant 0 : i32
    return %arg0, %c0_i32, %c0_i32_0 : i32, i32, i32
  }
  func.func @transform_11(%arg0: i32) -> (i32, i32, i32) {
    %c0_i32 = arith.constant 0 : i32
    %c0_i32_0 = arith.constant 0 : i32
    %c0_i32_1 = arith.constant 0 : i32
    return %arg0, %c0_i32, %c0_i32_0 : i32, i32, i32
  }
  func.func @transform_12(%arg0: i32) -> (i32, i32, i32) {
    %c0_i32 = arith.constant 0 : i32
    %c0_i32_0 = arith.constant 0 : i32
    %c0_i32_1 = arith.constant 0 : i32
    return %arg0, %c0_i32, %c0_i32_0 : i32, i32, i32
  }
}

module attributes {stable_mosaic.version = 11 : i64} {
  func.func @_ssim_pool_kernel(%arg0: i32, %arg1: memref<2xf32, #tpu.memory_space<smem>>, %arg2: memref<1x8x8xf32, #tpu.memory_space<vmem>>, %arg3: memref<1x8x8xf32, #tpu.memory_space<vmem>>, %arg4: memref<1x8xf32, #tpu.memory_space<vmem>>, %arg5: memref<8x1xf32, #tpu.memory_space<vmem>>, %arg6: memref<4x8xf32, #tpu.memory_space<vmem>>, %arg7: memref<8x4xf32, #tpu.memory_space<vmem>>, %arg8: memref<1x1x1xf32, #tpu.memory_space<vmem>>, %arg9: memref<1x1x1xf32, #tpu.memory_space<vmem>>, %arg10: memref<1x4x4xf32, #tpu.memory_space<vmem>>, %arg11: memref<1x4x4xf32, #tpu.memory_space<vmem>>, %arg12: memref<1x1x1xf32, #tpu.memory_space<vmem>>, %arg13: memref<1x1x1xf32, #tpu.memory_space<vmem>>) attributes {dimension_semantics = [#tpu.dimension_semantics<parallel>], iteration_bounds = array<i64: 6>, scalar_prefetch = 0 : i64, scratch_operands = 0 : i64, tpu.core_type = #tpu.core_type<tc>, window_params = [{transform_indices = @transform_0, window_bounds = array<i64: 2>}, {transform_indices = @transform_1, window_bounds = array<i64: 1, 8, 8>}, {transform_indices = @transform_2, window_bounds = array<i64: 1, 8, 8>}, {pipeline_mode = #tpu.pipeline_mode<synchronous>, transform_indices = @transform_3, window_bounds = array<i64: 1, 8>}, {pipeline_mode = #tpu.pipeline_mode<synchronous>, transform_indices = @transform_4, window_bounds = array<i64: 8, 1>}, {pipeline_mode = #tpu.pipeline_mode<synchronous>, transform_indices = @transform_5, window_bounds = array<i64: 4, 8>}, {pipeline_mode = #tpu.pipeline_mode<synchronous>, transform_indices = @transform_6, window_bounds = array<i64: 8, 4>}, {transform_indices = @transform_7, window_bounds = array<i64: 1, 1, 1>}, {transform_indices = @transform_8, window_bounds = array<i64: 1, 1, 1>}, {transform_indices = @transform_9, window_bounds = array<i64: 1, 4, 4>}, {transform_indices = @transform_10, window_bounds = array<i64: 1, 4, 4>}, {transform_indices = @transform_11, window_bounds = array<i64: 1, 1, 1>}, {transform_indices = @transform_12, window_bounds = array<i64: 1, 1, 1>}]} {
    %c0 = arith.constant 0 : index
    %0 = memref.load %arg1[%c0] : memref<2xf32, #tpu.memory_space<smem>>
    %c1 = arith.constant 1 : index
    %1 = memref.load %arg1[%c1] : memref<2xf32, #tpu.memory_space<smem>>
    %c0_0 = arith.constant 0 : index
    %c0_1 = arith.constant 0 : index
    %c0_2 = arith.constant 0 : index
    %2 = vector.load %arg2[%c0_0, %c0_1, %c0_2] : memref<1x8x8xf32, #tpu.memory_space<vmem>>, vector<1x8x8xf32>
    %3 = vector.shape_cast %2 : vector<1x8x8xf32> to vector<8x8xf32>
    %c0_3 = arith.constant 0 : index
    %c0_4 = arith.constant 0 : index
    %c0_5 = arith.constant 0 : index
    %4 = vector.load %arg3[%c0_3, %c0_4, %c0_5] : memref<1x8x8xf32, #tpu.memory_space<vmem>>, vector<1x8x8xf32>
    %5 = vector.shape_cast %4 : vector<1x8x8xf32> to vector<8x8xf32>
    %c0_6 = arith.constant 0 : index
    %c0_7 = arith.constant 0 : index
    %6 = vector.load %arg4[%c0_6, %c0_7] : memref<1x8xf32, #tpu.memory_space<vmem>>, vector<1x8xf32>
    %c0_8 = arith.constant 0 : index
    %c0_9 = arith.constant 0 : index
    %7 = vector.load %arg5[%c0_8, %c0_9] : memref<8x1xf32, #tpu.memory_space<vmem>>, vector<8x1xf32>
    %cst = arith.constant dense<0.000000e+00> : vector<8x1xf32>
    %8 = tpu.matmul %3, %7, %cst {dimension_numbers = #tpu.dot_dimension_numbers<[1], [0], [0], [1], [0, 0, 1, 1], [], []>} : vector<8x8xf32>, vector<8x1xf32>, vector<8x1xf32> -> vector<8x1xf32>
    %cst_10 = arith.constant dense<0.000000e+00> : vector<1x1xf32>
    %9 = tpu.matmul %6, %8, %cst_10 {dimension_numbers = #tpu.dot_dimension_numbers<[1], [0], [0], [1], [0, 0, 1, 1], [], []>} : vector<1x8xf32>, vector<8x1xf32>, vector<1x1xf32> -> vector<1x1xf32>
    %cst_11 = arith.constant dense<0.000000e+00> : vector<8x1xf32>
    %10 = tpu.matmul %5, %7, %cst_11 {dimension_numbers = #tpu.dot_dimension_numbers<[1], [0], [0], [1], [0, 0, 1, 1], [], []>} : vector<8x8xf32>, vector<8x1xf32>, vector<8x1xf32> -> vector<8x1xf32>
    %cst_12 = arith.constant dense<0.000000e+00> : vector<1x1xf32>
    %11 = tpu.matmul %6, %10, %cst_12 {dimension_numbers = #tpu.dot_dimension_numbers<[1], [0], [0], [1], [0, 0, 1, 1], [], []>} : vector<1x8xf32>, vector<8x1xf32>, vector<1x1xf32> -> vector<1x1xf32>
    %12 = arith.mulf %3, %3 : vector<8x8xf32>
    %cst_13 = arith.constant dense<0.000000e+00> : vector<8x1xf32>
    %13 = tpu.matmul %12, %7, %cst_13 {dimension_numbers = #tpu.dot_dimension_numbers<[1], [0], [0], [1], [0, 0, 1, 1], [], []>} : vector<8x8xf32>, vector<8x1xf32>, vector<8x1xf32> -> vector<8x1xf32>
    %cst_14 = arith.constant dense<0.000000e+00> : vector<1x1xf32>
    %14 = tpu.matmul %6, %13, %cst_14 {dimension_numbers = #tpu.dot_dimension_numbers<[1], [0], [0], [1], [0, 0, 1, 1], [], []>} : vector<1x8xf32>, vector<8x1xf32>, vector<1x1xf32> -> vector<1x1xf32>
    %15 = arith.mulf %5, %5 : vector<8x8xf32>
    %cst_15 = arith.constant dense<0.000000e+00> : vector<8x1xf32>
    %16 = tpu.matmul %15, %7, %cst_15 {dimension_numbers = #tpu.dot_dimension_numbers<[1], [0], [0], [1], [0, 0, 1, 1], [], []>} : vector<8x8xf32>, vector<8x1xf32>, vector<8x1xf32> -> vector<8x1xf32>
    %cst_16 = arith.constant dense<0.000000e+00> : vector<1x1xf32>
    %17 = tpu.matmul %6, %16, %cst_16 {dimension_numbers = #tpu.dot_dimension_numbers<[1], [0], [0], [1], [0, 0, 1, 1], [], []>} : vector<1x8xf32>, vector<8x1xf32>, vector<1x1xf32> -> vector<1x1xf32>
    %18 = arith.mulf %3, %5 : vector<8x8xf32>
    %cst_17 = arith.constant dense<0.000000e+00> : vector<8x1xf32>
    %19 = tpu.matmul %18, %7, %cst_17 {dimension_numbers = #tpu.dot_dimension_numbers<[1], [0], [0], [1], [0, 0, 1, 1], [], []>} : vector<8x8xf32>, vector<8x1xf32>, vector<8x1xf32> -> vector<8x1xf32>
    %cst_18 = arith.constant dense<0.000000e+00> : vector<1x1xf32>
    %20 = tpu.matmul %6, %19, %cst_18 {dimension_numbers = #tpu.dot_dimension_numbers<[1], [0], [0], [1], [0, 0, 1, 1], [], []>} : vector<1x8xf32>, vector<8x1xf32>, vector<1x1xf32> -> vector<1x1xf32>
    %21 = arith.mulf %9, %9 : vector<1x1xf32>
    %22 = arith.mulf %11, %11 : vector<1x1xf32>
    %23 = arith.mulf %9, %11 : vector<1x1xf32>
    %24 = arith.subf %14, %21 : vector<1x1xf32>
    %25 = arith.subf %17, %22 : vector<1x1xf32>
    %26 = arith.subf %20, %23 : vector<1x1xf32>
    %cst_19 = arith.constant 2.000000e+00 : f32
    %27 = vector.broadcast %cst_19 : f32 to vector<1x1xf32>
    %28 = arith.mulf %27, %26 : vector<1x1xf32>
    %29 = vector.broadcast %1 : f32 to vector<1x1xf32>
    %30 = arith.addf %28, %29 : vector<1x1xf32>
    %31 = arith.addf %24, %25 : vector<1x1xf32>
    %32 = vector.broadcast %1 : f32 to vector<1x1xf32>
    %33 = arith.addf %31, %32 : vector<1x1xf32>
    %34 = tpu.reciprocal %33 : vector<1x1xf32> -> vector<1x1xf32>
    %35 = arith.mulf %30, %34 : vector<1x1xf32>
    %36 = arith.addf %21, %22 : vector<1x1xf32>
    %37 = vector.broadcast %0 : f32 to vector<1x1xf32>
    %38 = arith.addf %36, %37 : vector<1x1xf32>
    %39 = tpu.reciprocal %38 : vector<1x1xf32> -> vector<1x1xf32>
    %cst_20 = arith.constant 2.000000e+00 : f32
    %40 = vector.broadcast %cst_20 : f32 to vector<1x1xf32>
    %41 = arith.mulf %40, %23 : vector<1x1xf32>
    %42 = vector.broadcast %0 : f32 to vector<1x1xf32>
    %43 = arith.addf %41, %42 : vector<1x1xf32>
    %44 = arith.mulf %43, %39 : vector<1x1xf32>
    %45 = arith.mulf %44, %35 : vector<1x1xf32>
    %46 = vector.shape_cast %45 : vector<1x1xf32> to vector<1x1x1xf32>
    %cst_21 = arith.constant dense<0.000000e+00> : vector<1xf32>
    %47 = vector.multi_reduction <add>, %46, %cst_21 [1, 2] : vector<1x1x1xf32> to vector<1xf32>
    %48 = vector.shape_cast %47 : vector<1xf32> to vector<1x1x1xf32>
    %49 = vector.extract %48[0, 0, 0] : f32 from vector<1x1x1xf32>
    %50 = vector.broadcast %49 : f32 to vector<1x1x1xf32>
    %c0_22 = arith.constant 0 : index
    %c0_23 = arith.constant 0 : index
    %c0_24 = arith.constant 0 : index
    %51 = vector.load %arg8[%c0_22, %c0_23, %c0_24] : memref<1x1x1xf32, #tpu.memory_space<vmem>>, vector<1x1x1xf32>
    tpu.vector_store %arg8[%c0_22, %c0_23, %c0_24], %50 {strides = array<i32>} : memref<1x1x1xf32, #tpu.memory_space<vmem>>, vector<1x1x1xf32>,
    %52 = vector.shape_cast %35 : vector<1x1xf32> to vector<1x1x1xf32>
    %cst_25 = arith.constant dense<0.000000e+00> : vector<1xf32>
    %53 = vector.multi_reduction <add>, %52, %cst_25 [1, 2] : vector<1x1x1xf32> to vector<1xf32>
    %54 = vector.shape_cast %53 : vector<1xf32> to vector<1x1x1xf32>
    %55 = vector.extract %54[0, 0, 0] : f32 from vector<1x1x1xf32>
    %56 = vector.broadcast %55 : f32 to vector<1x1x1xf32>
    %c0_26 = arith.constant 0 : index
    %c0_27 = arith.constant 0 : index
    %c0_28 = arith.constant 0 : index
    %57 = vector.load %arg9[%c0_26, %c0_27, %c0_28] : memref<1x1x1xf32, #tpu.memory_space<vmem>>, vector<1x1x1xf32>
    tpu.vector_store %arg9[%c0_26, %c0_27, %c0_28], %56 {strides = array<i32>} : memref<1x1x1xf32, #tpu.memory_space<vmem>>, vector<1x1x1xf32>,
    %c0_29 = arith.constant 0 : index
    %c0_30 = arith.constant 0 : index
    %58 = vector.load %arg6[%c0_29, %c0_30] : memref<4x8xf32, #tpu.memory_space<vmem>>, vector<4x8xf32>
    %c0_31 = arith.constant 0 : index
    %c0_32 = arith.constant 0 : index
    %59 = vector.load %arg7[%c0_31, %c0_32] : memref<8x4xf32, #tpu.memory_space<vmem>>, vector<8x4xf32>
    %cst_33 = arith.constant dense<0.000000e+00> : vector<4x8xf32>
    %60 = tpu.matmul %58, %3, %cst_33 {dimension_numbers = #tpu.dot_dimension_numbers<[1], [0], [0], [1], [0, 0, 1, 1], [], []>} : vector<4x8xf32>, vector<8x8xf32>, vector<4x8xf32> -> vector<4x8xf32>
    %cst_34 = arith.constant dense<0.000000e+00> : vector<4x4xf32>
    %61 = tpu.matmul %60, %59, %cst_34 {dimension_numbers = #tpu.dot_dimension_numbers<[1], [0], [0], [1], [0, 0, 1, 1], [], []>} : vector<4x8xf32>, vector<8x4xf32>, vector<4x4xf32> -> vector<4x4xf32>
    %cst_35 = arith.constant dense<0.000000e+00> : vector<4x8xf32>
    %62 = tpu.matmul %58, %5, %cst_35 {dimension_numbers = #tpu.dot_dimension_numbers<[1], [0], [0], [1], [0, 0, 1, 1], [], []>} : vector<4x8xf32>, vector<8x8xf32>, vector<4x8xf32> -> vector<4x8xf32>
    %cst_36 = arith.constant dense<0.000000e+00> : vector<4x4xf32>
    %63 = tpu.matmul %62, %59, %cst_36 {dimension_numbers = #tpu.dot_dimension_numbers<[1], [0], [0], [1], [0, 0, 1, 1], [], []>} : vector<4x8xf32>, vector<8x4xf32>, vector<4x4xf32> -> vector<4x4xf32>
    %c0_37 = arith.constant 0 : index
    %c0_38 = arith.constant 0 : index
    %c0_39 = arith.constant 0 : index
    %64 = vector.load %arg10[%c0_37, %c0_38, %c0_39] : memref<1x4x4xf32, #tpu.memory_space<vmem>>, vector<1x4x4xf32>
    %65 = vector.shape_cast %64 : vector<1x4x4xf32> to vector<4x4xf32>
    %66 = vector.shape_cast %61 : vector<4x4xf32> to vector<1x4x4xf32>
    tpu.vector_store %arg10[%c0_37, %c0_38, %c0_39], %66 {strides = array<i32>} : memref<1x4x4xf32, #tpu.memory_space<vmem>>, vector<1x4x4xf32>,
    %c0_40 = arith.constant 0 : index
    %c0_41 = arith.constant 0 : index
    %c0_42 = arith.constant 0 : index
    %67 = vector.load %arg11[%c0_40, %c0_41, %c0_42] : memref<1x4x4xf32, #tpu.memory_space<vmem>>, vector<1x4x4xf32>
    %68 = vector.shape_cast %67 : vector<1x4x4xf32> to vector<4x4xf32>
    %69 = vector.shape_cast %63 : vector<4x4xf32> to vector<1x4x4xf32>
    tpu.vector_store %arg11[%c0_40, %c0_41, %c0_42], %69 {strides = array<i32>} : memref<1x4x4xf32, #tpu.memory_space<vmem>>, vector<1x4x4xf32>,
    %70 = vector.shape_cast %61 : vector<4x4xf32> to vector<1x4x4xf32>
    %cst_43 = arith.constant dense<0xFF800000> : vector<1xf32>
    %71 = vector.multi_reduction <maximumf>, %70, %cst_43 [1, 2] : vector<1x4x4xf32> to vector<1xf32>
    %72 = vector.shape_cast %71 : vector<1xf32> to vector<1x1x1xf32>
    %73 = vector.extract %72[0, 0, 0] : f32 from vector<1x1x1xf32>
    %74 = vector.broadcast %73 : f32 to vector<1x1x1xf32>
    %c0_44 = arith.constant 0 : index
    %c0_45 = arith.constant 0 : index
    %c0_46 = arith.constant 0 : index
    %75 = vector.load %arg12[%c0_44, %c0_45, %c0_46] : memref<1x1x1xf32, #tpu.memory_space<vmem>>, vector<1x1x1xf32>
    tpu.vector_store %arg12[%c0_44, %c0_45, %c0_46], %74 {strides = array<i32>} : memref<1x1x1xf32, #tpu.memory_space<vmem>>, vector<1x1x1xf32>,
    %76 = vector.shape_cast %61 : vector<4x4xf32> to vector<1x4x4xf32>
    %cst_47 = arith.constant dense<0x7F800000> : vector<1xf32>
    %77 = vector.multi_reduction <minimumf>, %76, %cst_47 [1, 2] : vector<1x4x4xf32> to vector<1xf32>
    %78 = vector.shape_cast %77 : vector<1xf32> to vector<1x1x1xf32>
    %79 = vector.extract %78[0, 0, 0] : f32 from vector<1x1x1xf32>
    %80 = vector.broadcast %79 : f32 to vector<1x1x1xf32>
    %c0_48 = arith.constant 0 : index
    %c0_49 = arith.constant 0 : index
    %c0_50 = arith.constant 0 : index
    %81 = vector.load %arg13[%c0_48, %c0_49, %c0_50] : memref<1x1x1xf32, #tpu.memory_space<vmem>>, vector<1x1x1xf32>
    tpu.vector_store %arg13[%c0_48, %c0_49, %c0_50], %80 {strides = array<i32>} : memref<1x1x1xf32, #tpu.memory_space<vmem>>, vector<1x1x1xf32>,
    return
  }
  func.func @transform_0(%arg0: i32) -> i32 {
    %c0_i32 = arith.constant 0 : i32
    %c0_i32_0 = arith.constant 0 : i32
    return %c0_i32 : i32
  }
  func.func @transform_1(%arg0: i32) -> (i32, i32, i32) {
    %c0_i32 = arith.constant 0 : i32
    %c0_i32_0 = arith.constant 0 : i32
    %c0_i32_1 = arith.constant 0 : i32
    return %arg0, %c0_i32, %c0_i32_0 : i32, i32, i32
  }
  func.func @transform_2(%arg0: i32) -> (i32, i32, i32) {
    %c0_i32 = arith.constant 0 : i32
    %c0_i32_0 = arith.constant 0 : i32
    %c0_i32_1 = arith.constant 0 : i32
    return %arg0, %c0_i32, %c0_i32_0 : i32, i32, i32
  }
  func.func @transform_3(%arg0: i32) -> (i32, i32) {
    %c0_i32 = arith.constant 0 : i32
    %c0_i32_0 = arith.constant 0 : i32
    %c0_i32_1 = arith.constant 0 : i32
    return %c0_i32, %c0_i32_0 : i32, i32
  }
  func.func @transform_4(%arg0: i32) -> (i32, i32) {
    %c0_i32 = arith.constant 0 : i32
    %c0_i32_0 = arith.constant 0 : i32
    %c0_i32_1 = arith.constant 0 : i32
    return %c0_i32, %c0_i32_0 : i32, i32
  }
  func.func @transform_5(%arg0: i32) -> (i32, i32) {
    %c0_i32 = arith.constant 0 : i32
    %c0_i32_0 = arith.constant 0 : i32
    %c0_i32_1 = arith.constant 0 : i32
    return %c0_i32, %c0_i32_0 : i32, i32
  }
  func.func @transform_6(%arg0: i32) -> (i32, i32) {
    %c0_i32 = arith.constant 0 : i32
    %c0_i32_0 = arith.constant 0 : i32
    %c0_i32_1 = arith.constant 0 : i32
    return %c0_i32, %c0_i32_0 : i32, i32
  }
  func.func @transform_7(%arg0: i32) -> (i32, i32, i32) {
    %c0_i32 = arith.constant 0 : i32
    %c0_i32_0 = arith.constant 0 : i32
    %c0_i32_1 = arith.constant 0 : i32
    return %arg0, %c0_i32, %c0_i32_0 : i32, i32, i32
  }
  func.func @transform_8(%arg0: i32) -> (i32, i32, i32) {
    %c0_i32 = arith.constant 0 : i32
    %c0_i32_0 = arith.constant 0 : i32
    %c0_i32_1 = arith.constant 0 : i32
    return %arg0, %c0_i32, %c0_i32_0 : i32, i32, i32
  }
  func.func @transform_9(%arg0: i32) -> (i32, i32, i32) {
    %c0_i32 = arith.constant 0 : i32
    %c0_i32_0 = arith.constant 0 : i32
    %c0_i32_1 = arith.constant 0 : i32
    return %arg0, %c0_i32, %c0_i32_0 : i32, i32, i32
  }
  func.func @transform_10(%arg0: i32) -> (i32, i32, i32) {
    %c0_i32 = arith.constant 0 : i32
    %c0_i32_0 = arith.constant 0 : i32
    %c0_i32_1 = arith.constant 0 : i32
    return %arg0, %c0_i32, %c0_i32_0 : i32, i32, i32
  }
  func.func @transform_11(%arg0: i32) -> (i32, i32, i32) {
    %c0_i32 = arith.constant 0 : i32
    %c0_i32_0 = arith.constant 0 : i32
    %c0_i32_1 = arith.constant 0 : i32
    return %arg0, %c0_i32, %c0_i32_0 : i32, i32, i32
  }
  func.func @transform_12(%arg0: i32) -> (i32, i32, i32) {
    %c0_i32 = arith.constant 0 : i32
    %c0_i32_0 = arith.constant 0 : i32
    %c0_i32_1 = arith.constant 0 : i32
    return %arg0, %c0_i32, %c0_i32_0 : i32, i32, i32
  }
}

module attributes {stable_mosaic.version = 11 : i64} {
  func.func @_ssim_pool_kernel(%arg0: i32, %arg1: memref<2xf32, #tpu.memory_space<smem>>, %arg2: memref<1x16x16xf32, #tpu.memory_space<vmem>>, %arg3: memref<1x16x16xf32, #tpu.memory_space<vmem>>, %arg4: memref<6x16xf32, #tpu.memory_space<vmem>>, %arg5: memref<16x6xf32, #tpu.memory_space<vmem>>, %arg6: memref<8x16xf32, #tpu.memory_space<vmem>>, %arg7: memref<16x8xf32, #tpu.memory_space<vmem>>, %arg8: memref<1x1x1xf32, #tpu.memory_space<vmem>>, %arg9: memref<1x1x1xf32, #tpu.memory_space<vmem>>, %arg10: memref<1x8x8xf32, #tpu.memory_space<vmem>>, %arg11: memref<1x8x8xf32, #tpu.memory_space<vmem>>, %arg12: memref<1x1x1xf32, #tpu.memory_space<vmem>>, %arg13: memref<1x1x1xf32, #tpu.memory_space<vmem>>) attributes {dimension_semantics = [#tpu.dimension_semantics<parallel>], iteration_bounds = array<i64: 6>, scalar_prefetch = 0 : i64, scratch_operands = 0 : i64, tpu.core_type = #tpu.core_type<tc>, window_params = [{transform_indices = @transform_0, window_bounds = array<i64: 2>}, {transform_indices = @transform_1, window_bounds = array<i64: 1, 16, 16>}, {transform_indices = @transform_2, window_bounds = array<i64: 1, 16, 16>}, {pipeline_mode = #tpu.pipeline_mode<synchronous>, transform_indices = @transform_3, window_bounds = array<i64: 6, 16>}, {pipeline_mode = #tpu.pipeline_mode<synchronous>, transform_indices = @transform_4, window_bounds = array<i64: 16, 6>}, {pipeline_mode = #tpu.pipeline_mode<synchronous>, transform_indices = @transform_5, window_bounds = array<i64: 8, 16>}, {pipeline_mode = #tpu.pipeline_mode<synchronous>, transform_indices = @transform_6, window_bounds = array<i64: 16, 8>}, {transform_indices = @transform_7, window_bounds = array<i64: 1, 1, 1>}, {transform_indices = @transform_8, window_bounds = array<i64: 1, 1, 1>}, {transform_indices = @transform_9, window_bounds = array<i64: 1, 8, 8>}, {transform_indices = @transform_10, window_bounds = array<i64: 1, 8, 8>}, {transform_indices = @transform_11, window_bounds = array<i64: 1, 1, 1>}, {transform_indices = @transform_12, window_bounds = array<i64: 1, 1, 1>}]} {
    %c0 = arith.constant 0 : index
    %0 = memref.load %arg1[%c0] : memref<2xf32, #tpu.memory_space<smem>>
    %c1 = arith.constant 1 : index
    %1 = memref.load %arg1[%c1] : memref<2xf32, #tpu.memory_space<smem>>
    %c0_0 = arith.constant 0 : index
    %c0_1 = arith.constant 0 : index
    %c0_2 = arith.constant 0 : index
    %2 = vector.load %arg2[%c0_0, %c0_1, %c0_2] : memref<1x16x16xf32, #tpu.memory_space<vmem>>, vector<1x16x16xf32>
    %3 = vector.shape_cast %2 : vector<1x16x16xf32> to vector<16x16xf32>
    %c0_3 = arith.constant 0 : index
    %c0_4 = arith.constant 0 : index
    %c0_5 = arith.constant 0 : index
    %4 = vector.load %arg3[%c0_3, %c0_4, %c0_5] : memref<1x16x16xf32, #tpu.memory_space<vmem>>, vector<1x16x16xf32>
    %5 = vector.shape_cast %4 : vector<1x16x16xf32> to vector<16x16xf32>
    %c0_6 = arith.constant 0 : index
    %c0_7 = arith.constant 0 : index
    %6 = vector.load %arg4[%c0_6, %c0_7] : memref<6x16xf32, #tpu.memory_space<vmem>>, vector<6x16xf32>
    %c0_8 = arith.constant 0 : index
    %c0_9 = arith.constant 0 : index
    %7 = vector.load %arg5[%c0_8, %c0_9] : memref<16x6xf32, #tpu.memory_space<vmem>>, vector<16x6xf32>
    %cst = arith.constant dense<0.000000e+00> : vector<16x6xf32>
    %8 = tpu.matmul %3, %7, %cst {dimension_numbers = #tpu.dot_dimension_numbers<[1], [0], [0], [1], [0, 0, 1, 1], [], []>} : vector<16x16xf32>, vector<16x6xf32>, vector<16x6xf32> -> vector<16x6xf32>
    %cst_10 = arith.constant dense<0.000000e+00> : vector<6x6xf32>
    %9 = tpu.matmul %6, %8, %cst_10 {dimension_numbers = #tpu.dot_dimension_numbers<[1], [0], [0], [1], [0, 0, 1, 1], [], []>} : vector<6x16xf32>, vector<16x6xf32>, vector<6x6xf32> -> vector<6x6xf32>
    %cst_11 = arith.constant dense<0.000000e+00> : vector<16x6xf32>
    %10 = tpu.matmul %5, %7, %cst_11 {dimension_numbers = #tpu.dot_dimension_numbers<[1], [0], [0], [1], [0, 0, 1, 1], [], []>} : vector<16x16xf32>, vector<16x6xf32>, vector<16x6xf32> -> vector<16x6xf32>
    %cst_12 = arith.constant dense<0.000000e+00> : vector<6x6xf32>
    %11 = tpu.matmul %6, %10, %cst_12 {dimension_numbers = #tpu.dot_dimension_numbers<[1], [0], [0], [1], [0, 0, 1, 1], [], []>} : vector<6x16xf32>, vector<16x6xf32>, vector<6x6xf32> -> vector<6x6xf32>
    %12 = arith.mulf %3, %3 : vector<16x16xf32>
    %cst_13 = arith.constant dense<0.000000e+00> : vector<16x6xf32>
    %13 = tpu.matmul %12, %7, %cst_13 {dimension_numbers = #tpu.dot_dimension_numbers<[1], [0], [0], [1], [0, 0, 1, 1], [], []>} : vector<16x16xf32>, vector<16x6xf32>, vector<16x6xf32> -> vector<16x6xf32>
    %cst_14 = arith.constant dense<0.000000e+00> : vector<6x6xf32>
    %14 = tpu.matmul %6, %13, %cst_14 {dimension_numbers = #tpu.dot_dimension_numbers<[1], [0], [0], [1], [0, 0, 1, 1], [], []>} : vector<6x16xf32>, vector<16x6xf32>, vector<6x6xf32> -> vector<6x6xf32>
    %15 = arith.mulf %5, %5 : vector<16x16xf32>
    %cst_15 = arith.constant dense<0.000000e+00> : vector<16x6xf32>
    %16 = tpu.matmul %15, %7, %cst_15 {dimension_numbers = #tpu.dot_dimension_numbers<[1], [0], [0], [1], [0, 0, 1, 1], [], []>} : vector<16x16xf32>, vector<16x6xf32>, vector<16x6xf32> -> vector<16x6xf32>
    %cst_16 = arith.constant dense<0.000000e+00> : vector<6x6xf32>
    %17 = tpu.matmul %6, %16, %cst_16 {dimension_numbers = #tpu.dot_dimension_numbers<[1], [0], [0], [1], [0, 0, 1, 1], [], []>} : vector<6x16xf32>, vector<16x6xf32>, vector<6x6xf32> -> vector<6x6xf32>
    %18 = arith.mulf %3, %5 : vector<16x16xf32>
    %cst_17 = arith.constant dense<0.000000e+00> : vector<16x6xf32>
    %19 = tpu.matmul %18, %7, %cst_17 {dimension_numbers = #tpu.dot_dimension_numbers<[1], [0], [0], [1], [0, 0, 1, 1], [], []>} : vector<16x16xf32>, vector<16x6xf32>, vector<16x6xf32> -> vector<16x6xf32>
    %cst_18 = arith.constant dense<0.000000e+00> : vector<6x6xf32>
    %20 = tpu.matmul %6, %19, %cst_18 {dimension_numbers = #tpu.dot_dimension_numbers<[1], [0], [0], [1], [0, 0, 1, 1], [], []>} : vector<6x16xf32>, vector<16x6xf32>, vector<6x6xf32> -> vector<6x6xf32>
    %21 = arith.mulf %9, %9 : vector<6x6xf32>
    %22 = arith.mulf %11, %11 : vector<6x6xf32>
    %23 = arith.mulf %9, %11 : vector<6x6xf32>
    %24 = arith.subf %14, %21 : vector<6x6xf32>
    %25 = arith.subf %17, %22 : vector<6x6xf32>
    %26 = arith.subf %20, %23 : vector<6x6xf32>
    %cst_19 = arith.constant 2.000000e+00 : f32
    %27 = vector.broadcast %cst_19 : f32 to vector<6x6xf32>
    %28 = arith.mulf %27, %26 : vector<6x6xf32>
    %29 = vector.broadcast %1 : f32 to vector<6x6xf32>
    %30 = arith.addf %28, %29 : vector<6x6xf32>
    %31 = arith.addf %24, %25 : vector<6x6xf32>
    %32 = vector.broadcast %1 : f32 to vector<6x6xf32>
    %33 = arith.addf %31, %32 : vector<6x6xf32>
    %34 = tpu.reciprocal %33 : vector<6x6xf32> -> vector<6x6xf32>
    %35 = arith.mulf %30, %34 : vector<6x6xf32>
    %36 = arith.addf %21, %22 : vector<6x6xf32>
    %37 = vector.broadcast %0 : f32 to vector<6x6xf32>
    %38 = arith.addf %36, %37 : vector<6x6xf32>
    %39 = tpu.reciprocal %38 : vector<6x6xf32> -> vector<6x6xf32>
    %cst_20 = arith.constant 2.000000e+00 : f32
    %40 = vector.broadcast %cst_20 : f32 to vector<6x6xf32>
    %41 = arith.mulf %40, %23 : vector<6x6xf32>
    %42 = vector.broadcast %0 : f32 to vector<6x6xf32>
    %43 = arith.addf %41, %42 : vector<6x6xf32>
    %44 = arith.mulf %43, %39 : vector<6x6xf32>
    %45 = arith.mulf %44, %35 : vector<6x6xf32>
    %46 = vector.shape_cast %45 : vector<6x6xf32> to vector<1x6x6xf32>
    %cst_21 = arith.constant dense<0.000000e+00> : vector<1xf32>
    %47 = vector.multi_reduction <add>, %46, %cst_21 [1, 2] : vector<1x6x6xf32> to vector<1xf32>
    %48 = vector.shape_cast %47 : vector<1xf32> to vector<1x1x1xf32>
    %49 = vector.extract %48[0, 0, 0] : f32 from vector<1x1x1xf32>
    %50 = vector.broadcast %49 : f32 to vector<1x1x1xf32>
    %c0_22 = arith.constant 0 : index
    %c0_23 = arith.constant 0 : index
    %c0_24 = arith.constant 0 : index
    %51 = vector.load %arg8[%c0_22, %c0_23, %c0_24] : memref<1x1x1xf32, #tpu.memory_space<vmem>>, vector<1x1x1xf32>
    tpu.vector_store %arg8[%c0_22, %c0_23, %c0_24], %50 {strides = array<i32>} : memref<1x1x1xf32, #tpu.memory_space<vmem>>, vector<1x1x1xf32>,
    %52 = vector.shape_cast %35 : vector<6x6xf32> to vector<1x6x6xf32>
    %cst_25 = arith.constant dense<0.000000e+00> : vector<1xf32>
    %53 = vector.multi_reduction <add>, %52, %cst_25 [1, 2] : vector<1x6x6xf32> to vector<1xf32>
    %54 = vector.shape_cast %53 : vector<1xf32> to vector<1x1x1xf32>
    %55 = vector.extract %54[0, 0, 0] : f32 from vector<1x1x1xf32>
    %56 = vector.broadcast %55 : f32 to vector<1x1x1xf32>
    %c0_26 = arith.constant 0 : index
    %c0_27 = arith.constant 0 : index
    %c0_28 = arith.constant 0 : index
    %57 = vector.load %arg9[%c0_26, %c0_27, %c0_28] : memref<1x1x1xf32, #tpu.memory_space<vmem>>, vector<1x1x1xf32>
    tpu.vector_store %arg9[%c0_26, %c0_27, %c0_28], %56 {strides = array<i32>} : memref<1x1x1xf32, #tpu.memory_space<vmem>>, vector<1x1x1xf32>,
    %c0_29 = arith.constant 0 : index
    %c0_30 = arith.constant 0 : index
    %58 = vector.load %arg6[%c0_29, %c0_30] : memref<8x16xf32, #tpu.memory_space<vmem>>, vector<8x16xf32>
    %c0_31 = arith.constant 0 : index
    %c0_32 = arith.constant 0 : index
    %59 = vector.load %arg7[%c0_31, %c0_32] : memref<16x8xf32, #tpu.memory_space<vmem>>, vector<16x8xf32>
    %cst_33 = arith.constant dense<0.000000e+00> : vector<8x16xf32>
    %60 = tpu.matmul %58, %3, %cst_33 {dimension_numbers = #tpu.dot_dimension_numbers<[1], [0], [0], [1], [0, 0, 1, 1], [], []>} : vector<8x16xf32>, vector<16x16xf32>, vector<8x16xf32> -> vector<8x16xf32>
    %cst_34 = arith.constant dense<0.000000e+00> : vector<8x8xf32>
    %61 = tpu.matmul %60, %59, %cst_34 {dimension_numbers = #tpu.dot_dimension_numbers<[1], [0], [0], [1], [0, 0, 1, 1], [], []>} : vector<8x16xf32>, vector<16x8xf32>, vector<8x8xf32> -> vector<8x8xf32>
    %cst_35 = arith.constant dense<0.000000e+00> : vector<8x16xf32>
    %62 = tpu.matmul %58, %5, %cst_35 {dimension_numbers = #tpu.dot_dimension_numbers<[1], [0], [0], [1], [0, 0, 1, 1], [], []>} : vector<8x16xf32>, vector<16x16xf32>, vector<8x16xf32> -> vector<8x16xf32>
    %cst_36 = arith.constant dense<0.000000e+00> : vector<8x8xf32>
    %63 = tpu.matmul %62, %59, %cst_36 {dimension_numbers = #tpu.dot_dimension_numbers<[1], [0], [0], [1], [0, 0, 1, 1], [], []>} : vector<8x16xf32>, vector<16x8xf32>, vector<8x8xf32> -> vector<8x8xf32>
    %c0_37 = arith.constant 0 : index
    %c0_38 = arith.constant 0 : index
    %c0_39 = arith.constant 0 : index
    %64 = vector.load %arg10[%c0_37, %c0_38, %c0_39] : memref<1x8x8xf32, #tpu.memory_space<vmem>>, vector<1x8x8xf32>
    %65 = vector.shape_cast %64 : vector<1x8x8xf32> to vector<8x8xf32>
    %66 = vector.shape_cast %61 : vector<8x8xf32> to vector<1x8x8xf32>
    tpu.vector_store %arg10[%c0_37, %c0_38, %c0_39], %66 {strides = array<i32>} : memref<1x8x8xf32, #tpu.memory_space<vmem>>, vector<1x8x8xf32>,
    %c0_40 = arith.constant 0 : index
    %c0_41 = arith.constant 0 : index
    %c0_42 = arith.constant 0 : index
    %67 = vector.load %arg11[%c0_40, %c0_41, %c0_42] : memref<1x8x8xf32, #tpu.memory_space<vmem>>, vector<1x8x8xf32>
    %68 = vector.shape_cast %67 : vector<1x8x8xf32> to vector<8x8xf32>
    %69 = vector.shape_cast %63 : vector<8x8xf32> to vector<1x8x8xf32>
    tpu.vector_store %arg11[%c0_40, %c0_41, %c0_42], %69 {strides = array<i32>} : memref<1x8x8xf32, #tpu.memory_space<vmem>>, vector<1x8x8xf32>,
    %70 = vector.shape_cast %61 : vector<8x8xf32> to vector<1x8x8xf32>
    %cst_43 = arith.constant dense<0xFF800000> : vector<1xf32>
    %71 = vector.multi_reduction <maximumf>, %70, %cst_43 [1, 2] : vector<1x8x8xf32> to vector<1xf32>
    %72 = vector.shape_cast %71 : vector<1xf32> to vector<1x1x1xf32>
    %73 = vector.extract %72[0, 0, 0] : f32 from vector<1x1x1xf32>
    %74 = vector.broadcast %73 : f32 to vector<1x1x1xf32>
    %c0_44 = arith.constant 0 : index
    %c0_45 = arith.constant 0 : index
    %c0_46 = arith.constant 0 : index
    %75 = vector.load %arg12[%c0_44, %c0_45, %c0_46] : memref<1x1x1xf32, #tpu.memory_space<vmem>>, vector<1x1x1xf32>
    tpu.vector_store %arg12[%c0_44, %c0_45, %c0_46], %74 {strides = array<i32>} : memref<1x1x1xf32, #tpu.memory_space<vmem>>, vector<1x1x1xf32>,
    %76 = vector.shape_cast %61 : vector<8x8xf32> to vector<1x8x8xf32>
    %cst_47 = arith.constant dense<0x7F800000> : vector<1xf32>
    %77 = vector.multi_reduction <minimumf>, %76, %cst_47 [1, 2] : vector<1x8x8xf32> to vector<1xf32>
    %78 = vector.shape_cast %77 : vector<1xf32> to vector<1x1x1xf32>
    %79 = vector.extract %78[0, 0, 0] : f32 from vector<1x1x1xf32>
    %80 = vector.broadcast %79 : f32 to vector<1x1x1xf32>
    %c0_48 = arith.constant 0 : index
    %c0_49 = arith.constant 0 : index
    %c0_50 = arith.constant 0 : index
    %81 = vector.load %arg13[%c0_48, %c0_49, %c0_50] : memref<1x1x1xf32, #tpu.memory_space<vmem>>, vector<1x1x1xf32>
    tpu.vector_store %arg13[%c0_48, %c0_49, %c0_50], %80 {strides = array<i32>} : memref<1x1x1xf32, #tpu.memory_space<vmem>>, vector<1x1x1xf32>,
    return
  }
  func.func @transform_0(%arg0: i32) -> i32 {
    %c0_i32 = arith.constant 0 : i32
    %c0_i32_0 = arith.constant 0 : i32
    return %c0_i32 : i32
  }
  func.func @transform_1(%arg0: i32) -> (i32, i32, i32) {
    %c0_i32 = arith.constant 0 : i32
    %c0_i32_0 = arith.constant 0 : i32
    %c0_i32_1 = arith.constant 0 : i32
    return %arg0, %c0_i32, %c0_i32_0 : i32, i32, i32
  }
  func.func @transform_2(%arg0: i32) -> (i32, i32, i32) {
    %c0_i32 = arith.constant 0 : i32
    %c0_i32_0 = arith.constant 0 : i32
    %c0_i32_1 = arith.constant 0 : i32
    return %arg0, %c0_i32, %c0_i32_0 : i32, i32, i32
  }
  func.func @transform_3(%arg0: i32) -> (i32, i32) {
    %c0_i32 = arith.constant 0 : i32
    %c0_i32_0 = arith.constant 0 : i32
    %c0_i32_1 = arith.constant 0 : i32
    return %c0_i32, %c0_i32_0 : i32, i32
  }
  func.func @transform_4(%arg0: i32) -> (i32, i32) {
    %c0_i32 = arith.constant 0 : i32
    %c0_i32_0 = arith.constant 0 : i32
    %c0_i32_1 = arith.constant 0 : i32
    return %c0_i32, %c0_i32_0 : i32, i32
  }
  func.func @transform_5(%arg0: i32) -> (i32, i32) {
    %c0_i32 = arith.constant 0 : i32
    %c0_i32_0 = arith.constant 0 : i32
    %c0_i32_1 = arith.constant 0 : i32
    return %c0_i32, %c0_i32_0 : i32, i32
  }
  func.func @transform_6(%arg0: i32) -> (i32, i32) {
    %c0_i32 = arith.constant 0 : i32
    %c0_i32_0 = arith.constant 0 : i32
    %c0_i32_1 = arith.constant 0 : i32
    return %c0_i32, %c0_i32_0 : i32, i32
  }
  func.func @transform_7(%arg0: i32) -> (i32, i32, i32) {
    %c0_i32 = arith.constant 0 : i32
    %c0_i32_0 = arith.constant 0 : i32
    %c0_i32_1 = arith.constant 0 : i32
    return %arg0, %c0_i32, %c0_i32_0 : i32, i32, i32
  }
  func.func @transform_8(%arg0: i32) -> (i32, i32, i32) {
    %c0_i32 = arith.constant 0 : i32
    %c0_i32_0 = arith.constant 0 : i32
    %c0_i32_1 = arith.constant 0 : i32
    return %arg0, %c0_i32, %c0_i32_0 : i32, i32, i32
  }
  func.func @transform_9(%arg0: i32) -> (i32, i32, i32) {
    %c0_i32 = arith.constant 0 : i32
    %c0_i32_0 = arith.constant 0 : i32
    %c0_i32_1 = arith.constant 0 : i32
    return %arg0, %c0_i32, %c0_i32_0 : i32, i32, i32
  }
  func.func @transform_10(%arg0: i32) -> (i32, i32, i32) {
    %c0_i32 = arith.constant 0 : i32
    %c0_i32_0 = arith.constant 0 : i32
    %c0_i32_1 = arith.constant 0 : i32
    return %arg0, %c0_i32, %c0_i32_0 : i32, i32, i32
  }
  func.func @transform_11(%arg0: i32) -> (i32, i32, i32) {
    %c0_i32 = arith.constant 0 : i32
    %c0_i32_0 = arith.constant 0 : i32
    %c0_i32_1 = arith.constant 0 : i32
    return %arg0, %c0_i32, %c0_i32_0 : i32, i32, i32
  }
  func.func @transform_12(%arg0: i32) -> (i32, i32, i32) {
    %c0_i32 = arith.constant 0 : i32
    %c0_i32_0 = arith.constant 0 : i32
    %c0_i32_1 = arith.constant 0 : i32
    return %arg0, %c0_i32, %c0_i32_0 : i32, i32, i32
  }
}

module attributes {stable_mosaic.version = 11 : i64} {
  func.func @_ssim_pool_kernel(%arg0: i32, %arg1: memref<2xf32, #tpu.memory_space<smem>>, %arg2: memref<1x4x4xf32, #tpu.memory_space<vmem>>, %arg3: memref<1x4x4xf32, #tpu.memory_space<vmem>>, %arg4: memref<1x4xf32, #tpu.memory_space<vmem>>, %arg5: memref<4x1xf32, #tpu.memory_space<vmem>>, %arg6: memref<2x4xf32, #tpu.memory_space<vmem>>, %arg7: memref<4x2xf32, #tpu.memory_space<vmem>>, %arg8: memref<1x1x1xf32, #tpu.memory_space<vmem>>, %arg9: memref<1x1x1xf32, #tpu.memory_space<vmem>>, %arg10: memref<1x2x2xf32, #tpu.memory_space<vmem>>, %arg11: memref<1x2x2xf32, #tpu.memory_space<vmem>>, %arg12: memref<1x1x1xf32, #tpu.memory_space<vmem>>, %arg13: memref<1x1x1xf32, #tpu.memory_space<vmem>>) attributes {dimension_semantics = [#tpu.dimension_semantics<parallel>], iteration_bounds = array<i64: 6>, scalar_prefetch = 0 : i64, scratch_operands = 0 : i64, tpu.core_type = #tpu.core_type<tc>, window_params = [{transform_indices = @transform_0, window_bounds = array<i64: 2>}, {transform_indices = @transform_1, window_bounds = array<i64: 1, 4, 4>}, {transform_indices = @transform_2, window_bounds = array<i64: 1, 4, 4>}, {pipeline_mode = #tpu.pipeline_mode<synchronous>, transform_indices = @transform_3, window_bounds = array<i64: 1, 4>}, {pipeline_mode = #tpu.pipeline_mode<synchronous>, transform_indices = @transform_4, window_bounds = array<i64: 4, 1>}, {pipeline_mode = #tpu.pipeline_mode<synchronous>, transform_indices = @transform_5, window_bounds = array<i64: 2, 4>}, {pipeline_mode = #tpu.pipeline_mode<synchronous>, transform_indices = @transform_6, window_bounds = array<i64: 4, 2>}, {transform_indices = @transform_7, window_bounds = array<i64: 1, 1, 1>}, {transform_indices = @transform_8, window_bounds = array<i64: 1, 1, 1>}, {transform_indices = @transform_9, window_bounds = array<i64: 1, 2, 2>}, {transform_indices = @transform_10, window_bounds = array<i64: 1, 2, 2>}, {transform_indices = @transform_11, window_bounds = array<i64: 1, 1, 1>}, {transform_indices = @transform_12, window_bounds = array<i64: 1, 1, 1>}]} {
    %c0 = arith.constant 0 : index
    %0 = memref.load %arg1[%c0] : memref<2xf32, #tpu.memory_space<smem>>
    %c1 = arith.constant 1 : index
    %1 = memref.load %arg1[%c1] : memref<2xf32, #tpu.memory_space<smem>>
    %c0_0 = arith.constant 0 : index
    %c0_1 = arith.constant 0 : index
    %c0_2 = arith.constant 0 : index
    %2 = vector.load %arg2[%c0_0, %c0_1, %c0_2] : memref<1x4x4xf32, #tpu.memory_space<vmem>>, vector<1x4x4xf32>
    %3 = vector.shape_cast %2 : vector<1x4x4xf32> to vector<4x4xf32>
    %c0_3 = arith.constant 0 : index
    %c0_4 = arith.constant 0 : index
    %c0_5 = arith.constant 0 : index
    %4 = vector.load %arg3[%c0_3, %c0_4, %c0_5] : memref<1x4x4xf32, #tpu.memory_space<vmem>>, vector<1x4x4xf32>
    %5 = vector.shape_cast %4 : vector<1x4x4xf32> to vector<4x4xf32>
    %c0_6 = arith.constant 0 : index
    %c0_7 = arith.constant 0 : index
    %6 = vector.load %arg4[%c0_6, %c0_7] : memref<1x4xf32, #tpu.memory_space<vmem>>, vector<1x4xf32>
    %c0_8 = arith.constant 0 : index
    %c0_9 = arith.constant 0 : index
    %7 = vector.load %arg5[%c0_8, %c0_9] : memref<4x1xf32, #tpu.memory_space<vmem>>, vector<4x1xf32>
    %cst = arith.constant dense<0.000000e+00> : vector<4x1xf32>
    %8 = tpu.matmul %3, %7, %cst {dimension_numbers = #tpu.dot_dimension_numbers<[1], [0], [0], [1], [0, 0, 1, 1], [], []>} : vector<4x4xf32>, vector<4x1xf32>, vector<4x1xf32> -> vector<4x1xf32>
    %cst_10 = arith.constant dense<0.000000e+00> : vector<1x1xf32>
    %9 = tpu.matmul %6, %8, %cst_10 {dimension_numbers = #tpu.dot_dimension_numbers<[1], [0], [0], [1], [0, 0, 1, 1], [], []>} : vector<1x4xf32>, vector<4x1xf32>, vector<1x1xf32> -> vector<1x1xf32>
    %cst_11 = arith.constant dense<0.000000e+00> : vector<4x1xf32>
    %10 = tpu.matmul %5, %7, %cst_11 {dimension_numbers = #tpu.dot_dimension_numbers<[1], [0], [0], [1], [0, 0, 1, 1], [], []>} : vector<4x4xf32>, vector<4x1xf32>, vector<4x1xf32> -> vector<4x1xf32>
    %cst_12 = arith.constant dense<0.000000e+00> : vector<1x1xf32>
    %11 = tpu.matmul %6, %10, %cst_12 {dimension_numbers = #tpu.dot_dimension_numbers<[1], [0], [0], [1], [0, 0, 1, 1], [], []>} : vector<1x4xf32>, vector<4x1xf32>, vector<1x1xf32> -> vector<1x1xf32>
    %12 = arith.mulf %3, %3 : vector<4x4xf32>
    %cst_13 = arith.constant dense<0.000000e+00> : vector<4x1xf32>
    %13 = tpu.matmul %12, %7, %cst_13 {dimension_numbers = #tpu.dot_dimension_numbers<[1], [0], [0], [1], [0, 0, 1, 1], [], []>} : vector<4x4xf32>, vector<4x1xf32>, vector<4x1xf32> -> vector<4x1xf32>
    %cst_14 = arith.constant dense<0.000000e+00> : vector<1x1xf32>
    %14 = tpu.matmul %6, %13, %cst_14 {dimension_numbers = #tpu.dot_dimension_numbers<[1], [0], [0], [1], [0, 0, 1, 1], [], []>} : vector<1x4xf32>, vector<4x1xf32>, vector<1x1xf32> -> vector<1x1xf32>
    %15 = arith.mulf %5, %5 : vector<4x4xf32>
    %cst_15 = arith.constant dense<0.000000e+00> : vector<4x1xf32>
    %16 = tpu.matmul %15, %7, %cst_15 {dimension_numbers = #tpu.dot_dimension_numbers<[1], [0], [0], [1], [0, 0, 1, 1], [], []>} : vector<4x4xf32>, vector<4x1xf32>, vector<4x1xf32> -> vector<4x1xf32>
    %cst_16 = arith.constant dense<0.000000e+00> : vector<1x1xf32>
    %17 = tpu.matmul %6, %16, %cst_16 {dimension_numbers = #tpu.dot_dimension_numbers<[1], [0], [0], [1], [0, 0, 1, 1], [], []>} : vector<1x4xf32>, vector<4x1xf32>, vector<1x1xf32> -> vector<1x1xf32>
    %18 = arith.mulf %3, %5 : vector<4x4xf32>
    %cst_17 = arith.constant dense<0.000000e+00> : vector<4x1xf32>
    %19 = tpu.matmul %18, %7, %cst_17 {dimension_numbers = #tpu.dot_dimension_numbers<[1], [0], [0], [1], [0, 0, 1, 1], [], []>} : vector<4x4xf32>, vector<4x1xf32>, vector<4x1xf32> -> vector<4x1xf32>
    %cst_18 = arith.constant dense<0.000000e+00> : vector<1x1xf32>
    %20 = tpu.matmul %6, %19, %cst_18 {dimension_numbers = #tpu.dot_dimension_numbers<[1], [0], [0], [1], [0, 0, 1, 1], [], []>} : vector<1x4xf32>, vector<4x1xf32>, vector<1x1xf32> -> vector<1x1xf32>
    %21 = arith.mulf %9, %9 : vector<1x1xf32>
    %22 = arith.mulf %11, %11 : vector<1x1xf32>
    %23 = arith.mulf %9, %11 : vector<1x1xf32>
    %24 = arith.subf %14, %21 : vector<1x1xf32>
    %25 = arith.subf %17, %22 : vector<1x1xf32>
    %26 = arith.subf %20, %23 : vector<1x1xf32>
    %cst_19 = arith.constant 2.000000e+00 : f32
    %27 = vector.broadcast %cst_19 : f32 to vector<1x1xf32>
    %28 = arith.mulf %27, %26 : vector<1x1xf32>
    %29 = vector.broadcast %1 : f32 to vector<1x1xf32>
    %30 = arith.addf %28, %29 : vector<1x1xf32>
    %31 = arith.addf %24, %25 : vector<1x1xf32>
    %32 = vector.broadcast %1 : f32 to vector<1x1xf32>
    %33 = arith.addf %31, %32 : vector<1x1xf32>
    %34 = tpu.reciprocal %33 : vector<1x1xf32> -> vector<1x1xf32>
    %35 = arith.mulf %30, %34 : vector<1x1xf32>
    %36 = arith.addf %21, %22 : vector<1x1xf32>
    %37 = vector.broadcast %0 : f32 to vector<1x1xf32>
    %38 = arith.addf %36, %37 : vector<1x1xf32>
    %39 = tpu.reciprocal %38 : vector<1x1xf32> -> vector<1x1xf32>
    %cst_20 = arith.constant 2.000000e+00 : f32
    %40 = vector.broadcast %cst_20 : f32 to vector<1x1xf32>
    %41 = arith.mulf %40, %23 : vector<1x1xf32>
    %42 = vector.broadcast %0 : f32 to vector<1x1xf32>
    %43 = arith.addf %41, %42 : vector<1x1xf32>
    %44 = arith.mulf %43, %39 : vector<1x1xf32>
    %45 = arith.mulf %44, %35 : vector<1x1xf32>
    %46 = vector.shape_cast %45 : vector<1x1xf32> to vector<1x1x1xf32>
    %cst_21 = arith.constant dense<0.000000e+00> : vector<1xf32>
    %47 = vector.multi_reduction <add>, %46, %cst_21 [1, 2] : vector<1x1x1xf32> to vector<1xf32>
    %48 = vector.shape_cast %47 : vector<1xf32> to vector<1x1x1xf32>
    %49 = vector.extract %48[0, 0, 0] : f32 from vector<1x1x1xf32>
    %50 = vector.broadcast %49 : f32 to vector<1x1x1xf32>
    %c0_22 = arith.constant 0 : index
    %c0_23 = arith.constant 0 : index
    %c0_24 = arith.constant 0 : index
    %51 = vector.load %arg8[%c0_22, %c0_23, %c0_24] : memref<1x1x1xf32, #tpu.memory_space<vmem>>, vector<1x1x1xf32>
    tpu.vector_store %arg8[%c0_22, %c0_23, %c0_24], %50 {strides = array<i32>} : memref<1x1x1xf32, #tpu.memory_space<vmem>>, vector<1x1x1xf32>,
    %52 = vector.shape_cast %35 : vector<1x1xf32> to vector<1x1x1xf32>
    %cst_25 = arith.constant dense<0.000000e+00> : vector<1xf32>
    %53 = vector.multi_reduction <add>, %52, %cst_25 [1, 2] : vector<1x1x1xf32> to vector<1xf32>
    %54 = vector.shape_cast %53 : vector<1xf32> to vector<1x1x1xf32>
    %55 = vector.extract %54[0, 0, 0] : f32 from vector<1x1x1xf32>
    %56 = vector.broadcast %55 : f32 to vector<1x1x1xf32>
    %c0_26 = arith.constant 0 : index
    %c0_27 = arith.constant 0 : index
    %c0_28 = arith.constant 0 : index
    %57 = vector.load %arg9[%c0_26, %c0_27, %c0_28] : memref<1x1x1xf32, #tpu.memory_space<vmem>>, vector<1x1x1xf32>
    tpu.vector_store %arg9[%c0_26, %c0_27, %c0_28], %56 {strides = array<i32>} : memref<1x1x1xf32, #tpu.memory_space<vmem>>, vector<1x1x1xf32>,
    %c0_29 = arith.constant 0 : index
    %c0_30 = arith.constant 0 : index
    %58 = vector.load %arg6[%c0_29, %c0_30] : memref<2x4xf32, #tpu.memory_space<vmem>>, vector<2x4xf32>
    %c0_31 = arith.constant 0 : index
    %c0_32 = arith.constant 0 : index
    %59 = vector.load %arg7[%c0_31, %c0_32] : memref<4x2xf32, #tpu.memory_space<vmem>>, vector<4x2xf32>
    %cst_33 = arith.constant dense<0.000000e+00> : vector<2x4xf32>
    %60 = tpu.matmul %58, %3, %cst_33 {dimension_numbers = #tpu.dot_dimension_numbers<[1], [0], [0], [1], [0, 0, 1, 1], [], []>} : vector<2x4xf32>, vector<4x4xf32>, vector<2x4xf32> -> vector<2x4xf32>
    %cst_34 = arith.constant dense<0.000000e+00> : vector<2x2xf32>
    %61 = tpu.matmul %60, %59, %cst_34 {dimension_numbers = #tpu.dot_dimension_numbers<[1], [0], [0], [1], [0, 0, 1, 1], [], []>} : vector<2x4xf32>, vector<4x2xf32>, vector<2x2xf32> -> vector<2x2xf32>
    %cst_35 = arith.constant dense<0.000000e+00> : vector<2x4xf32>
    %62 = tpu.matmul %58, %5, %cst_35 {dimension_numbers = #tpu.dot_dimension_numbers<[1], [0], [0], [1], [0, 0, 1, 1], [], []>} : vector<2x4xf32>, vector<4x4xf32>, vector<2x4xf32> -> vector<2x4xf32>
    %cst_36 = arith.constant dense<0.000000e+00> : vector<2x2xf32>
    %63 = tpu.matmul %62, %59, %cst_36 {dimension_numbers = #tpu.dot_dimension_numbers<[1], [0], [0], [1], [0, 0, 1, 1], [], []>} : vector<2x4xf32>, vector<4x2xf32>, vector<2x2xf32> -> vector<2x2xf32>
    %c0_37 = arith.constant 0 : index
    %c0_38 = arith.constant 0 : index
    %c0_39 = arith.constant 0 : index
    %64 = vector.load %arg10[%c0_37, %c0_38, %c0_39] : memref<1x2x2xf32, #tpu.memory_space<vmem>>, vector<1x2x2xf32>
    %65 = vector.shape_cast %64 : vector<1x2x2xf32> to vector<2x2xf32>
    %66 = vector.shape_cast %61 : vector<2x2xf32> to vector<1x2x2xf32>
    tpu.vector_store %arg10[%c0_37, %c0_38, %c0_39], %66 {strides = array<i32>} : memref<1x2x2xf32, #tpu.memory_space<vmem>>, vector<1x2x2xf32>,
    %c0_40 = arith.constant 0 : index
    %c0_41 = arith.constant 0 : index
    %c0_42 = arith.constant 0 : index
    %67 = vector.load %arg11[%c0_40, %c0_41, %c0_42] : memref<1x2x2xf32, #tpu.memory_space<vmem>>, vector<1x2x2xf32>
    %68 = vector.shape_cast %67 : vector<1x2x2xf32> to vector<2x2xf32>
    %69 = vector.shape_cast %63 : vector<2x2xf32> to vector<1x2x2xf32>
    tpu.vector_store %arg11[%c0_40, %c0_41, %c0_42], %69 {strides = array<i32>} : memref<1x2x2xf32, #tpu.memory_space<vmem>>, vector<1x2x2xf32>,
    %70 = vector.shape_cast %61 : vector<2x2xf32> to vector<1x2x2xf32>
    %cst_43 = arith.constant dense<0xFF800000> : vector<1xf32>
    %71 = vector.multi_reduction <maximumf>, %70, %cst_43 [1, 2] : vector<1x2x2xf32> to vector<1xf32>
    %72 = vector.shape_cast %71 : vector<1xf32> to vector<1x1x1xf32>
    %73 = vector.extract %72[0, 0, 0] : f32 from vector<1x1x1xf32>
    %74 = vector.broadcast %73 : f32 to vector<1x1x1xf32>
    %c0_44 = arith.constant 0 : index
    %c0_45 = arith.constant 0 : index
    %c0_46 = arith.constant 0 : index
    %75 = vector.load %arg12[%c0_44, %c0_45, %c0_46] : memref<1x1x1xf32, #tpu.memory_space<vmem>>, vector<1x1x1xf32>
    tpu.vector_store %arg12[%c0_44, %c0_45, %c0_46], %74 {strides = array<i32>} : memref<1x1x1xf32, #tpu.memory_space<vmem>>, vector<1x1x1xf32>,
    %76 = vector.shape_cast %61 : vector<2x2xf32> to vector<1x2x2xf32>
    %cst_47 = arith.constant dense<0x7F800000> : vector<1xf32>
    %77 = vector.multi_reduction <minimumf>, %76, %cst_47 [1, 2] : vector<1x2x2xf32> to vector<1xf32>
    %78 = vector.shape_cast %77 : vector<1xf32> to vector<1x1x1xf32>
    %79 = vector.extract %78[0, 0, 0] : f32 from vector<1x1x1xf32>
    %80 = vector.broadcast %79 : f32 to vector<1x1x1xf32>
    %c0_48 = arith.constant 0 : index
    %c0_49 = arith.constant 0 : index
    %c0_50 = arith.constant 0 : index
    %81 = vector.load %arg13[%c0_48, %c0_49, %c0_50] : memref<1x1x1xf32, #tpu.memory_space<vmem>>, vector<1x1x1xf32>
    tpu.vector_store %arg13[%c0_48, %c0_49, %c0_50], %80 {strides = array<i32>} : memref<1x1x1xf32, #tpu.memory_space<vmem>>, vector<1x1x1xf32>,
    return
  }
  func.func @transform_0(%arg0: i32) -> i32 {
    %c0_i32 = arith.constant 0 : i32
    %c0_i32_0 = arith.constant 0 : i32
    return %c0_i32 : i32
  }
  func.func @transform_1(%arg0: i32) -> (i32, i32, i32) {
    %c0_i32 = arith.constant 0 : i32
    %c0_i32_0 = arith.constant 0 : i32
    %c0_i32_1 = arith.constant 0 : i32
    return %arg0, %c0_i32, %c0_i32_0 : i32, i32, i32
  }
  func.func @transform_2(%arg0: i32) -> (i32, i32, i32) {
    %c0_i32 = arith.constant 0 : i32
    %c0_i32_0 = arith.constant 0 : i32
    %c0_i32_1 = arith.constant 0 : i32
    return %arg0, %c0_i32, %c0_i32_0 : i32, i32, i32
  }
  func.func @transform_3(%arg0: i32) -> (i32, i32) {
    %c0_i32 = arith.constant 0 : i32
    %c0_i32_0 = arith.constant 0 : i32
    %c0_i32_1 = arith.constant 0 : i32
    return %c0_i32, %c0_i32_0 : i32, i32
  }
  func.func @transform_4(%arg0: i32) -> (i32, i32) {
    %c0_i32 = arith.constant 0 : i32
    %c0_i32_0 = arith.constant 0 : i32
    %c0_i32_1 = arith.constant 0 : i32
    return %c0_i32, %c0_i32_0 : i32, i32
  }
  func.func @transform_5(%arg0: i32) -> (i32, i32) {
    %c0_i32 = arith.constant 0 : i32
    %c0_i32_0 = arith.constant 0 : i32
    %c0_i32_1 = arith.constant 0 : i32
    return %c0_i32, %c0_i32_0 : i32, i32
  }
  func.func @transform_6(%arg0: i32) -> (i32, i32) {
    %c0_i32 = arith.constant 0 : i32
    %c0_i32_0 = arith.constant 0 : i32
    %c0_i32_1 = arith.constant 0 : i32
    return %c0_i32, %c0_i32_0 : i32, i32
  }
  func.func @transform_7(%arg0: i32) -> (i32, i32, i32) {
    %c0_i32 = arith.constant 0 : i32
    %c0_i32_0 = arith.constant 0 : i32
    %c0_i32_1 = arith.constant 0 : i32
    return %arg0, %c0_i32, %c0_i32_0 : i32, i32, i32
  }
  func.func @transform_8(%arg0: i32) -> (i32, i32, i32) {
    %c0_i32 = arith.constant 0 : i32
    %c0_i32_0 = arith.constant 0 : i32
    %c0_i32_1 = arith.constant 0 : i32
    return %arg0, %c0_i32, %c0_i32_0 : i32, i32, i32
  }
  func.func @transform_9(%arg0: i32) -> (i32, i32, i32) {
    %c0_i32 = arith.constant 0 : i32
    %c0_i32_0 = arith.constant 0 : i32
    %c0_i32_1 = arith.constant 0 : i32
    return %arg0, %c0_i32, %c0_i32_0 : i32, i32, i32
  }
  func.func @transform_10(%arg0: i32) -> (i32, i32, i32) {
    %c0_i32 = arith.constant 0 : i32
    %c0_i32_0 = arith.constant 0 : i32
    %c0_i32_1 = arith.constant 0 : i32
    return %arg0, %c0_i32, %c0_i32_0 : i32, i32, i32
  }
  func.func @transform_11(%arg0: i32) -> (i32, i32, i32) {
    %c0_i32 = arith.constant 0 : i32
    %c0_i32_0 = arith.constant 0 : i32
    %c0_i32_1 = arith.constant 0 : i32
    return %arg0, %c0_i32, %c0_i32_0 : i32, i32, i32
  }
  func.func @transform_12(%arg0: i32) -> (i32, i32, i32) {
    %c0_i32 = arith.constant 0 : i32
    %c0_i32_0 = arith.constant 0 : i32
    %c0_i32_1 = arith.constant 0 : i32
    return %arg0, %c0_i32, %c0_i32_0 : i32, i32, i32
  }
}

module attributes {stable_mosaic.version = 11 : i64} {
  func.func @_ssim_final_kernel(%arg0: i32, %arg1: memref<2xf32, #tpu.memory_space<smem>>, %arg2: memref<1x2x2xf32, #tpu.memory_space<vmem>>, %arg3: memref<1x2x2xf32, #tpu.memory_space<vmem>>, %arg4: memref<1x2xf32, #tpu.memory_space<vmem>>, %arg5: memref<2x1xf32, #tpu.memory_space<vmem>>, %arg6: memref<1x1x1xf32, #tpu.memory_space<vmem>>, %arg7: memref<1x1x1xf32, #tpu.memory_space<vmem>>) attributes {dimension_semantics = [#tpu.dimension_semantics<parallel>], iteration_bounds = array<i64: 6>, scalar_prefetch = 0 : i64, scratch_operands = 0 : i64, tpu.core_type = #tpu.core_type<tc>, window_params = [{transform_indices = @transform_0, window_bounds = array<i64: 2>}, {transform_indices = @transform_1, window_bounds = array<i64: 1, 2, 2>}, {transform_indices = @transform_2, window_bounds = array<i64: 1, 2, 2>}, {pipeline_mode = #tpu.pipeline_mode<synchronous>, transform_indices = @transform_3, window_bounds = array<i64: 1, 2>}, {pipeline_mode = #tpu.pipeline_mode<synchronous>, transform_indices = @transform_4, window_bounds = array<i64: 2, 1>}, {transform_indices = @transform_5, window_bounds = array<i64: 1, 1, 1>}, {transform_indices = @transform_6, window_bounds = array<i64: 1, 1, 1>}]} {
    %c0 = arith.constant 0 : index
    %0 = memref.load %arg1[%c0] : memref<2xf32, #tpu.memory_space<smem>>
    %c1 = arith.constant 1 : index
    %1 = memref.load %arg1[%c1] : memref<2xf32, #tpu.memory_space<smem>>
    %c0_0 = arith.constant 0 : index
    %c0_1 = arith.constant 0 : index
    %c0_2 = arith.constant 0 : index
    %2 = vector.load %arg2[%c0_0, %c0_1, %c0_2] : memref<1x2x2xf32, #tpu.memory_space<vmem>>, vector<1x2x2xf32>
    %3 = vector.shape_cast %2 : vector<1x2x2xf32> to vector<2x2xf32>
    %c0_3 = arith.constant 0 : index
    %c0_4 = arith.constant 0 : index
    %c0_5 = arith.constant 0 : index
    %4 = vector.load %arg3[%c0_3, %c0_4, %c0_5] : memref<1x2x2xf32, #tpu.memory_space<vmem>>, vector<1x2x2xf32>
    %5 = vector.shape_cast %4 : vector<1x2x2xf32> to vector<2x2xf32>
    %c0_6 = arith.constant 0 : index
    %c0_7 = arith.constant 0 : index
    %6 = vector.load %arg4[%c0_6, %c0_7] : memref<1x2xf32, #tpu.memory_space<vmem>>, vector<1x2xf32>
    %c0_8 = arith.constant 0 : index
    %c0_9 = arith.constant 0 : index
    %7 = vector.load %arg5[%c0_8, %c0_9] : memref<2x1xf32, #tpu.memory_space<vmem>>, vector<2x1xf32>
    %cst = arith.constant dense<0.000000e+00> : vector<2x1xf32>
    %8 = tpu.matmul %3, %7, %cst {dimension_numbers = #tpu.dot_dimension_numbers<[1], [0], [0], [1], [0, 0, 1, 1], [], []>} : vector<2x2xf32>, vector<2x1xf32>, vector<2x1xf32> -> vector<2x1xf32>
    %cst_10 = arith.constant dense<0.000000e+00> : vector<1x1xf32>
    %9 = tpu.matmul %6, %8, %cst_10 {dimension_numbers = #tpu.dot_dimension_numbers<[1], [0], [0], [1], [0, 0, 1, 1], [], []>} : vector<1x2xf32>, vector<2x1xf32>, vector<1x1xf32> -> vector<1x1xf32>
    %cst_11 = arith.constant dense<0.000000e+00> : vector<2x1xf32>
    %10 = tpu.matmul %5, %7, %cst_11 {dimension_numbers = #tpu.dot_dimension_numbers<[1], [0], [0], [1], [0, 0, 1, 1], [], []>} : vector<2x2xf32>, vector<2x1xf32>, vector<2x1xf32> -> vector<2x1xf32>
    %cst_12 = arith.constant dense<0.000000e+00> : vector<1x1xf32>
    %11 = tpu.matmul %6, %10, %cst_12 {dimension_numbers = #tpu.dot_dimension_numbers<[1], [0], [0], [1], [0, 0, 1, 1], [], []>} : vector<1x2xf32>, vector<2x1xf32>, vector<1x1xf32> -> vector<1x1xf32>
    %12 = arith.mulf %3, %3 : vector<2x2xf32>
    %cst_13 = arith.constant dense<0.000000e+00> : vector<2x1xf32>
    %13 = tpu.matmul %12, %7, %cst_13 {dimension_numbers = #tpu.dot_dimension_numbers<[1], [0], [0], [1], [0, 0, 1, 1], [], []>} : vector<2x2xf32>, vector<2x1xf32>, vector<2x1xf32> -> vector<2x1xf32>
    %cst_14 = arith.constant dense<0.000000e+00> : vector<1x1xf32>
    %14 = tpu.matmul %6, %13, %cst_14 {dimension_numbers = #tpu.dot_dimension_numbers<[1], [0], [0], [1], [0, 0, 1, 1], [], []>} : vector<1x2xf32>, vector<2x1xf32>, vector<1x1xf32> -> vector<1x1xf32>
    %15 = arith.mulf %5, %5 : vector<2x2xf32>
    %cst_15 = arith.constant dense<0.000000e+00> : vector<2x1xf32>
    %16 = tpu.matmul %15, %7, %cst_15 {dimension_numbers = #tpu.dot_dimension_numbers<[1], [0], [0], [1], [0, 0, 1, 1], [], []>} : vector<2x2xf32>, vector<2x1xf32>, vector<2x1xf32> -> vector<2x1xf32>
    %cst_16 = arith.constant dense<0.000000e+00> : vector<1x1xf32>
    %17 = tpu.matmul %6, %16, %cst_16 {dimension_numbers = #tpu.dot_dimension_numbers<[1], [0], [0], [1], [0, 0, 1, 1], [], []>} : vector<1x2xf32>, vector<2x1xf32>, vector<1x1xf32> -> vector<1x1xf32>
    %18 = arith.mulf %3, %5 : vector<2x2xf32>
    %cst_17 = arith.constant dense<0.000000e+00> : vector<2x1xf32>
    %19 = tpu.matmul %18, %7, %cst_17 {dimension_numbers = #tpu.dot_dimension_numbers<[1], [0], [0], [1], [0, 0, 1, 1], [], []>} : vector<2x2xf32>, vector<2x1xf32>, vector<2x1xf32> -> vector<2x1xf32>
    %cst_18 = arith.constant dense<0.000000e+00> : vector<1x1xf32>
    %20 = tpu.matmul %6, %19, %cst_18 {dimension_numbers = #tpu.dot_dimension_numbers<[1], [0], [0], [1], [0, 0, 1, 1], [], []>} : vector<1x2xf32>, vector<2x1xf32>, vector<1x1xf32> -> vector<1x1xf32>
    %21 = arith.mulf %9, %9 : vector<1x1xf32>
    %22 = arith.mulf %11, %11 : vector<1x1xf32>
    %23 = arith.mulf %9, %11 : vector<1x1xf32>
    %24 = arith.subf %14, %21 : vector<1x1xf32>
    %25 = arith.subf %17, %22 : vector<1x1xf32>
    %26 = arith.subf %20, %23 : vector<1x1xf32>
    %cst_19 = arith.constant 2.000000e+00 : f32
    %27 = vector.broadcast %cst_19 : f32 to vector<1x1xf32>
    %28 = arith.mulf %27, %26 : vector<1x1xf32>
    %29 = vector.broadcast %1 : f32 to vector<1x1xf32>
    %30 = arith.addf %28, %29 : vector<1x1xf32>
    %31 = arith.addf %24, %25 : vector<1x1xf32>
    %32 = vector.broadcast %1 : f32 to vector<1x1xf32>
    %33 = arith.addf %31, %32 : vector<1x1xf32>
    %34 = tpu.reciprocal %33 : vector<1x1xf32> -> vector<1x1xf32>
    %35 = arith.mulf %30, %34 : vector<1x1xf32>
    %36 = arith.addf %21, %22 : vector<1x1xf32>
    %37 = vector.broadcast %0 : f32 to vector<1x1xf32>
    %38 = arith.addf %36, %37 : vector<1x1xf32>
    %39 = tpu.reciprocal %38 : vector<1x1xf32> -> vector<1x1xf32>
    %cst_20 = arith.constant 2.000000e+00 : f32
    %40 = vector.broadcast %cst_20 : f32 to vector<1x1xf32>
    %41 = arith.mulf %40, %23 : vector<1x1xf32>
    %42 = vector.broadcast %0 : f32 to vector<1x1xf32>
    %43 = arith.addf %41, %42 : vector<1x1xf32>
    %44 = arith.mulf %43, %39 : vector<1x1xf32>
    %45 = arith.mulf %44, %35 : vector<1x1xf32>
    %46 = vector.shape_cast %45 : vector<1x1xf32> to vector<1x1x1xf32>
    %cst_21 = arith.constant dense<0.000000e+00> : vector<1xf32>
    %47 = vector.multi_reduction <add>, %46, %cst_21 [1, 2] : vector<1x1x1xf32> to vector<1xf32>
    %48 = vector.shape_cast %47 : vector<1xf32> to vector<1x1x1xf32>
    %49 = vector.extract %48[0, 0, 0] : f32 from vector<1x1x1xf32>
    %50 = vector.broadcast %49 : f32 to vector<1x1x1xf32>
    %c0_22 = arith.constant 0 : index
    %c0_23 = arith.constant 0 : index
    %c0_24 = arith.constant 0 : index
    %51 = vector.load %arg6[%c0_22, %c0_23, %c0_24] : memref<1x1x1xf32, #tpu.memory_space<vmem>>, vector<1x1x1xf32>
    tpu.vector_store %arg6[%c0_22, %c0_23, %c0_24], %50 {strides = array<i32>} : memref<1x1x1xf32, #tpu.memory_space<vmem>>, vector<1x1x1xf32>,
    %52 = vector.shape_cast %35 : vector<1x1xf32> to vector<1x1x1xf32>
    %cst_25 = arith.constant dense<0.000000e+00> : vector<1xf32>
    %53 = vector.multi_reduction <add>, %52, %cst_25 [1, 2] : vector<1x1x1xf32> to vector<1xf32>
    %54 = vector.shape_cast %53 : vector<1xf32> to vector<1x1x1xf32>
    %55 = vector.extract %54[0, 0, 0] : f32 from vector<1x1x1xf32>
    %56 = vector.broadcast %55 : f32 to vector<1x1x1xf32>
    %c0_26 = arith.constant 0 : index
    %c0_27 = arith.constant 0 : index
    %c0_28 = arith.constant 0 : index
    %57 = vector.load %arg7[%c0_26, %c0_27, %c0_28] : memref<1x1x1xf32, #tpu.memory_space<vmem>>, vector<1x1x1xf32>
    tpu.vector_store %arg7[%c0_26, %c0_27, %c0_28], %56 {strides = array<i32>} : memref<1x1x1xf32, #tpu.memory_space<vmem>>, vector<1x1x1xf32>,
    return
  }
  func.func @transform_0(%arg0: i32) -> i32 {
    %c0_i32 = arith.constant 0 : i32
    %c0_i32_0 = arith.constant 0 : i32
    return %c0_i32 : i32
  }
  func.func @transform_1(%arg0: i32) -> (i32, i32, i32) {
    %c0_i32 = arith.constant 0 : i32
    %c0_i32_0 = arith.constant 0 : i32
    %c0_i32_1 = arith.constant 0 : i32
    return %arg0, %c0_i32, %c0_i32_0 : i32, i32, i32
  }
  func.func @transform_2(%arg0: i32) -> (i32, i32, i32) {
    %c0_i32 = arith.constant 0 : i32
    %c0_i32_0 = arith.constant 0 : i32
    %c0_i32_1 = arith.constant 0 : i32
    return %arg0, %c0_i32, %c0_i32_0 : i32, i32, i32
  }
  func.func @transform_3(%arg0: i32) -> (i32, i32) {
    %c0_i32 = arith.constant 0 : i32
    %c0_i32_0 = arith.constant 0 : i32
    %c0_i32_1 = arith.constant 0 : i32
    return %c0_i32, %c0_i32_0 : i32, i32
  }
  func.func @transform_4(%arg0: i32) -> (i32, i32) {
    %c0_i32 = arith.constant 0 : i32
    %c0_i32_0 = arith.constant 0 : i32
    %c0_i32_1 = arith.constant 0 : i32
    return %c0_i32, %c0_i32_0 : i32, i32
  }
  func.func @transform_5(%arg0: i32) -> (i32, i32, i32) {
    %c0_i32 = arith.constant 0 : i32
    %c0_i32_0 = arith.constant 0 : i32
    %c0_i32_1 = arith.constant 0 : i32
    return %arg0, %c0_i32, %c0_i32_0 : i32, i32, i32
  }
  func.func @transform_6(%arg0: i32) -> (i32, i32, i32) {
    %c0_i32 = arith.constant 0 : i32
    %c0_i32_0 = arith.constant 0 : i32
    %c0_i32_1 = arith.constant 0 : i32
    return %arg0, %c0_i32, %c0_i32_0 : i32, i32, i32
  }
}

</mosaic_0001>

<llo_original>
// kernel: a_call__.5
$region0: #{a_call__.5}
  #allocation0 [shape = 'u32[]', space=smem, size = 0x4, offset = 0x4, fixed_abs, tag = 'smem constant byte address 0x4 - core index']
  #allocation1 [shape = 'u32[144,128]{1,0:T(1,128)}', space=vmem, size = 0x12000, scoped, tag = 'internal scratch']
  %s0 = inlined_call_operand.vmem [shape: f32[2], index: 0, kind: input, shape index: {}]
  %s1 = inlined_call_operand.vmem [shape: f32[6,32,32], index: 1, kind: input, shape index: {}]
  %s2 = inlined_call_operand.hbm [shape: f32[6,32,32], index: 2, kind: input, shape index: {}]
  %s3 = inlined_call_operand.vmem [shape: f32[22,32], index: 3, kind: input, shape index: {}]
  %s4 = inlined_call_operand.vmem [shape: f32[32,22], index: 4, kind: input, shape index: {}]
  %s5 = inlined_call_operand.vmem [shape: f32[16,32], index: 5, kind: input, shape index: {}]
  %s6 = inlined_call_operand.vmem [shape: f32[32,16], index: 6, kind: input, shape index: {}]
  %s7 = inlined_call_operand.vmem [shape: f32[6,1,1], index: 7, kind: output, shape index: {0}]
  %s8 = inlined_call_operand.vmem [shape: f32[6,1,1], index: 8, kind: output, shape index: {1}]
  %s9 = inlined_call_operand.vmem [shape: f32[6,16,16], index: 9, kind: output, shape index: {2}]
  %s10 = inlined_call_operand.vmem [shape: f32[6,16,16], index: 10, kind: output, shape index: {3}]
  %s11 = inlined_call_operand.vmem [shape: f32[6,1,1], index: 11, kind: output, shape index: {4}]
  %s12 = inlined_call_operand.vmem [shape: f32[6,1,1], index: 12, kind: output, shape index: {5}]
  %13 = xla_tuple %s7, %s8, %s9, %s10, %s11, %s12
  %s14 = sld [smem:[#allocation0]]
  $region109: #{a_call__.5} parent=0
    _
  %s16 = ssub.s32 1, %s14
  %s17 = scalar_select 0, %s16, %s14
  $region1: #{a_call__.5} parent=0
    #allocation2 [shape = 'u8[512]{0}', space=smem, size = 0x200, scoped, tag = 'input window, operand 0, single buffered']
    #allocation3 [shape = 's32[2]{0}', space=sflag, size = 0x8, scoped, tag = 'scoped memory for a_call__.5']
    #allocation4 [shape = 's32[2]{0}', space=sflag, size = 0x8, scoped, tag = 'scoped memory for a_call__.5']
    #allocation5 [shape = 'u8[32768]{0}', space=vmem, size = 0x8000, scoped, tag = 'input window, operand 2']
    %18 = vsyncpa [#allocation4], 0
    %19 = vsyncpa [#allocation3], 0
    %s20 = scalar_lea.sflag [#allocation3], 1
    %21 = vsyncpa %s20, 0
    loop: start=0, step=1, limit=8
    $region2: #{a_call__.5} parent=1 // loop_pre_header
      _
    $region3: #{a_call__.5} parent=1 // loop_header
      %s23 = sphi 0, %s27
      %p24 = scmp.ge.s32.totalorder %s23, 8
      %s31 = sphi 0, %s31
      %s33 = sphi 0, %s31
      %s34 = sphi 0, %s33
      %s48 = sphi 0, %s34
      %s54 = sphi 0, %s56
      %s57 = sphi 0, %s54
      %s58 = sphi 0, %s57
      %s74 = sphi 0, %s58
      %s80 = sphi 0, %s82
      %s83 = sphi 0, %s80
      %s84 = sphi 0, %s83
      %s100 = sphi 0, %s84
      %s104 = sphi 0, %s104
      %s106 = sphi 0, %s104
      %s107 = sphi 0, %s106
      %s121 = sphi 0, %s107
      %s125 = sphi 0, %s125
      %s127 = sphi 0, %s125
      %s128 = sphi 0, %s127
      %s142 = sphi 0, %s128
      %s146 = sphi 0, %s146
      %s148 = sphi 0, %s146
      %s149 = sphi 0, %s148
      %s163 = sphi 0, %s149
      %s167 = sphi 0, %s167
      %s169 = sphi 0, %s167
      %s170 = sphi 0, %s169
      %s184 = sphi 0, %s170
      %s190 = sphi 0, %s192
      %s193 = sphi 0, %s190
      %s194 = sphi 0, %s193
      %s210 = sphi 0, %s194
      %s216 = sphi 0, %s218
      %s219 = sphi 0, %s216
      %s220 = sphi 0, %s219
      %s236 = sphi 0, %s220
      %s242 = sphi 0, %s244
      %s245 = sphi 0, %s242
      %s246 = sphi 0, %s245
      %s262 = sphi 0, %s246
      %s268 = sphi 0, %s270
      %s271 = sphi 0, %s268
      %s272 = sphi 0, %s271
      %s288 = sphi 0, %s272
      %s294 = sphi 0, %s296
      %s297 = sphi 0, %s294
      %s298 = sphi 0, %s297
      %s314 = sphi 0, %s298
      %s320 = sphi 0, %s322
      %s323 = sphi 0, %s320
      %s324 = sphi 0, %s323
      %s340 = sphi 0, %s324
    $region4: #{a_call__.5} parent=1 // loop_header_branch
      %26 = sbr.rel (%p24) target = $region8
    $region5: #{a_call__.5} parent=1 // loop_body
      %s28 = ssub.s32 %s23, 1
      %s29 = ssub.s32 %s23, 2
      %s30 = sadd.s32 %s23, 1
      %s32 = sadd.s32 %s31, 1
      %p35 = scmp.eq.s32.totalorder %s23, 5
      %p36 = scmp.ne.s32.totalorder %s31, %s33
      %p37 = scmp.eq.s32.totalorder %s23, 0
      %p38 = por %p36, %p37
      %p39 = scmp.ne.s32.totalorder %s31, %s33
      %p40 = scmp.eq.s32.totalorder %s28, 5
      %p41 = por %p39, %p40
      %p42 = scmp.ne.s32.totalorder %s33, %s34
      %p43 = scmp.eq.s32.totalorder %s28, 0
      %p44 = por %p42, %p43
      %p45 = scmp.ne.s32.totalorder %s33, %s34
      %p46 = scmp.eq.s32.totalorder %s29, 5
      %p47 = por %p45, %p46
      %p49 = scmp.ne.s32.totalorder %s34, %s48
      %p50 = scmp.eq.s32.totalorder %s29, 0
      %p51 = por %p49, %p50
      %s52 = ssub.s32 %s23, %s30
      %p53 = scmp.eq.s32.totalorder %s52, 0
      %s55 = sadd.s32 %s54, 1
      %s56 = scalar_select %p53, %s54, %s55
      %p59 = pneg %p53
      %p60 = scmp.eq.s32.totalorder %s23, 5
      %p61 = por %p59, %p60
      %p62 = scmp.ne.s32.totalorder %s54, %s57
      %p63 = scmp.eq.s32.totalorder %s23, 0
      %p64 = por %p62, %p63
      %p65 = scmp.ne.s32.totalorder %s54, %s57
      %p66 = scmp.eq.s32.totalorder %s28, 5
      %p67 = por %p65, %p66
      %p68 = scmp.ne.s32.totalorder %s57, %s58
      %p69 = scmp.eq.s32.totalorder %s28, 0
      %p70 = por %p68, %p69
      %p71 = scmp.ne.s32.totalorder %s57, %s58
      %p72 = scmp.eq.s32.totalorder %s29, 5
      %p73 = por %p71, %p72
      %p75 = scmp.ne.s32.totalorder %s58, %s74
      %p76 = scmp.eq.s32.totalorder %s29, 0
      %p77 = por %p75, %p76
      %s78 = ssub.s32 %s23, %s30
      %p79 = scmp.eq.s32.totalorder %s78, 0
      %s81 = sadd.s32 %s80, 1
      %s82 = scalar_select %p79, %s80, %s81
      %p85 = pneg %p79
      %p86 = scmp.eq.s32.totalorder %s23, 5
      %p87 = por %p85, %p86
      %p88 = scmp.ne.s32.totalorder %s80, %s83
      %p89 = scmp.eq.s32.totalorder %s23, 0
      %p90 = por %p88, %p89
      %p91 = scmp.ne.s32.totalorder %s80, %s83
      %p92 = scmp.eq.s32.totalorder %s28, 5
      %p93 = por %p91, %p92
      %p94 = scmp.ne.s32.totalorder %s83, %s84
      %p95 = scmp.eq.s32.totalorder %s28, 0
      %p96 = por %p94, %p95
      %p97 = scmp.ne.s32.totalorder %s83, %s84
      %p98 = scmp.eq.s32.totalorder %s29, 5
      %p99 = por %p97, %p98
      %p101 = scmp.ne.s32.totalorder %s84, %s100
      %p102 = scmp.eq.s32.totalorder %s29, 0
      %p103 = por %p101, %p102
      %s105 = sadd.s32 %s104, 1
      %p108 = scmp.eq.s32.totalorder %s23, 5
      %p109 = scmp.ne.s32.totalorder %s104, %s106
      %p110 = scmp.eq.s32.totalorder %s23, 0
      %p111 = por %p109, %p110
      %p112 = scmp.ne.s32.totalorder %s104, %s106
      %p113 = scmp.eq.s32.totalorder %s28, 5
      %p114 = por %p112, %p113
      %p115 = scmp.ne.s32.totalorder %s106, %s107
      %p116 = scmp.eq.s32.totalorder %s28, 0
      %p117 = por %p115, %p116
      %p118 = scmp.ne.s32.totalorder %s106, %s107
      %p119 = scmp.eq.s32.totalorder %s29, 5
      %p120 = por %p118, %p119
      %p122 = scmp.ne.s32.totalorder %s107, %s121
      %p123 = scmp.eq.s32.totalorder %s29, 0
      %p124 = por %p122, %p123
      %s126 = sadd.s32 %s125, 1
      %p129 = scmp.eq.s32.totalorder %s23, 5
      %p130 = scmp.ne.s32.totalorder %s125, %s127
      %p131 = scmp.eq.s32.totalorder %s23, 0
      %p132 = por %p130, %p131
      %p133 = scmp.ne.s32.totalorder %s125, %s127
      %p134 = scmp.eq.s32.totalorder %s28, 5
      %p135 = por %p133, %p134
      %p136 = scmp.ne.s32.totalorder %s127, %s128
      %p137 = scmp.eq.s32.totalorder %s28, 0
      %p138 = por %p136, %p137
      %p139 = scmp.ne.s32.totalorder %s127, %s128
      %p140 = scmp.eq.s32.totalorder %s29, 5
      %p141 = por %p139, %p140
      %p143 = scmp.ne.s32.totalorder %s128, %s142
      %p144 = scmp.eq.s32.totalorder %s29, 0
      %p145 = por %p143, %p144
      %s147 = sadd.s32 %s146, 1
      %p150 = scmp.eq.s32.totalorder %s23, 5
      %p151 = scmp.ne.s32.totalorder %s146, %s148
      %p152 = scmp.eq.s32.totalorder %s23, 0
      %p153 = por %p151, %p152
      %p154 = scmp.ne.s32.totalorder %s146, %s148
      %p155 = scmp.eq.s32.totalorder %s28, 5
      %p156 = por %p154, %p155
      %p157 = scmp.ne.s32.totalorder %s148, %s149
      %p158 = scmp.eq.s32.totalorder %s28, 0
      %p159 = por %p157, %p158
      %p160 = scmp.ne.s32.totalorder %s148, %s149
      %p161 = scmp.eq.s32.totalorder %s29, 5
      %p162 = por %p160, %p161
      %p164 = scmp.ne.s32.totalorder %s149, %s163
      %p165 = scmp.eq.s32.totalorder %s29, 0
      %p166 = por %p164, %p165
      %s168 = sadd.s32 %s167, 1
      %p171 = scmp.eq.s32.totalorder %s23, 5
      %p172 = scmp.ne.s32.totalorder %s167, %s169
      %p173 = scmp.eq.s32.totalorder %s23, 0
      %p174 = por %p172, %p173
      %p175 = scmp.ne.s32.totalorder %s167, %s169
      %p176 = scmp.eq.s32.totalorder %s28, 5
      %p177 = por %p175, %p176
      %p178 = scmp.ne.s32.totalorder %s169, %s170
      %p179 = scmp.eq.s32.totalorder %s28, 0
      %p180 = por %p178, %p179
      %p181 = scmp.ne.s32.totalorder %s169, %s170
      %p182 = scmp.eq.s32.totalorder %s29, 5
      %p183 = por %p181, %p182
      %p185 = scmp.ne.s32.totalorder %s170, %s184
      %p186 = scmp.eq.s32.totalorder %s29, 0
      %p187 = por %p185, %p186
      %s188 = ssub.s32 %s23, %s30
      %p189 = scmp.eq.s32.totalorder %s188, 0
      %s191 = sadd.s32 %s190, 1
      %s192 = scalar_select %p189, %s190, %s191
      %p195 = pneg %p189
      %p196 = scmp.eq.s32.totalorder %s23, 5
      %p197 = por %p195, %p196
      %p198 = scmp.ne.s32.totalorder %s190, %s193
      %p199 = scmp.eq.s32.totalorder %s23, 0
      %p200 = por %p198, %p199
      %p201 = scmp.ne.s32.totalorder %s190, %s193
      %p202 = scmp.eq.s32.totalorder %s28, 5
      %p203 = por %p201, %p202
      %p204 = scmp.ne.s32.totalorder %s193, %s194
      %p205 = scmp.eq.s32.totalorder %s28, 0
      %p206 = por %p204, %p205
      %p207 = scmp.ne.s32.totalorder %s193, %s194
      %p208 = scmp.eq.s32.totalorder %s29, 5
      %p209 = por %p207, %p208
      %p211 = scmp.ne.s32.totalorder %s194, %s210
      %p212 = scmp.eq.s32.totalorder %s29, 0
      %p213 = por %p211, %p212
      %s214 = ssub.s32 %s23, %s30
      %p215 = scmp.eq.s32.totalorder %s214, 0
      %s217 = sadd.s32 %s216, 1
      %s218 = scalar_select %p215, %s216, %s217
      %p221 = pneg %p215
      %p222 = scmp.eq.s32.totalorder %s23, 5
      %p223 = por %p221, %p222
      %p224 = scmp.ne.s32.totalorder %s216, %s219
      %p225 = scmp.eq.s32.totalorder %s23, 0
      %p226 = por %p224, %p225
      %p227 = scmp.ne.s32.totalorder %s216, %s219
      %p228 = scmp.eq.s32.totalorder %s28, 5
      %p229 = por %p227, %p228
      %p230 = scmp.ne.s32.totalorder %s219, %s220
      %p231 = scmp.eq.s32.totalorder %s28, 0
      %p232 = por %p230, %p231
      %p233 = scmp.ne.s32.totalorder %s219, %s220
      %p234 = scmp.eq.s32.totalorder %s29, 5
      %p235 = por %p233, %p234
      %p237 = scmp.ne.s32.totalorder %s220, %s236
      %p238 = scmp.eq.s32.totalorder %s29, 0
      %p239 = por %p237, %p238
      %s240 = ssub.s32 %s23, %s30
      %p241 = scmp.eq.s32.totalorder %s240, 0
      %s243 = sadd.s32 %s242, 1
      %s244 = scalar_select %p241, %s242, %s243
      %p247 = pneg %p241
      %p248 = scmp.eq.s32.totalorder %s23, 5
      %p249 = por %p247, %p248
      %p250 = scmp.ne.s32.totalorder %s242, %s245
      %p251 = scmp.eq.s32.totalorder %s23, 0
      %p252 = por %p250, %p251
      %p253 = scmp.ne.s32.totalorder %s242, %s245
      %p254 = scmp.eq.s32.totalorder %s28, 5
      %p255 = por %p253, %p254
      %p256 = scmp.ne.s32.totalorder %s245, %s246
      %p257 = scmp.eq.s32.totalorder %s28, 0
      %p258 = por %p256, %p257
      %p259 = scmp.ne.s32.totalorder %s245, %s246
      %p260 = scmp.eq.s32.totalorder %s29, 5
      %p261 = por %p259, %p260
      %p263 = scmp.ne.s32.totalorder %s246, %s262
      %p264 = scmp.eq.s32.totalorder %s29, 0
      %p265 = por %p263, %p264
      %s266 = ssub.s32 %s23, %s30
      %p267 = scmp.eq.s32.totalorder %s266, 0
      %s269 = sadd.s32 %s268, 1
      %s270 = scalar_select %p267, %s268, %s269
      %p273 = pneg %p267
      %p274 = scmp.eq.s32.totalorder %s23, 5
      %p275 = por %p273, %p274
      %p276 = scmp.ne.s32.totalorder %s268, %s271
      %p277 = scmp.eq.s32.totalorder %s23, 0
      %p278 = por %p276, %p277
      %p279 = scmp.ne.s32.totalorder %s268, %s271
      %p280 = scmp.eq.s32.totalorder %s28, 5
      %p281 = por %p279, %p280
      %p282 = scmp.ne.s32.totalorder %s271, %s272
      %p283 = scmp.eq.s32.totalorder %s28, 0
      %p284 = por %p282, %p283
      %p285 = scmp.ne.s32.totalorder %s271, %s272
      %p286 = scmp.eq.s32.totalorder %s29, 5
      %p287 = por %p285, %p286
      %p289 = scmp.ne.s32.totalorder %s272, %s288
      %p290 = scmp.eq.s32.totalorder %s29, 0
      %p291 = por %p289, %p290
      %s292 = ssub.s32 %s23, %s30
      %p293 = scmp.eq.s32.totalorder %s292, 0
      %s295 = sadd.s32 %s294, 1
      %s296 = scalar_select %p293, %s294, %s295
      %p299 = pneg %p293
      %p300 = scmp.eq.s32.totalorder %s23, 5
      %p301 = por %p299, %p300
      %p302 = scmp.ne.s32.totalorder %s294, %s297
      %p303 = scmp.eq.s32.totalorder %s23, 0
      %p304 = por %p302, %p303
      %p305 = scmp.ne.s32.totalorder %s294, %s297
      %p306 = scmp.eq.s32.totalorder %s28, 5
      %p307 = por %p305, %p306
      %p308 = scmp.ne.s32.totalorder %s297, %s298
      %p309 = scmp.eq.s32.totalorder %s28, 0
      %p310 = por %p308, %p309
      %p311 = scmp.ne.s32.totalorder %s297, %s298
      %p312 = scmp.eq.s32.totalorder %s29, 5
      %p313 = por %p311, %p312
      %p315 = scmp.ne.s32.totalorder %s298, %s314
      %p316 = scmp.eq.s32.totalorder %s29, 0
      %p317 = por %p315, %p316
      %s318 = ssub.s32 %s23, %s30
      %p319 = scmp.eq.s32.totalorder %s318, 0
      %s321 = sadd.s32 %s320, 1
      %s322 = scalar_select %p319, %s320, %s321
      %p325 = pneg %p319
      %p326 = scmp.eq.s32.totalorder %s23, 5
      %p327 = por %p325, %p326
      %p328 = scmp.ne.s32.totalorder %s320, %s323
      %p329 = scmp.eq.s32.totalorder %s23, 0
      %p330 = por %p328, %p329
      %p331 = scmp.ne.s32.totalorder %s320, %s323
      %p332 = scmp.eq.s32.totalorder %s28, 5
      %p333 = por %p331, %p332
      %p334 = scmp.ne.s32.totalorder %s323, %s324
      %p335 = scmp.eq.s32.totalorder %s28, 0
      %p336 = por %p334, %p335
      %p337 = scmp.ne.s32.totalorder %s323, %s324
      %p338 = scmp.eq.s32.totalorder %s29, 5
      %p339 = por %p337, %p338
      %p341 = scmp.ne.s32.totalorder %s324, %s340
      %p342 = scmp.eq.s32.totalorder %s29, 0
      %p343 = por %p341, %p342
      %p344 = scmp.le.s32.totalorder 1, %s23
      %p345 = scmp.lt.s32.totalorder %s23, 7
      %p346 = pnand %p344, %p345
      %p347 = pneg %p346
      // Predicated region
      $region9: #{a_call__.5} parent=5 // pred_check
        _
      $region10: #{a_call__.5} parent=5 // pred_check_branch
        %349 = sbr.rel (%p346) target = $region12
      $region11: #{a_call__.5} parent=5 // pred_region
        %s350 = ssub.s32 %s23, 1
        // Predicated region
        $region13: #{a_call__.5} parent=11 // pred_check
          %p351 = pneg %p44
        $region14: #{a_call__.5} parent=11 // pred_check_branch
          %353 = sbr.rel (%p351) target = $region16
        $region15: #{a_call__.5} parent=11 // pred_region
          %s355 = ssub.s32 16, 16
          %356 = vsyncadd [#allocation4], %s355
          %s358 = sshll.u32 %s0, 4
          %s359 = int_to_ptr.vmem [resolvable:$true] %s358
          %361 = dma.vmem_to_smem %s359, 16, [#allocation2], [#allocation4]
        $region16: #{a_call__.5} parent=11 // pred_fallthru
          _
        // Predicated region
        $region17: #{a_call__.5} parent=11 // pred_check
          %p362 = pneg %p117
        $region18: #{a_call__.5} parent=11 // pred_check_branch
          %364 = sbr.rel (%p362) target = $region20
        $region19: #{a_call__.5} parent=11 // pred_region
          _
        $region20: #{a_call__.5} parent=11 // pred_fallthru
          _
        // Predicated region
        $region21: #{a_call__.5} parent=11 // pred_check
          %p365 = pneg %p138
        $region22: #{a_call__.5} parent=11 // pred_check_branch
          %367 = sbr.rel (%p365) target = $region24
        $region23: #{a_call__.5} parent=11 // pred_region
          _
        $region24: #{a_call__.5} parent=11 // pred_fallthru
          _
        // Predicated region
        $region25: #{a_call__.5} parent=11 // pred_check
          %p368 = pneg %p159
        $region26: #{a_call__.5} parent=11 // pred_check_branch
          %370 = sbr.rel (%p368) target = $region28
        $region27: #{a_call__.5} parent=11 // pred_region
          _
        $region28: #{a_call__.5} parent=11 // pred_fallthru
          _
        // Predicated region
        $region29: #{a_call__.5} parent=11 // pred_check
          %p371 = pneg %p180
        $region30: #{a_call__.5} parent=11 // pred_check_branch
          %373 = sbr.rel (%p371) target = $region32
        $region31: #{a_call__.5} parent=11 // pred_region
          _
        $region32: #{a_call__.5} parent=11 // pred_fallthru
          _
      $region12: #{a_call__.5} parent=5 // pred_fallthru
        _
      %p374 = scmp.lt.s32.totalorder %s23, 6
      // Predicated region
      $region33: #{a_call__.5} parent=5 // pred_check
        %p375 = pneg %p374
      $region34: #{a_call__.5} parent=5 // pred_check_branch
        %377 = sbr.rel (%p375) target = $region36
      $region35: #{a_call__.5} parent=5 // pred_region
        // Predicated region
        $region37: #{a_call__.5} parent=35 // pred_check
          %p378 = pneg %p64
        $region38: #{a_call__.5} parent=35 // pred_check_branch
          %380 = sbr.rel (%p378) target = $region40
        $region39: #{a_call__.5} parent=35 // pred_region
          %p381 = scmp.lt.s32.totalorder %s23, 5
          %s382 = scalar_select %p381, %s23, 5
          %s383 = smul.addr %s382, 4
          %s384 = smul.addr %s383, 8
          %s385 = scalar_lea.vmem %s1, %s384
        $region40: #{a_call__.5} parent=35 // pred_fallthru
          _
        // Predicated region
        $region41: #{a_call__.5} parent=35 // pred_check
          %p386 = pneg %p90
        $region42: #{a_call__.5} parent=35 // pred_check_branch
          %388 = sbr.rel (%p386) target = $region44
        $region43: #{a_call__.5} parent=35 // pred_region
          %s389 = sand.u32 %s80, 1
          %s390 = scalar_lea.sflag [#allocation3], %s389
          %s391 = sand.u32 %s80, 1
          %s392 = smul.addr %s391, 32
          %s393 = scalar_lea.vmem [#allocation5], %s392
          %s395 = ssub.s32 512, 512
          %396 = vsyncadd %s390, %s395
          %s397 = smul.addr %s23, 4
          %s398 = smul.addr %s397, 128
          %s399 = scalar_lea.hbm %s2, %s398
          %s400 = sshll.u32 %s393, 4
          %s401 = int_to_ptr.vmem [resolvable:$true] %s400
          %406 = dma.hbm_to_vmem [thread:$0]  %s399, 512, %s401, %s390, 128, 128, 8
        $region44: #{a_call__.5} parent=35 // pred_fallthru
          _
      $region36: #{a_call__.5} parent=5 // pred_fallthru
        _
      %p407 = scmp.le.s32.totalorder 1, %s23
      %p408 = scmp.lt.s32.totalorder %s23, 7
      %p409 = pnand %p407, %p408
      %p410 = pneg %p409
      // Predicated region
      $region45: #{a_call__.5} parent=5 // pred_check
        _
      $region46: #{a_call__.5} parent=5 // pred_check_branch
        %412 = sbr.rel (%p409) target = $region48
      $region47: #{a_call__.5} parent=5 // pred_region
        %s413 = ssub.s32 %s23, 1
        // Predicated region
        $region49: #{a_call__.5} parent=47 // pred_check
          %p414 = pneg %p44
        $region50: #{a_call__.5} parent=47 // pred_check_branch
          %416 = sbr.rel (%p414) target = $region52
        $region51: #{a_call__.5} parent=47 // pred_region
          %417 = dma.done [#allocation4], 16
        $region52: #{a_call__.5} parent=47 // pred_fallthru
          _
        %s418 = sand.u32 %s83, 1
        %s419 = scalar_lea.sflag [#allocation3], %s418
        %s420 = sand.u32 %s83, 1
        %s421 = smul.addr %s420, 32
        %s422 = scalar_lea.vmem [#allocation5], %s421
        // Predicated region
        $region53: #{a_call__.5} parent=47 // pred_check
          %p423 = pneg %p96
        $region54: #{a_call__.5} parent=47 // pred_check_branch
          %425 = sbr.rel (%p423) target = $region56
        $region55: #{a_call__.5} parent=47 // pred_region
          %426 = dma.done %s419, 512
        $region56: #{a_call__.5} parent=47 // pred_fallthru
          _
        %427 = sfence
        %p428 = pneg %p44
        %p429 = pneg %p41
        %p430 = scmp.lt.s32.totalorder %s28, 5
        %s431 = scalar_select %p430, %s28, 5
        %s432 = smul.addr %s431, 4
        %s433 = smul.addr %s432, 8
        %s434 = scalar_lea.vmem %s1, %s433
        %p435 = pneg %p70
        %p436 = pneg %p67
        %s437 = sand.u32 %s83, 1
        %s438 = scalar_lea.sflag [#allocation3], %s437
        %s439 = sand.u32 %s83, 1
        %s440 = smul.addr %s439, 32
        %s441 = scalar_lea.vmem [#allocation5], %s440
        %p442 = pneg %p96
        %p443 = pneg %p93
        %p444 = pneg %p117
        %p445 = pneg %p114
        %p446 = pneg %p138
        %p447 = pneg %p135
        %p448 = pneg %p159
        %p449 = pneg %p156
        %p450 = pneg %p180
        %p451 = pneg %p177
        %p452 = pneg %p206
        %p453 = pneg %p203
        %p454 = scmp.lt.s32.totalorder %s28, 5
        %s455 = scalar_select %p454, %s28, 5
        %s456 = scalar_lea.vmem %s7, %s455
        %p457 = pneg %p232
        %p458 = pneg %p229
        %p459 = scmp.lt.s32.totalorder %s28, 5
        %s460 = scalar_select %p459, %s28, 5
        %s461 = scalar_lea.vmem %s8, %s460
        %p462 = pneg %p258
        %p463 = pneg %p255
        %p464 = scmp.lt.s32.totalorder %s28, 5
        %s465 = scalar_select %p464, %s28, 5
        %s466 = smul.addr %s465, 2
        %s467 = smul.addr %s466, 8
        %s468 = scalar_lea.vmem %s9, %s467
        %p469 = pneg %p284
        %p470 = pneg %p281
        %p471 = scmp.lt.s32.totalorder %s28, 5
        %s472 = scalar_select %p471, %s28, 5
        %s473 = smul.addr %s472, 2
        %s474 = smul.addr %s473, 8
        %s475 = scalar_lea.vmem %s10, %s474
        %p476 = pneg %p310
        %p477 = pneg %p307
        %p478 = scmp.lt.s32.totalorder %s28, 5
        %s479 = scalar_select %p478, %s28, 5
        %s480 = scalar_lea.vmem %s11, %s479
        %p481 = pneg %p336
        %p482 = pneg %p333
        %p483 = scmp.lt.s32.totalorder %s28, 5
        %s484 = scalar_select %p483, %s28, 5
        %s485 = scalar_lea.vmem %s12, %s484
        %p486 = scmp.lt.s32.totalorder %s28, 5
        %s487 = scalar_select %p486, %s28, 5
        %s488 = smul.addr %s487, 4
        %s489 = smul.addr %s488, 8
        %s490 = scalar_lea.vmem %s1, %s489
        %p491 = scmp.lt.s32.totalorder %s28, 5
        %s492 = scalar_select %p491, %s28, 5
        %s493 = scalar_lea.vmem %s7, %s492
        %p494 = scmp.lt.s32.totalorder %s28, 5
        %s495 = scalar_select %p494, %s28, 5
        %s496 = scalar_lea.vmem %s8, %s495
        %p497 = scmp.lt.s32.totalorder %s28, 5
        %s498 = scalar_select %p497, %s28, 5
        %s499 = smul.addr %s498, 2
        %s500 = smul.addr %s499, 8
        %s501 = scalar_lea.vmem %s9, %s500
        %p502 = scmp.lt.s32.totalorder %s28, 5
        %s503 = scalar_select %p502, %s28, 5
        %s504 = smul.addr %s503, 2
        %s505 = smul.addr %s504, 8
        %s506 = scalar_lea.vmem %s10, %s505
        %p507 = scmp.lt.s32.totalorder %s28, 5
        %s508 = scalar_select %p507, %s28, 5
        %s509 = scalar_lea.vmem %s11, %s508
        %p510 = scmp.lt.s32.totalorder %s28, 5
        %s511 = scalar_select %p510, %s28, 5
        %s512 = scalar_lea.vmem %s12, %s511
        %s513 = sld [smem:[#allocation2]]
        %s514 = sld [smem:[#allocation2 + $0x1]]
        %v515 = vld [vmem:[%s490] sm:$0xff]
        %v516 = vld [vmem:[%s490 + $0x8] sm:$0xff]
        %v517 = vld [vmem:[%s490 + $0x10] sm:$0xff]
        %v518 = vld [vmem:[%s490 + $0x18] sm:$0xff]
        %v519 = vld [vmem:[%s422] sm:$0xff]
        %v520 = vld [vmem:[%s422 + $0x8] sm:$0xff]
        %v521 = vld [vmem:[%s422 + $0x10] sm:$0xff]
        %v522 = vld [vmem:[%s422 + $0x18] sm:$0xff]
        %v523 = vld [vmem:[%s3] sm:$0xff]
        %v524 = vld [vmem:[%s3 + $0x8] sm:$0xff]
        %v525 = vld [vmem:[%s3 + $0x10] sm:$0x3f]
        %v526 = vld [vmem:[%s4] sm:$0xff]
        %v527 = vld [vmem:[%s4 + $0x8] sm:$0xff]
        %v528 = vld [vmem:[%s4 + $0x10] sm:$0xff]
        %v529 = vld [vmem:[%s4 + $0x18] sm:$0xff]
        %vm530 = vcmask 261120
        %v532 = vsel %vm530, %v515, 0
        %v535 = vsel %vm530, %v516, 0
        %v538 = vsel %vm530, %v517, 0
        %v541 = vsel %vm530, %v518, 0
        %543 = vmatprep.subr.mxu0 0.0
        %544 = vmatpush1.msra.mxu0 %v526
        %545 = vmatprep.subr.mxu0 0.0
        %546 = vmatpush1.msra.mxu0 %v527
        %547 = vmatprep.subr.mxu0 0.0
        %548 = vmatpush1.msra.mxu0 %v528
        %549 = vmatprep.subr.mxu0 0.0
        %550 = vmatpush1.msra.mxu0 %v529
        %551 = vmatprep.subr.mxu0 0.0
        %552 = vmatpush1.msra.mxu0 0.0
        %553 = vmatprep.subr.mxu0 0.0
        %554 = vmatpush1.msra.mxu0 0.0
        %555 = vmatprep.subr.mxu0 0.0
        %556 = vmatpush1.msra.mxu0 0.0
        %557 = vmatprep.subr.mxu0 0.0
        %558 = vmatpush1.msra.mxu0 0.0
        %559 = vmatprep.subr.mxu0 0.0
        %560 = vmatpush1.msra.mxu0 0.0
        %561 = vmatprep.subr.mxu0 0.0
        %562 = vmatpush1.msra.mxu0 0.0
        %563 = vmatprep.subr.mxu0 0.0
        %564 = vmatpush1.msra.mxu0 0.0
        %565 = vmatprep.subr.mxu0 0.0
        %566 = vmatpush1.msra.mxu0 0.0
        %567 = vmatprep.subr.mxu0 0.0
        %568 = vmatpush1.msra.mxu0 0.0
        %569 = vmatprep.subr.mxu0 0.0
        %570 = vmatpush1.msra.mxu0 0.0
        %571 = vmatprep.subr.mxu0 0.0
        %572 = vmatpush1.msra.mxu0 0.0
        %573 = vmatprep.subr.mxu0 0.0
        %574 = vmatpush1.msra.mxu0 0.0
        %575 = vmatprep.subr.mxu0 0.0
        %576 = vmatpush1.msra.mxu0 0.0
        %577 = vmatprep.subr.mxu0 0.0
        %578 = vmatpush1.msra.mxu0 0.0
        %579 = vmatprep.subr.mxu0 0.0
        %580 = vmatpush1.msra.mxu0 0.0
        %581 = vmatprep.subr.mxu0 0.0
        %582 = vmatpush1.msra.mxu0 0.0
        %583 = vmatprep.subr.mxu0 0.0
        %584 = vmatpush1.msra.mxu0 0.0
        %585 = vmatprep.subr.mxu0 0.0
        %586 = vmatpush1.msra.mxu0 0.0
        %587 = vmatprep.subr.mxu0 0.0
        %588 = vmatpush1.msra.mxu0 0.0
        %589 = vmatprep.subr.mxu0 0.0
        %590 = vmatpush1.msra.mxu0 0.0
        %591 = vmatprep.subr.mxu0 0.0
        %592 = vmatpush1.msra.mxu0 0.0
        %593 = vmatprep.subr.mxu0 0.0
        %594 = vmatpush1.msra.mxu0 0.0
        %595 = vmatprep.subr.mxu0 0.0
        %596 = vmatpush1.msra.mxu0 0.0
        %597 = vmatprep.subr.mxu0 0.0
        %598 = vmatpush1.msra.mxu0 0.0
        %599 = vmatprep.subr.mxu0 0.0
        %600 = vmatpush1.msra.mxu0 0.0
        %601 = vmatprep.subr.mxu0 0.0
        %602 = vmatpush1.msra.mxu0 0.0
        %603 = vmatprep.subr.mxu0 0.0
        %604 = vmatpush1.msra.mxu0 0.0
        %605 = vmatprep.subr.mxu0 0.0
        %606 = vmatpush1.msra.mxu0 0.0
        %607 = vmatprep.mubr.f32.mxu0 0.0
        %608 = vmatmul.mubr.f32.gmra.mrb[0].mxu0 %v532
        %v609 = vpop.f32.mrb[0].mxu0
        %v610 = vadd.f32 0.0, %v609
        %v611 = vpop.f32.mrb[0].mxu0
        %612 = vmatprep.mubr.f32.mxu0 0.0
        %613 = vmatmul.mubr.f32.gmra.mrb[0].mxu0 %v535
        %v614 = vpop.f32.mrb[0].mxu0
        %v615 = vadd.f32 0.0, %v614
        %v616 = vpop.f32.mrb[0].mxu0
        %617 = vmatprep.mubr.f32.mxu0 0.0
        %618 = vmatmul.mubr.f32.gmra.mrb[0].mxu0 %v538
        %v619 = vpop.f32.mrb[0].mxu0
        %v620 = vadd.f32 0.0, %v619
        %v621 = vpop.f32.mrb[0].mxu0
        %622 = vmatprep.mubr.f32.mxu0 0.0
        %623 = vmatmul.mubr.f32.gmra.mrb[0].mxu0 %v541
        %v624 = vpop.f32.mrb[0].mxu0
        %v625 = vadd.f32 0.0, %v624
        %v626 = vpop.f32.mrb[0].mxu0
        %627 = vdwg.mxu0
        %v629 = vsel %vm530, %v523, 0
        %v632 = vsel %vm530, %v524, 0
        %v635 = vsel %vm530, %v525, 0
        %637 = vmatprep.subr.mxu0 0.0
        %638 = vmatpush1.msra.mxu0 %v610
        %639 = vmatprep.subr.mxu0 0.0
        %640 = vmatpush1.msra.mxu0 %v615
        %641 = vmatprep.subr.mxu0 0.0
        %642 = vmatpush1.msra.mxu0 %v620
        %643 = vmatprep.subr.mxu0 0.0
        %644 = vmatpush1.msra.mxu0 %v625
        %645 = vmatprep.subr.mxu0 0.0
        %646 = vmatpush1.msra.mxu0 0.0
        %647 = vmatprep.subr.mxu0 0.0
        %648 = vmatpush1.msra.mxu0 0.0
        %649 = vmatprep.subr.mxu0 0.0
        %650 = vmatpush1.msra.mxu0 0.0
        %651 = vmatprep.subr.mxu0 0.0
        %652 = vmatpush1.msra.mxu0 0.0
        %653 = vmatprep.subr.mxu0 0.0
        %654 = vmatpush1.msra.mxu0 0.0
        %655 = vmatprep.subr.mxu0 0.0
        %656 = vmatpush1.msra.mxu0 0.0
        %657 = vmatprep.subr.mxu0 0.0
        %658 = vmatpush1.msra.mxu0 0.0
        %659 = vmatprep.subr.mxu0 0.0
        %660 = vmatpush1.msra.mxu0 0.0
        %661 = vmatprep.subr.mxu0 0.0
        %662 = vmatpush1.msra.mxu0 0.0
        %663 = vmatprep.subr.mxu0 0.0
        %664 = vmatpush1.msra.mxu0 0.0
        %665 = vmatprep.subr.mxu0 0.0
        %666 = vmatpush1.msra.mxu0 0.0
        %667 = vmatprep.subr.mxu0 0.0
        %668 = vmatpush1.msra.mxu0 0.0
        %669 = vmatprep.subr.mxu0 0.0
        %670 = vmatpush1.msra.mxu0 0.0
        %671 = vmatprep.subr.mxu0 0.0
        %672 = vmatpush1.msra.mxu0 0.0
        %673 = vmatprep.subr.mxu0 0.0
        %674 = vmatpush1.msra.mxu0 0.0
        %675 = vmatprep.subr.mxu0 0.0
        %676 = vmatpush1.msra.mxu0 0.0
        %677 = vmatprep.subr.mxu0 0.0
        %678 = vmatpush1.msra.mxu0 0.0
        %679 = vmatprep.subr.mxu0 0.0
        %680 = vmatpush1.msra.mxu0 0.0
        %681 = vmatprep.subr.mxu0 0.0
        %682 = vmatpush1.msra.mxu0 0.0
        %683 = vmatprep.subr.mxu0 0.0
        %684 = vmatpush1.msra.mxu0 0.0
        %685 = vmatprep.subr.mxu0 0.0
        %686 = vmatpush1.msra.mxu0 0.0
        %687 = vmatprep.subr.mxu0 0.0
        %688 = vmatpush1.msra.mxu0 0.0
        %689 = vmatprep.subr.mxu0 0.0
        %690 = vmatpush1.msra.mxu0 0.0
        %691 = vmatprep.subr.mxu0 0.0
        %692 = vmatpush1.msra.mxu0 0.0
        %693 = vmatprep.subr.mxu0 0.0
        %694 = vmatpush1.msra.mxu0 0.0
        %695 = vmatprep.subr.mxu0 0.0
        %696 = vmatpush1.msra.mxu0 0.0
        %697 = vmatprep.subr.mxu0 0.0
        %698 = vmatpush1.msra.mxu0 0.0
        %699 = vmatprep.subr.mxu0 0.0
        %700 = vmatpush1.msra.mxu0 0.0
        %701 = vmatprep.mubr.f32.mxu0 0.0
        %702 = vmatmul.mubr.f32.gmra.mrb[0].mxu0 %v629
        %v703 = vpop.f32.mrb[0].mxu0
        %v704 = vadd.f32 0.0, %v703
        %v705 = vpop.f32.mrb[0].mxu0
        %706 = vmatprep.mubr.f32.mxu0 0.0
        %707 = vmatmul.mubr.f32.gmra.mrb[0].mxu0 %v632
        %v708 = vpop.f32.mrb[0].mxu0
        %v709 = vadd.f32 0.0, %v708
        %v710 = vpop.f32.mrb[0].mxu0
        %711 = vmatprep.mubr.f32.mxu0 0.0
        %712 = vmatmul.mubr.f32.gmra.mrb[0].mxu0 %v635
        %v713 = vpop.f32.mrb[0].mxu0
        %v714 = vadd.f32 0.0, %v713
        %v715 = vpop.f32.mrb[0].mxu0
        %716 = vdwg.mxu0
        %v718 = vsel %vm530, %v519, 0
        %v721 = vsel %vm530, %v520, 0
        %v724 = vsel %vm530, %v521, 0
        %v727 = vsel %vm530, %v522, 0
        %729 = vmatprep.subr.mxu0 0.0
        %730 = vmatpush1.msra.mxu0 %v526
        %731 = vmatprep.subr.mxu0 0.0
        %732 = vmatpush1.msra.mxu0 %v527
        %733 = vmatprep.subr.mxu0 0.0
        %734 = vmatpush1.msra.mxu0 %v528
        %735 = vmatprep.subr.mxu0 0.0
        %736 = vmatpush1.msra.mxu0 %v529
        %737 = vmatprep.subr.mxu0 0.0
        %738 = vmatpush1.msra.mxu0 0.0
        %739 = vmatprep.subr.mxu0 0.0
        %740 = vmatpush1.msra.mxu0 0.0
        %741 = vmatprep.subr.mxu0 0.0
        %742 = vmatpush1.msra.mxu0 0.0
        %743 = vmatprep.subr.mxu0 0.0
        %744 = vmatpush1.msra.mxu0 0.0
        %745 = vmatprep.subr.mxu0 0.0
        %746 = vmatpush1.msra.mxu0 0.0
        %747 = vmatprep.subr.mxu0 0.0
        %748 = vmatpush1.msra.mxu0 0.0
        %749 = vmatprep.subr.mxu0 0.0
        %750 = vmatpush1.msra.mxu0 0.0
        %751 = vmatprep.subr.mxu0 0.0
        %752 = vmatpush1.msra.mxu0 0.0
        %753 = vmatprep.subr.mxu0 0.0
        %754 = vmatpush1.msra.mxu0 0.0
        %755 = vmatprep.subr.mxu0 0.0
        %756 = vmatpush1.msra.mxu0 0.0
        %757 = vmatprep.subr.mxu0 0.0
        %758 = vmatpush1.msra.mxu0 0.0
        %759 = vmatprep.subr.mxu0 0.0
        %760 = vmatpush1.msra.mxu0 0.0
        %761 = vmatprep.subr.mxu0 0.0
        %762 = vmatpush1.msra.mxu0 0.0
        %763 = vmatprep.subr.mxu0 0.0
        %764 = vmatpush1.msra.mxu0 0.0
        %765 = vmatprep.subr.mxu0 0.0
        %766 = vmatpush1.msra.mxu0 0.0
        %767 = vmatprep.subr.mxu0 0.0
        %768 = vmatpush1.msra.mxu0 0.0
        %769 = vmatprep.subr.mxu0 0.0
        %770 = vmatpush1.msra.mxu0 0.0
        %771 = vmatprep.subr.mxu0 0.0
        %772 = vmatpush1.msra.mxu0 0.0
        %773 = vmatprep.subr.mxu0 0.0
        %774 = vmatpush1.msra.mxu0 0.0
        %775 = vmatprep.subr.mxu0 0.0
        %776 = vmatpush1.msra.mxu0 0.0
        %777 = vmatprep.subr.mxu0 0.0
        %778 = vmatpush1.msra.mxu0 0.0
        %779 = vmatprep.subr.mxu0 0.0
        %780 = vmatpush1.msra.mxu0 0.0
        %781 = vmatprep.subr.mxu0 0.0
        %782 = vmatpush1.msra.mxu0 0.0
        %783 = vmatprep.subr.mxu0 0.0
        %784 = vmatpush1.msra.mxu0 0.0
        %785 = vmatprep.subr.mxu0 0.0
        %786 = vmatpush1.msra.mxu0 0.0
        %787 = vmatprep.subr.mxu0 0.0
        %788 = vmatpush1.msra.mxu0 0.0
        %789 = vmatprep.subr.mxu0 0.0
        %790 = vmatpush1.msra.mxu0 0.0
        %791 = vmatprep.subr.mxu0 0.0
        %792 = vmatpush1.msra.mxu0 0.0
        %793 = vmatprep.mubr.f32.mxu0 0.0
        %794 = vmatmul.mubr.f32.gmra.mrb[0].mxu0 %v718
        %v795 = vpop.f32.mrb[0].mxu0
        %v796 = vadd.f32 0.0, %v795
        %v797 = vpop.f32.mrb[0].mxu0
        %798 = vmatprep.mubr.f32.mxu0 0.0
        %799 = vmatmul.mubr.f32.gmra.mrb[0].mxu0 %v721
        %v800 = vpop.f32.mrb[0].mxu0
        %v801 = vadd.f32 0.0, %v800
        %v802 = vpop.f32.mrb[0].mxu0
        %803 = vmatprep.mubr.f32.mxu0 0.0
        %804 = vmatmul.mubr.f32.gmra.mrb[0].mxu0 %v724
        %v805 = vpop.f32.mrb[0].mxu0
        %v806 = vadd.f32 0.0, %v805
        %v807 = vpop.f32.mrb[0].mxu0
        %808 = vmatprep.mubr.f32.mxu0 0.0
        %809 = vmatmul.mubr.f32.gmra.mrb[0].mxu0 %v727
        %v810 = vpop.f32.mrb[0].mxu0
        %v811 = vadd.f32 0.0, %v810
        %v812 = vpop.f32.mrb[0].mxu0
        %813 = vdwg.mxu0
        %814 = vmatprep.subr.mxu0 0.0
        %815 = vmatpush1.msra.mxu0 %v796
        %816 = vmatprep.subr.mxu0 0.0
        %817 = vmatpush1.msra.mxu0 %v801
        %818 = vmatprep.subr.mxu0 0.0
        %819 = vmatpush1.msra.mxu0 %v806
        %820 = vmatprep.subr.mxu0 0.0
        %821 = vmatpush1.msra.mxu0 %v811
        %822 = vmatprep.subr.mxu0 0.0
        %823 = vmatpush1.msra.mxu0 0.0
        %824 = vmatprep.subr.mxu0 0.0
        %825 = vmatpush1.msra.mxu0 0.0
        %826 = vmatprep.subr.mxu0 0.0
        %827 = vmatpush1.msra.mxu0 0.0
        %828 = vmatprep.subr.mxu0 0.0
        %829 = vmatpush1.msra.mxu0 0.0
        %830 = vmatprep.subr.mxu0 0.0
        %831 = vmatpush1.msra.mxu0 0.0
        %832 = vmatprep.subr.mxu0 0.0
        %833 = vmatpush1.msra.mxu0 0.0
        %834 = vmatprep.subr.mxu0 0.0
        %835 = vmatpush1.msra.mxu0 0.0
        %836 = vmatprep.subr.mxu0 0.0
        %837 = vmatpush1.msra.mxu0 0.0
        %838 = vmatprep.subr.mxu0 0.0
        %839 = vmatpush1.msra.mxu0 0.0
        %840 = vmatprep.subr.mxu0 0.0
        %841 = vmatpush1.msra.mxu0 0.0
        %842 = vmatprep.subr.mxu0 0.0
        %843 = vmatpush1.msra.mxu0 0.0
        %844 = vmatprep.subr.mxu0 0.0
        %845 = vmatpush1.msra.mxu0 0.0
        %846 = vmatprep.subr.mxu0 0.0
        %847 = vmatpush1.msra.mxu0 0.0
        %848 = vmatprep.subr.mxu0 0.0
        %849 = vmatpush1.msra.mxu0 0.0
        %850 = vmatprep.subr.mxu0 0.0
        %851 = vmatpush1.msra.mxu0 0.0
        %852 = vmatprep.subr.mxu0 0.0
        %853 = vmatpush1.msra.mxu0 0.0
        %854 = vmatprep.subr.mxu0 0.0
        %855 = vmatpush1.msra.mxu0 0.0
        %856 = vmatprep.subr.mxu0 0.0
        %857 = vmatpush1.msra.mxu0 0.0
        %858 = vmatprep.subr.mxu0 0.0
        %859 = vmatpush1.msra.mxu0 0.0
        %860 = vmatprep.subr.mxu0 0.0
        %861 = vmatpush1.msra.mxu0 0.0
        %862 = vmatprep.subr.mxu0 0.0
        %863 = vmatpush1.msra.mxu0 0.0
        %864 = vmatprep.subr.mxu0 0.0
        %865 = vmatpush1.msra.mxu0 0.0
        %866 = vmatprep.subr.mxu0 0.0
        %867 = vmatpush1.msra.mxu0 0.0
        %868 = vmatprep.subr.mxu0 0.0
        %869 = vmatpush1.msra.mxu0 0.0
        %870 = vmatprep.subr.mxu0 0.0
        %871 = vmatpush1.msra.mxu0 0.0
        %872 = vmatprep.subr.mxu0 0.0
        %873 = vmatpush1.msra.mxu0 0.0
        %874 = vmatprep.subr.mxu0 0.0
        %875 = vmatpush1.msra.mxu0 0.0
        %876 = vmatprep.subr.mxu0 0.0
        %877 = vmatpush1.msra.mxu0 0.0
        %878 = vmatprep.mubr.f32.mxu0 0.0
        %879 = vmatmul.mubr.f32.gmra.mrb[0].mxu0 %v629
        %v880 = vpop.f32.mrb[0].mxu0
        %v881 = vadd.f32 0.0, %v880
        %v882 = vpop.f32.mrb[0].mxu0
        %883 = vmatprep.mubr.f32.mxu0 0.0
        %884 = vmatmul.mubr.f32.gmra.mrb[0].mxu0 %v632
        %v885 = vpop.f32.mrb[0].mxu0
        %v886 = vadd.f32 0.0, %v885
        %v887 = vpop.f32.mrb[0].mxu0
        %888 = vmatprep.mubr.f32.mxu0 0.0
        %889 = vmatmul.mubr.f32.gmra.mrb[0].mxu0 %v635
        %v890 = vpop.f32.mrb[0].mxu0
        %v891 = vadd.f32 0.0, %v890
        %v892 = vpop.f32.mrb[0].mxu0
        %893 = vdwg.mxu0
        %v894 = vmul.f32 %v515, %v515
        %v895 = vmul.f32 %v516, %v516
        %v896 = vmul.f32 %v517, %v517
        %v897 = vmul.f32 %v518, %v518
        %v899 = vsel %vm530, %v894, 0
        %v902 = vsel %vm530, %v895, 0
        %v905 = vsel %vm530, %v896, 0
        %v908 = vsel %vm530, %v897, 0
        %910 = vmatprep.subr.mxu0 0.0
        %911 = vmatpush1.msra.mxu0 %v526
        %912 = vmatprep.subr.mxu0 0.0
        %913 = vmatpush1.msra.mxu0 %v527
        %914 = vmatprep.subr.mxu0 0.0
        %915 = vmatpush1.msra.mxu0 %v528
        %916 = vmatprep.subr.mxu0 0.0
        %917 = vmatpush1.msra.mxu0 %v529
        %918 = vmatprep.subr.mxu0 0.0
        %919 = vmatpush1.msra.mxu0 0.0
        %920 = vmatprep.subr.mxu0 0.0
        %921 = vmatpush1.msra.mxu0 0.0
        %922 = vmatprep.subr.mxu0 0.0
        %923 = vmatpush1.msra.mxu0 0.0
        %924 = vmatprep.subr.mxu0 0.0
        %925 = vmatpush1.msra.mxu0 0.0
        %926 = vmatprep.subr.mxu0 0.0
        %927 = vmatpush1.msra.mxu0 0.0
        %928 = vmatprep.subr.mxu0 0.0
        %929 = vmatpush1.msra.mxu0 0.0
        %930 = vmatprep.subr.mxu0 0.0
        %931 = vmatpush1.msra.mxu0 0.0
        %932 = vmatprep.subr.mxu0 0.0
        %933 = vmatpush1.msra.mxu0 0.0
        %934 = vmatprep.subr.mxu0 0.0
        %935 = vmatpush1.msra.mxu0 0.0
        %936 = vmatprep.subr.mxu0 0.0
        %937 = vmatpush1.msra.mxu0 0.0
        %938 = vmatprep.subr.mxu0 0.0
        %939 = vmatpush1.msra.mxu0 0.0
        %940 = vmatprep.subr.mxu0 0.0
        %941 = vmatpush1.msra.mxu0 0.0
        %942 = vmatprep.subr.mxu0 0.0
        %943 = vmatpush1.msra.mxu0 0.0
        %944 = vmatprep.subr.mxu0 0.0
        %945 = vmatpush1.msra.mxu0 0.0
        %946 = vmatprep.subr.mxu0 0.0
        %947 = vmatpush1.msra.mxu0 0.0
        %948 = vmatprep.subr.mxu0 0.0
        %949 = vmatpush1.msra.mxu0 0.0
        %950 = vmatprep.subr.mxu0 0.0
        %951 = vmatpush1.msra.mxu0 0.0
        %952 = vmatprep.subr.mxu0 0.0
        %953 = vmatpush1.msra.mxu0 0.0
        %954 = vmatprep.subr.mxu0 0.0
        %955 = vmatpush1.msra.mxu0 0.0
        %956 = vmatprep.subr.mxu0 0.0
        %957 = vmatpush1.msra.mxu0 0.0
        %958 = vmatprep.subr.mxu0 0.0
        %959 = vmatpush1.msra.mxu0 0.0
        %960 = vmatprep.subr.mxu0 0.0
        %961 = vmatpush1.msra.mxu0 0.0
        %962 = vmatprep.subr.mxu0 0.0
        %963 = vmatpush1.msra.mxu0 0.0
        %964 = vmatprep.subr.mxu0 0.0
        %965 = vmatpush1.msra.mxu0 0.0
        %966 = vmatprep.subr.mxu0 0.0
        %967 = vmatpush1.msra.mxu0 0.0
        %968 = vmatprep.subr.mxu0 0.0
        %969 = vmatpush1.msra.mxu0 0.0
        %970 = vmatprep.subr.mxu0 0.0
        %971 = vmatpush1.msra.mxu0 0.0
        %972 = vmatprep.subr.mxu0 0.0
        %973 = vmatpush1.msra.mxu0 0.0
        %974 = vmatprep.mubr.f32.mxu0 0.0
        %975 = vmatmul.mubr.f32.gmra.mrb[0].mxu0 %v899
        %v976 = vpop.f32.mrb[0].mxu0
        %v977 = vadd.f32 0.0, %v976
        %v978 = vpop.f32.mrb[0].mxu0
        %979 = vmatprep.mubr.f32.mxu0 0.0
        %980 = vmatmul.mubr.f32.gmra.mrb[0].mxu0 %v902
        %v981 = vpop.f32.mrb[0].mxu0
        %v982 = vadd.f32 0.0, %v981
        %v983 = vpop.f32.mrb[0].mxu0
        %984 = vmatprep.mubr.f32.mxu0 0.0
        %985 = vmatmul.mubr.f32.gmra.mrb[0].mxu0 %v905
        %v986 = vpop.f32.mrb[0].mxu0
        %v987 = vadd.f32 0.0, %v986
        %v988 = vpop.f32.mrb[0].mxu0
        %989 = vmatprep.mubr.f32.mxu0 0.0
        %990 = vmatmul.mubr.f32.gmra.mrb[0].mxu0 %v908
        %v991 = vpop.f32.mrb[0].mxu0
        %v992 = vadd.f32 0.0, %v991
        %v993 = vpop.f32.mrb[0].mxu0
        %994 = vdwg.mxu0
        %995 = vmatprep.subr.mxu0 0.0
        %996 = vmatpush1.msra.mxu0 %v977
        %997 = vmatprep.subr.mxu0 0.0
        %998 = vmatpush1.msra.mxu0 %v982
        %999 = vmatprep.subr.mxu0 0.0
        %1000 = vmatpush1.msra.mxu0 %v987
        %1001 = vmatprep.subr.mxu0 0.0
        %1002 = vmatpush1.msra.mxu0 %v992
        %1003 = vmatprep.subr.mxu0 0.0
        %1004 = vmatpush1.msra.mxu0 0.0
        %1005 = vmatprep.subr.mxu0 0.0
        %1006 = vmatpush1.msra.mxu0 0.0
        %1007 = vmatprep.subr.mxu0 0.0
        %1008 = vmatpush1.msra.mxu0 0.0
        %1009 = vmatprep.subr.mxu0 0.0
        %1010 = vmatpush1.msra.mxu0 0.0
        %1011 = vmatprep.subr.mxu0 0.0
        %1012 = vmatpush1.msra.mxu0 0.0
        %1013 = vmatprep.subr.mxu0 0.0
        %1014 = vmatpush1.msra.mxu0 0.0
        %1015 = vmatprep.subr.mxu0 0.0
        %1016 = vmatpush1.msra.mxu0 0.0
        %1017 = vmatprep.subr.mxu0 0.0
        %1018 = vmatpush1.msra.mxu0 0.0
        %1019 = vmatprep.subr.mxu0 0.0
        %1020 = vmatpush1.msra.mxu0 0.0
        %1021 = vmatprep.subr.mxu0 0.0
        %1022 = vmatpush1.msra.mxu0 0.0
        %1023 = vmatprep.subr.mxu0 0.0
        %1024 = vmatpush1.msra.mxu0 0.0
        %1025 = vmatprep.subr.mxu0 0.0
        %1026 = vmatpush1.msra.mxu0 0.0
        %1027 = vmatprep.subr.mxu0 0.0
        %1028 = vmatpush1.msra.mxu0 0.0
        %1029 = vmatprep.subr.mxu0 0.0
        %1030 = vmatpush1.msra.mxu0 0.0
        %1031 = vmatprep.subr.mxu0 0.0
        %1032 = vmatpush1.msra.mxu0 0.0
        %1033 = vmatprep.subr.mxu0 0.0
        %1034 = vmatpush1.msra.mxu0 0.0
        %1035 = vmatprep.subr.mxu0 0.0
        %1036 = vmatpush1.msra.mxu0 0.0
        %1037 = vmatprep.subr.mxu0 0.0
        %1038 = vmatpush1.msra.mxu0 0.0
        %1039 = vmatprep.subr.mxu0 0.0
        %1040 = vmatpush1.msra.mxu0 0.0
        %1041 = vmatprep.subr.mxu0 0.0
        %1042 = vmatpush1.msra.mxu0 0.0
        %1043 = vmatprep.subr.mxu0 0.0
        %1044 = vmatpush1.msra.mxu0 0.0
        %1045 = vmatprep.subr.mxu0 0.0
        %1046 = vmatpush1.msra.mxu0 0.0
        %1047 = vmatprep.subr.mxu0 0.0
        %1048 = vmatpush1.msra.mxu0 0.0
        %1049 = vmatprep.subr.mxu0 0.0
        %1050 = vmatpush1.msra.mxu0 0.0
        %1051 = vmatprep.subr.mxu0 0.0
        %1052 = vmatpush1.msra.mxu0 0.0
        %1053 = vmatprep.subr.mxu0 0.0
        %1054 = vmatpush1.msra.mxu0 0.0
        %1055 = vmatprep.subr.mxu0 0.0
        %1056 = vmatpush1.msra.mxu0 0.0
        %1057 = vmatprep.subr.mxu0 0.0
        %1058 = vmatpush1.msra.mxu0 0.0
        %1059 = vmatprep.mubr.f32.mxu0 0.0
        %1060 = vmatmul.mubr.f32.gmra.mrb[0].mxu0 %v629
        %v1061 = vpop.f32.mrb[0].mxu0
        %v1062 = vadd.f32 0.0, %v1061
        %v1063 = vpop.f32.mrb[0].mxu0
        %1064 = vmatprep.mubr.f32.mxu0 0.0
        %1065 = vmatmul.mubr.f32.gmra.mrb[0].mxu0 %v632
        %v1066 = vpop.f32.mrb[0].mxu0
        %v1067 = vadd.f32 0.0, %v1066
        %v1068 = vpop.f32.mrb[0].mxu0
        %1069 = vmatprep.mubr.f32.mxu0 0.0
        %1070 = vmatmul.mubr.f32.gmra.mrb[0].mxu0 %v635
        %v1071 = vpop.f32.mrb[0].mxu0
        %v1072 = vadd.f32 0.0, %v1071
        %v1073 = vpop.f32.mrb[0].mxu0
        %1074 = vdwg.mxu0
        %v1075 = vmul.f32 %v519, %v519
        %v1076 = vmul.f32 %v520, %v520
        %v1077 = vmul.f32 %v521, %v521
        %v1078 = vmul.f32 %v522, %v522
        %v1080 = vsel %vm530, %v1075, 0
        %v1083 = vsel %vm530, %v1076, 0
        %v1086 = vsel %vm530, %v1077, 0
        %v1089 = vsel %vm530, %v1078, 0
        %1091 = vmatprep.subr.mxu0 0.0
        %1092 = vmatpush1.msra.mxu0 %v526
        %1093 = vmatprep.subr.mxu0 0.0
        %1094 = vmatpush1.msra.mxu0 %v527
        %1095 = vmatprep.subr.mxu0 0.0
        %1096 = vmatpush1.msra.mxu0 %v528
        %1097 = vmatprep.subr.mxu0 0.0
        %1098 = vmatpush1.msra.mxu0 %v529
        %1099 = vmatprep.subr.mxu0 0.0
        %1100 = vmatpush1.msra.mxu0 0.0
        %1101 = vmatprep.subr.mxu0 0.0
        %1102 = vmatpush1.msra.mxu0 0.0
        %1103 = vmatprep.subr.mxu0 0.0
        %1104 = vmatpush1.msra.mxu0 0.0
        %1105 = vmatprep.subr.mxu0 0.0
        %1106 = vmatpush1.msra.mxu0 0.0
        %1107 = vmatprep.subr.mxu0 0.0
        %1108 = vmatpush1.msra.mxu0 0.0
        %1109 = vmatprep.subr.mxu0 0.0
        %1110 = vmatpush1.msra.mxu0 0.0
        %1111 = vmatprep.subr.mxu0 0.0
        %1112 = vmatpush1.msra.mxu0 0.0
        %1113 = vmatprep.subr.mxu0 0.0
        %1114 = vmatpush1.msra.mxu0 0.0
        %1115 = vmatprep.subr.mxu0 0.0
        %1116 = vmatpush1.msra.mxu0 0.0
        %1117 = vmatprep.subr.mxu0 0.0
        %1118 = vmatpush1.msra.mxu0 0.0
        %1119 = vmatprep.subr.mxu0 0.0
        %1120 = vmatpush1.msra.mxu0 0.0
        %1121 = vmatprep.subr.mxu0 0.0
        %1122 = vmatpush1.msra.mxu0 0.0
        %1123 = vmatprep.subr.mxu0 0.0
        %1124 = vmatpush1.msra.mxu0 0.0
        %1125 = vmatprep.subr.mxu0 0.0
        %1126 = vmatpush1.msra.mxu0 0.0
        %1127 = vmatprep.subr.mxu0 0.0
        %1128 = vmatpush1.msra.mxu0 0.0
        %1129 = vmatprep.subr.mxu0 0.0
        %1130 = vmatpush1.msra.mxu0 0.0
        %1131 = vmatprep.subr.mxu0 0.0
        %1132 = vmatpush1.msra.mxu0 0.0
        %1133 = vmatprep.subr.mxu0 0.0
        %1134 = vmatpush1.msra.mxu0 0.0
        %1135 = vmatprep.subr.mxu0 0.0
        %1136 = vmatpush1.msra.mxu0 0.0
        %1137 = vmatprep.subr.mxu0 0.0
        %1138 = vmatpush1.msra.mxu0 0.0
        %1139 = vmatprep.subr.mxu0 0.0
        %1140 = vmatpush1.msra.mxu0 0.0
        %1141 = vmatprep.subr.mxu0 0.0
        %1142 = vmatpush1.msra.mxu0 0.0
        %1143 = vmatprep.subr.mxu0 0.0
        %1144 = vmatpush1.msra.mxu0 0.0
        %1145 = vmatprep.subr.mxu0 0.0
        %1146 = vmatpush1.msra.mxu0 0.0
        %1147 = vmatprep.subr.mxu0 0.0
        %1148 = vmatpush1.msra.mxu0 0.0
        %1149 = vmatprep.subr.mxu0 0.0
        %1150 = vmatpush1.msra.mxu0 0.0
        %1151 = vmatprep.subr.mxu0 0.0
        %1152 = vmatpush1.msra.mxu0 0.0
        %1153 = vmatprep.subr.mxu0 0.0
        %1154 = vmatpush1.msra.mxu0 0.0
        %1155 = vmatprep.mubr.f32.mxu0 0.0
        %1156 = vmatmul.mubr.f32.gmra.mrb[0].mxu0 %v1080
        %v1157 = vpop.f32.mrb[0].mxu0
        %v1158 = vadd.f32 0.0, %v1157
        %v1159 = vpop.f32.mrb[0].mxu0
        %1160 = vmatprep.mubr.f32.mxu0 0.0
        %1161 = vmatmul.mubr.f32.gmra.mrb[0].mxu0 %v1083
        %v1162 = vpop.f32.mrb[0].mxu0
        %v1163 = vadd.f32 0.0, %v1162
        %v1164 = vpop.f32.mrb[0].mxu0
        %1165 = vmatprep.mubr.f32.mxu0 0.0
        %1166 = vmatmul.mubr.f32.gmra.mrb[0].mxu0 %v1086
        %v1167 = vpop.f32.mrb[0].mxu0
        %v1168 = vadd.f32 0.0, %v1167
        %v1169 = vpop.f32.mrb[0].mxu0
        %1170 = vmatprep.mubr.f32.mxu0 0.0
        %1171 = vmatmul.mubr.f32.gmra.mrb[0].mxu0 %v1089
        %v1172 = vpop.f32.mrb[0].mxu0
        %v1173 = vadd.f32 0.0, %v1172
        %v1174 = vpop.f32.mrb[0].mxu0
        %1175 = vdwg.mxu0
        %1176 = vmatprep.subr.mxu0 0.0
        %1177 = vmatpush1.msra.mxu0 %v1158
        %1178 = vmatprep.subr.mxu0 0.0
        %1179 = vmatpush1.msra.mxu0 %v1163
        %1180 = vmatprep.subr.mxu0 0.0
        %1181 = vmatpush1.msra.mxu0 %v1168
        %1182 = vmatprep.subr.mxu0 0.0
        %1183 = vmatpush1.msra.mxu0 %v1173
        %1184 = vmatprep.subr.mxu0 0.0
        %1185 = vmatpush1.msra.mxu0 0.0
        %1186 = vmatprep.subr.mxu0 0.0
        %1187 = vmatpush1.msra.mxu0 0.0
        %1188 = vmatprep.subr.mxu0 0.0
        %1189 = vmatpush1.msra.mxu0 0.0
        %1190 = vmatprep.subr.mxu0 0.0
        %1191 = vmatpush1.msra.mxu0 0.0
        %1192 = vmatprep.subr.mxu0 0.0
        %1193 = vmatpush1.msra.mxu0 0.0
        %1194 = vmatprep.subr.mxu0 0.0
        %1195 = vmatpush1.msra.mxu0 0.0
        %1196 = vmatprep.subr.mxu0 0.0
        %1197 = vmatpush1.msra.mxu0 0.0
        %1198 = vmatprep.subr.mxu0 0.0
        %1199 = vmatpush1.msra.mxu0 0.0
        %1200 = vmatprep.subr.mxu0 0.0
        %1201 = vmatpush1.msra.mxu0 0.0
        %1202 = vmatprep.subr.mxu0 0.0
        %1203 = vmatpush1.msra.mxu0 0.0
        %1204 = vmatprep.subr.mxu0 0.0
        %1205 = vmatpush1.msra.mxu0 0.0
        %1206 = vmatprep.subr.mxu0 0.0
        %1207 = vmatpush1.msra.mxu0 0.0
        %1208 = vmatprep.subr.mxu0 0.0
        %1209 = vmatpush1.msra.mxu0 0.0
        %1210 = vmatprep.subr.mxu0 0.0
        %1211 = vmatpush1.msra.mxu0 0.0
        %1212 = vmatprep.subr.mxu0 0.0
        %1213 = vmatpush1.msra.mxu0 0.0
        %1214 = vmatprep.subr.mxu0 0.0
        %1215 = vmatpush1.msra.mxu0 0.0
        %1216 = vmatprep.subr.mxu0 0.0
        %1217 = vmatpush1.msra.mxu0 0.0
        %1218 = vmatprep.subr.mxu0 0.0
        %1219 = vmatpush1.msra.mxu0 0.0
        %1220 = vmatprep.subr.mxu0 0.0
        %1221 = vmatpush1.msra.mxu0 0.0
        %1222 = vmatprep.subr.mxu0 0.0
        %1223 = vmatpush1.msra.mxu0 0.0
        %1224 = vmatprep.subr.mxu0 0.0
        %1225 = vmatpush1.msra.mxu0 0.0
        %1226 = vmatprep.subr.mxu0 0.0
        %1227 = vmatpush1.msra.mxu0 0.0
        %1228 = vmatprep.subr.mxu0 0.0
        %1229 = vmatpush1.msra.mxu0 0.0
        %1230 = vmatprep.subr.mxu0 0.0
        %1231 = vmatpush1.msra.mxu0 0.0
        %1232 = vmatprep.subr.mxu0 0.0
        %1233 = vmatpush1.msra.mxu0 0.0
        %1234 = vmatprep.subr.mxu0 0.0
        %1235 = vmatpush1.msra.mxu0 0.0
        %1236 = vmatprep.subr.mxu0 0.0
        %1237 = vmatpush1.msra.mxu0 0.0
        %1238 = vmatprep.subr.mxu0 0.0
        %1239 = vmatpush1.msra.mxu0 0.0
        %1240 = vmatprep.mubr.f32.mxu0 0.0
        %1241 = vmatmul.mubr.f32.gmra.mrb[0].mxu0 %v629
        %v1242 = vpop.f32.mrb[0].mxu0
        %v1243 = vadd.f32 0.0, %v1242
        %v1244 = vpop.f32.mrb[0].mxu0
        %1245 = vmatprep.mubr.f32.mxu0 0.0
        %1246 = vmatmul.mubr.f32.gmra.mrb[0].mxu0 %v632
        %v1247 = vpop.f32.mrb[0].mxu0
        %v1248 = vadd.f32 0.0, %v1247
        %v1249 = vpop.f32.mrb[0].mxu0
        %1250 = vmatprep.mubr.f32.mxu0 0.0
        %1251 = vmatmul.mubr.f32.gmra.mrb[0].mxu0 %v635
        %v1252 = vpop.f32.mrb[0].mxu0
        %v1253 = vadd.f32 0.0, %v1252
        %v1254 = vpop.f32.mrb[0].mxu0
        %1255 = vdwg.mxu0
        %v1256 = vmul.f32 %v515, %v519
        %v1257 = vmul.f32 %v516, %v520
        %v1258 = vmul.f32 %v517, %v521
        %v1259 = vmul.f32 %v518, %v522
        %v1261 = vsel %vm530, %v1256, 0
        %v1264 = vsel %vm530, %v1257, 0
        %v1267 = vsel %vm530, %v1258, 0
        %v1270 = vsel %vm530, %v1259, 0
        %1272 = vmatprep.subr.mxu0 0.0
        %1273 = vmatpush1.msra.mxu0 %v526
        %1274 = vmatprep.subr.mxu0 0.0
        %1275 = vmatpush1.msra.mxu0 %v527
        %1276 = vmatprep.subr.mxu0 0.0
        %1277 = vmatpush1.msra.mxu0 %v528
        %1278 = vmatprep.subr.mxu0 0.0
        %1279 = vmatpush1.msra.mxu0 %v529
        %1280 = vmatprep.subr.mxu0 0.0
        %1281 = vmatpush1.msra.mxu0 0.0
        %1282 = vmatprep.subr.mxu0 0.0
        %1283 = vmatpush1.msra.mxu0 0.0
        %1284 = vmatprep.subr.mxu0 0.0
        %1285 = vmatpush1.msra.mxu0 0.0
        %1286 = vmatprep.subr.mxu0 0.0
        %1287 = vmatpush1.msra.mxu0 0.0
        %1288 = vmatprep.subr.mxu0 0.0
        %1289 = vmatpush1.msra.mxu0 0.0
        %1290 = vmatprep.subr.mxu0 0.0
        %1291 = vmatpush1.msra.mxu0 0.0
        %1292 = vmatprep.subr.mxu0 0.0
        %1293 = vmatpush1.msra.mxu0 0.0
        %1294 = vmatprep.subr.mxu0 0.0
        %1295 = vmatpush1.msra.mxu0 0.0
        %1296 = vmatprep.subr.mxu0 0.0
        %1297 = vmatpush1.msra.mxu0 0.0
        %1298 = vmatprep.subr.mxu0 0.0
        %1299 = vmatpush1.msra.mxu0 0.0
        %1300 = vmatprep.subr.mxu0 0.0
        %1301 = vmatpush1.msra.mxu0 0.0
        %1302 = vmatprep.subr.mxu0 0.0
        %1303 = vmatpush1.msra.mxu0 0.0
        %1304 = vmatprep.subr.mxu0 0.0
        %1305 = vmatpush1.msra.mxu0 0.0
        %1306 = vmatprep.subr.mxu0 0.0
        %1307 = vmatpush1.msra.mxu0 0.0
        %1308 = vmatprep.subr.mxu0 0.0
        %1309 = vmatpush1.msra.mxu0 0.0
        %1310 = vmatprep.subr.mxu0 0.0
        %1311 = vmatpush1.msra.mxu0 0.0
        %1312 = vmatprep.subr.mxu0 0.0
        %1313 = vmatpush1.msra.mxu0 0.0
        %1314 = vmatprep.subr.mxu0 0.0
        %1315 = vmatpush1.msra.mxu0 0.0
        %1316 = vmatprep.subr.mxu0 0.0
        %1317 = vmatpush1.msra.mxu0 0.0
        %1318 = vmatprep.subr.mxu0 0.0
        %1319 = vmatpush1.msra.mxu0 0.0
        %1320 = vmatprep.subr.mxu0 0.0
        %1321 = vmatpush1.msra.mxu0 0.0
        %1322 = vmatprep.subr.mxu0 0.0
        %1323 = vmatpush1.msra.mxu0 0.0
        %1324 = vmatprep.subr.mxu0 0.0
        %1325 = vmatpush1.msra.mxu0 0.0
        %1326 = vmatprep.subr.mxu0 0.0
        %1327 = vmatpush1.msra.mxu0 0.0
        %1328 = vmatprep.subr.mxu0 0.0
        %1329 = vmatpush1.msra.mxu0 0.0
        %1330 = vmatprep.subr.mxu0 0.0
        %1331 = vmatpush1.msra.mxu0 0.0
        %1332 = vmatprep.subr.mxu0 0.0
        %1333 = vmatpush1.msra.mxu0 0.0
        %1334 = vmatprep.subr.mxu0 0.0
        %1335 = vmatpush1.msra.mxu0 0.0
        %1336 = vmatprep.mubr.f32.mxu0 0.0
        %1337 = vmatmul.mubr.f32.gmra.mrb[0].mxu0 %v1261
        %v1338 = vpop.f32.mrb[0].mxu0
        %v1339 = vadd.f32 0.0, %v1338
        %v1340 = vpop.f32.mrb[0].mxu0
        %1341 = vmatprep.mubr.f32.mxu0 0.0
        %1342 = vmatmul.mubr.f32.gmra.mrb[0].mxu0 %v1264
        %v1343 = vpop.f32.mrb[0].mxu0
        %v1344 = vadd.f32 0.0, %v1343
        %v1345 = vpop.f32.mrb[0].mxu0
        %1346 = vmatprep.mubr.f32.mxu0 0.0
        %1347 = vmatmul.mubr.f32.gmra.mrb[0].mxu0 %v1267
        %v1348 = vpop.f32.mrb[0].mxu0
        %v1349 = vadd.f32 0.0, %v1348
        %v1350 = vpop.f32.mrb[0].mxu0
        %1351 = vmatprep.mubr.f32.mxu0 0.0
        %1352 = vmatmul.mubr.f32.gmra.mrb[0].mxu0 %v1270
        %v1353 = vpop.f32.mrb[0].mxu0
        %v1354 = vadd.f32 0.0, %v1353
        %v1355 = vpop.f32.mrb[0].mxu0
        %1356 = vdwg.mxu0
        %1357 = vmatprep.subr.mxu0 0.0
        %1358 = vmatpush1.msra.mxu0 %v1339
        %1359 = vmatprep.subr.mxu0 0.0
        %1360 = vmatpush1.msra.mxu0 %v1344
        %1361 = vmatprep.subr.mxu0 0.0
        %1362 = vmatpush1.msra.mxu0 %v1349
        %1363 = vmatprep.subr.mxu0 0.0
        %1364 = vmatpush1.msra.mxu0 %v1354
        %1365 = vmatprep.subr.mxu0 0.0
        %1366 = vmatpush1.msra.mxu0 0.0
        %1367 = vmatprep.subr.mxu0 0.0
        %1368 = vmatpush1.msra.mxu0 0.0
        %1369 = vmatprep.subr.mxu0 0.0
        %1370 = vmatpush1.msra.mxu0 0.0
        %1371 = vmatprep.subr.mxu0 0.0
        %1372 = vmatpush1.msra.mxu0 0.0
        %1373 = vmatprep.subr.mxu0 0.0
        %1374 = vmatpush1.msra.mxu0 0.0
        %1375 = vmatprep.subr.mxu0 0.0
        %1376 = vmatpush1.msra.mxu0 0.0
        %1377 = vmatprep.subr.mxu0 0.0
        %1378 = vmatpush1.msra.mxu0 0.0
        %1379 = vmatprep.subr.mxu0 0.0
        %1380 = vmatpush1.msra.mxu0 0.0
        %1381 = vmatprep.subr.mxu0 0.0
        %1382 = vmatpush1.msra.mxu0 0.0
        %1383 = vmatprep.subr.mxu0 0.0
        %1384 = vmatpush1.msra.mxu0 0.0
        %1385 = vmatprep.subr.mxu0 0.0
        %1386 = vmatpush1.msra.mxu0 0.0
        %1387 = vmatprep.subr.mxu0 0.0
        %1388 = vmatpush1.msra.mxu0 0.0
        %1389 = vmatprep.subr.mxu0 0.0
        %1390 = vmatpush1.msra.mxu0 0.0
        %1391 = vmatprep.subr.mxu0 0.0
        %1392 = vmatpush1.msra.mxu0 0.0
        %1393 = vmatprep.subr.mxu0 0.0
        %1394 = vmatpush1.msra.mxu0 0.0
        %1395 = vmatprep.subr.mxu0 0.0
        %1396 = vmatpush1.msra.mxu0 0.0
        %1397 = vmatprep.subr.mxu0 0.0
        %1398 = vmatpush1.msra.mxu0 0.0
        %1399 = vmatprep.subr.mxu0 0.0
        %1400 = vmatpush1.msra.mxu0 0.0
        %1401 = vmatprep.subr.mxu0 0.0
        %1402 = vmatpush1.msra.mxu0 0.0
        %1403 = vmatprep.subr.mxu0 0.0
        %1404 = vmatpush1.msra.mxu0 0.0
        %1405 = vmatprep.subr.mxu0 0.0
        %1406 = vmatpush1.msra.mxu0 0.0
        %1407 = vmatprep.subr.mxu0 0.0
        %1408 = vmatpush1.msra.mxu0 0.0
        %1409 = vmatprep.subr.mxu0 0.0
        %1410 = vmatpush1.msra.mxu0 0.0
        %1411 = vmatprep.subr.mxu0 0.0
        %1412 = vmatpush1.msra.mxu0 0.0
        %1413 = vmatprep.subr.mxu0 0.0
        %1414 = vmatpush1.msra.mxu0 0.0
        %1415 = vmatprep.subr.mxu0 0.0
        %1416 = vmatpush1.msra.mxu0 0.0
        %1417 = vmatprep.subr.mxu0 0.0
        %1418 = vmatpush1.msra.mxu0 0.0
        %1419 = vmatprep.subr.mxu0 0.0
        %1420 = vmatpush1.msra.mxu0 0.0
        %1421 = vmatprep.mubr.f32.mxu0 0.0
        %1422 = vmatmul.mubr.f32.gmra.mrb[0].mxu0 %v629
        %v1423 = vpop.f32.mrb[0].mxu0
        %v1424 = vadd.f32 0.0, %v1423
        %v1425 = vpop.f32.mrb[0].mxu0
        %1426 = vmatprep.mubr.f32.mxu0 0.0
        %1427 = vmatmul.mubr.f32.gmra.mrb[0].mxu0 %v632
        %v1428 = vpop.f32.mrb[0].mxu0
        %v1429 = vadd.f32 0.0, %v1428
        %v1430 = vpop.f32.mrb[0].mxu0
        %1431 = vmatprep.mubr.f32.mxu0 0.0
        %1432 = vmatmul.mubr.f32.gmra.mrb[0].mxu0 %v635
        %v1433 = vpop.f32.mrb[0].mxu0
        %v1434 = vadd.f32 0.0, %v1433
        %v1435 = vpop.f32.mrb[0].mxu0
        %1436 = vdwg.mxu0
        %v1437 = vmul.f32 %v704, %v704
        %v1438 = vmul.f32 %v709, %v709
        %v1439 = vmul.f32 %v714, %v714
        %v1440 = vmul.f32 %v881, %v881
        %v1441 = vmul.f32 %v886, %v886
        %v1442 = vmul.f32 %v891, %v891
        %v1443 = vmul.f32 %v704, %v881
        %v1444 = vmul.f32 %v709, %v886
        %v1445 = vmul.f32 %v714, %v891
        %v1446 = vsub.f32 %v1062, %v1437
        %v1447 = vsub.f32 %v1067, %v1438
        %v1448 = vsub.f32 %v1072, %v1439
        %v1449 = vsub.f32 %v1243, %v1440
        %v1450 = vsub.f32 %v1248, %v1441
        %v1451 = vsub.f32 %v1253, %v1442
        %v1452 = vsub.f32 %v1424, %v1443
        %v1453 = vsub.f32 %v1429, %v1444
        %v1454 = vsub.f32 %v1434, %v1445
        %v1455 = vmul.f32 %v1452, 2.0
        %v1456 = vmul.f32 %v1453, 2.0
        %v1457 = vmul.f32 %v1454, 2.0
        %v1458 = vstv %s514
        %v1459 = vadd.f32 %v1455, %v1458
        %v1460 = vadd.f32 %v1456, %v1458
        %v1461 = vadd.f32 %v1457, %v1458
        %v1462 = vadd.f32 %v1446, %v1449
        %v1463 = vadd.f32 %v1447, %v1450
        %v1464 = vadd.f32 %v1448, %v1451
        %v1465 = vadd.f32 %v1462, %v1458
        %v1466 = vadd.f32 %v1463, %v1458
        %v1467 = vadd.f32 %v1464, %v1458
        %v1468 = vrcp.pop %v1465
        %v1469 = vrcp.pop %v1466
        %v1470 = vrcp.pop %v1467
        %v1471 = vmul.f32 %v1459, %v1468
        %v1472 = vmul.f32 %v1460, %v1469
        %v1473 = vmul.f32 %v1461, %v1470
        %v1474 = vadd.f32 %v1437, %v1440
        %v1475 = vadd.f32 %v1438, %v1441
        %v1476 = vadd.f32 %v1439, %v1442
        %v1477 = vstv %s513
        %v1478 = vadd.f32 %v1474, %v1477
        %v1479 = vadd.f32 %v1475, %v1477
        %v1480 = vadd.f32 %v1476, %v1477
        %v1481 = vrcp.pop %v1478
        %v1482 = vrcp.pop %v1479
        %v1483 = vrcp.pop %v1480
        %v1484 = vmul.f32 %v1443, 2.0
        %v1485 = vmul.f32 %v1444, 2.0
        %v1486 = vmul.f32 %v1445, 2.0
        %v1487 = vadd.f32 %v1484, %v1477
        %v1488 = vadd.f32 %v1485, %v1477
        %v1489 = vadd.f32 %v1486, %v1477
        %v1490 = vmul.f32 %v1487, %v1481
        %v1491 = vmul.f32 %v1488, %v1482
        %v1492 = vmul.f32 %v1489, %v1483
        %v1493 = vmul.f32 %v1490, %v1471
        %v1494 = vmul.f32 %v1491, %v1472
        %v1495 = vmul.f32 %v1492, %v1473
        %vm1496 = vcmask 179200
        %v1497 = vsel %vm1496, %v1493, 0.0
        %v1498 = vsel %vm1496, %v1494, 0.0
        %v1499 = vadd.f32 %v1497, %v1498
        %vm1500 = vcmask 177152
        %v1501 = vsel %vm1500, %v1495, 0.0
        %v1502 = vadd.f32 %v1499, %v1501
        %1503 = vadd.xlane.f32.xlu0 %v1502
        %v1504 = vpop.xlane.xlu0 %1503
        %v1505 = vrot.slane %v1504, 4
        %v1506 = vadd.f32 %v1504, %v1505
        %v1507 = vrot.slane %v1506, 2
        %v1508 = vadd.f32 %v1506, %v1507
        %v1509 = vrot.slane %v1508, 1
        %v1510 = vadd.f32 %v1508, %v1509
        %s1511 = vtos %v1510
        %v1512 = vstv %s1511
        %vm1513 = vcmask 0
        %1514 = vst.msk [vmem:[%s493] sm:$0x1] %vm1513, %v1512
        %v1515 = vsel %vm1496, %v1471, 0.0
        %v1516 = vsel %vm1496, %v1472, 0.0
        %v1517 = vadd.f32 %v1515, %v1516
        %v1518 = vsel %vm1500, %v1473, 0.0
        %v1519 = vadd.f32 %v1517, %v1518
        %1520 = vadd.xlane.f32.xlu0 %v1519
        %v1521 = vpop.xlane.xlu0 %1520
        %v1522 = vrot.slane %v1521, 4
        %v1523 = vadd.f32 %v1521, %v1522
        %v1524 = vrot.slane %v1523, 2
        %v1525 = vadd.f32 %v1523, %v1524
        %v1526 = vrot.slane %v1525, 1
        %v1527 = vadd.f32 %v1525, %v1526
        %s1528 = vtos %v1527
        %v1529 = vstv %s1528
        %1530 = vst.msk [vmem:[%s496] sm:$0x1] %vm1513, %v1529
        %v1531 = vld [vmem:[%s5] sm:$0xff]
        %v1532 = vld [vmem:[%s5 + $0x8] sm:$0xff]
        %v1533 = vld [vmem:[%s6] sm:$0xff]
        %v1534 = vld [vmem:[%s6 + $0x8] sm:$0xff]
        %v1535 = vld [vmem:[%s6 + $0x10] sm:$0xff]
        %v1536 = vld [vmem:[%s6 + $0x18] sm:$0xff]
        %v1538 = vsel %vm530, %v1531, 0
        %v1541 = vsel %vm530, %v1532, 0
        %1543 = vmatprep.subr.mxu0 0.0
        %1544 = vmatpush1.msra.mxu0 %v515
        %1545 = vmatprep.subr.mxu0 0.0
        %1546 = vmatpush1.msra.mxu0 %v516
        %1547 = vmatprep.subr.mxu0 0.0
        %1548 = vmatpush1.msra.mxu0 %v517
        %1549 = vmatprep.subr.mxu0 0.0
        %1550 = vmatpush1.msra.mxu0 %v518
        %1551 = vmatprep.subr.mxu0 0.0
        %1552 = vmatpush1.msra.mxu0 0.0
        %1553 = vmatprep.subr.mxu0 0.0
        %1554 = vmatpush1.msra.mxu0 0.0
        %1555 = vmatprep.subr.mxu0 0.0
        %1556 = vmatpush1.msra.mxu0 0.0
        %1557 = vmatprep.subr.mxu0 0.0
        %1558 = vmatpush1.msra.mxu0 0.0
        %1559 = vmatprep.subr.mxu0 0.0
        %1560 = vmatpush1.msra.mxu0 0.0
        %1561 = vmatprep.subr.mxu0 0.0
        %1562 = vmatpush1.msra.mxu0 0.0
        %1563 = vmatprep.subr.mxu0 0.0
        %1564 = vmatpush1.msra.mxu0 0.0
        %1565 = vmatprep.subr.mxu0 0.0
        %1566 = vmatpush1.msra.mxu0 0.0
        %1567 = vmatprep.subr.mxu0 0.0
        %1568 = vmatpush1.msra.mxu0 0.0
        %1569 = vmatprep.subr.mxu0 0.0
        %1570 = vmatpush1.msra.mxu0 0.0
        %1571 = vmatprep.subr.mxu0 0.0
        %1572 = vmatpush1.msra.mxu0 0.0
        %1573 = vmatprep.subr.mxu0 0.0
        %1574 = vmatpush1.msra.mxu0 0.0
        %1575 = vmatprep.subr.mxu0 0.0
        %1576 = vmatpush1.msra.mxu0 0.0
        %1577 = vmatprep.subr.mxu0 0.0
        %1578 = vmatpush1.msra.mxu0 0.0
        %1579 = vmatprep.subr.mxu0 0.0
        %1580 = vmatpush1.msra.mxu0 0.0
        %1581 = vmatprep.subr.mxu0 0.0
        %1582 = vmatpush1.msra.mxu0 0.0
        %1583 = vmatprep.subr.mxu0 0.0
        %1584 = vmatpush1.msra.mxu0 0.0
        %1585 = vmatprep.subr.mxu0 0.0
        %1586 = vmatpush1.msra.mxu0 0.0
        %1587 = vmatprep.subr.mxu0 0.0
        %1588 = vmatpush1.msra.mxu0 0.0
        %1589 = vmatprep.subr.mxu0 0.0
        %1590 = vmatpush1.msra.mxu0 0.0
        %1591 = vmatprep.subr.mxu0 0.0
        %1592 = vmatpush1.msra.mxu0 0.0
        %1593 = vmatprep.subr.mxu0 0.0
        %1594 = vmatpush1.msra.mxu0 0.0
        %1595 = vmatprep.subr.mxu0 0.0
        %1596 = vmatpush1.msra.mxu0 0.0
        %1597 = vmatprep.subr.mxu0 0.0
        %1598 = vmatpush1.msra.mxu0 0.0
        %1599 = vmatprep.subr.mxu0 0.0
        %1600 = vmatpush1.msra.mxu0 0.0
        %1601 = vmatprep.subr.mxu0 0.0
        %1602 = vmatpush1.msra.mxu0 0.0
        %1603 = vmatprep.subr.mxu0 0.0
        %1604 = vmatpush1.msra.mxu0 0.0
        %1605 = vmatprep.subr.mxu0 0.0
        %1606 = vmatpush1.msra.mxu0 0.0
        %1607 = vmatprep.mubr.f32.mxu0 0.0
        %1608 = vmatmul.mubr.f32.gmra.mrb[0].mxu0 %v1538
        %v1609 = vpop.f32.mrb[0].mxu0
        %v1610 = vadd.f32 0.0, %v1609
        %v1611 = vpop.f32.mrb[0].mxu0
        %1612 = vmatprep.mubr.f32.mxu0 0.0
        %1613 = vmatmul.mubr.f32.gmra.mrb[0].mxu0 %v1541
        %v1614 = vpop.f32.mrb[0].mxu0
        %v1615 = vadd.f32 0.0, %v1614
        %v1616 = vpop.f32.mrb[0].mxu0
        %1617 = vdwg.mxu0
        %v1619 = vsel %vm530, %v1610, 0
        %v1622 = vsel %vm530, %v1615, 0
        %1624 = vmatprep.subr.mxu0 0.0
        %1625 = vmatpush1.msra.mxu0 %v1533
        %1626 = vmatprep.subr.mxu0 0.0
        %1627 = vmatpush1.msra.mxu0 %v1534
        %1628 = vmatprep.subr.mxu0 0.0
        %1629 = vmatpush1.msra.mxu0 %v1535
        %1630 = vmatprep.subr.mxu0 0.0
        %1631 = vmatpush1.msra.mxu0 %v1536
        %1632 = vmatprep.subr.mxu0 0.0
        %1633 = vmatpush1.msra.mxu0 0.0
        %1634 = vmatprep.subr.mxu0 0.0
        %1635 = vmatpush1.msra.mxu0 0.0
        %1636 = vmatprep.subr.mxu0 0.0
        %1637 = vmatpush1.msra.mxu0 0.0
        %1638 = vmatprep.subr.mxu0 0.0
        %1639 = vmatpush1.msra.mxu0 0.0
        %1640 = vmatprep.subr.mxu0 0.0
        %1641 = vmatpush1.msra.mxu0 0.0
        %1642 = vmatprep.subr.mxu0 0.0
        %1643 = vmatpush1.msra.mxu0 0.0
        %1644 = vmatprep.subr.mxu0 0.0
        %1645 = vmatpush1.msra.mxu0 0.0
        %1646 = vmatprep.subr.mxu0 0.0
        %1647 = vmatpush1.msra.mxu0 0.0
        %1648 = vmatprep.subr.mxu0 0.0
        %1649 = vmatpush1.msra.mxu0 0.0
        %1650 = vmatprep.subr.mxu0 0.0
        %1651 = vmatpush1.msra.mxu0 0.0
        %1652 = vmatprep.subr.mxu0 0.0
        %1653 = vmatpush1.msra.mxu0 0.0
        %1654 = vmatprep.subr.mxu0 0.0
        %1655 = vmatpush1.msra.mxu0 0.0
        %1656 = vmatprep.subr.mxu0 0.0
        %1657 = vmatpush1.msra.mxu0 0.0
        %1658 = vmatprep.subr.mxu0 0.0
        %1659 = vmatpush1.msra.mxu0 0.0
        %1660 = vmatprep.subr.mxu0 0.0
        %1661 = vmatpush1.msra.mxu0 0.0
        %1662 = vmatprep.subr.mxu0 0.0
        %1663 = vmatpush1.msra.mxu0 0.0
        %1664 = vmatprep.subr.mxu0 0.0
        %1665 = vmatpush1.msra.mxu0 0.0
        %1666 = vmatprep.subr.mxu0 0.0
        %1667 = vmatpush1.msra.mxu0 0.0
        %1668 = vmatprep.subr.mxu0 0.0
        %1669 = vmatpush1.msra.mxu0 0.0
        %1670 = vmatprep.subr.mxu0 0.0
        %1671 = vmatpush1.msra.mxu0 0.0
        %1672 = vmatprep.subr.mxu0 0.0
        %1673 = vmatpush1.msra.mxu0 0.0
        %1674 = vmatprep.subr.mxu0 0.0
        %1675 = vmatpush1.msra.mxu0 0.0
        %1676 = vmatprep.subr.mxu0 0.0
        %1677 = vmatpush1.msra.mxu0 0.0
        %1678 = vmatprep.subr.mxu0 0.0
        %1679 = vmatpush1.msra.mxu0 0.0
        %1680 = vmatprep.subr.mxu0 0.0
        %1681 = vmatpush1.msra.mxu0 0.0
        %1682 = vmatprep.subr.mxu0 0.0
        %1683 = vmatpush1.msra.mxu0 0.0
        %1684 = vmatprep.subr.mxu0 0.0
        %1685 = vmatpush1.msra.mxu0 0.0
        %1686 = vmatprep.subr.mxu0 0.0
        %1687 = vmatpush1.msra.mxu0 0.0
        %1688 = vmatprep.mubr.f32.mxu0 0.0
        %1689 = vmatmul.mubr.f32.gmra.mrb[0].mxu0 %v1619
        %v1690 = vpop.f32.mrb[0].mxu0
        %v1691 = vadd.f32 0.0, %v1690
        %v1692 = vpop.f32.mrb[0].mxu0
        %1693 = vmatprep.mubr.f32.mxu0 0.0
        %1694 = vmatmul.mubr.f32.gmra.mrb[0].mxu0 %v1622
        %v1695 = vpop.f32.mrb[0].mxu0
        %v1696 = vadd.f32 0.0, %v1695
        %v1697 = vpop.f32.mrb[0].mxu0
        %1698 = vdwg.mxu0
        %1699 = vmatprep.subr.mxu0 0.0
        %1700 = vmatpush1.msra.mxu0 %v519
        %1701 = vmatprep.subr.mxu0 0.0
        %1702 = vmatpush1.msra.mxu0 %v520
        %1703 = vmatprep.subr.mxu0 0.0
        %1704 = vmatpush1.msra.mxu0 %v521
        %1705 = vmatprep.subr.mxu0 0.0
        %1706 = vmatpush1.msra.mxu0 %v522
        %1707 = vmatprep.subr.mxu0 0.0
        %1708 = vmatpush1.msra.mxu0 0.0
        %1709 = vmatprep.subr.mxu0 0.0
        %1710 = vmatpush1.msra.mxu0 0.0
        %1711 = vmatprep.subr.mxu0 0.0
        %1712 = vmatpush1.msra.mxu0 0.0
        %1713 = vmatprep.subr.mxu0 0.0
        %1714 = vmatpush1.msra.mxu0 0.0
        %1715 = vmatprep.subr.mxu0 0.0
        %1716 = vmatpush1.msra.mxu0 0.0
        %1717 = vmatprep.subr.mxu0 0.0
        %1718 = vmatpush1.msra.mxu0 0.0
        %1719 = vmatprep.subr.mxu0 0.0
        %1720 = vmatpush1.msra.mxu0 0.0
        %1721 = vmatprep.subr.mxu0 0.0
        %1722 = vmatpush1.msra.mxu0 0.0
        %1723 = vmatprep.subr.mxu0 0.0
        %1724 = vmatpush1.msra.mxu0 0.0
        %1725 = vmatprep.subr.mxu0 0.0
        %1726 = vmatpush1.msra.mxu0 0.0
        %1727 = vmatprep.subr.mxu0 0.0
        %1728 = vmatpush1.msra.mxu0 0.0
        %1729 = vmatprep.subr.mxu0 0.0
        %1730 = vmatpush1.msra.mxu0 0.0
        %1731 = vmatprep.subr.mxu0 0.0
        %1732 = vmatpush1.msra.mxu0 0.0
        %1733 = vmatprep.subr.mxu0 0.0
        %1734 = vmatpush1.msra.mxu0 0.0
        %1735 = vmatprep.subr.mxu0 0.0
        %1736 = vmatpush1.msra.mxu0 0.0
        %1737 = vmatprep.subr.mxu0 0.0
        %1738 = vmatpush1.msra.mxu0 0.0
        %1739 = vmatprep.subr.mxu0 0.0
        %1740 = vmatpush1.msra.mxu0 0.0
        %1741 = vmatprep.subr.mxu0 0.0
        %1742 = vmatpush1.msra.mxu0 0.0
        %1743 = vmatprep.subr.mxu0 0.0
        %1744 = vmatpush1.msra.mxu0 0.0
        %1745 = vmatprep.subr.mxu0 0.0
        %1746 = vmatpush1.msra.mxu0 0.0
        %1747 = vmatprep.subr.mxu0 0.0
        %1748 = vmatpush1.msra.mxu0 0.0
        %1749 = vmatprep.subr.mxu0 0.0
        %1750 = vmatpush1.msra.mxu0 0.0
        %1751 = vmatprep.subr.mxu0 0.0
        %1752 = vmatpush1.msra.mxu0 0.0
        %1753 = vmatprep.subr.mxu0 0.0
        %1754 = vmatpush1.msra.mxu0 0.0
        %1755 = vmatprep.subr.mxu0 0.0
        %1756 = vmatpush1.msra.mxu0 0.0
        %1757 = vmatprep.subr.mxu0 0.0
        %1758 = vmatpush1.msra.mxu0 0.0
        %1759 = vmatprep.subr.mxu0 0.0
        %1760 = vmatpush1.msra.mxu0 0.0
        %1761 = vmatprep.subr.mxu0 0.0
        %1762 = vmatpush1.msra.mxu0 0.0
        %1763 = vmatprep.mubr.f32.mxu0 0.0
        %1764 = vmatmul.mubr.f32.gmra.mrb[0].mxu0 %v1538
        %v1765 = vpop.f32.mrb[0].mxu0
        %v1766 = vadd.f32 0.0, %v1765
        %v1767 = vpop.f32.mrb[0].mxu0
        %1768 = vmatprep.mubr.f32.mxu0 0.0
        %1769 = vmatmul.mubr.f32.gmra.mrb[0].mxu0 %v1541
        %v1770 = vpop.f32.mrb[0].mxu0
        %v1771 = vadd.f32 0.0, %v1770
        %v1772 = vpop.f32.mrb[0].mxu0
        %1773 = vdwg.mxu0
        %v1775 = vsel %vm530, %v1766, 0
        %v1778 = vsel %vm530, %v1771, 0
        %1780 = vmatprep.subr.mxu0 0.0
        %1781 = vmatpush1.msra.mxu0 %v1533
        %1782 = vmatprep.subr.mxu0 0.0
        %1783 = vmatpush1.msra.mxu0 %v1534
        %1784 = vmatprep.subr.mxu0 0.0
        %1785 = vmatpush1.msra.mxu0 %v1535
        %1786 = vmatprep.subr.mxu0 0.0
        %1787 = vmatpush1.msra.mxu0 %v1536
        %1788 = vmatprep.subr.mxu0 0.0
        %1789 = vmatpush1.msra.mxu0 0.0
        %1790 = vmatprep.subr.mxu0 0.0
        %1791 = vmatpush1.msra.mxu0 0.0
        %1792 = vmatprep.subr.mxu0 0.0
        %1793 = vmatpush1.msra.mxu0 0.0
        %1794 = vmatprep.subr.mxu0 0.0
        %1795 = vmatpush1.msra.mxu0 0.0
        %1796 = vmatprep.subr.mxu0 0.0
        %1797 = vmatpush1.msra.mxu0 0.0
        %1798 = vmatprep.subr.mxu0 0.0
        %1799 = vmatpush1.msra.mxu0 0.0
        %1800 = vmatprep.subr.mxu0 0.0
        %1801 = vmatpush1.msra.mxu0 0.0
        %1802 = vmatprep.subr.mxu0 0.0
        %1803 = vmatpush1.msra.mxu0 0.0
        %1804 = vmatprep.subr.mxu0 0.0
        %1805 = vmatpush1.msra.mxu0 0.0
        %1806 = vmatprep.subr.mxu0 0.0
        %1807 = vmatpush1.msra.mxu0 0.0
        %1808 = vmatprep.subr.mxu0 0.0
        %1809 = vmatpush1.msra.mxu0 0.0
        %1810 = vmatprep.subr.mxu0 0.0
        %1811 = vmatpush1.msra.mxu0 0.0
        %1812 = vmatprep.subr.mxu0 0.0
        %1813 = vmatpush1.msra.mxu0 0.0
        %1814 = vmatprep.subr.mxu0 0.0
        %1815 = vmatpush1.msra.mxu0 0.0
        %1816 = vmatprep.subr.mxu0 0.0
        %1817 = vmatpush1.msra.mxu0 0.0
        %1818 = vmatprep.subr.mxu0 0.0
        %1819 = vmatpush1.msra.mxu0 0.0
        %1820 = vmatprep.subr.mxu0 0.0
        %1821 = vmatpush1.msra.mxu0 0.0
        %1822 = vmatprep.subr.mxu0 0.0
        %1823 = vmatpush1.msra.mxu0 0.0
        %1824 = vmatprep.subr.mxu0 0.0
        %1825 = vmatpush1.msra.mxu0 0.0
        %1826 = vmatprep.subr.mxu0 0.0
        %1827 = vmatpush1.msra.mxu0 0.0
        %1828 = vmatprep.subr.mxu0 0.0
        %1829 = vmatpush1.msra.mxu0 0.0
        %1830 = vmatprep.subr.mxu0 0.0
        %1831 = vmatpush1.msra.mxu0 0.0
        %1832 = vmatprep.subr.mxu0 0.0
        %1833 = vmatpush1.msra.mxu0 0.0
        %1834 = vmatprep.subr.mxu0 0.0
        %1835 = vmatpush1.msra.mxu0 0.0
        %1836 = vmatprep.subr.mxu0 0.0
        %1837 = vmatpush1.msra.mxu0 0.0
        %1838 = vmatprep.subr.mxu0 0.0
        %1839 = vmatpush1.msra.mxu0 0.0
        %1840 = vmatprep.subr.mxu0 0.0
        %1841 = vmatpush1.msra.mxu0 0.0
        %1842 = vmatprep.subr.mxu0 0.0
        %1843 = vmatpush1.msra.mxu0 0.0
        %1844 = vmatprep.mubr.f32.mxu0 0.0
        %1845 = vmatmul.mubr.f32.gmra.mrb[0].mxu0 %v1775
        %v1846 = vpop.f32.mrb[0].mxu0
        %v1847 = vadd.f32 0.0, %v1846
        %v1848 = vpop.f32.mrb[0].mxu0
        %1849 = vmatprep.mubr.f32.mxu0 0.0
        %1850 = vmatmul.mubr.f32.gmra.mrb[0].mxu0 %v1778
        %v1851 = vpop.f32.mrb[0].mxu0
        %v1852 = vadd.f32 0.0, %v1851
        %v1853 = vpop.f32.mrb[0].mxu0
        %1854 = vdwg.mxu0
        %vm1855 = vcmask 130048
        %1856 = vst.msk [vmem:[%s501] sm:$0xff] %vm1855, %v1691
        %1857 = vst.msk [vmem:[%s501 + $0x8] sm:$0xff] %vm1855, %v1696
        %1858 = vst.msk [vmem:[%s506] sm:$0xff] %vm1855, %v1847
        %1859 = vst.msk [vmem:[%s506 + $0x8] sm:$0xff] %vm1855, %v1852
        %v1860 = vsel %vm1855, %v1691, -inf
        %v1861 = vsel %vm1855, %v1696, -inf
        %v1862 = vmax.f32 %v1860, %v1861
        %1863 = vmax.xlane.f32.xlu0 %v1862
        %v1864 = vpop.xlane.xlu0 %1863
        %v1865 = vrot.slane %v1864, 4
        %v1866 = vmax.f32 %v1864, %v1865
        %v1867 = vrot.slane %v1866, 2
        %v1868 = vmax.f32 %v1866, %v1867
        %v1869 = vrot.slane %v1868, 1
        %v1870 = vmax.f32 %v1868, %v1869
        %s1871 = vtos %v1870
        %v1872 = vstv %s1871
        %1873 = vst.msk [vmem:[%s509] sm:$0x1] %vm1513, %v1872
        %v1874 = vsel %vm1855, %v1691, inf
        %v1875 = vsel %vm1855, %v1696, inf
        %v1876 = vmin.f32 %v1874, %v1875
        %1877 = vmin.xlane.f32.xlu0 %v1876
        %v1878 = vpop.xlane.xlu0 %1877
        %v1879 = vrot.slane %v1878, 4
        %v1880 = vmin.f32 %v1878, %v1879
        %v1881 = vrot.slane %v1880, 2
        %v1882 = vmin.f32 %v1880, %v1881
        %v1883 = vrot.slane %v1882, 1
        %v1884 = vmin.f32 %v1882, %v1883
        %s1885 = vtos %v1884
        %v1886 = vstv %s1885
        %1887 = vst.msk [vmem:[%s512] sm:$0x1] %vm1513, %v1886
        %p1888 = scmp.lt.s32.totalorder %s28, 5
        %s1889 = scalar_select %p1888, %s28, 5
        %s1890 = scalar_lea.vmem %s7, %s1889
        %p1891 = scmp.lt.s32.totalorder %s28, 5
        %s1892 = scalar_select %p1891, %s28, 5
        %s1893 = scalar_lea.vmem %s8, %s1892
        %p1894 = scmp.lt.s32.totalorder %s28, 5
        %s1895 = scalar_select %p1894, %s28, 5
        %s1896 = smul.addr %s1895, 2
        %s1897 = smul.addr %s1896, 8
        %s1898 = scalar_lea.vmem %s9, %s1897
        %p1899 = scmp.lt.s32.totalorder %s28, 5
        %s1900 = scalar_select %p1899, %s28, 5
        %s1901 = smul.addr %s1900, 2
        %s1902 = smul.addr %s1901, 8
        %s1903 = scalar_lea.vmem %s10, %s1902
        %p1904 = scmp.lt.s32.totalorder %s28, 5
        %s1905 = scalar_select %p1904, %s28, 5
        %s1906 = scalar_lea.vmem %s11, %s1905
        %p1907 = scmp.lt.s32.totalorder %s28, 5
        %s1908 = scalar_select %p1907, %s28, 5
        %s1909 = scalar_lea.vmem %s12, %s1908
        // Predicated region
        $region57: #{a_call__.5} parent=47 // pred_check
          %p1910 = pneg %p203
        $region58: #{a_call__.5} parent=47 // pred_check_branch
          %1912 = sbr.rel (%p1910) target = $region60
        $region59: #{a_call__.5} parent=47 // pred_region
          _
        $region60: #{a_call__.5} parent=47 // pred_fallthru
          _
        // Predicated region
        $region61: #{a_call__.5} parent=47 // pred_check
          %p1913 = pneg %p229
        $region62: #{a_call__.5} parent=47 // pred_check_branch
          %1915 = sbr.rel (%p1913) target = $region64
        $region63: #{a_call__.5} parent=47 // pred_region
          _
        $region64: #{a_call__.5} parent=47 // pred_fallthru
          _
        // Predicated region
        $region65: #{a_call__.5} parent=47 // pred_check
          %p1916 = pneg %p255
        $region66: #{a_call__.5} parent=47 // pred_check_branch
          %1918 = sbr.rel (%p1916) target = $region68
        $region67: #{a_call__.5} parent=47 // pred_region
          _
        $region68: #{a_call__.5} parent=47 // pred_fallthru
          _
        // Predicated region
        $region69: #{a_call__.5} parent=47 // pred_check
          %p1919 = pneg %p281
        $region70: #{a_call__.5} parent=47 // pred_check_branch
          %1921 = sbr.rel (%p1919) target = $region72
        $region71: #{a_call__.5} parent=47 // pred_region
          _
        $region72: #{a_call__.5} parent=47 // pred_fallthru
          _
        // Predicated region
        $region73: #{a_call__.5} parent=47 // pred_check
          %p1922 = pneg %p307
        $region74: #{a_call__.5} parent=47 // pred_check_branch
          %1924 = sbr.rel (%p1922) target = $region76
        $region75: #{a_call__.5} parent=47 // pred_region
          _
        $region76: #{a_call__.5} parent=47 // pred_fallthru
          _
        // Predicated region
        $region77: #{a_call__.5} parent=47 // pred_check
          %p1925 = pneg %p333
        $region78: #{a_call__.5} parent=47 // pred_check_branch
          %1927 = sbr.rel (%p1925) target = $region80
        $region79: #{a_call__.5} parent=47 // pred_region
          _
        $region80: #{a_call__.5} parent=47 // pred_fallthru
          _
      $region48: #{a_call__.5} parent=5 // pred_fallthru
        _
      %p1928 = scmp.le.s32.totalorder 2, %s23
      // Predicated region
      $region81: #{a_call__.5} parent=5 // pred_check
        %p1929 = pneg %p1928
      $region82: #{a_call__.5} parent=5 // pred_check_branch
        %1931 = sbr.rel (%p1929) target = $region84
      $region83: #{a_call__.5} parent=5 // pred_region
        %s1932 = ssub.s32 %s23, 2
        // Predicated region
        $region85: #{a_call__.5} parent=83 // pred_check
          %p1933 = pneg %p209
        $region86: #{a_call__.5} parent=83 // pred_check_branch
          %1935 = sbr.rel (%p1933) target = $region88
        $region87: #{a_call__.5} parent=83 // pred_region
          %p1936 = scmp.lt.s32.totalorder %s29, 5
          %s1937 = scalar_select %p1936, %s29, 5
          %s1938 = scalar_lea.vmem %s7, %s1937
        $region88: #{a_call__.5} parent=83 // pred_fallthru
          _
        // Predicated region
        $region89: #{a_call__.5} parent=83 // pred_check
          %p1939 = pneg %p235
        $region90: #{a_call__.5} parent=83 // pred_check_branch
          %1941 = sbr.rel (%p1939) target = $region92
        $region91: #{a_call__.5} parent=83 // pred_region
          %p1942 = scmp.lt.s32.totalorder %s29, 5
          %s1943 = scalar_select %p1942, %s29, 5
          %s1944 = scalar_lea.vmem %s8, %s1943
        $region92: #{a_call__.5} parent=83 // pred_fallthru
          _
        // Predicated region
        $region93: #{a_call__.5} parent=83 // pred_check
          %p1945 = pneg %p261
        $region94: #{a_call__.5} parent=83 // pred_check_branch
          %1947 = sbr.rel (%p1945) target = $region96
        $region95: #{a_call__.5} parent=83 // pred_region
          %p1948 = scmp.lt.s32.totalorder %s29, 5
          %s1949 = scalar_select %p1948, %s29, 5
          %s1950 = smul.addr %s1949, 2
          %s1951 = smul.addr %s1950, 8
          %s1952 = scalar_lea.vmem %s9, %s1951
        $region96: #{a_call__.5} parent=83 // pred_fallthru
          _
        // Predicated region
        $region97: #{a_call__.5} parent=83 // pred_check
          %p1953 = pneg %p287
        $region98: #{a_call__.5} parent=83 // pred_check_branch
          %1955 = sbr.rel (%p1953) target = $region100
        $region99: #{a_call__.5} parent=83 // pred_region
          %p1956 = scmp.lt.s32.totalorder %s29, 5
          %s1957 = scalar_select %p1956, %s29, 5
          %s1958 = smul.addr %s1957, 2
          %s1959 = smul.addr %s1958, 8
          %s1960 = scalar_lea.vmem %s10, %s1959
        $region100: #{a_call__.5} parent=83 // pred_fallthru
          _
        // Predicated region
        $region101: #{a_call__.5} parent=83 // pred_check
          %p1961 = pneg %p313
        $region102: #{a_call__.5} parent=83 // pred_check_branch
          %1963 = sbr.rel (%p1961) target = $region104
        $region103: #{a_call__.5} parent=83 // pred_region
          %p1964 = scmp.lt.s32.totalorder %s29, 5
          %s1965 = scalar_select %p1964, %s29, 5
          %s1966 = scalar_lea.vmem %s11, %s1965
        $region104: #{a_call__.5} parent=83 // pred_fallthru
          _
        // Predicated region
        $region105: #{a_call__.5} parent=83 // pred_check
          %p1967 = pneg %p339
        $region106: #{a_call__.5} parent=83 // pred_check_branch
          %1969 = sbr.rel (%p1967) target = $region108
        $region107: #{a_call__.5} parent=83 // pred_region
          %p1970 = scmp.lt.s32.totalorder %s29, 5
          %s1971 = scalar_select %p1970, %s29, 5
          %s1972 = scalar_lea.vmem %s12, %s1971
        $region108: #{a_call__.5} parent=83 // pred_fallthru
          _
      $region84: #{a_call__.5} parent=5 // pred_fallthru
        _
    $region6: #{a_call__.5} parent=1 // loop_footer
      %s27 = sadd.s32 1, %s23
    $region7: #{a_call__.5} parent=1 // loop_footer_branch
      %22 = sbr.rel target = $region3
    $region8: #{a_call__.5} parent=1 // loop_exit
      _
    %1973 = vsyncpa [#allocation3], 1
    %s1974 = scalar_lea.sflag [#allocation3], 1
    %1975 = vsyncpa %s1974, 1
    %1976 = vsyncpa [#allocation4], 1
    %s1977 = scalar_lea.sflag [#allocation4], 1
    %1978 = vsyncpa %s1977, 1

// kernel: a_call__.7
$region0: #{a_call__.7}
  #allocation0 [shape = 'u32[]', space=smem, size = 0x4, offset = 0x4, fixed_abs, tag = 'smem constant byte address 0x4 - core index']
  #allocation1 [shape = 'u32[144,128]{1,0:T(1,128)}', space=vmem, size = 0x12000, scoped, tag = 'internal scratch']
  %s0 = inlined_call_operand.vmem [shape: f32[2], index: 0, kind: input, shape index: {}]
  %s1 = inlined_call_operand.vmem [shape: f32[6,8,8], index: 1, kind: input, shape index: {}]
  %s2 = inlined_call_operand.vmem [shape: f32[6,8,8], index: 2, kind: input, shape index: {}]
  %s3 = inlined_call_operand.vmem [shape: f32[1,8], index: 3, kind: input, shape index: {}]
  %s4 = inlined_call_operand.vmem [shape: f32[8,1], index: 4, kind: input, shape index: {}]
  %s5 = inlined_call_operand.vmem [shape: f32[4,8], index: 5, kind: input, shape index: {}]
  %s6 = inlined_call_operand.vmem [shape: f32[8,4], index: 6, kind: input, shape index: {}]
  %s7 = inlined_call_operand.vmem [shape: f32[6,1,1], index: 7, kind: output, shape index: {0}]
  %s8 = inlined_call_operand.vmem [shape: f32[6,1,1], index: 8, kind: output, shape index: {1}]
  %s9 = inlined_call_operand.vmem [shape: f32[6,4,4], index: 9, kind: output, shape index: {2}]
  %s10 = inlined_call_operand.vmem [shape: f32[6,4,4], index: 10, kind: output, shape index: {3}]
  %s11 = inlined_call_operand.vmem [shape: f32[6,1,1], index: 11, kind: output, shape index: {4}]
  %s12 = inlined_call_operand.vmem [shape: f32[6,1,1], index: 12, kind: output, shape index: {5}]
  %13 = xla_tuple %s7, %s8, %s9, %s10, %s11, %s12
  %s14 = sld [smem:[#allocation0]]
  $region105: #{a_call__.7} parent=0
    _
  %s16 = ssub.s32 1, %s14
  %s17 = scalar_select 0, %s16, %s14
  $region1: #{a_call__.7} parent=0
    #allocation2 [shape = 'u8[512]{0}', space=smem, size = 0x200, scoped, tag = 'input window, operand 0, single buffered']
    #allocation3 [shape = 's32[2]{0}', space=sflag, size = 0x8, scoped, tag = 'scoped memory for a_call__.7']
    %18 = vsyncpa [#allocation3], 0
    loop: start=0, step=1, limit=8
    $region2: #{a_call__.7} parent=1 // loop_pre_header
      _
    $region3: #{a_call__.7} parent=1 // loop_header
      %s20 = sphi 0, %s24
      %p21 = scmp.ge.s32.totalorder %s20, 8
      %s28 = sphi 0, %s28
      %s30 = sphi 0, %s28
      %s31 = sphi 0, %s30
      %s45 = sphi 0, %s31
      %s51 = sphi 0, %s53
      %s54 = sphi 0, %s51
      %s55 = sphi 0, %s54
      %s71 = sphi 0, %s55
      %s77 = sphi 0, %s79
      %s80 = sphi 0, %s77
      %s81 = sphi 0, %s80
      %s97 = sphi 0, %s81
      %s101 = sphi 0, %s101
      %s103 = sphi 0, %s101
      %s104 = sphi 0, %s103
      %s118 = sphi 0, %s104
      %s122 = sphi 0, %s122
      %s124 = sphi 0, %s122
      %s125 = sphi 0, %s124
      %s139 = sphi 0, %s125
      %s143 = sphi 0, %s143
      %s145 = sphi 0, %s143
      %s146 = sphi 0, %s145
      %s160 = sphi 0, %s146
      %s164 = sphi 0, %s164
      %s166 = sphi 0, %s164
      %s167 = sphi 0, %s166
      %s181 = sphi 0, %s167
      %s187 = sphi 0, %s189
      %s190 = sphi 0, %s187
      %s191 = sphi 0, %s190
      %s207 = sphi 0, %s191
      %s213 = sphi 0, %s215
      %s216 = sphi 0, %s213
      %s217 = sphi 0, %s216
      %s233 = sphi 0, %s217
      %s239 = sphi 0, %s241
      %s242 = sphi 0, %s239
      %s243 = sphi 0, %s242
      %s259 = sphi 0, %s243
      %s265 = sphi 0, %s267
      %s268 = sphi 0, %s265
      %s269 = sphi 0, %s268
      %s285 = sphi 0, %s269
      %s291 = sphi 0, %s293
      %s294 = sphi 0, %s291
      %s295 = sphi 0, %s294
      %s311 = sphi 0, %s295
      %s317 = sphi 0, %s319
      %s320 = sphi 0, %s317
      %s321 = sphi 0, %s320
      %s337 = sphi 0, %s321
    $region4: #{a_call__.7} parent=1 // loop_header_branch
      %23 = sbr.rel (%p21) target = $region8
    $region5: #{a_call__.7} parent=1 // loop_body
      %s25 = ssub.s32 %s20, 1
      %s26 = ssub.s32 %s20, 2
      %s27 = sadd.s32 %s20, 1
      %s29 = sadd.s32 %s28, 1
      %p32 = scmp.eq.s32.totalorder %s20, 5
      %p33 = scmp.ne.s32.totalorder %s28, %s30
      %p34 = scmp.eq.s32.totalorder %s20, 0
      %p35 = por %p33, %p34
      %p36 = scmp.ne.s32.totalorder %s28, %s30
      %p37 = scmp.eq.s32.totalorder %s25, 5
      %p38 = por %p36, %p37
      %p39 = scmp.ne.s32.totalorder %s30, %s31
      %p40 = scmp.eq.s32.totalorder %s25, 0
      %p41 = por %p39, %p40
      %p42 = scmp.ne.s32.totalorder %s30, %s31
      %p43 = scmp.eq.s32.totalorder %s26, 5
      %p44 = por %p42, %p43
      %p46 = scmp.ne.s32.totalorder %s31, %s45
      %p47 = scmp.eq.s32.totalorder %s26, 0
      %p48 = por %p46, %p47
      %s49 = ssub.s32 %s20, %s27
      %p50 = scmp.eq.s32.totalorder %s49, 0
      %s52 = sadd.s32 %s51, 1
      %s53 = scalar_select %p50, %s51, %s52
      %p56 = pneg %p50
      %p57 = scmp.eq.s32.totalorder %s20, 5
      %p58 = por %p56, %p57
      %p59 = scmp.ne.s32.totalorder %s51, %s54
      %p60 = scmp.eq.s32.totalorder %s20, 0
      %p61 = por %p59, %p60
      %p62 = scmp.ne.s32.totalorder %s51, %s54
      %p63 = scmp.eq.s32.totalorder %s25, 5
      %p64 = por %p62, %p63
      %p65 = scmp.ne.s32.totalorder %s54, %s55
      %p66 = scmp.eq.s32.totalorder %s25, 0
      %p67 = por %p65, %p66
      %p68 = scmp.ne.s32.totalorder %s54, %s55
      %p69 = scmp.eq.s32.totalorder %s26, 5
      %p70 = por %p68, %p69
      %p72 = scmp.ne.s32.totalorder %s55, %s71
      %p73 = scmp.eq.s32.totalorder %s26, 0
      %p74 = por %p72, %p73
      %s75 = ssub.s32 %s20, %s27
      %p76 = scmp.eq.s32.totalorder %s75, 0
      %s78 = sadd.s32 %s77, 1
      %s79 = scalar_select %p76, %s77, %s78
      %p82 = pneg %p76
      %p83 = scmp.eq.s32.totalorder %s20, 5
      %p84 = por %p82, %p83
      %p85 = scmp.ne.s32.totalorder %s77, %s80
      %p86 = scmp.eq.s32.totalorder %s20, 0
      %p87 = por %p85, %p86
      %p88 = scmp.ne.s32.totalorder %s77, %s80
      %p89 = scmp.eq.s32.totalorder %s25, 5
      %p90 = por %p88, %p89
      %p91 = scmp.ne.s32.totalorder %s80, %s81
      %p92 = scmp.eq.s32.totalorder %s25, 0
      %p93 = por %p91, %p92
      %p94 = scmp.ne.s32.totalorder %s80, %s81
      %p95 = scmp.eq.s32.totalorder %s26, 5
      %p96 = por %p94, %p95
      %p98 = scmp.ne.s32.totalorder %s81, %s97
      %p99 = scmp.eq.s32.totalorder %s26, 0
      %p100 = por %p98, %p99
      %s102 = sadd.s32 %s101, 1
      %p105 = scmp.eq.s32.totalorder %s20, 5
      %p106 = scmp.ne.s32.totalorder %s101, %s103
      %p107 = scmp.eq.s32.totalorder %s20, 0
      %p108 = por %p106, %p107
      %p109 = scmp.ne.s32.totalorder %s101, %s103
      %p110 = scmp.eq.s32.totalorder %s25, 5
      %p111 = por %p109, %p110
      %p112 = scmp.ne.s32.totalorder %s103, %s104
      %p113 = scmp.eq.s32.totalorder %s25, 0
      %p114 = por %p112, %p113
      %p115 = scmp.ne.s32.totalorder %s103, %s104
      %p116 = scmp.eq.s32.totalorder %s26, 5
      %p117 = por %p115, %p116
      %p119 = scmp.ne.s32.totalorder %s104, %s118
      %p120 = scmp.eq.s32.totalorder %s26, 0
      %p121 = por %p119, %p120
      %s123 = sadd.s32 %s122, 1
      %p126 = scmp.eq.s32.totalorder %s20, 5
      %p127 = scmp.ne.s32.totalorder %s122, %s124
      %p128 = scmp.eq.s32.totalorder %s20, 0
      %p129 = por %p127, %p128
      %p130 = scmp.ne.s32.totalorder %s122, %s124
      %p131 = scmp.eq.s32.totalorder %s25, 5
      %p132 = por %p130, %p131
      %p133 = scmp.ne.s32.totalorder %s124, %s125
      %p134 = scmp.eq.s32.totalorder %s25, 0
      %p135 = por %p133, %p134
      %p136 = scmp.ne.s32.totalorder %s124, %s125
      %p137 = scmp.eq.s32.totalorder %s26, 5
      %p138 = por %p136, %p137
      %p140 = scmp.ne.s32.totalorder %s125, %s139
      %p141 = scmp.eq.s32.totalorder %s26, 0
      %p142 = por %p140, %p141
      %s144 = sadd.s32 %s143, 1
      %p147 = scmp.eq.s32.totalorder %s20, 5
      %p148 = scmp.ne.s32.totalorder %s143, %s145
      %p149 = scmp.eq.s32.totalorder %s20, 0
      %p150 = por %p148, %p149
      %p151 = scmp.ne.s32.totalorder %s143, %s145
      %p152 = scmp.eq.s32.totalorder %s25, 5
      %p153 = por %p151, %p152
      %p154 = scmp.ne.s32.totalorder %s145, %s146
      %p155 = scmp.eq.s32.totalorder %s25, 0
      %p156 = por %p154, %p155
      %p157 = scmp.ne.s32.totalorder %s145, %s146
      %p158 = scmp.eq.s32.totalorder %s26, 5
      %p159 = por %p157, %p158
      %p161 = scmp.ne.s32.totalorder %s146, %s160
      %p162 = scmp.eq.s32.totalorder %s26, 0
      %p163 = por %p161, %p162
      %s165 = sadd.s32 %s164, 1
      %p168 = scmp.eq.s32.totalorder %s20, 5
      %p169 = scmp.ne.s32.totalorder %s164, %s166
      %p170 = scmp.eq.s32.totalorder %s20, 0
      %p171 = por %p169, %p170
      %p172 = scmp.ne.s32.totalorder %s164, %s166
      %p173 = scmp.eq.s32.totalorder %s25, 5
      %p174 = por %p172, %p173
      %p175 = scmp.ne.s32.totalorder %s166, %s167
      %p176 = scmp.eq.s32.totalorder %s25, 0
      %p177 = por %p175, %p176
      %p178 = scmp.ne.s32.totalorder %s166, %s167
      %p179 = scmp.eq.s32.totalorder %s26, 5
      %p180 = por %p178, %p179
      %p182 = scmp.ne.s32.totalorder %s167, %s181
      %p183 = scmp.eq.s32.totalorder %s26, 0
      %p184 = por %p182, %p183
      %s185 = ssub.s32 %s20, %s27
      %p186 = scmp.eq.s32.totalorder %s185, 0
      %s188 = sadd.s32 %s187, 1
      %s189 = scalar_select %p186, %s187, %s188
      %p192 = pneg %p186
      %p193 = scmp.eq.s32.totalorder %s20, 5
      %p194 = por %p192, %p193
      %p195 = scmp.ne.s32.totalorder %s187, %s190
      %p196 = scmp.eq.s32.totalorder %s20, 0
      %p197 = por %p195, %p196
      %p198 = scmp.ne.s32.totalorder %s187, %s190
      %p199 = scmp.eq.s32.totalorder %s25, 5
      %p200 = por %p198, %p199
      %p201 = scmp.ne.s32.totalorder %s190, %s191
      %p202 = scmp.eq.s32.totalorder %s25, 0
      %p203 = por %p201, %p202
      %p204 = scmp.ne.s32.totalorder %s190, %s191
      %p205 = scmp.eq.s32.totalorder %s26, 5
      %p206 = por %p204, %p205
      %p208 = scmp.ne.s32.totalorder %s191, %s207
      %p209 = scmp.eq.s32.totalorder %s26, 0
      %p210 = por %p208, %p209
      %s211 = ssub.s32 %s20, %s27
      %p212 = scmp.eq.s32.totalorder %s211, 0
      %s214 = sadd.s32 %s213, 1
      %s215 = scalar_select %p212, %s213, %s214
      %p218 = pneg %p212
      %p219 = scmp.eq.s32.totalorder %s20, 5
      %p220 = por %p218, %p219
      %p221 = scmp.ne.s32.totalorder %s213, %s216
      %p222 = scmp.eq.s32.totalorder %s20, 0
      %p223 = por %p221, %p222
      %p224 = scmp.ne.s32.totalorder %s213, %s216
      %p225 = scmp.eq.s32.totalorder %s25, 5
      %p226 = por %p224, %p225
      %p227 = scmp.ne.s32.totalorder %s216, %s217
      %p228 = scmp.eq.s32.totalorder %s25, 0
      %p229 = por %p227, %p228
      %p230 = scmp.ne.s32.totalorder %s216, %s217
      %p231 = scmp.eq.s32.totalorder %s26, 5
      %p232 = por %p230, %p231
      %p234 = scmp.ne.s32.totalorder %s217, %s233
      %p235 = scmp.eq.s32.totalorder %s26, 0
      %p236 = por %p234, %p235
      %s237 = ssub.s32 %s20, %s27
      %p238 = scmp.eq.s32.totalorder %s237, 0
      %s240 = sadd.s32 %s239, 1
      %s241 = scalar_select %p238, %s239, %s240
      %p244 = pneg %p238
      %p245 = scmp.eq.s32.totalorder %s20, 5
      %p246 = por %p244, %p245
      %p247 = scmp.ne.s32.totalorder %s239, %s242
      %p248 = scmp.eq.s32.totalorder %s20, 0
      %p249 = por %p247, %p248
      %p250 = scmp.ne.s32.totalorder %s239, %s242
      %p251 = scmp.eq.s32.totalorder %s25, 5
      %p252 = por %p250, %p251
      %p253 = scmp.ne.s32.totalorder %s242, %s243
      %p254 = scmp.eq.s32.totalorder %s25, 0
      %p255 = por %p253, %p254
      %p256 = scmp.ne.s32.totalorder %s242, %s243
      %p257 = scmp.eq.s32.totalorder %s26, 5
      %p258 = por %p256, %p257
      %p260 = scmp.ne.s32.totalorder %s243, %s259
      %p261 = scmp.eq.s32.totalorder %s26, 0
      %p262 = por %p260, %p261
      %s263 = ssub.s32 %s20, %s27
      %p264 = scmp.eq.s32.totalorder %s263, 0
      %s266 = sadd.s32 %s265, 1
      %s267 = scalar_select %p264, %s265, %s266
      %p270 = pneg %p264
      %p271 = scmp.eq.s32.totalorder %s20, 5
      %p272 = por %p270, %p271
      %p273 = scmp.ne.s32.totalorder %s265, %s268
      %p274 = scmp.eq.s32.totalorder %s20, 0
      %p275 = por %p273, %p274
      %p276 = scmp.ne.s32.totalorder %s265, %s268
      %p277 = scmp.eq.s32.totalorder %s25, 5
      %p278 = por %p276, %p277
      %p279 = scmp.ne.s32.totalorder %s268, %s269
      %p280 = scmp.eq.s32.totalorder %s25, 0
      %p281 = por %p279, %p280
      %p282 = scmp.ne.s32.totalorder %s268, %s269
      %p283 = scmp.eq.s32.totalorder %s26, 5
      %p284 = por %p282, %p283
      %p286 = scmp.ne.s32.totalorder %s269, %s285
      %p287 = scmp.eq.s32.totalorder %s26, 0
      %p288 = por %p286, %p287
      %s289 = ssub.s32 %s20, %s27
      %p290 = scmp.eq.s32.totalorder %s289, 0
      %s292 = sadd.s32 %s291, 1
      %s293 = scalar_select %p290, %s291, %s292
      %p296 = pneg %p290
      %p297 = scmp.eq.s32.totalorder %s20, 5
      %p298 = por %p296, %p297
      %p299 = scmp.ne.s32.totalorder %s291, %s294
      %p300 = scmp.eq.s32.totalorder %s20, 0
      %p301 = por %p299, %p300
      %p302 = scmp.ne.s32.totalorder %s291, %s294
      %p303 = scmp.eq.s32.totalorder %s25, 5
      %p304 = por %p302, %p303
      %p305 = scmp.ne.s32.totalorder %s294, %s295
      %p306 = scmp.eq.s32.totalorder %s25, 0
      %p307 = por %p305, %p306
      %p308 = scmp.ne.s32.totalorder %s294, %s295
      %p309 = scmp.eq.s32.totalorder %s26, 5
      %p310 = por %p308, %p309
      %p312 = scmp.ne.s32.totalorder %s295, %s311
      %p313 = scmp.eq.s32.totalorder %s26, 0
      %p314 = por %p312, %p313
      %s315 = ssub.s32 %s20, %s27
      %p316 = scmp.eq.s32.totalorder %s315, 0
      %s318 = sadd.s32 %s317, 1
      %s319 = scalar_select %p316, %s317, %s318
      %p322 = pneg %p316
      %p323 = scmp.eq.s32.totalorder %s20, 5
      %p324 = por %p322, %p323
      %p325 = scmp.ne.s32.totalorder %s317, %s320
      %p326 = scmp.eq.s32.totalorder %s20, 0
      %p327 = por %p325, %p326
      %p328 = scmp.ne.s32.totalorder %s317, %s320
      %p329 = scmp.eq.s32.totalorder %s25, 5
      %p330 = por %p328, %p329
      %p331 = scmp.ne.s32.totalorder %s320, %s321
      %p332 = scmp.eq.s32.totalorder %s25, 0
      %p333 = por %p331, %p332
      %p334 = scmp.ne.s32.totalorder %s320, %s321
      %p335 = scmp.eq.s32.totalorder %s26, 5
      %p336 = por %p334, %p335
      %p338 = scmp.ne.s32.totalorder %s321, %s337
      %p339 = scmp.eq.s32.totalorder %s26, 0
      %p340 = por %p338, %p339
      %p341 = scmp.le.s32.totalorder 1, %s20
      %p342 = scmp.lt.s32.totalorder %s20, 7
      %p343 = pnand %p341, %p342
      %p344 = pneg %p343
      // Predicated region
      $region9: #{a_call__.7} parent=5 // pred_check
        _
      $region10: #{a_call__.7} parent=5 // pred_check_branch
        %346 = sbr.rel (%p343) target = $region12
      $region11: #{a_call__.7} parent=5 // pred_region
        %s347 = ssub.s32 %s20, 1
        // Predicated region
        $region13: #{a_call__.7} parent=11 // pred_check
          %p348 = pneg %p41
        $region14: #{a_call__.7} parent=11 // pred_check_branch
          %350 = sbr.rel (%p348) target = $region16
        $region15: #{a_call__.7} parent=11 // pred_region
          %s352 = ssub.s32 16, 16
          %353 = vsyncadd [#allocation3], %s352
          %s355 = sshll.u32 %s0, 4
          %s356 = int_to_ptr.vmem [resolvable:$true] %s355
          %358 = dma.vmem_to_smem %s356, 16, [#allocation2], [#allocation3]
        $region16: #{a_call__.7} parent=11 // pred_fallthru
          _
        // Predicated region
        $region17: #{a_call__.7} parent=11 // pred_check
          %p359 = pneg %p114
        $region18: #{a_call__.7} parent=11 // pred_check_branch
          %361 = sbr.rel (%p359) target = $region20
        $region19: #{a_call__.7} parent=11 // pred_region
          _
        $region20: #{a_call__.7} parent=11 // pred_fallthru
          _
        // Predicated region
        $region21: #{a_call__.7} parent=11 // pred_check
          %p362 = pneg %p135
        $region22: #{a_call__.7} parent=11 // pred_check_branch
          %364 = sbr.rel (%p362) target = $region24
        $region23: #{a_call__.7} parent=11 // pred_region
          _
        $region24: #{a_call__.7} parent=11 // pred_fallthru
          _
        // Predicated region
        $region25: #{a_call__.7} parent=11 // pred_check
          %p365 = pneg %p156
        $region26: #{a_call__.7} parent=11 // pred_check_branch
          %367 = sbr.rel (%p365) target = $region28
        $region27: #{a_call__.7} parent=11 // pred_region
          _
        $region28: #{a_call__.7} parent=11 // pred_fallthru
          _
        // Predicated region
        $region29: #{a_call__.7} parent=11 // pred_check
          %p368 = pneg %p177
        $region30: #{a_call__.7} parent=11 // pred_check_branch
          %370 = sbr.rel (%p368) target = $region32
        $region31: #{a_call__.7} parent=11 // pred_region
          _
        $region32: #{a_call__.7} parent=11 // pred_fallthru
          _
      $region12: #{a_call__.7} parent=5 // pred_fallthru
        _
      %p371 = scmp.lt.s32.totalorder %s20, 6
      // Predicated region
      $region33: #{a_call__.7} parent=5 // pred_check
        %p372 = pneg %p371
      $region34: #{a_call__.7} parent=5 // pred_check_branch
        %374 = sbr.rel (%p372) target = $region36
      $region35: #{a_call__.7} parent=5 // pred_region
        // Predicated region
        $region37: #{a_call__.7} parent=35 // pred_check
          %p375 = pneg %p61
        $region38: #{a_call__.7} parent=35 // pred_check_branch
          %377 = sbr.rel (%p375) target = $region40
        $region39: #{a_call__.7} parent=35 // pred_region
          %p378 = scmp.lt.s32.totalorder %s20, 5
          %s379 = scalar_select %p378, %s20, 5
          %s380 = smul.addr %s379, 8
          %s381 = scalar_lea.vmem %s1, %s380
        $region40: #{a_call__.7} parent=35 // pred_fallthru
          _
        // Predicated region
        $region41: #{a_call__.7} parent=35 // pred_check
          %p382 = pneg %p87
        $region42: #{a_call__.7} parent=35 // pred_check_branch
          %384 = sbr.rel (%p382) target = $region44
        $region43: #{a_call__.7} parent=35 // pred_region
          %p385 = scmp.lt.s32.totalorder %s20, 5
          %s386 = scalar_select %p385, %s20, 5
          %s387 = smul.addr %s386, 8
          %s388 = scalar_lea.vmem %s2, %s387
        $region44: #{a_call__.7} parent=35 // pred_fallthru
          _
      $region36: #{a_call__.7} parent=5 // pred_fallthru
        _
      %p389 = scmp.le.s32.totalorder 1, %s20
      %p390 = scmp.lt.s32.totalorder %s20, 7
      %p391 = pnand %p389, %p390
      %p392 = pneg %p391
      // Predicated region
      $region45: #{a_call__.7} parent=5 // pred_check
        _
      $region46: #{a_call__.7} parent=5 // pred_check_branch
        %394 = sbr.rel (%p391) target = $region48
      $region47: #{a_call__.7} parent=5 // pred_region
        %s395 = ssub.s32 %s20, 1
        // Predicated region
        $region49: #{a_call__.7} parent=47 // pred_check
          %p396 = pneg %p41
        $region50: #{a_call__.7} parent=47 // pred_check_branch
          %398 = sbr.rel (%p396) target = $region52
        $region51: #{a_call__.7} parent=47 // pred_region
          %399 = dma.done [#allocation3], 16
        $region52: #{a_call__.7} parent=47 // pred_fallthru
          _
        %400 = sfence
        %p401 = pneg %p41
        %p402 = pneg %p38
        %p403 = scmp.lt.s32.totalorder %s25, 5
        %s404 = scalar_select %p403, %s25, 5
        %s405 = smul.addr %s404, 8
        %s406 = scalar_lea.vmem %s1, %s405
        %p407 = pneg %p67
        %p408 = pneg %p64
        %p409 = scmp.lt.s32.totalorder %s25, 5
        %s410 = scalar_select %p409, %s25, 5
        %s411 = smul.addr %s410, 8
        %s412 = scalar_lea.vmem %s2, %s411
        %p413 = pneg %p93
        %p414 = pneg %p90
        %p415 = pneg %p114
        %p416 = pneg %p111
        %p417 = pneg %p135
        %p418 = pneg %p132
        %p419 = pneg %p156
        %p420 = pneg %p153
        %p421 = pneg %p177
        %p422 = pneg %p174
        %p423 = pneg %p203
        %p424 = pneg %p200
        %p425 = scmp.lt.s32.totalorder %s25, 5
        %s426 = scalar_select %p425, %s25, 5
        %s427 = scalar_lea.vmem %s7, %s426
        %p428 = pneg %p229
        %p429 = pneg %p226
        %p430 = scmp.lt.s32.totalorder %s25, 5
        %s431 = scalar_select %p430, %s25, 5
        %s432 = scalar_lea.vmem %s8, %s431
        %p433 = pneg %p255
        %p434 = pneg %p252
        %p435 = scmp.lt.s32.totalorder %s25, 5
        %s436 = scalar_select %p435, %s25, 5
        %s437 = smul.addr %s436, 4
        %s438 = scalar_lea.vmem %s9, %s437
        %p439 = pneg %p281
        %p440 = pneg %p278
        %p441 = scmp.lt.s32.totalorder %s25, 5
        %s442 = scalar_select %p441, %s25, 5
        %s443 = smul.addr %s442, 4
        %s444 = scalar_lea.vmem %s10, %s443
        %p445 = pneg %p307
        %p446 = pneg %p304
        %p447 = scmp.lt.s32.totalorder %s25, 5
        %s448 = scalar_select %p447, %s25, 5
        %s449 = scalar_lea.vmem %s11, %s448
        %p450 = pneg %p333
        %p451 = pneg %p330
        %p452 = scmp.lt.s32.totalorder %s25, 5
        %s453 = scalar_select %p452, %s25, 5
        %s454 = scalar_lea.vmem %s12, %s453
        %p455 = scmp.lt.s32.totalorder %s25, 5
        %s456 = scalar_select %p455, %s25, 5
        %s457 = smul.addr %s456, 8
        %s458 = scalar_lea.vmem %s1, %s457
        %p459 = scmp.lt.s32.totalorder %s25, 5
        %s460 = scalar_select %p459, %s25, 5
        %s461 = smul.addr %s460, 8
        %s462 = scalar_lea.vmem %s2, %s461
        %p463 = scmp.lt.s32.totalorder %s25, 5
        %s464 = scalar_select %p463, %s25, 5
        %s465 = scalar_lea.vmem %s7, %s464
        %p466 = scmp.lt.s32.totalorder %s25, 5
        %s467 = scalar_select %p466, %s25, 5
        %s468 = scalar_lea.vmem %s8, %s467
        %p469 = scmp.lt.s32.totalorder %s25, 5
        %s470 = scalar_select %p469, %s25, 5
        %s471 = smul.addr %s470, 4
        %s472 = scalar_lea.vmem %s9, %s471
        %p473 = scmp.lt.s32.totalorder %s25, 5
        %s474 = scalar_select %p473, %s25, 5
        %s475 = smul.addr %s474, 4
        %s476 = scalar_lea.vmem %s10, %s475
        %p477 = scmp.lt.s32.totalorder %s25, 5
        %s478 = scalar_select %p477, %s25, 5
        %s479 = scalar_lea.vmem %s11, %s478
        %p480 = scmp.lt.s32.totalorder %s25, 5
        %s481 = scalar_select %p480, %s25, 5
        %s482 = scalar_lea.vmem %s12, %s481
        %s483 = sld [smem:[#allocation2]]
        %s484 = sld [smem:[#allocation2 + $0x1]]
        %v485 = vld [vmem:[%s458] sm:$0xff]
        %v486 = vld [vmem:[%s462] sm:$0xff]
        %v487 = vld [vmem:[%s3] sm:$0x1]
        %v488 = vld [vmem:[%s4] sm:$0xff]
        %vm489 = vcmask 64512
        %v491 = vsel %vm489, %v485, 0
        %493 = vmatprep.subr.mxu0 0.0
        %494 = vmatpush1.msra.mxu0 %v488
        %495 = vmatprep.subr.mxu0 0.0
        %496 = vmatpush1.msra.mxu0 0.0
        %497 = vmatprep.subr.mxu0 0.0
        %498 = vmatpush1.msra.mxu0 0.0
        %499 = vmatprep.subr.mxu0 0.0
        %500 = vmatpush1.msra.mxu0 0.0
        %501 = vmatprep.subr.mxu0 0.0
        %502 = vmatpush1.msra.mxu0 0.0
        %503 = vmatprep.subr.mxu0 0.0
        %504 = vmatpush1.msra.mxu0 0.0
        %505 = vmatprep.subr.mxu0 0.0
        %506 = vmatpush1.msra.mxu0 0.0
        %507 = vmatprep.subr.mxu0 0.0
        %508 = vmatpush1.msra.mxu0 0.0
        %509 = vmatprep.subr.mxu0 0.0
        %510 = vmatpush1.msra.mxu0 0.0
        %511 = vmatprep.subr.mxu0 0.0
        %512 = vmatpush1.msra.mxu0 0.0
        %513 = vmatprep.subr.mxu0 0.0
        %514 = vmatpush1.msra.mxu0 0.0
        %515 = vmatprep.subr.mxu0 0.0
        %516 = vmatpush1.msra.mxu0 0.0
        %517 = vmatprep.subr.mxu0 0.0
        %518 = vmatpush1.msra.mxu0 0.0
        %519 = vmatprep.subr.mxu0 0.0
        %520 = vmatpush1.msra.mxu0 0.0
        %521 = vmatprep.subr.mxu0 0.0
        %522 = vmatpush1.msra.mxu0 0.0
        %523 = vmatprep.subr.mxu0 0.0
        %524 = vmatpush1.msra.mxu0 0.0
        %525 = vmatprep.subr.mxu0 0.0
        %526 = vmatpush1.msra.mxu0 0.0
        %527 = vmatprep.subr.mxu0 0.0
        %528 = vmatpush1.msra.mxu0 0.0
        %529 = vmatprep.subr.mxu0 0.0
        %530 = vmatpush1.msra.mxu0 0.0
        %531 = vmatprep.subr.mxu0 0.0
        %532 = vmatpush1.msra.mxu0 0.0
        %533 = vmatprep.subr.mxu0 0.0
        %534 = vmatpush1.msra.mxu0 0.0
        %535 = vmatprep.subr.mxu0 0.0
        %536 = vmatpush1.msra.mxu0 0.0
        %537 = vmatprep.subr.mxu0 0.0
        %538 = vmatpush1.msra.mxu0 0.0
        %539 = vmatprep.subr.mxu0 0.0
        %540 = vmatpush1.msra.mxu0 0.0
        %541 = vmatprep.subr.mxu0 0.0
        %542 = vmatpush1.msra.mxu0 0.0
        %543 = vmatprep.subr.mxu0 0.0
        %544 = vmatpush1.msra.mxu0 0.0
        %545 = vmatprep.subr.mxu0 0.0
        %546 = vmatpush1.msra.mxu0 0.0
        %547 = vmatprep.subr.mxu0 0.0
        %548 = vmatpush1.msra.mxu0 0.0
        %549 = vmatprep.subr.mxu0 0.0
        %550 = vmatpush1.msra.mxu0 0.0
        %551 = vmatprep.subr.mxu0 0.0
        %552 = vmatpush1.msra.mxu0 0.0
        %553 = vmatprep.subr.mxu0 0.0
        %554 = vmatpush1.msra.mxu0 0.0
        %555 = vmatprep.subr.mxu0 0.0
        %556 = vmatpush1.msra.mxu0 0.0
        %557 = vmatprep.mubr.f32.mxu0 0.0
        %558 = vmatmul.mubr.f32.gmra.mrb[0].mxu0 %v491
        %v559 = vpop.f32.mrb[0].mxu0
        %v560 = vadd.f32 0.0, %v559
        %v561 = vpop.f32.mrb[0].mxu0
        %562 = vdwg.mxu0
        %v564 = vsel %vm489, %v487, 0
        %566 = vmatprep.subr.mxu0 0.0
        %567 = vmatpush1.msra.mxu0 %v560
        %568 = vmatprep.subr.mxu0 0.0
        %569 = vmatpush1.msra.mxu0 0.0
        %570 = vmatprep.subr.mxu0 0.0
        %571 = vmatpush1.msra.mxu0 0.0
        %572 = vmatprep.subr.mxu0 0.0
        %573 = vmatpush1.msra.mxu0 0.0
        %574 = vmatprep.subr.mxu0 0.0
        %575 = vmatpush1.msra.mxu0 0.0
        %576 = vmatprep.subr.mxu0 0.0
        %577 = vmatpush1.msra.mxu0 0.0
        %578 = vmatprep.subr.mxu0 0.0
        %579 = vmatpush1.msra.mxu0 0.0
        %580 = vmatprep.subr.mxu0 0.0
        %581 = vmatpush1.msra.mxu0 0.0
        %582 = vmatprep.subr.mxu0 0.0
        %583 = vmatpush1.msra.mxu0 0.0
        %584 = vmatprep.subr.mxu0 0.0
        %585 = vmatpush1.msra.mxu0 0.0
        %586 = vmatprep.subr.mxu0 0.0
        %587 = vmatpush1.msra.mxu0 0.0
        %588 = vmatprep.subr.mxu0 0.0
        %589 = vmatpush1.msra.mxu0 0.0
        %590 = vmatprep.subr.mxu0 0.0
        %591 = vmatpush1.msra.mxu0 0.0
        %592 = vmatprep.subr.mxu0 0.0
        %593 = vmatpush1.msra.mxu0 0.0
        %594 = vmatprep.subr.mxu0 0.0
        %595 = vmatpush1.msra.mxu0 0.0
        %596 = vmatprep.subr.mxu0 0.0
        %597 = vmatpush1.msra.mxu0 0.0
        %598 = vmatprep.subr.mxu0 0.0
        %599 = vmatpush1.msra.mxu0 0.0
        %600 = vmatprep.subr.mxu0 0.0
        %601 = vmatpush1.msra.mxu0 0.0
        %602 = vmatprep.subr.mxu0 0.0
        %603 = vmatpush1.msra.mxu0 0.0
        %604 = vmatprep.subr.mxu0 0.0
        %605 = vmatpush1.msra.mxu0 0.0
        %606 = vmatprep.subr.mxu0 0.0
        %607 = vmatpush1.msra.mxu0 0.0
        %608 = vmatprep.subr.mxu0 0.0
        %609 = vmatpush1.msra.mxu0 0.0
        %610 = vmatprep.subr.mxu0 0.0
        %611 = vmatpush1.msra.mxu0 0.0
        %612 = vmatprep.subr.mxu0 0.0
        %613 = vmatpush1.msra.mxu0 0.0
        %614 = vmatprep.subr.mxu0 0.0
        %615 = vmatpush1.msra.mxu0 0.0
        %616 = vmatprep.subr.mxu0 0.0
        %617 = vmatpush1.msra.mxu0 0.0
        %618 = vmatprep.subr.mxu0 0.0
        %619 = vmatpush1.msra.mxu0 0.0
        %620 = vmatprep.subr.mxu0 0.0
        %621 = vmatpush1.msra.mxu0 0.0
        %622 = vmatprep.subr.mxu0 0.0
        %623 = vmatpush1.msra.mxu0 0.0
        %624 = vmatprep.subr.mxu0 0.0
        %625 = vmatpush1.msra.mxu0 0.0
        %626 = vmatprep.subr.mxu0 0.0
        %627 = vmatpush1.msra.mxu0 0.0
        %628 = vmatprep.subr.mxu0 0.0
        %629 = vmatpush1.msra.mxu0 0.0
        %630 = vmatprep.mubr.f32.mxu0 0.0
        %631 = vmatmul.mubr.f32.gmra.mrb[0].mxu0 %v564
        %v632 = vpop.f32.mrb[0].mxu0
        %v633 = vadd.f32 0.0, %v632
        %v634 = vpop.f32.mrb[0].mxu0
        %635 = vdwg.mxu0
        %v637 = vsel %vm489, %v486, 0
        %639 = vmatprep.subr.mxu0 0.0
        %640 = vmatpush1.msra.mxu0 %v488
        %641 = vmatprep.subr.mxu0 0.0
        %642 = vmatpush1.msra.mxu0 0.0
        %643 = vmatprep.subr.mxu0 0.0
        %644 = vmatpush1.msra.mxu0 0.0
        %645 = vmatprep.subr.mxu0 0.0
        %646 = vmatpush1.msra.mxu0 0.0
        %647 = vmatprep.subr.mxu0 0.0
        %648 = vmatpush1.msra.mxu0 0.0
        %649 = vmatprep.subr.mxu0 0.0
        %650 = vmatpush1.msra.mxu0 0.0
        %651 = vmatprep.subr.mxu0 0.0
        %652 = vmatpush1.msra.mxu0 0.0
        %653 = vmatprep.subr.mxu0 0.0
        %654 = vmatpush1.msra.mxu0 0.0
        %655 = vmatprep.subr.mxu0 0.0
        %656 = vmatpush1.msra.mxu0 0.0
        %657 = vmatprep.subr.mxu0 0.0
        %658 = vmatpush1.msra.mxu0 0.0
        %659 = vmatprep.subr.mxu0 0.0
        %660 = vmatpush1.msra.mxu0 0.0
        %661 = vmatprep.subr.mxu0 0.0
        %662 = vmatpush1.msra.mxu0 0.0
        %663 = vmatprep.subr.mxu0 0.0
        %664 = vmatpush1.msra.mxu0 0.0
        %665 = vmatprep.subr.mxu0 0.0
        %666 = vmatpush1.msra.mxu0 0.0
        %667 = vmatprep.subr.mxu0 0.0
        %668 = vmatpush1.msra.mxu0 0.0
        %669 = vmatprep.subr.mxu0 0.0
        %670 = vmatpush1.msra.mxu0 0.0
        %671 = vmatprep.subr.mxu0 0.0
        %672 = vmatpush1.msra.mxu0 0.0
        %673 = vmatprep.subr.mxu0 0.0
        %674 = vmatpush1.msra.mxu0 0.0
        %675 = vmatprep.subr.mxu0 0.0
        %676 = vmatpush1.msra.mxu0 0.0
        %677 = vmatprep.subr.mxu0 0.0
        %678 = vmatpush1.msra.mxu0 0.0
        %679 = vmatprep.subr.mxu0 0.0
        %680 = vmatpush1.msra.mxu0 0.0
        %681 = vmatprep.subr.mxu0 0.0
        %682 = vmatpush1.msra.mxu0 0.0
        %683 = vmatprep.subr.mxu0 0.0
        %684 = vmatpush1.msra.mxu0 0.0
        %685 = vmatprep.subr.mxu0 0.0
        %686 = vmatpush1.msra.mxu0 0.0
        %687 = vmatprep.subr.mxu0 0.0
        %688 = vmatpush1.msra.mxu0 0.0
        %689 = vmatprep.subr.mxu0 0.0
        %690 = vmatpush1.msra.mxu0 0.0
        %691 = vmatprep.subr.mxu0 0.0
        %692 = vmatpush1.msra.mxu0 0.0
        %693 = vmatprep.subr.mxu0 0.0
        %694 = vmatpush1.msra.mxu0 0.0
        %695 = vmatprep.subr.mxu0 0.0
        %696 = vmatpush1.msra.mxu0 0.0
        %697 = vmatprep.subr.mxu0 0.0
        %698 = vmatpush1.msra.mxu0 0.0
        %699 = vmatprep.subr.mxu0 0.0
        %700 = vmatpush1.msra.mxu0 0.0
        %701 = vmatprep.subr.mxu0 0.0
        %702 = vmatpush1.msra.mxu0 0.0
        %703 = vmatprep.mubr.f32.mxu0 0.0
        %704 = vmatmul.mubr.f32.gmra.mrb[0].mxu0 %v637
        %v705 = vpop.f32.mrb[0].mxu0
        %v706 = vadd.f32 0.0, %v705
        %v707 = vpop.f32.mrb[0].mxu0
        %708 = vdwg.mxu0
        %709 = vmatprep.subr.mxu0 0.0
        %710 = vmatpush1.msra.mxu0 %v706
        %711 = vmatprep.subr.mxu0 0.0
        %712 = vmatpush1.msra.mxu0 0.0
        %713 = vmatprep.subr.mxu0 0.0
        %714 = vmatpush1.msra.mxu0 0.0
        %715 = vmatprep.subr.mxu0 0.0
        %716 = vmatpush1.msra.mxu0 0.0
        %717 = vmatprep.subr.mxu0 0.0
        %718 = vmatpush1.msra.mxu0 0.0
        %719 = vmatprep.subr.mxu0 0.0
        %720 = vmatpush1.msra.mxu0 0.0
        %721 = vmatprep.subr.mxu0 0.0
        %722 = vmatpush1.msra.mxu0 0.0
        %723 = vmatprep.subr.mxu0 0.0
        %724 = vmatpush1.msra.mxu0 0.0
        %725 = vmatprep.subr.mxu0 0.0
        %726 = vmatpush1.msra.mxu0 0.0
        %727 = vmatprep.subr.mxu0 0.0
        %728 = vmatpush1.msra.mxu0 0.0
        %729 = vmatprep.subr.mxu0 0.0
        %730 = vmatpush1.msra.mxu0 0.0
        %731 = vmatprep.subr.mxu0 0.0
        %732 = vmatpush1.msra.mxu0 0.0
        %733 = vmatprep.subr.mxu0 0.0
        %734 = vmatpush1.msra.mxu0 0.0
        %735 = vmatprep.subr.mxu0 0.0
        %736 = vmatpush1.msra.mxu0 0.0
        %737 = vmatprep.subr.mxu0 0.0
        %738 = vmatpush1.msra.mxu0 0.0
        %739 = vmatprep.subr.mxu0 0.0
        %740 = vmatpush1.msra.mxu0 0.0
        %741 = vmatprep.subr.mxu0 0.0
        %742 = vmatpush1.msra.mxu0 0.0
        %743 = vmatprep.subr.mxu0 0.0
        %744 = vmatpush1.msra.mxu0 0.0
        %745 = vmatprep.subr.mxu0 0.0
        %746 = vmatpush1.msra.mxu0 0.0
        %747 = vmatprep.subr.mxu0 0.0
        %748 = vmatpush1.msra.mxu0 0.0
        %749 = vmatprep.subr.mxu0 0.0
        %750 = vmatpush1.msra.mxu0 0.0
        %751 = vmatprep.subr.mxu0 0.0
        %752 = vmatpush1.msra.mxu0 0.0
        %753 = vmatprep.subr.mxu0 0.0
        %754 = vmatpush1.msra.mxu0 0.0
        %755 = vmatprep.subr.mxu0 0.0
        %756 = vmatpush1.msra.mxu0 0.0
        %757 = vmatprep.subr.mxu0 0.0
        %758 = vmatpush1.msra.mxu0 0.0
        %759 = vmatprep.subr.mxu0 0.0
        %760 = vmatpush1.msra.mxu0 0.0
        %761 = vmatprep.subr.mxu0 0.0
        %762 = vmatpush1.msra.mxu0 0.0
        %763 = vmatprep.subr.mxu0 0.0
        %764 = vmatpush1.msra.mxu0 0.0
        %765 = vmatprep.subr.mxu0 0.0
        %766 = vmatpush1.msra.mxu0 0.0
        %767 = vmatprep.subr.mxu0 0.0
        %768 = vmatpush1.msra.mxu0 0.0
        %769 = vmatprep.subr.mxu0 0.0
        %770 = vmatpush1.msra.mxu0 0.0
        %771 = vmatprep.subr.mxu0 0.0
        %772 = vmatpush1.msra.mxu0 0.0
        %773 = vmatprep.mubr.f32.mxu0 0.0
        %774 = vmatmul.mubr.f32.gmra.mrb[0].mxu0 %v564
        %v775 = vpop.f32.mrb[0].mxu0
        %v776 = vadd.f32 0.0, %v775
        %v777 = vpop.f32.mrb[0].mxu0
        %778 = vdwg.mxu0
        %v779 = vmul.f32 %v485, %v485
        %v781 = vsel %vm489, %v779, 0
        %783 = vmatprep.subr.mxu0 0.0
        %784 = vmatpush1.msra.mxu0 %v488
        %785 = vmatprep.subr.mxu0 0.0
        %786 = vmatpush1.msra.mxu0 0.0
        %787 = vmatprep.subr.mxu0 0.0
        %788 = vmatpush1.msra.mxu0 0.0
        %789 = vmatprep.subr.mxu0 0.0
        %790 = vmatpush1.msra.mxu0 0.0
        %791 = vmatprep.subr.mxu0 0.0
        %792 = vmatpush1.msra.mxu0 0.0
        %793 = vmatprep.subr.mxu0 0.0
        %794 = vmatpush1.msra.mxu0 0.0
        %795 = vmatprep.subr.mxu0 0.0
        %796 = vmatpush1.msra.mxu0 0.0
        %797 = vmatprep.subr.mxu0 0.0
        %798 = vmatpush1.msra.mxu0 0.0
        %799 = vmatprep.subr.mxu0 0.0
        %800 = vmatpush1.msra.mxu0 0.0
        %801 = vmatprep.subr.mxu0 0.0
        %802 = vmatpush1.msra.mxu0 0.0
        %803 = vmatprep.subr.mxu0 0.0
        %804 = vmatpush1.msra.mxu0 0.0
        %805 = vmatprep.subr.mxu0 0.0
        %806 = vmatpush1.msra.mxu0 0.0
        %807 = vmatprep.subr.mxu0 0.0
        %808 = vmatpush1.msra.mxu0 0.0
        %809 = vmatprep.subr.mxu0 0.0
        %810 = vmatpush1.msra.mxu0 0.0
        %811 = vmatprep.subr.mxu0 0.0
        %812 = vmatpush1.msra.mxu0 0.0
        %813 = vmatprep.subr.mxu0 0.0
        %814 = vmatpush1.msra.mxu0 0.0
        %815 = vmatprep.subr.mxu0 0.0
        %816 = vmatpush1.msra.mxu0 0.0
        %817 = vmatprep.subr.mxu0 0.0
        %818 = vmatpush1.msra.mxu0 0.0
        %819 = vmatprep.subr.mxu0 0.0
        %820 = vmatpush1.msra.mxu0 0.0
        %821 = vmatprep.subr.mxu0 0.0
        %822 = vmatpush1.msra.mxu0 0.0
        %823 = vmatprep.subr.mxu0 0.0
        %824 = vmatpush1.msra.mxu0 0.0
        %825 = vmatprep.subr.mxu0 0.0
        %826 = vmatpush1.msra.mxu0 0.0
        %827 = vmatprep.subr.mxu0 0.0
        %828 = vmatpush1.msra.mxu0 0.0
        %829 = vmatprep.subr.mxu0 0.0
        %830 = vmatpush1.msra.mxu0 0.0
        %831 = vmatprep.subr.mxu0 0.0
        %832 = vmatpush1.msra.mxu0 0.0
        %833 = vmatprep.subr.mxu0 0.0
        %834 = vmatpush1.msra.mxu0 0.0
        %835 = vmatprep.subr.mxu0 0.0
        %836 = vmatpush1.msra.mxu0 0.0
        %837 = vmatprep.subr.mxu0 0.0
        %838 = vmatpush1.msra.mxu0 0.0
        %839 = vmatprep.subr.mxu0 0.0
        %840 = vmatpush1.msra.mxu0 0.0
        %841 = vmatprep.subr.mxu0 0.0
        %842 = vmatpush1.msra.mxu0 0.0
        %843 = vmatprep.subr.mxu0 0.0
        %844 = vmatpush1.msra.mxu0 0.0
        %845 = vmatprep.subr.mxu0 0.0
        %846 = vmatpush1.msra.mxu0 0.0
        %847 = vmatprep.mubr.f32.mxu0 0.0
        %848 = vmatmul.mubr.f32.gmra.mrb[0].mxu0 %v781
        %v849 = vpop.f32.mrb[0].mxu0
        %v850 = vadd.f32 0.0, %v849
        %v851 = vpop.f32.mrb[0].mxu0
        %852 = vdwg.mxu0
        %853 = vmatprep.subr.mxu0 0.0
        %854 = vmatpush1.msra.mxu0 %v850
        %855 = vmatprep.subr.mxu0 0.0
        %856 = vmatpush1.msra.mxu0 0.0
        %857 = vmatprep.subr.mxu0 0.0
        %858 = vmatpush1.msra.mxu0 0.0
        %859 = vmatprep.subr.mxu0 0.0
        %860 = vmatpush1.msra.mxu0 0.0
        %861 = vmatprep.subr.mxu0 0.0
        %862 = vmatpush1.msra.mxu0 0.0
        %863 = vmatprep.subr.mxu0 0.0
        %864 = vmatpush1.msra.mxu0 0.0
        %865 = vmatprep.subr.mxu0 0.0
        %866 = vmatpush1.msra.mxu0 0.0
        %867 = vmatprep.subr.mxu0 0.0
        %868 = vmatpush1.msra.mxu0 0.0
        %869 = vmatprep.subr.mxu0 0.0
        %870 = vmatpush1.msra.mxu0 0.0
        %871 = vmatprep.subr.mxu0 0.0
        %872 = vmatpush1.msra.mxu0 0.0
        %873 = vmatprep.subr.mxu0 0.0
        %874 = vmatpush1.msra.mxu0 0.0
        %875 = vmatprep.subr.mxu0 0.0
        %876 = vmatpush1.msra.mxu0 0.0
        %877 = vmatprep.subr.mxu0 0.0
        %878 = vmatpush1.msra.mxu0 0.0
        %879 = vmatprep.subr.mxu0 0.0
        %880 = vmatpush1.msra.mxu0 0.0
        %881 = vmatprep.subr.mxu0 0.0
        %882 = vmatpush1.msra.mxu0 0.0
        %883 = vmatprep.subr.mxu0 0.0
        %884 = vmatpush1.msra.mxu0 0.0
        %885 = vmatprep.subr.mxu0 0.0
        %886 = vmatpush1.msra.mxu0 0.0
        %887 = vmatprep.subr.mxu0 0.0
        %888 = vmatpush1.msra.mxu0 0.0
        %889 = vmatprep.subr.mxu0 0.0
        %890 = vmatpush1.msra.mxu0 0.0
        %891 = vmatprep.subr.mxu0 0.0
        %892 = vmatpush1.msra.mxu0 0.0
        %893 = vmatprep.subr.mxu0 0.0
        %894 = vmatpush1.msra.mxu0 0.0
        %895 = vmatprep.subr.mxu0 0.0
        %896 = vmatpush1.msra.mxu0 0.0
        %897 = vmatprep.subr.mxu0 0.0
        %898 = vmatpush1.msra.mxu0 0.0
        %899 = vmatprep.subr.mxu0 0.0
        %900 = vmatpush1.msra.mxu0 0.0
        %901 = vmatprep.subr.mxu0 0.0
        %902 = vmatpush1.msra.mxu0 0.0
        %903 = vmatprep.subr.mxu0 0.0
        %904 = vmatpush1.msra.mxu0 0.0
        %905 = vmatprep.subr.mxu0 0.0
        %906 = vmatpush1.msra.mxu0 0.0
        %907 = vmatprep.subr.mxu0 0.0
        %908 = vmatpush1.msra.mxu0 0.0
        %909 = vmatprep.subr.mxu0 0.0
        %910 = vmatpush1.msra.mxu0 0.0
        %911 = vmatprep.subr.mxu0 0.0
        %912 = vmatpush1.msra.mxu0 0.0
        %913 = vmatprep.subr.mxu0 0.0
        %914 = vmatpush1.msra.mxu0 0.0
        %915 = vmatprep.subr.mxu0 0.0
        %916 = vmatpush1.msra.mxu0 0.0
        %917 = vmatprep.mubr.f32.mxu0 0.0
        %918 = vmatmul.mubr.f32.gmra.mrb[0].mxu0 %v564
        %v919 = vpop.f32.mrb[0].mxu0
        %v920 = vadd.f32 0.0, %v919
        %v921 = vpop.f32.mrb[0].mxu0
        %922 = vdwg.mxu0
        %v923 = vmul.f32 %v486, %v486
        %v925 = vsel %vm489, %v923, 0
        %927 = vmatprep.subr.mxu0 0.0
        %928 = vmatpush1.msra.mxu0 %v488
        %929 = vmatprep.subr.mxu0 0.0
        %930 = vmatpush1.msra.mxu0 0.0
        %931 = vmatprep.subr.mxu0 0.0
        %932 = vmatpush1.msra.mxu0 0.0
        %933 = vmatprep.subr.mxu0 0.0
        %934 = vmatpush1.msra.mxu0 0.0
        %935 = vmatprep.subr.mxu0 0.0
        %936 = vmatpush1.msra.mxu0 0.0
        %937 = vmatprep.subr.mxu0 0.0
        %938 = vmatpush1.msra.mxu0 0.0
        %939 = vmatprep.subr.mxu0 0.0
        %940 = vmatpush1.msra.mxu0 0.0
        %941 = vmatprep.subr.mxu0 0.0
        %942 = vmatpush1.msra.mxu0 0.0
        %943 = vmatprep.subr.mxu0 0.0
        %944 = vmatpush1.msra.mxu0 0.0
        %945 = vmatprep.subr.mxu0 0.0
        %946 = vmatpush1.msra.mxu0 0.0
        %947 = vmatprep.subr.mxu0 0.0
        %948 = vmatpush1.msra.mxu0 0.0
        %949 = vmatprep.subr.mxu0 0.0
        %950 = vmatpush1.msra.mxu0 0.0
        %951 = vmatprep.subr.mxu0 0.0
        %952 = vmatpush1.msra.mxu0 0.0
        %953 = vmatprep.subr.mxu0 0.0
        %954 = vmatpush1.msra.mxu0 0.0
        %955 = vmatprep.subr.mxu0 0.0
        %956 = vmatpush1.msra.mxu0 0.0
        %957 = vmatprep.subr.mxu0 0.0
        %958 = vmatpush1.msra.mxu0 0.0
        %959 = vmatprep.subr.mxu0 0.0
        %960 = vmatpush1.msra.mxu0 0.0
        %961 = vmatprep.subr.mxu0 0.0
        %962 = vmatpush1.msra.mxu0 0.0
        %963 = vmatprep.subr.mxu0 0.0
        %964 = vmatpush1.msra.mxu0 0.0
        %965 = vmatprep.subr.mxu0 0.0
        %966 = vmatpush1.msra.mxu0 0.0
        %967 = vmatprep.subr.mxu0 0.0
        %968 = vmatpush1.msra.mxu0 0.0
        %969 = vmatprep.subr.mxu0 0.0
        %970 = vmatpush1.msra.mxu0 0.0
        %971 = vmatprep.subr.mxu0 0.0
        %972 = vmatpush1.msra.mxu0 0.0
        %973 = vmatprep.subr.mxu0 0.0
        %974 = vmatpush1.msra.mxu0 0.0
        %975 = vmatprep.subr.mxu0 0.0
        %976 = vmatpush1.msra.mxu0 0.0
        %977 = vmatprep.subr.mxu0 0.0
        %978 = vmatpush1.msra.mxu0 0.0
        %979 = vmatprep.subr.mxu0 0.0
        %980 = vmatpush1.msra.mxu0 0.0
        %981 = vmatprep.subr.mxu0 0.0
        %982 = vmatpush1.msra.mxu0 0.0
        %983 = vmatprep.subr.mxu0 0.0
        %984 = vmatpush1.msra.mxu0 0.0
        %985 = vmatprep.subr.mxu0 0.0
        %986 = vmatpush1.msra.mxu0 0.0
        %987 = vmatprep.subr.mxu0 0.0
        %988 = vmatpush1.msra.mxu0 0.0
        %989 = vmatprep.subr.mxu0 0.0
        %990 = vmatpush1.msra.mxu0 0.0
        %991 = vmatprep.mubr.f32.mxu0 0.0
        %992 = vmatmul.mubr.f32.gmra.mrb[0].mxu0 %v925
        %v993 = vpop.f32.mrb[0].mxu0
        %v994 = vadd.f32 0.0, %v993
        %v995 = vpop.f32.mrb[0].mxu0
        %996 = vdwg.mxu0
        %997 = vmatprep.subr.mxu0 0.0
        %998 = vmatpush1.msra.mxu0 %v994
        %999 = vmatprep.subr.mxu0 0.0
        %1000 = vmatpush1.msra.mxu0 0.0
        %1001 = vmatprep.subr.mxu0 0.0
        %1002 = vmatpush1.msra.mxu0 0.0
        %1003 = vmatprep.subr.mxu0 0.0
        %1004 = vmatpush1.msra.mxu0 0.0
        %1005 = vmatprep.subr.mxu0 0.0
        %1006 = vmatpush1.msra.mxu0 0.0
        %1007 = vmatprep.subr.mxu0 0.0
        %1008 = vmatpush1.msra.mxu0 0.0
        %1009 = vmatprep.subr.mxu0 0.0
        %1010 = vmatpush1.msra.mxu0 0.0
        %1011 = vmatprep.subr.mxu0 0.0
        %1012 = vmatpush1.msra.mxu0 0.0
        %1013 = vmatprep.subr.mxu0 0.0
        %1014 = vmatpush1.msra.mxu0 0.0
        %1015 = vmatprep.subr.mxu0 0.0
        %1016 = vmatpush1.msra.mxu0 0.0
        %1017 = vmatprep.subr.mxu0 0.0
        %1018 = vmatpush1.msra.mxu0 0.0
        %1019 = vmatprep.subr.mxu0 0.0
        %1020 = vmatpush1.msra.mxu0 0.0
        %1021 = vmatprep.subr.mxu0 0.0
        %1022 = vmatpush1.msra.mxu0 0.0
        %1023 = vmatprep.subr.mxu0 0.0
        %1024 = vmatpush1.msra.mxu0 0.0
        %1025 = vmatprep.subr.mxu0 0.0
        %1026 = vmatpush1.msra.mxu0 0.0
        %1027 = vmatprep.subr.mxu0 0.0
        %1028 = vmatpush1.msra.mxu0 0.0
        %1029 = vmatprep.subr.mxu0 0.0
        %1030 = vmatpush1.msra.mxu0 0.0
        %1031 = vmatprep.subr.mxu0 0.0
        %1032 = vmatpush1.msra.mxu0 0.0
        %1033 = vmatprep.subr.mxu0 0.0
        %1034 = vmatpush1.msra.mxu0 0.0
        %1035 = vmatprep.subr.mxu0 0.0
        %1036 = vmatpush1.msra.mxu0 0.0
        %1037 = vmatprep.subr.mxu0 0.0
        %1038 = vmatpush1.msra.mxu0 0.0
        %1039 = vmatprep.subr.mxu0 0.0
        %1040 = vmatpush1.msra.mxu0 0.0
        %1041 = vmatprep.subr.mxu0 0.0
        %1042 = vmatpush1.msra.mxu0 0.0
        %1043 = vmatprep.subr.mxu0 0.0
        %1044 = vmatpush1.msra.mxu0 0.0
        %1045 = vmatprep.subr.mxu0 0.0
        %1046 = vmatpush1.msra.mxu0 0.0
        %1047 = vmatprep.subr.mxu0 0.0
        %1048 = vmatpush1.msra.mxu0 0.0
        %1049 = vmatprep.subr.mxu0 0.0
        %1050 = vmatpush1.msra.mxu0 0.0
        %1051 = vmatprep.subr.mxu0 0.0
        %1052 = vmatpush1.msra.mxu0 0.0
        %1053 = vmatprep.subr.mxu0 0.0
        %1054 = vmatpush1.msra.mxu0 0.0
        %1055 = vmatprep.subr.mxu0 0.0
        %1056 = vmatpush1.msra.mxu0 0.0
        %1057 = vmatprep.subr.mxu0 0.0
        %1058 = vmatpush1.msra.mxu0 0.0
        %1059 = vmatprep.subr.mxu0 0.0
        %1060 = vmatpush1.msra.mxu0 0.0
        %1061 = vmatprep.mubr.f32.mxu0 0.0
        %1062 = vmatmul.mubr.f32.gmra.mrb[0].mxu0 %v564
        %v1063 = vpop.f32.mrb[0].mxu0
        %v1064 = vadd.f32 0.0, %v1063
        %v1065 = vpop.f32.mrb[0].mxu0
        %1066 = vdwg.mxu0
        %v1067 = vmul.f32 %v485, %v486
        %v1069 = vsel %vm489, %v1067, 0
        %1071 = vmatprep.subr.mxu0 0.0
        %1072 = vmatpush1.msra.mxu0 %v488
        %1073 = vmatprep.subr.mxu0 0.0
        %1074 = vmatpush1.msra.mxu0 0.0
        %1075 = vmatprep.subr.mxu0 0.0
        %1076 = vmatpush1.msra.mxu0 0.0
        %1077 = vmatprep.subr.mxu0 0.0
        %1078 = vmatpush1.msra.mxu0 0.0
        %1079 = vmatprep.subr.mxu0 0.0
        %1080 = vmatpush1.msra.mxu0 0.0
        %1081 = vmatprep.subr.mxu0 0.0
        %1082 = vmatpush1.msra.mxu0 0.0
        %1083 = vmatprep.subr.mxu0 0.0
        %1084 = vmatpush1.msra.mxu0 0.0
        %1085 = vmatprep.subr.mxu0 0.0
        %1086 = vmatpush1.msra.mxu0 0.0
        %1087 = vmatprep.subr.mxu0 0.0
        %1088 = vmatpush1.msra.mxu0 0.0
        %1089 = vmatprep.subr.mxu0 0.0
        %1090 = vmatpush1.msra.mxu0 0.0
        %1091 = vmatprep.subr.mxu0 0.0
        %1092 = vmatpush1.msra.mxu0 0.0
        %1093 = vmatprep.subr.mxu0 0.0
        %1094 = vmatpush1.msra.mxu0 0.0
        %1095 = vmatprep.subr.mxu0 0.0
        %1096 = vmatpush1.msra.mxu0 0.0
        %1097 = vmatprep.subr.mxu0 0.0
        %1098 = vmatpush1.msra.mxu0 0.0
        %1099 = vmatprep.subr.mxu0 0.0
        %1100 = vmatpush1.msra.mxu0 0.0
        %1101 = vmatprep.subr.mxu0 0.0
        %1102 = vmatpush1.msra.mxu0 0.0
        %1103 = vmatprep.subr.mxu0 0.0
        %1104 = vmatpush1.msra.mxu0 0.0
        %1105 = vmatprep.subr.mxu0 0.0
        %1106 = vmatpush1.msra.mxu0 0.0
        %1107 = vmatprep.subr.mxu0 0.0
        %1108 = vmatpush1.msra.mxu0 0.0
        %1109 = vmatprep.subr.mxu0 0.0
        %1110 = vmatpush1.msra.mxu0 0.0
        %1111 = vmatprep.subr.mxu0 0.0
        %1112 = vmatpush1.msra.mxu0 0.0
        %1113 = vmatprep.subr.mxu0 0.0
        %1114 = vmatpush1.msra.mxu0 0.0
        %1115 = vmatprep.subr.mxu0 0.0
        %1116 = vmatpush1.msra.mxu0 0.0
        %1117 = vmatprep.subr.mxu0 0.0
        %1118 = vmatpush1.msra.mxu0 0.0
        %1119 = vmatprep.subr.mxu0 0.0
        %1120 = vmatpush1.msra.mxu0 0.0
        %1121 = vmatprep.subr.mxu0 0.0
        %1122 = vmatpush1.msra.mxu0 0.0
        %1123 = vmatprep.subr.mxu0 0.0
        %1124 = vmatpush1.msra.mxu0 0.0
        %1125 = vmatprep.subr.mxu0 0.0
        %1126 = vmatpush1.msra.mxu0 0.0
        %1127 = vmatprep.subr.mxu0 0.0
        %1128 = vmatpush1.msra.mxu0 0.0
        %1129 = vmatprep.subr.mxu0 0.0
        %1130 = vmatpush1.msra.mxu0 0.0
        %1131 = vmatprep.subr.mxu0 0.0
        %1132 = vmatpush1.msra.mxu0 0.0
        %1133 = vmatprep.subr.mxu0 0.0
        %1134 = vmatpush1.msra.mxu0 0.0
        %1135 = vmatprep.mubr.f32.mxu0 0.0
        %1136 = vmatmul.mubr.f32.gmra.mrb[0].mxu0 %v1069
        %v1137 = vpop.f32.mrb[0].mxu0
        %v1138 = vadd.f32 0.0, %v1137
        %v1139 = vpop.f32.mrb[0].mxu0
        %1140 = vdwg.mxu0
        %1141 = vmatprep.subr.mxu0 0.0
        %1142 = vmatpush1.msra.mxu0 %v1138
        %1143 = vmatprep.subr.mxu0 0.0
        %1144 = vmatpush1.msra.mxu0 0.0
        %1145 = vmatprep.subr.mxu0 0.0
        %1146 = vmatpush1.msra.mxu0 0.0
        %1147 = vmatprep.subr.mxu0 0.0
        %1148 = vmatpush1.msra.mxu0 0.0
        %1149 = vmatprep.subr.mxu0 0.0
        %1150 = vmatpush1.msra.mxu0 0.0
        %1151 = vmatprep.subr.mxu0 0.0
        %1152 = vmatpush1.msra.mxu0 0.0
        %1153 = vmatprep.subr.mxu0 0.0
        %1154 = vmatpush1.msra.mxu0 0.0
        %1155 = vmatprep.subr.mxu0 0.0
        %1156 = vmatpush1.msra.mxu0 0.0
        %1157 = vmatprep.subr.mxu0 0.0
        %1158 = vmatpush1.msra.mxu0 0.0
        %1159 = vmatprep.subr.mxu0 0.0
        %1160 = vmatpush1.msra.mxu0 0.0
        %1161 = vmatprep.subr.mxu0 0.0
        %1162 = vmatpush1.msra.mxu0 0.0
        %1163 = vmatprep.subr.mxu0 0.0
        %1164 = vmatpush1.msra.mxu0 0.0
        %1165 = vmatprep.subr.mxu0 0.0
        %1166 = vmatpush1.msra.mxu0 0.0
        %1167 = vmatprep.subr.mxu0 0.0
        %1168 = vmatpush1.msra.mxu0 0.0
        %1169 = vmatprep.subr.mxu0 0.0
        %1170 = vmatpush1.msra.mxu0 0.0
        %1171 = vmatprep.subr.mxu0 0.0
        %1172 = vmatpush1.msra.mxu0 0.0
        %1173 = vmatprep.subr.mxu0 0.0
        %1174 = vmatpush1.msra.mxu0 0.0
        %1175 = vmatprep.subr.mxu0 0.0
        %1176 = vmatpush1.msra.mxu0 0.0
        %1177 = vmatprep.subr.mxu0 0.0
        %1178 = vmatpush1.msra.mxu0 0.0
        %1179 = vmatprep.subr.mxu0 0.0
        %1180 = vmatpush1.msra.mxu0 0.0
        %1181 = vmatprep.subr.mxu0 0.0
        %1182 = vmatpush1.msra.mxu0 0.0
        %1183 = vmatprep.subr.mxu0 0.0
        %1184 = vmatpush1.msra.mxu0 0.0
        %1185 = vmatprep.subr.mxu0 0.0
        %1186 = vmatpush1.msra.mxu0 0.0
        %1187 = vmatprep.subr.mxu0 0.0
        %1188 = vmatpush1.msra.mxu0 0.0
        %1189 = vmatprep.subr.mxu0 0.0
        %1190 = vmatpush1.msra.mxu0 0.0
        %1191 = vmatprep.subr.mxu0 0.0
        %1192 = vmatpush1.msra.mxu0 0.0
        %1193 = vmatprep.subr.mxu0 0.0
        %1194 = vmatpush1.msra.mxu0 0.0
        %1195 = vmatprep.subr.mxu0 0.0
        %1196 = vmatpush1.msra.mxu0 0.0
        %1197 = vmatprep.subr.mxu0 0.0
        %1198 = vmatpush1.msra.mxu0 0.0
        %1199 = vmatprep.subr.mxu0 0.0
        %1200 = vmatpush1.msra.mxu0 0.0
        %1201 = vmatprep.subr.mxu0 0.0
        %1202 = vmatpush1.msra.mxu0 0.0
        %1203 = vmatprep.subr.mxu0 0.0
        %1204 = vmatpush1.msra.mxu0 0.0
        %1205 = vmatprep.mubr.f32.mxu0 0.0
        %1206 = vmatmul.mubr.f32.gmra.mrb[0].mxu0 %v564
        %v1207 = vpop.f32.mrb[0].mxu0
        %v1208 = vadd.f32 0.0, %v1207
        %v1209 = vpop.f32.mrb[0].mxu0
        %1210 = vdwg.mxu0
        %v1211 = vmul.f32 %v633, %v633
        %v1212 = vmul.f32 %v776, %v776
        %v1213 = vmul.f32 %v633, %v776
        %v1214 = vsub.f32 %v920, %v1211
        %v1215 = vsub.f32 %v1064, %v1212
        %v1216 = vsub.f32 %v1208, %v1213
        %v1217 = vmul.f32 %v1216, 2.0
        %v1218 = vstv %s484
        %v1219 = vadd.f32 %v1217, %v1218
        %v1220 = vadd.f32 %v1214, %v1215
        %v1221 = vadd.f32 %v1220, %v1218
        %v1222 = vrcp.pop %v1221
        %v1223 = vmul.f32 %v1219, %v1222
        %v1224 = vadd.f32 %v1211, %v1212
        %v1225 = vstv %s483
        %v1226 = vadd.f32 %v1224, %v1225
        %v1227 = vrcp.pop %v1226
        %v1228 = vmul.f32 %v1213, 2.0
        %v1229 = vadd.f32 %v1228, %v1225
        %v1230 = vmul.f32 %v1229, %v1227
        %v1231 = vmul.f32 %v1230, %v1223
        %v1232 = vadd.f32 %v1231, 0.0
        %s1233 = vtos %v1232
        %v1234 = vstv %s1233
        %vm1235 = vcmask 0
        %1236 = vst.msk [vmem:[%s465] sm:$0x1] %vm1235, %v1234
        %v1237 = vadd.f32 %v1223, 0.0
        %s1238 = vtos %v1237
        %v1239 = vstv %s1238
        %1240 = vst.msk [vmem:[%s468] sm:$0x1] %vm1235, %v1239
        %v1241 = vld [vmem:[%s5] sm:$0xf]
        %v1242 = vld [vmem:[%s6] sm:$0xff]
        %v1244 = vsel %vm489, %v1241, 0
        %1246 = vmatprep.subr.mxu0 0.0
        %1247 = vmatpush1.msra.mxu0 %v485
        %1248 = vmatprep.subr.mxu0 0.0
        %1249 = vmatpush1.msra.mxu0 0.0
        %1250 = vmatprep.subr.mxu0 0.0
        %1251 = vmatpush1.msra.mxu0 0.0
        %1252 = vmatprep.subr.mxu0 0.0
        %1253 = vmatpush1.msra.mxu0 0.0
        %1254 = vmatprep.subr.mxu0 0.0
        %1255 = vmatpush1.msra.mxu0 0.0
        %1256 = vmatprep.subr.mxu0 0.0
        %1257 = vmatpush1.msra.mxu0 0.0
        %1258 = vmatprep.subr.mxu0 0.0
        %1259 = vmatpush1.msra.mxu0 0.0
        %1260 = vmatprep.subr.mxu0 0.0
        %1261 = vmatpush1.msra.mxu0 0.0
        %1262 = vmatprep.subr.mxu0 0.0
        %1263 = vmatpush1.msra.mxu0 0.0
        %1264 = vmatprep.subr.mxu0 0.0
        %1265 = vmatpush1.msra.mxu0 0.0
        %1266 = vmatprep.subr.mxu0 0.0
        %1267 = vmatpush1.msra.mxu0 0.0
        %1268 = vmatprep.subr.mxu0 0.0
        %1269 = vmatpush1.msra.mxu0 0.0
        %1270 = vmatprep.subr.mxu0 0.0
        %1271 = vmatpush1.msra.mxu0 0.0
        %1272 = vmatprep.subr.mxu0 0.0
        %1273 = vmatpush1.msra.mxu0 0.0
        %1274 = vmatprep.subr.mxu0 0.0
        %1275 = vmatpush1.msra.mxu0 0.0
        %1276 = vmatprep.subr.mxu0 0.0
        %1277 = vmatpush1.msra.mxu0 0.0
        %1278 = vmatprep.subr.mxu0 0.0
        %1279 = vmatpush1.msra.mxu0 0.0
        %1280 = vmatprep.subr.mxu0 0.0
        %1281 = vmatpush1.msra.mxu0 0.0
        %1282 = vmatprep.subr.mxu0 0.0
        %1283 = vmatpush1.msra.mxu0 0.0
        %1284 = vmatprep.subr.mxu0 0.0
        %1285 = vmatpush1.msra.mxu0 0.0
        %1286 = vmatprep.subr.mxu0 0.0
        %1287 = vmatpush1.msra.mxu0 0.0
        %1288 = vmatprep.subr.mxu0 0.0
        %1289 = vmatpush1.msra.mxu0 0.0
        %1290 = vmatprep.subr.mxu0 0.0
        %1291 = vmatpush1.msra.mxu0 0.0
        %1292 = vmatprep.subr.mxu0 0.0
        %1293 = vmatpush1.msra.mxu0 0.0
        %1294 = vmatprep.subr.mxu0 0.0
        %1295 = vmatpush1.msra.mxu0 0.0
        %1296 = vmatprep.subr.mxu0 0.0
        %1297 = vmatpush1.msra.mxu0 0.0
        %1298 = vmatprep.subr.mxu0 0.0
        %1299 = vmatpush1.msra.mxu0 0.0
        %1300 = vmatprep.subr.mxu0 0.0
        %1301 = vmatpush1.msra.mxu0 0.0
        %1302 = vmatprep.subr.mxu0 0.0
        %1303 = vmatpush1.msra.mxu0 0.0
        %1304 = vmatprep.subr.mxu0 0.0
        %1305 = vmatpush1.msra.mxu0 0.0
        %1306 = vmatprep.subr.mxu0 0.0
        %1307 = vmatpush1.msra.mxu0 0.0
        %1308 = vmatprep.subr.mxu0 0.0
        %1309 = vmatpush1.msra.mxu0 0.0
        %1310 = vmatprep.mubr.f32.mxu0 0.0
        %1311 = vmatmul.mubr.f32.gmra.mrb[0].mxu0 %v1244
        %v1312 = vpop.f32.mrb[0].mxu0
        %v1313 = vadd.f32 0.0, %v1312
        %v1314 = vpop.f32.mrb[0].mxu0
        %1315 = vdwg.mxu0
        %v1317 = vsel %vm489, %v1313, 0
        %1319 = vmatprep.subr.mxu0 0.0
        %1320 = vmatpush1.msra.mxu0 %v1242
        %1321 = vmatprep.subr.mxu0 0.0
        %1322 = vmatpush1.msra.mxu0 0.0
        %1323 = vmatprep.subr.mxu0 0.0
        %1324 = vmatpush1.msra.mxu0 0.0
        %1325 = vmatprep.subr.mxu0 0.0
        %1326 = vmatpush1.msra.mxu0 0.0
        %1327 = vmatprep.subr.mxu0 0.0
        %1328 = vmatpush1.msra.mxu0 0.0
        %1329 = vmatprep.subr.mxu0 0.0
        %1330 = vmatpush1.msra.mxu0 0.0
        %1331 = vmatprep.subr.mxu0 0.0
        %1332 = vmatpush1.msra.mxu0 0.0
        %1333 = vmatprep.subr.mxu0 0.0
        %1334 = vmatpush1.msra.mxu0 0.0
        %1335 = vmatprep.subr.mxu0 0.0
        %1336 = vmatpush1.msra.mxu0 0.0
        %1337 = vmatprep.subr.mxu0 0.0
        %1338 = vmatpush1.msra.mxu0 0.0
        %1339 = vmatprep.subr.mxu0 0.0
        %1340 = vmatpush1.msra.mxu0 0.0
        %1341 = vmatprep.subr.mxu0 0.0
        %1342 = vmatpush1.msra.mxu0 0.0
        %1343 = vmatprep.subr.mxu0 0.0
        %1344 = vmatpush1.msra.mxu0 0.0
        %1345 = vmatprep.subr.mxu0 0.0
        %1346 = vmatpush1.msra.mxu0 0.0
        %1347 = vmatprep.subr.mxu0 0.0
        %1348 = vmatpush1.msra.mxu0 0.0
        %1349 = vmatprep.subr.mxu0 0.0
        %1350 = vmatpush1.msra.mxu0 0.0
        %1351 = vmatprep.subr.mxu0 0.0
        %1352 = vmatpush1.msra.mxu0 0.0
        %1353 = vmatprep.subr.mxu0 0.0
        %1354 = vmatpush1.msra.mxu0 0.0
        %1355 = vmatprep.subr.mxu0 0.0
        %1356 = vmatpush1.msra.mxu0 0.0
        %1357 = vmatprep.subr.mxu0 0.0
        %1358 = vmatpush1.msra.mxu0 0.0
        %1359 = vmatprep.subr.mxu0 0.0
        %1360 = vmatpush1.msra.mxu0 0.0
        %1361 = vmatprep.subr.mxu0 0.0
        %1362 = vmatpush1.msra.mxu0 0.0
        %1363 = vmatprep.subr.mxu0 0.0
        %1364 = vmatpush1.msra.mxu0 0.0
        %1365 = vmatprep.subr.mxu0 0.0
        %1366 = vmatpush1.msra.mxu0 0.0
        %1367 = vmatprep.subr.mxu0 0.0
        %1368 = vmatpush1.msra.mxu0 0.0
        %1369 = vmatprep.subr.mxu0 0.0
        %1370 = vmatpush1.msra.mxu0 0.0
        %1371 = vmatprep.subr.mxu0 0.0
        %1372 = vmatpush1.msra.mxu0 0.0
        %1373 = vmatprep.subr.mxu0 0.0
        %1374 = vmatpush1.msra.mxu0 0.0
        %1375 = vmatprep.subr.mxu0 0.0
        %1376 = vmatpush1.msra.mxu0 0.0
        %1377 = vmatprep.subr.mxu0 0.0
        %1378 = vmatpush1.msra.mxu0 0.0
        %1379 = vmatprep.subr.mxu0 0.0
        %1380 = vmatpush1.msra.mxu0 0.0
        %1381 = vmatprep.subr.mxu0 0.0
        %1382 = vmatpush1.msra.mxu0 0.0
        %1383 = vmatprep.mubr.f32.mxu0 0.0
        %1384 = vmatmul.mubr.f32.gmra.mrb[0].mxu0 %v1317
        %v1385 = vpop.f32.mrb[0].mxu0
        %v1386 = vadd.f32 0.0, %v1385
        %v1387 = vpop.f32.mrb[0].mxu0
        %1388 = vdwg.mxu0
        %1389 = vmatprep.subr.mxu0 0.0
        %1390 = vmatpush1.msra.mxu0 %v486
        %1391 = vmatprep.subr.mxu0 0.0
        %1392 = vmatpush1.msra.mxu0 0.0
        %1393 = vmatprep.subr.mxu0 0.0
        %1394 = vmatpush1.msra.mxu0 0.0
        %1395 = vmatprep.subr.mxu0 0.0
        %1396 = vmatpush1.msra.mxu0 0.0
        %1397 = vmatprep.subr.mxu0 0.0
        %1398 = vmatpush1.msra.mxu0 0.0
        %1399 = vmatprep.subr.mxu0 0.0
        %1400 = vmatpush1.msra.mxu0 0.0
        %1401 = vmatprep.subr.mxu0 0.0
        %1402 = vmatpush1.msra.mxu0 0.0
        %1403 = vmatprep.subr.mxu0 0.0
        %1404 = vmatpush1.msra.mxu0 0.0
        %1405 = vmatprep.subr.mxu0 0.0
        %1406 = vmatpush1.msra.mxu0 0.0
        %1407 = vmatprep.subr.mxu0 0.0
        %1408 = vmatpush1.msra.mxu0 0.0
        %1409 = vmatprep.subr.mxu0 0.0
        %1410 = vmatpush1.msra.mxu0 0.0
        %1411 = vmatprep.subr.mxu0 0.0
        %1412 = vmatpush1.msra.mxu0 0.0
        %1413 = vmatprep.subr.mxu0 0.0
        %1414 = vmatpush1.msra.mxu0 0.0
        %1415 = vmatprep.subr.mxu0 0.0
        %1416 = vmatpush1.msra.mxu0 0.0
        %1417 = vmatprep.subr.mxu0 0.0
        %1418 = vmatpush1.msra.mxu0 0.0
        %1419 = vmatprep.subr.mxu0 0.0
        %1420 = vmatpush1.msra.mxu0 0.0
        %1421 = vmatprep.subr.mxu0 0.0
        %1422 = vmatpush1.msra.mxu0 0.0
        %1423 = vmatprep.subr.mxu0 0.0
        %1424 = vmatpush1.msra.mxu0 0.0
        %1425 = vmatprep.subr.mxu0 0.0
        %1426 = vmatpush1.msra.mxu0 0.0
        %1427 = vmatprep.subr.mxu0 0.0
        %1428 = vmatpush1.msra.mxu0 0.0
        %1429 = vmatprep.subr.mxu0 0.0
        %1430 = vmatpush1.msra.mxu0 0.0
        %1431 = vmatprep.subr.mxu0 0.0
        %1432 = vmatpush1.msra.mxu0 0.0
        %1433 = vmatprep.subr.mxu0 0.0
        %1434 = vmatpush1.msra.mxu0 0.0
        %1435 = vmatprep.subr.mxu0 0.0
        %1436 = vmatpush1.msra.mxu0 0.0
        %1437 = vmatprep.subr.mxu0 0.0
        %1438 = vmatpush1.msra.mxu0 0.0
        %1439 = vmatprep.subr.mxu0 0.0
        %1440 = vmatpush1.msra.mxu0 0.0
        %1441 = vmatprep.subr.mxu0 0.0
        %1442 = vmatpush1.msra.mxu0 0.0
        %1443 = vmatprep.subr.mxu0 0.0
        %1444 = vmatpush1.msra.mxu0 0.0
        %1445 = vmatprep.subr.mxu0 0.0
        %1446 = vmatpush1.msra.mxu0 0.0
        %1447 = vmatprep.subr.mxu0 0.0
        %1448 = vmatpush1.msra.mxu0 0.0
        %1449 = vmatprep.subr.mxu0 0.0
        %1450 = vmatpush1.msra.mxu0 0.0
        %1451 = vmatprep.subr.mxu0 0.0
        %1452 = vmatpush1.msra.mxu0 0.0
        %1453 = vmatprep.mubr.f32.mxu0 0.0
        %1454 = vmatmul.mubr.f32.gmra.mrb[0].mxu0 %v1244
        %v1455 = vpop.f32.mrb[0].mxu0
        %v1456 = vadd.f32 0.0, %v1455
        %v1457 = vpop.f32.mrb[0].mxu0
        %1458 = vdwg.mxu0
        %v1460 = vsel %vm489, %v1456, 0
        %1462 = vmatprep.subr.mxu0 0.0
        %1463 = vmatpush1.msra.mxu0 %v1242
        %1464 = vmatprep.subr.mxu0 0.0
        %1465 = vmatpush1.msra.mxu0 0.0
        %1466 = vmatprep.subr.mxu0 0.0
        %1467 = vmatpush1.msra.mxu0 0.0
        %1468 = vmatprep.subr.mxu0 0.0
        %1469 = vmatpush1.msra.mxu0 0.0
        %1470 = vmatprep.subr.mxu0 0.0
        %1471 = vmatpush1.msra.mxu0 0.0
        %1472 = vmatprep.subr.mxu0 0.0
        %1473 = vmatpush1.msra.mxu0 0.0
        %1474 = vmatprep.subr.mxu0 0.0
        %1475 = vmatpush1.msra.mxu0 0.0
        %1476 = vmatprep.subr.mxu0 0.0
        %1477 = vmatpush1.msra.mxu0 0.0
        %1478 = vmatprep.subr.mxu0 0.0
        %1479 = vmatpush1.msra.mxu0 0.0
        %1480 = vmatprep.subr.mxu0 0.0
        %1481 = vmatpush1.msra.mxu0 0.0
        %1482 = vmatprep.subr.mxu0 0.0
        %1483 = vmatpush1.msra.mxu0 0.0
        %1484 = vmatprep.subr.mxu0 0.0
        %1485 = vmatpush1.msra.mxu0 0.0
        %1486 = vmatprep.subr.mxu0 0.0
        %1487 = vmatpush1.msra.mxu0 0.0
        %1488 = vmatprep.subr.mxu0 0.0
        %1489 = vmatpush1.msra.mxu0 0.0
        %1490 = vmatprep.subr.mxu0 0.0
        %1491 = vmatpush1.msra.mxu0 0.0
        %1492 = vmatprep.subr.mxu0 0.0
        %1493 = vmatpush1.msra.mxu0 0.0
        %1494 = vmatprep.subr.mxu0 0.0
        %1495 = vmatpush1.msra.mxu0 0.0
        %1496 = vmatprep.subr.mxu0 0.0
        %1497 = vmatpush1.msra.mxu0 0.0
        %1498 = vmatprep.subr.mxu0 0.0
        %1499 = vmatpush1.msra.mxu0 0.0
        %1500 = vmatprep.subr.mxu0 0.0
        %1501 = vmatpush1.msra.mxu0 0.0
        %1502 = vmatprep.subr.mxu0 0.0
        %1503 = vmatpush1.msra.mxu0 0.0
        %1504 = vmatprep.subr.mxu0 0.0
        %1505 = vmatpush1.msra.mxu0 0.0
        %1506 = vmatprep.subr.mxu0 0.0
        %1507 = vmatpush1.msra.mxu0 0.0
        %1508 = vmatprep.subr.mxu0 0.0
        %1509 = vmatpush1.msra.mxu0 0.0
        %1510 = vmatprep.subr.mxu0 0.0
        %1511 = vmatpush1.msra.mxu0 0.0
        %1512 = vmatprep.subr.mxu0 0.0
        %1513 = vmatpush1.msra.mxu0 0.0
        %1514 = vmatprep.subr.mxu0 0.0
        %1515 = vmatpush1.msra.mxu0 0.0
        %1516 = vmatprep.subr.mxu0 0.0
        %1517 = vmatpush1.msra.mxu0 0.0
        %1518 = vmatprep.subr.mxu0 0.0
        %1519 = vmatpush1.msra.mxu0 0.0
        %1520 = vmatprep.subr.mxu0 0.0
        %1521 = vmatpush1.msra.mxu0 0.0
        %1522 = vmatprep.subr.mxu0 0.0
        %1523 = vmatpush1.msra.mxu0 0.0
        %1524 = vmatprep.subr.mxu0 0.0
        %1525 = vmatpush1.msra.mxu0 0.0
        %1526 = vmatprep.mubr.f32.mxu0 0.0
        %1527 = vmatmul.mubr.f32.gmra.mrb[0].mxu0 %v1460
        %v1528 = vpop.f32.mrb[0].mxu0
        %v1529 = vadd.f32 0.0, %v1528
        %v1530 = vpop.f32.mrb[0].mxu0
        %1531 = vdwg.mxu0
        %vm1532 = vcmask 27648
        %1533 = vst.msk [vmem:[%s472] sm:$0xf] %vm1532, %v1386
        %1534 = vst.msk [vmem:[%s476] sm:$0xf] %vm1532, %v1529
        %v1535 = vsel %vm1532, %v1386, -inf
        %1536 = vmax.xlane.f32.xlu0 %v1535
        %v1537 = vpop.xlane.xlu0 %1536
        %v1538 = vrot.slane %v1537, 4
        %v1539 = vmax.f32 %v1537, %v1538
        %v1540 = vrot.slane %v1539, 2
        %v1541 = vmax.f32 %v1539, %v1540
        %v1542 = vrot.slane %v1541, 1
        %v1543 = vmax.f32 %v1541, %v1542
        %s1544 = vtos %v1543
        %v1545 = vstv %s1544
        %1546 = vst.msk [vmem:[%s479] sm:$0x1] %vm1235, %v1545
        %v1547 = vsel %vm1532, %v1386, inf
        %1548 = vmin.xlane.f32.xlu0 %v1547
        %v1549 = vpop.xlane.xlu0 %1548
        %v1550 = vrot.slane %v1549, 4
        %v1551 = vmin.f32 %v1549, %v1550
        %v1552 = vrot.slane %v1551, 2
        %v1553 = vmin.f32 %v1551, %v1552
        %v1554 = vrot.slane %v1553, 1
        %v1555 = vmin.f32 %v1553, %v1554
        %s1556 = vtos %v1555
        %v1557 = vstv %s1556
        %1558 = vst.msk [vmem:[%s482] sm:$0x1] %vm1235, %v1557
        %p1559 = scmp.lt.s32.totalorder %s25, 5
        %s1560 = scalar_select %p1559, %s25, 5
        %s1561 = scalar_lea.vmem %s7, %s1560
        %p1562 = scmp.lt.s32.totalorder %s25, 5
        %s1563 = scalar_select %p1562, %s25, 5
        %s1564 = scalar_lea.vmem %s8, %s1563
        %p1565 = scmp.lt.s32.totalorder %s25, 5
        %s1566 = scalar_select %p1565, %s25, 5
        %s1567 = smul.addr %s1566, 4
        %s1568 = scalar_lea.vmem %s9, %s1567
        %p1569 = scmp.lt.s32.totalorder %s25, 5
        %s1570 = scalar_select %p1569, %s25, 5
        %s1571 = smul.addr %s1570, 4
        %s1572 = scalar_lea.vmem %s10, %s1571
        %p1573 = scmp.lt.s32.totalorder %s25, 5
        %s1574 = scalar_select %p1573, %s25, 5
        %s1575 = scalar_lea.vmem %s11, %s1574
        %p1576 = scmp.lt.s32.totalorder %s25, 5
        %s1577 = scalar_select %p1576, %s25, 5
        %s1578 = scalar_lea.vmem %s12, %s1577
        // Predicated region
        $region53: #{a_call__.7} parent=47 // pred_check
          %p1579 = pneg %p200
        $region54: #{a_call__.7} parent=47 // pred_check_branch
          %1581 = sbr.rel (%p1579) target = $region56
        $region55: #{a_call__.7} parent=47 // pred_region
          _
        $region56: #{a_call__.7} parent=47 // pred_fallthru
          _
        // Predicated region
        $region57: #{a_call__.7} parent=47 // pred_check
          %p1582 = pneg %p226
        $region58: #{a_call__.7} parent=47 // pred_check_branch
          %1584 = sbr.rel (%p1582) target = $region60
        $region59: #{a_call__.7} parent=47 // pred_region
          _
        $region60: #{a_call__.7} parent=47 // pred_fallthru
          _
        // Predicated region
        $region61: #{a_call__.7} parent=47 // pred_check
          %p1585 = pneg %p252
        $region62: #{a_call__.7} parent=47 // pred_check_branch
          %1587 = sbr.rel (%p1585) target = $region64
        $region63: #{a_call__.7} parent=47 // pred_region
          _
        $region64: #{a_call__.7} parent=47 // pred_fallthru
          _
        // Predicated region
        $region65: #{a_call__.7} parent=47 // pred_check
          %p1588 = pneg %p278
        $region66: #{a_call__.7} parent=47 // pred_check_branch
          %1590 = sbr.rel (%p1588) target = $region68
        $region67: #{a_call__.7} parent=47 // pred_region
          _
        $region68: #{a_call__.7} parent=47 // pred_fallthru
          _
        // Predicated region
        $region69: #{a_call__.7} parent=47 // pred_check
          %p1591 = pneg %p304
        $region70: #{a_call__.7} parent=47 // pred_check_branch
          %1593 = sbr.rel (%p1591) target = $region72
        $region71: #{a_call__.7} parent=47 // pred_region
          _
        $region72: #{a_call__.7} parent=47 // pred_fallthru
          _
        // Predicated region
        $region73: #{a_call__.7} parent=47 // pred_check
          %p1594 = pneg %p330
        $region74: #{a_call__.7} parent=47 // pred_check_branch
          %1596 = sbr.rel (%p1594) target = $region76
        $region75: #{a_call__.7} parent=47 // pred_region
          _
        $region76: #{a_call__.7} parent=47 // pred_fallthru
          _
      $region48: #{a_call__.7} parent=5 // pred_fallthru
        _
      %p1597 = scmp.le.s32.totalorder 2, %s20
      // Predicated region
      $region77: #{a_call__.7} parent=5 // pred_check
        %p1598 = pneg %p1597
      $region78: #{a_call__.7} parent=5 // pred_check_branch
        %1600 = sbr.rel (%p1598) target = $region80
      $region79: #{a_call__.7} parent=5 // pred_region
        %s1601 = ssub.s32 %s20, 2
        // Predicated region
        $region81: #{a_call__.7} parent=79 // pred_check
          %p1602 = pneg %p206
        $region82: #{a_call__.7} parent=79 // pred_check_branch
          %1604 = sbr.rel (%p1602) target = $region84
        $region83: #{a_call__.7} parent=79 // pred_region
          %p1605 = scmp.lt.s32.totalorder %s26, 5
          %s1606 = scalar_select %p1605, %s26, 5
          %s1607 = scalar_lea.vmem %s7, %s1606
        $region84: #{a_call__.7} parent=79 // pred_fallthru
          _
        // Predicated region
        $region85: #{a_call__.7} parent=79 // pred_check
          %p1608 = pneg %p232
        $region86: #{a_call__.7} parent=79 // pred_check_branch
          %1610 = sbr.rel (%p1608) target = $region88
        $region87: #{a_call__.7} parent=79 // pred_region
          %p1611 = scmp.lt.s32.totalorder %s26, 5
          %s1612 = scalar_select %p1611, %s26, 5
          %s1613 = scalar_lea.vmem %s8, %s1612
        $region88: #{a_call__.7} parent=79 // pred_fallthru
          _
        // Predicated region
        $region89: #{a_call__.7} parent=79 // pred_check
          %p1614 = pneg %p258
        $region90: #{a_call__.7} parent=79 // pred_check_branch
          %1616 = sbr.rel (%p1614) target = $region92
        $region91: #{a_call__.7} parent=79 // pred_region
          %p1617 = scmp.lt.s32.totalorder %s26, 5
          %s1618 = scalar_select %p1617, %s26, 5
          %s1619 = smul.addr %s1618, 4
          %s1620 = scalar_lea.vmem %s9, %s1619
        $region92: #{a_call__.7} parent=79 // pred_fallthru
          _
        // Predicated region
        $region93: #{a_call__.7} parent=79 // pred_check
          %p1621 = pneg %p284
        $region94: #{a_call__.7} parent=79 // pred_check_branch
          %1623 = sbr.rel (%p1621) target = $region96
        $region95: #{a_call__.7} parent=79 // pred_region
          %p1624 = scmp.lt.s32.totalorder %s26, 5
          %s1625 = scalar_select %p1624, %s26, 5
          %s1626 = smul.addr %s1625, 4
          %s1627 = scalar_lea.vmem %s10, %s1626
        $region96: #{a_call__.7} parent=79 // pred_fallthru
          _
        // Predicated region
        $region97: #{a_call__.7} parent=79 // pred_check
          %p1628 = pneg %p310
        $region98: #{a_call__.7} parent=79 // pred_check_branch
          %1630 = sbr.rel (%p1628) target = $region100
        $region99: #{a_call__.7} parent=79 // pred_region
          %p1631 = scmp.lt.s32.totalorder %s26, 5
          %s1632 = scalar_select %p1631, %s26, 5
          %s1633 = scalar_lea.vmem %s11, %s1632
        $region100: #{a_call__.7} parent=79 // pred_fallthru
          _
        // Predicated region
        $region101: #{a_call__.7} parent=79 // pred_check
          %p1634 = pneg %p336
        $region102: #{a_call__.7} parent=79 // pred_check_branch
          %1636 = sbr.rel (%p1634) target = $region104
        $region103: #{a_call__.7} parent=79 // pred_region
          %p1637 = scmp.lt.s32.totalorder %s26, 5
          %s1638 = scalar_select %p1637, %s26, 5
          %s1639 = scalar_lea.vmem %s12, %s1638
        $region104: #{a_call__.7} parent=79 // pred_fallthru
          _
      $region80: #{a_call__.7} parent=5 // pred_fallthru
        _
    $region6: #{a_call__.7} parent=1 // loop_footer
      %s24 = sadd.s32 1, %s20
    $region7: #{a_call__.7} parent=1 // loop_footer_branch
      %19 = sbr.rel target = $region3
    $region8: #{a_call__.7} parent=1 // loop_exit
      _
    %1640 = vsyncpa [#allocation3], 1
    %s1641 = scalar_lea.sflag [#allocation3], 1
    %1642 = vsyncpa %s1641, 1

// kernel: a_call__.6
$region0: #{a_call__.6}
  #allocation0 [shape = 'u32[]', space=smem, size = 0x4, offset = 0x4, fixed_abs, tag = 'smem constant byte address 0x4 - core index']
  #allocation1 [shape = 'u32[144,128]{1,0:T(1,128)}', space=vmem, size = 0x12000, scoped, tag = 'internal scratch']
  %s0 = inlined_call_operand.vmem [shape: f32[2], index: 0, kind: input, shape index: {}]
  %s1 = inlined_call_operand.vmem [shape: f32[6,16,16], index: 1, kind: input, shape index: {}]
  %s2 = inlined_call_operand.vmem [shape: f32[6,16,16], index: 2, kind: input, shape index: {}]
  %s3 = inlined_call_operand.vmem [shape: f32[6,16], index: 3, kind: input, shape index: {}]
  %s4 = inlined_call_operand.vmem [shape: f32[16,6], index: 4, kind: input, shape index: {}]
  %s5 = inlined_call_operand.vmem [shape: f32[8,16], index: 5, kind: input, shape index: {}]
  %s6 = inlined_call_operand.vmem [shape: f32[16,8], index: 6, kind: input, shape index: {}]
  %s7 = inlined_call_operand.vmem [shape: f32[6,1,1], index: 7, kind: output, shape index: {0}]
  %s8 = inlined_call_operand.vmem [shape: f32[6,1,1], index: 8, kind: output, shape index: {1}]
  %s9 = inlined_call_operand.vmem [shape: f32[6,8,8], index: 9, kind: output, shape index: {2}]
  %s10 = inlined_call_operand.vmem [shape: f32[6,8,8], index: 10, kind: output, shape index: {3}]
  %s11 = inlined_call_operand.vmem [shape: f32[6,1,1], index: 11, kind: output, shape index: {4}]
  %s12 = inlined_call_operand.vmem [shape: f32[6,1,1], index: 12, kind: output, shape index: {5}]
  %13 = xla_tuple %s7, %s8, %s9, %s10, %s11, %s12
  %s14 = sld [smem:[#allocation0]]
  $region105: #{a_call__.6} parent=0
    _
  %s16 = ssub.s32 1, %s14
  %s17 = scalar_select 0, %s16, %s14
  $region1: #{a_call__.6} parent=0
    #allocation2 [shape = 'u8[512]{0}', space=smem, size = 0x200, scoped, tag = 'input window, operand 0, single buffered']
    #allocation3 [shape = 's32[2]{0}', space=sflag, size = 0x8, scoped, tag = 'scoped memory for a_call__.6']
    %18 = vsyncpa [#allocation3], 0
    loop: start=0, step=1, limit=8
    $region2: #{a_call__.6} parent=1 // loop_pre_header
      _
    $region3: #{a_call__.6} parent=1 // loop_header
      %s20 = sphi 0, %s24
      %p21 = scmp.ge.s32.totalorder %s20, 8
      %s28 = sphi 0, %s28
      %s30 = sphi 0, %s28
      %s31 = sphi 0, %s30
      %s45 = sphi 0, %s31
      %s51 = sphi 0, %s53
      %s54 = sphi 0, %s51
      %s55 = sphi 0, %s54
      %s71 = sphi 0, %s55
      %s77 = sphi 0, %s79
      %s80 = sphi 0, %s77
      %s81 = sphi 0, %s80
      %s97 = sphi 0, %s81
      %s101 = sphi 0, %s101
      %s103 = sphi 0, %s101
      %s104 = sphi 0, %s103
      %s118 = sphi 0, %s104
      %s122 = sphi 0, %s122
      %s124 = sphi 0, %s122
      %s125 = sphi 0, %s124
      %s139 = sphi 0, %s125
      %s143 = sphi 0, %s143
      %s145 = sphi 0, %s143
      %s146 = sphi 0, %s145
      %s160 = sphi 0, %s146
      %s164 = sphi 0, %s164
      %s166 = sphi 0, %s164
      %s167 = sphi 0, %s166
      %s181 = sphi 0, %s167
      %s187 = sphi 0, %s189
      %s190 = sphi 0, %s187
      %s191 = sphi 0, %s190
      %s207 = sphi 0, %s191
      %s213 = sphi 0, %s215
      %s216 = sphi 0, %s213
      %s217 = sphi 0, %s216
      %s233 = sphi 0, %s217
      %s239 = sphi 0, %s241
      %s242 = sphi 0, %s239
      %s243 = sphi 0, %s242
      %s259 = sphi 0, %s243
      %s265 = sphi 0, %s267
      %s268 = sphi 0, %s265
      %s269 = sphi 0, %s268
      %s285 = sphi 0, %s269
      %s291 = sphi 0, %s293
      %s294 = sphi 0, %s291
      %s295 = sphi 0, %s294
      %s311 = sphi 0, %s295
      %s317 = sphi 0, %s319
      %s320 = sphi 0, %s317
      %s321 = sphi 0, %s320
      %s337 = sphi 0, %s321
    $region4: #{a_call__.6} parent=1 // loop_header_branch
      %23 = sbr.rel (%p21) target = $region8
    $region5: #{a_call__.6} parent=1 // loop_body
      %s25 = ssub.s32 %s20, 1
      %s26 = ssub.s32 %s20, 2
      %s27 = sadd.s32 %s20, 1
      %s29 = sadd.s32 %s28, 1
      %p32 = scmp.eq.s32.totalorder %s20, 5
      %p33 = scmp.ne.s32.totalorder %s28, %s30
      %p34 = scmp.eq.s32.totalorder %s20, 0
      %p35 = por %p33, %p34
      %p36 = scmp.ne.s32.totalorder %s28, %s30
      %p37 = scmp.eq.s32.totalorder %s25, 5
      %p38 = por %p36, %p37
      %p39 = scmp.ne.s32.totalorder %s30, %s31
      %p40 = scmp.eq.s32.totalorder %s25, 0
      %p41 = por %p39, %p40
      %p42 = scmp.ne.s32.totalorder %s30, %s31
      %p43 = scmp.eq.s32.totalorder %s26, 5
      %p44 = por %p42, %p43
      %p46 = scmp.ne.s32.totalorder %s31, %s45
      %p47 = scmp.eq.s32.totalorder %s26, 0
      %p48 = por %p46, %p47
      %s49 = ssub.s32 %s20, %s27
      %p50 = scmp.eq.s32.totalorder %s49, 0
      %s52 = sadd.s32 %s51, 1
      %s53 = scalar_select %p50, %s51, %s52
      %p56 = pneg %p50
      %p57 = scmp.eq.s32.totalorder %s20, 5
      %p58 = por %p56, %p57
      %p59 = scmp.ne.s32.totalorder %s51, %s54
      %p60 = scmp.eq.s32.totalorder %s20, 0
      %p61 = por %p59, %p60
      %p62 = scmp.ne.s32.totalorder %s51, %s54
      %p63 = scmp.eq.s32.totalorder %s25, 5
      %p64 = por %p62, %p63
      %p65 = scmp.ne.s32.totalorder %s54, %s55
      %p66 = scmp.eq.s32.totalorder %s25, 0
      %p67 = por %p65, %p66
      %p68 = scmp.ne.s32.totalorder %s54, %s55
      %p69 = scmp.eq.s32.totalorder %s26, 5
      %p70 = por %p68, %p69
      %p72 = scmp.ne.s32.totalorder %s55, %s71
      %p73 = scmp.eq.s32.totalorder %s26, 0
      %p74 = por %p72, %p73
      %s75 = ssub.s32 %s20, %s27
      %p76 = scmp.eq.s32.totalorder %s75, 0
      %s78 = sadd.s32 %s77, 1
      %s79 = scalar_select %p76, %s77, %s78
      %p82 = pneg %p76
      %p83 = scmp.eq.s32.totalorder %s20, 5
      %p84 = por %p82, %p83
      %p85 = scmp.ne.s32.totalorder %s77, %s80
      %p86 = scmp.eq.s32.totalorder %s20, 0
      %p87 = por %p85, %p86
      %p88 = scmp.ne.s32.totalorder %s77, %s80
      %p89 = scmp.eq.s32.totalorder %s25, 5
      %p90 = por %p88, %p89
      %p91 = scmp.ne.s32.totalorder %s80, %s81
      %p92 = scmp.eq.s32.totalorder %s25, 0
      %p93 = por %p91, %p92
      %p94 = scmp.ne.s32.totalorder %s80, %s81
      %p95 = scmp.eq.s32.totalorder %s26, 5
      %p96 = por %p94, %p95
      %p98 = scmp.ne.s32.totalorder %s81, %s97
      %p99 = scmp.eq.s32.totalorder %s26, 0
      %p100 = por %p98, %p99
      %s102 = sadd.s32 %s101, 1
      %p105 = scmp.eq.s32.totalorder %s20, 5
      %p106 = scmp.ne.s32.totalorder %s101, %s103
      %p107 = scmp.eq.s32.totalorder %s20, 0
      %p108 = por %p106, %p107
      %p109 = scmp.ne.s32.totalorder %s101, %s103
      %p110 = scmp.eq.s32.totalorder %s25, 5
      %p111 = por %p109, %p110
      %p112 = scmp.ne.s32.totalorder %s103, %s104
      %p113 = scmp.eq.s32.totalorder %s25, 0
      %p114 = por %p112, %p113
      %p115 = scmp.ne.s32.totalorder %s103, %s104
      %p116 = scmp.eq.s32.totalorder %s26, 5
      %p117 = por %p115, %p116
      %p119 = scmp.ne.s32.totalorder %s104, %s118
      %p120 = scmp.eq.s32.totalorder %s26, 0
      %p121 = por %p119, %p120
      %s123 = sadd.s32 %s122, 1
      %p126 = scmp.eq.s32.totalorder %s20, 5
      %p127 = scmp.ne.s32.totalorder %s122, %s124
      %p128 = scmp.eq.s32.totalorder %s20, 0
      %p129 = por %p127, %p128
      %p130 = scmp.ne.s32.totalorder %s122, %s124
      %p131 = scmp.eq.s32.totalorder %s25, 5
      %p132 = por %p130, %p131
      %p133 = scmp.ne.s32.totalorder %s124, %s125
      %p134 = scmp.eq.s32.totalorder %s25, 0
      %p135 = por %p133, %p134
      %p136 = scmp.ne.s32.totalorder %s124, %s125
      %p137 = scmp.eq.s32.totalorder %s26, 5
      %p138 = por %p136, %p137
      %p140 = scmp.ne.s32.totalorder %s125, %s139
      %p141 = scmp.eq.s32.totalorder %s26, 0
      %p142 = por %p140, %p141
      %s144 = sadd.s32 %s143, 1
      %p147 = scmp.eq.s32.totalorder %s20, 5
      %p148 = scmp.ne.s32.totalorder %s143, %s145
      %p149 = scmp.eq.s32.totalorder %s20, 0
      %p150 = por %p148, %p149
      %p151 = scmp.ne.s32.totalorder %s143, %s145
      %p152 = scmp.eq.s32.totalorder %s25, 5
      %p153 = por %p151, %p152
      %p154 = scmp.ne.s32.totalorder %s145, %s146
      %p155 = scmp.eq.s32.totalorder %s25, 0
      %p156 = por %p154, %p155
      %p157 = scmp.ne.s32.totalorder %s145, %s146
      %p158 = scmp.eq.s32.totalorder %s26, 5
      %p159 = por %p157, %p158
      %p161 = scmp.ne.s32.totalorder %s146, %s160
      %p162 = scmp.eq.s32.totalorder %s26, 0
      %p163 = por %p161, %p162
      %s165 = sadd.s32 %s164, 1
      %p168 = scmp.eq.s32.totalorder %s20, 5
      %p169 = scmp.ne.s32.totalorder %s164, %s166
      %p170 = scmp.eq.s32.totalorder %s20, 0
      %p171 = por %p169, %p170
      %p172 = scmp.ne.s32.totalorder %s164, %s166
      %p173 = scmp.eq.s32.totalorder %s25, 5
      %p174 = por %p172, %p173
      %p175 = scmp.ne.s32.totalorder %s166, %s167
      %p176 = scmp.eq.s32.totalorder %s25, 0
      %p177 = por %p175, %p176
      %p178 = scmp.ne.s32.totalorder %s166, %s167
      %p179 = scmp.eq.s32.totalorder %s26, 5
      %p180 = por %p178, %p179
      %p182 = scmp.ne.s32.totalorder %s167, %s181
      %p183 = scmp.eq.s32.totalorder %s26, 0
      %p184 = por %p182, %p183
      %s185 = ssub.s32 %s20, %s27
      %p186 = scmp.eq.s32.totalorder %s185, 0
      %s188 = sadd.s32 %s187, 1
      %s189 = scalar_select %p186, %s187, %s188
      %p192 = pneg %p186
      %p193 = scmp.eq.s32.totalorder %s20, 5
      %p194 = por %p192, %p193
      %p195 = scmp.ne.s32.totalorder %s187, %s190
      %p196 = scmp.eq.s32.totalorder %s20, 0
      %p197 = por %p195, %p196
      %p198 = scmp.ne.s32.totalorder %s187, %s190
      %p199 = scmp.eq.s32.totalorder %s25, 5
      %p200 = por %p198, %p199
      %p201 = scmp.ne.s32.totalorder %s190, %s191
      %p202 = scmp.eq.s32.totalorder %s25, 0
      %p203 = por %p201, %p202
      %p204 = scmp.ne.s32.totalorder %s190, %s191
      %p205 = scmp.eq.s32.totalorder %s26, 5
      %p206 = por %p204, %p205
      %p208 = scmp.ne.s32.totalorder %s191, %s207
      %p209 = scmp.eq.s32.totalorder %s26, 0
      %p210 = por %p208, %p209
      %s211 = ssub.s32 %s20, %s27
      %p212 = scmp.eq.s32.totalorder %s211, 0
      %s214 = sadd.s32 %s213, 1
      %s215 = scalar_select %p212, %s213, %s214
      %p218 = pneg %p212
      %p219 = scmp.eq.s32.totalorder %s20, 5
      %p220 = por %p218, %p219
      %p221 = scmp.ne.s32.totalorder %s213, %s216
      %p222 = scmp.eq.s32.totalorder %s20, 0
      %p223 = por %p221, %p222
      %p224 = scmp.ne.s32.totalorder %s213, %s216
      %p225 = scmp.eq.s32.totalorder %s25, 5
      %p226 = por %p224, %p225
      %p227 = scmp.ne.s32.totalorder %s216, %s217
      %p228 = scmp.eq.s32.totalorder %s25, 0
      %p229 = por %p227, %p228
      %p230 = scmp.ne.s32.totalorder %s216, %s217
      %p231 = scmp.eq.s32.totalorder %s26, 5
      %p232 = por %p230, %p231
      %p234 = scmp.ne.s32.totalorder %s217, %s233
      %p235 = scmp.eq.s32.totalorder %s26, 0
      %p236 = por %p234, %p235
      %s237 = ssub.s32 %s20, %s27
      %p238 = scmp.eq.s32.totalorder %s237, 0
      %s240 = sadd.s32 %s239, 1
      %s241 = scalar_select %p238, %s239, %s240
      %p244 = pneg %p238
      %p245 = scmp.eq.s32.totalorder %s20, 5
      %p246 = por %p244, %p245
      %p247 = scmp.ne.s32.totalorder %s239, %s242
      %p248 = scmp.eq.s32.totalorder %s20, 0
      %p249 = por %p247, %p248
      %p250 = scmp.ne.s32.totalorder %s239, %s242
      %p251 = scmp.eq.s32.totalorder %s25, 5
      %p252 = por %p250, %p251
      %p253 = scmp.ne.s32.totalorder %s242, %s243
      %p254 = scmp.eq.s32.totalorder %s25, 0
      %p255 = por %p253, %p254
      %p256 = scmp.ne.s32.totalorder %s242, %s243
      %p257 = scmp.eq.s32.totalorder %s26, 5
      %p258 = por %p256, %p257
      %p260 = scmp.ne.s32.totalorder %s243, %s259
      %p261 = scmp.eq.s32.totalorder %s26, 0
      %p262 = por %p260, %p261
      %s263 = ssub.s32 %s20, %s27
      %p264 = scmp.eq.s32.totalorder %s263, 0
      %s266 = sadd.s32 %s265, 1
      %s267 = scalar_select %p264, %s265, %s266
      %p270 = pneg %p264
      %p271 = scmp.eq.s32.totalorder %s20, 5
      %p272 = por %p270, %p271
      %p273 = scmp.ne.s32.totalorder %s265, %s268
      %p274 = scmp.eq.s32.totalorder %s20, 0
      %p275 = por %p273, %p274
      %p276 = scmp.ne.s32.totalorder %s265, %s268
      %p277 = scmp.eq.s32.totalorder %s25, 5
      %p278 = por %p276, %p277
      %p279 = scmp.ne.s32.totalorder %s268, %s269
      %p280 = scmp.eq.s32.totalorder %s25, 0
      %p281 = por %p279, %p280
      %p282 = scmp.ne.s32.totalorder %s268, %s269
      %p283 = scmp.eq.s32.totalorder %s26, 5
      %p284 = por %p282, %p283
      %p286 = scmp.ne.s32.totalorder %s269, %s285
      %p287 = scmp.eq.s32.totalorder %s26, 0
      %p288 = por %p286, %p287
      %s289 = ssub.s32 %s20, %s27
      %p290 = scmp.eq.s32.totalorder %s289, 0
      %s292 = sadd.s32 %s291, 1
      %s293 = scalar_select %p290, %s291, %s292
      %p296 = pneg %p290
      %p297 = scmp.eq.s32.totalorder %s20, 5
      %p298 = por %p296, %p297
      %p299 = scmp.ne.s32.totalorder %s291, %s294
      %p300 = scmp.eq.s32.totalorder %s20, 0
      %p301 = por %p299, %p300
      %p302 = scmp.ne.s32.totalorder %s291, %s294
      %p303 = scmp.eq.s32.totalorder %s25, 5
      %p304 = por %p302, %p303
      %p305 = scmp.ne.s32.totalorder %s294, %s295
      %p306 = scmp.eq.s32.totalorder %s25, 0
      %p307 = por %p305, %p306
      %p308 = scmp.ne.s32.totalorder %s294, %s295
      %p309 = scmp.eq.s32.totalorder %s26, 5
      %p310 = por %p308, %p309
      %p312 = scmp.ne.s32.totalorder %s295, %s311
      %p313 = scmp.eq.s32.totalorder %s26, 0
      %p314 = por %p312, %p313
      %s315 = ssub.s32 %s20, %s27
      %p316 = scmp.eq.s32.totalorder %s315, 0
      %s318 = sadd.s32 %s317, 1
      %s319 = scalar_select %p316, %s317, %s318
      %p322 = pneg %p316
      %p323 = scmp.eq.s32.totalorder %s20, 5
      %p324 = por %p322, %p323
      %p325 = scmp.ne.s32.totalorder %s317, %s320
      %p326 = scmp.eq.s32.totalorder %s20, 0
      %p327 = por %p325, %p326
      %p328 = scmp.ne.s32.totalorder %s317, %s320
      %p329 = scmp.eq.s32.totalorder %s25, 5
      %p330 = por %p328, %p329
      %p331 = scmp.ne.s32.totalorder %s320, %s321
      %p332 = scmp.eq.s32.totalorder %s25, 0
      %p333 = por %p331, %p332
      %p334 = scmp.ne.s32.totalorder %s320, %s321
      %p335 = scmp.eq.s32.totalorder %s26, 5
      %p336 = por %p334, %p335
      %p338 = scmp.ne.s32.totalorder %s321, %s337
      %p339 = scmp.eq.s32.totalorder %s26, 0
      %p340 = por %p338, %p339
      %p341 = scmp.le.s32.totalorder 1, %s20
      %p342 = scmp.lt.s32.totalorder %s20, 7
      %p343 = pnand %p341, %p342
      %p344 = pneg %p343
      // Predicated region
      $region9: #{a_call__.6} parent=5 // pred_check
        _
      $region10: #{a_call__.6} parent=5 // pred_check_branch
        %346 = sbr.rel (%p343) target = $region12
      $region11: #{a_call__.6} parent=5 // pred_region
        %s347 = ssub.s32 %s20, 1
        // Predicated region
        $region13: #{a_call__.6} parent=11 // pred_check
          %p348 = pneg %p41
        $region14: #{a_call__.6} parent=11 // pred_check_branch
          %350 = sbr.rel (%p348) target = $region16
        $region15: #{a_call__.6} parent=11 // pred_region
          %s352 = ssub.s32 16, 16
          %353 = vsyncadd [#allocation3], %s352
          %s355 = sshll.u32 %s0, 4
          %s356 = int_to_ptr.vmem [resolvable:$true] %s355
          %358 = dma.vmem_to_smem %s356, 16, [#allocation2], [#allocation3]
        $region16: #{a_call__.6} parent=11 // pred_fallthru
          _
        // Predicated region
        $region17: #{a_call__.6} parent=11 // pred_check
          %p359 = pneg %p114
        $region18: #{a_call__.6} parent=11 // pred_check_branch
          %361 = sbr.rel (%p359) target = $region20
        $region19: #{a_call__.6} parent=11 // pred_region
          _
        $region20: #{a_call__.6} parent=11 // pred_fallthru
          _
        // Predicated region
        $region21: #{a_call__.6} parent=11 // pred_check
          %p362 = pneg %p135
        $region22: #{a_call__.6} parent=11 // pred_check_branch
          %364 = sbr.rel (%p362) target = $region24
        $region23: #{a_call__.6} parent=11 // pred_region
          _
        $region24: #{a_call__.6} parent=11 // pred_fallthru
          _
        // Predicated region
        $region25: #{a_call__.6} parent=11 // pred_check
          %p365 = pneg %p156
        $region26: #{a_call__.6} parent=11 // pred_check_branch
          %367 = sbr.rel (%p365) target = $region28
        $region27: #{a_call__.6} parent=11 // pred_region
          _
        $region28: #{a_call__.6} parent=11 // pred_fallthru
          _
        // Predicated region
        $region29: #{a_call__.6} parent=11 // pred_check
          %p368 = pneg %p177
        $region30: #{a_call__.6} parent=11 // pred_check_branch
          %370 = sbr.rel (%p368) target = $region32
        $region31: #{a_call__.6} parent=11 // pred_region
          _
        $region32: #{a_call__.6} parent=11 // pred_fallthru
          _
      $region12: #{a_call__.6} parent=5 // pred_fallthru
        _
      %p371 = scmp.lt.s32.totalorder %s20, 6
      // Predicated region
      $region33: #{a_call__.6} parent=5 // pred_check
        %p372 = pneg %p371
      $region34: #{a_call__.6} parent=5 // pred_check_branch
        %374 = sbr.rel (%p372) target = $region36
      $region35: #{a_call__.6} parent=5 // pred_region
        // Predicated region
        $region37: #{a_call__.6} parent=35 // pred_check
          %p375 = pneg %p61
        $region38: #{a_call__.6} parent=35 // pred_check_branch
          %377 = sbr.rel (%p375) target = $region40
        $region39: #{a_call__.6} parent=35 // pred_region
          %p378 = scmp.lt.s32.totalorder %s20, 5
          %s379 = scalar_select %p378, %s20, 5
          %s380 = smul.addr %s379, 2
          %s381 = smul.addr %s380, 8
          %s382 = scalar_lea.vmem %s1, %s381
        $region40: #{a_call__.6} parent=35 // pred_fallthru
          _
        // Predicated region
        $region41: #{a_call__.6} parent=35 // pred_check
          %p383 = pneg %p87
        $region42: #{a_call__.6} parent=35 // pred_check_branch
          %385 = sbr.rel (%p383) target = $region44
        $region43: #{a_call__.6} parent=35 // pred_region
          %p386 = scmp.lt.s32.totalorder %s20, 5
          %s387 = scalar_select %p386, %s20, 5
          %s388 = smul.addr %s387, 2
          %s389 = smul.addr %s388, 8
          %s390 = scalar_lea.vmem %s2, %s389
        $region44: #{a_call__.6} parent=35 // pred_fallthru
          _
      $region36: #{a_call__.6} parent=5 // pred_fallthru
        _
      %p391 = scmp.le.s32.totalorder 1, %s20
      %p392 = scmp.lt.s32.totalorder %s20, 7
      %p393 = pnand %p391, %p392
      %p394 = pneg %p393
      // Predicated region
      $region45: #{a_call__.6} parent=5 // pred_check
        _
      $region46: #{a_call__.6} parent=5 // pred_check_branch
        %396 = sbr.rel (%p393) target = $region48
      $region47: #{a_call__.6} parent=5 // pred_region
        %s397 = ssub.s32 %s20, 1
        // Predicated region
        $region49: #{a_call__.6} parent=47 // pred_check
          %p398 = pneg %p41
        $region50: #{a_call__.6} parent=47 // pred_check_branch
          %400 = sbr.rel (%p398) target = $region52
        $region51: #{a_call__.6} parent=47 // pred_region
          %401 = dma.done [#allocation3], 16
        $region52: #{a_call__.6} parent=47 // pred_fallthru
          _
        %402 = sfence
        %p403 = pneg %p41
        %p404 = pneg %p38
        %p405 = scmp.lt.s32.totalorder %s25, 5
        %s406 = scalar_select %p405, %s25, 5
        %s407 = smul.addr %s406, 2
        %s408 = smul.addr %s407, 8
        %s409 = scalar_lea.vmem %s1, %s408
        %p410 = pneg %p67
        %p411 = pneg %p64
        %p412 = scmp.lt.s32.totalorder %s25, 5
        %s413 = scalar_select %p412, %s25, 5
        %s414 = smul.addr %s413, 2
        %s415 = smul.addr %s414, 8
        %s416 = scalar_lea.vmem %s2, %s415
        %p417 = pneg %p93
        %p418 = pneg %p90
        %p419 = pneg %p114
        %p420 = pneg %p111
        %p421 = pneg %p135
        %p422 = pneg %p132
        %p423 = pneg %p156
        %p424 = pneg %p153
        %p425 = pneg %p177
        %p426 = pneg %p174
        %p427 = pneg %p203
        %p428 = pneg %p200
        %p429 = scmp.lt.s32.totalorder %s25, 5
        %s430 = scalar_select %p429, %s25, 5
        %s431 = scalar_lea.vmem %s7, %s430
        %p432 = pneg %p229
        %p433 = pneg %p226
        %p434 = scmp.lt.s32.totalorder %s25, 5
        %s435 = scalar_select %p434, %s25, 5
        %s436 = scalar_lea.vmem %s8, %s435
        %p437 = pneg %p255
        %p438 = pneg %p252
        %p439 = scmp.lt.s32.totalorder %s25, 5
        %s440 = scalar_select %p439, %s25, 5
        %s441 = smul.addr %s440, 8
        %s442 = scalar_lea.vmem %s9, %s441
        %p443 = pneg %p281
        %p444 = pneg %p278
        %p445 = scmp.lt.s32.totalorder %s25, 5
        %s446 = scalar_select %p445, %s25, 5
        %s447 = smul.addr %s446, 8
        %s448 = scalar_lea.vmem %s10, %s447
        %p449 = pneg %p307
        %p450 = pneg %p304
        %p451 = scmp.lt.s32.totalorder %s25, 5
        %s452 = scalar_select %p451, %s25, 5
        %s453 = scalar_lea.vmem %s11, %s452
        %p454 = pneg %p333
        %p455 = pneg %p330
        %p456 = scmp.lt.s32.totalorder %s25, 5
        %s457 = scalar_select %p456, %s25, 5
        %s458 = scalar_lea.vmem %s12, %s457
        %p459 = scmp.lt.s32.totalorder %s25, 5
        %s460 = scalar_select %p459, %s25, 5
        %s461 = smul.addr %s460, 2
        %s462 = smul.addr %s461, 8
        %s463 = scalar_lea.vmem %s1, %s462
        %p464 = scmp.lt.s32.totalorder %s25, 5
        %s465 = scalar_select %p464, %s25, 5
        %s466 = smul.addr %s465, 2
        %s467 = smul.addr %s466, 8
        %s468 = scalar_lea.vmem %s2, %s467
        %p469 = scmp.lt.s32.totalorder %s25, 5
        %s470 = scalar_select %p469, %s25, 5
        %s471 = scalar_lea.vmem %s7, %s470
        %p472 = scmp.lt.s32.totalorder %s25, 5
        %s473 = scalar_select %p472, %s25, 5
        %s474 = scalar_lea.vmem %s8, %s473
        %p475 = scmp.lt.s32.totalorder %s25, 5
        %s476 = scalar_select %p475, %s25, 5
        %s477 = smul.addr %s476, 8
        %s478 = scalar_lea.vmem %s9, %s477
        %p479 = scmp.lt.s32.totalorder %s25, 5
        %s480 = scalar_select %p479, %s25, 5
        %s481 = smul.addr %s480, 8
        %s482 = scalar_lea.vmem %s10, %s481
        %p483 = scmp.lt.s32.totalorder %s25, 5
        %s484 = scalar_select %p483, %s25, 5
        %s485 = scalar_lea.vmem %s11, %s484
        %p486 = scmp.lt.s32.totalorder %s25, 5
        %s487 = scalar_select %p486, %s25, 5
        %s488 = scalar_lea.vmem %s12, %s487
        %s489 = sld [smem:[#allocation2]]
        %s490 = sld [smem:[#allocation2 + $0x1]]
        %v491 = vld [vmem:[%s463] sm:$0xff]
        %v492 = vld [vmem:[%s463 + $0x8] sm:$0xff]
        %v493 = vld [vmem:[%s468] sm:$0xff]
        %v494 = vld [vmem:[%s468 + $0x8] sm:$0xff]
        %v495 = vld [vmem:[%s3] sm:$0x3f]
        %v496 = vld [vmem:[%s4] sm:$0xff]
        %v497 = vld [vmem:[%s4 + $0x8] sm:$0xff]
        %vm498 = vcmask 130048
        %v500 = vsel %vm498, %v491, 0
        %v503 = vsel %vm498, %v492, 0
        %505 = vmatprep.subr.mxu0 0.0
        %506 = vmatpush1.msra.mxu0 %v496
        %507 = vmatprep.subr.mxu0 0.0
        %508 = vmatpush1.msra.mxu0 %v497
        %509 = vmatprep.subr.mxu0 0.0
        %510 = vmatpush1.msra.mxu0 0.0
        %511 = vmatprep.subr.mxu0 0.0
        %512 = vmatpush1.msra.mxu0 0.0
        %513 = vmatprep.subr.mxu0 0.0
        %514 = vmatpush1.msra.mxu0 0.0
        %515 = vmatprep.subr.mxu0 0.0
        %516 = vmatpush1.msra.mxu0 0.0
        %517 = vmatprep.subr.mxu0 0.0
        %518 = vmatpush1.msra.mxu0 0.0
        %519 = vmatprep.subr.mxu0 0.0
        %520 = vmatpush1.msra.mxu0 0.0
        %521 = vmatprep.subr.mxu0 0.0
        %522 = vmatpush1.msra.mxu0 0.0
        %523 = vmatprep.subr.mxu0 0.0
        %524 = vmatpush1.msra.mxu0 0.0
        %525 = vmatprep.subr.mxu0 0.0
        %526 = vmatpush1.msra.mxu0 0.0
        %527 = vmatprep.subr.mxu0 0.0
        %528 = vmatpush1.msra.mxu0 0.0
        %529 = vmatprep.subr.mxu0 0.0
        %530 = vmatpush1.msra.mxu0 0.0
        %531 = vmatprep.subr.mxu0 0.0
        %532 = vmatpush1.msra.mxu0 0.0
        %533 = vmatprep.subr.mxu0 0.0
        %534 = vmatpush1.msra.mxu0 0.0
        %535 = vmatprep.subr.mxu0 0.0
        %536 = vmatpush1.msra.mxu0 0.0
        %537 = vmatprep.subr.mxu0 0.0
        %538 = vmatpush1.msra.mxu0 0.0
        %539 = vmatprep.subr.mxu0 0.0
        %540 = vmatpush1.msra.mxu0 0.0
        %541 = vmatprep.subr.mxu0 0.0
        %542 = vmatpush1.msra.mxu0 0.0
        %543 = vmatprep.subr.mxu0 0.0
        %544 = vmatpush1.msra.mxu0 0.0
        %545 = vmatprep.subr.mxu0 0.0
        %546 = vmatpush1.msra.mxu0 0.0
        %547 = vmatprep.subr.mxu0 0.0
        %548 = vmatpush1.msra.mxu0 0.0
        %549 = vmatprep.subr.mxu0 0.0
        %550 = vmatpush1.msra.mxu0 0.0
        %551 = vmatprep.subr.mxu0 0.0
        %552 = vmatpush1.msra.mxu0 0.0
        %553 = vmatprep.subr.mxu0 0.0
        %554 = vmatpush1.msra.mxu0 0.0
        %555 = vmatprep.subr.mxu0 0.0
        %556 = vmatpush1.msra.mxu0 0.0
        %557 = vmatprep.subr.mxu0 0.0
        %558 = vmatpush1.msra.mxu0 0.0
        %559 = vmatprep.subr.mxu0 0.0
        %560 = vmatpush1.msra.mxu0 0.0
        %561 = vmatprep.subr.mxu0 0.0
        %562 = vmatpush1.msra.mxu0 0.0
        %563 = vmatprep.subr.mxu0 0.0
        %564 = vmatpush1.msra.mxu0 0.0
        %565 = vmatprep.subr.mxu0 0.0
        %566 = vmatpush1.msra.mxu0 0.0
        %567 = vmatprep.subr.mxu0 0.0
        %568 = vmatpush1.msra.mxu0 0.0
        %569 = vmatprep.mubr.f32.mxu0 0.0
        %570 = vmatmul.mubr.f32.gmra.mrb[0].mxu0 %v500
        %v571 = vpop.f32.mrb[0].mxu0
        %v572 = vadd.f32 0.0, %v571
        %v573 = vpop.f32.mrb[0].mxu0
        %574 = vmatprep.mubr.f32.mxu0 0.0
        %575 = vmatmul.mubr.f32.gmra.mrb[0].mxu0 %v503
        %v576 = vpop.f32.mrb[0].mxu0
        %v577 = vadd.f32 0.0, %v576
        %v578 = vpop.f32.mrb[0].mxu0
        %579 = vdwg.mxu0
        %v581 = vsel %vm498, %v495, 0
        %583 = vmatprep.subr.mxu0 0.0
        %584 = vmatpush1.msra.mxu0 %v572
        %585 = vmatprep.subr.mxu0 0.0
        %586 = vmatpush1.msra.mxu0 %v577
        %587 = vmatprep.subr.mxu0 0.0
        %588 = vmatpush1.msra.mxu0 0.0
        %589 = vmatprep.subr.mxu0 0.0
        %590 = vmatpush1.msra.mxu0 0.0
        %591 = vmatprep.subr.mxu0 0.0
        %592 = vmatpush1.msra.mxu0 0.0
        %593 = vmatprep.subr.mxu0 0.0
        %594 = vmatpush1.msra.mxu0 0.0
        %595 = vmatprep.subr.mxu0 0.0
        %596 = vmatpush1.msra.mxu0 0.0
        %597 = vmatprep.subr.mxu0 0.0
        %598 = vmatpush1.msra.mxu0 0.0
        %599 = vmatprep.subr.mxu0 0.0
        %600 = vmatpush1.msra.mxu0 0.0
        %601 = vmatprep.subr.mxu0 0.0
        %602 = vmatpush1.msra.mxu0 0.0
        %603 = vmatprep.subr.mxu0 0.0
        %604 = vmatpush1.msra.mxu0 0.0
        %605 = vmatprep.subr.mxu0 0.0
        %606 = vmatpush1.msra.mxu0 0.0
        %607 = vmatprep.subr.mxu0 0.0
        %608 = vmatpush1.msra.mxu0 0.0
        %609 = vmatprep.subr.mxu0 0.0
        %610 = vmatpush1.msra.mxu0 0.0
        %611 = vmatprep.subr.mxu0 0.0
        %612 = vmatpush1.msra.mxu0 0.0
        %613 = vmatprep.subr.mxu0 0.0
        %614 = vmatpush1.msra.mxu0 0.0
        %615 = vmatprep.subr.mxu0 0.0
        %616 = vmatpush1.msra.mxu0 0.0
        %617 = vmatprep.subr.mxu0 0.0
        %618 = vmatpush1.msra.mxu0 0.0
        %619 = vmatprep.subr.mxu0 0.0
        %620 = vmatpush1.msra.mxu0 0.0
        %621 = vmatprep.subr.mxu0 0.0
        %622 = vmatpush1.msra.mxu0 0.0
        %623 = vmatprep.subr.mxu0 0.0
        %624 = vmatpush1.msra.mxu0 0.0
        %625 = vmatprep.subr.mxu0 0.0
        %626 = vmatpush1.msra.mxu0 0.0
        %627 = vmatprep.subr.mxu0 0.0
        %628 = vmatpush1.msra.mxu0 0.0
        %629 = vmatprep.subr.mxu0 0.0
        %630 = vmatpush1.msra.mxu0 0.0
        %631 = vmatprep.subr.mxu0 0.0
        %632 = vmatpush1.msra.mxu0 0.0
        %633 = vmatprep.subr.mxu0 0.0
        %634 = vmatpush1.msra.mxu0 0.0
        %635 = vmatprep.subr.mxu0 0.0
        %636 = vmatpush1.msra.mxu0 0.0
        %637 = vmatprep.subr.mxu0 0.0
        %638 = vmatpush1.msra.mxu0 0.0
        %639 = vmatprep.subr.mxu0 0.0
        %640 = vmatpush1.msra.mxu0 0.0
        %641 = vmatprep.subr.mxu0 0.0
        %642 = vmatpush1.msra.mxu0 0.0
        %643 = vmatprep.subr.mxu0 0.0
        %644 = vmatpush1.msra.mxu0 0.0
        %645 = vmatprep.subr.mxu0 0.0
        %646 = vmatpush1.msra.mxu0 0.0
        %647 = vmatprep.mubr.f32.mxu0 0.0
        %648 = vmatmul.mubr.f32.gmra.mrb[0].mxu0 %v581
        %v649 = vpop.f32.mrb[0].mxu0
        %v650 = vadd.f32 0.0, %v649
        %v651 = vpop.f32.mrb[0].mxu0
        %652 = vdwg.mxu0
        %v654 = vsel %vm498, %v493, 0
        %v657 = vsel %vm498, %v494, 0
        %659 = vmatprep.subr.mxu0 0.0
        %660 = vmatpush1.msra.mxu0 %v496
        %661 = vmatprep.subr.mxu0 0.0
        %662 = vmatpush1.msra.mxu0 %v497
        %663 = vmatprep.subr.mxu0 0.0
        %664 = vmatpush1.msra.mxu0 0.0
        %665 = vmatprep.subr.mxu0 0.0
        %666 = vmatpush1.msra.mxu0 0.0
        %667 = vmatprep.subr.mxu0 0.0
        %668 = vmatpush1.msra.mxu0 0.0
        %669 = vmatprep.subr.mxu0 0.0
        %670 = vmatpush1.msra.mxu0 0.0
        %671 = vmatprep.subr.mxu0 0.0
        %672 = vmatpush1.msra.mxu0 0.0
        %673 = vmatprep.subr.mxu0 0.0
        %674 = vmatpush1.msra.mxu0 0.0
        %675 = vmatprep.subr.mxu0 0.0
        %676 = vmatpush1.msra.mxu0 0.0
        %677 = vmatprep.subr.mxu0 0.0
        %678 = vmatpush1.msra.mxu0 0.0
        %679 = vmatprep.subr.mxu0 0.0
        %680 = vmatpush1.msra.mxu0 0.0
        %681 = vmatprep.subr.mxu0 0.0
        %682 = vmatpush1.msra.mxu0 0.0
        %683 = vmatprep.subr.mxu0 0.0
        %684 = vmatpush1.msra.mxu0 0.0
        %685 = vmatprep.subr.mxu0 0.0
        %686 = vmatpush1.msra.mxu0 0.0
        %687 = vmatprep.subr.mxu0 0.0
        %688 = vmatpush1.msra.mxu0 0.0
        %689 = vmatprep.subr.mxu0 0.0
        %690 = vmatpush1.msra.mxu0 0.0
        %691 = vmatprep.subr.mxu0 0.0
        %692 = vmatpush1.msra.mxu0 0.0
        %693 = vmatprep.subr.mxu0 0.0
        %694 = vmatpush1.msra.mxu0 0.0
        %695 = vmatprep.subr.mxu0 0.0
        %696 = vmatpush1.msra.mxu0 0.0
        %697 = vmatprep.subr.mxu0 0.0
        %698 = vmatpush1.msra.mxu0 0.0
        %699 = vmatprep.subr.mxu0 0.0
        %700 = vmatpush1.msra.mxu0 0.0
        %701 = vmatprep.subr.mxu0 0.0
        %702 = vmatpush1.msra.mxu0 0.0
        %703 = vmatprep.subr.mxu0 0.0
        %704 = vmatpush1.msra.mxu0 0.0
        %705 = vmatprep.subr.mxu0 0.0
        %706 = vmatpush1.msra.mxu0 0.0
        %707 = vmatprep.subr.mxu0 0.0
        %708 = vmatpush1.msra.mxu0 0.0
        %709 = vmatprep.subr.mxu0 0.0
        %710 = vmatpush1.msra.mxu0 0.0
        %711 = vmatprep.subr.mxu0 0.0
        %712 = vmatpush1.msra.mxu0 0.0
        %713 = vmatprep.subr.mxu0 0.0
        %714 = vmatpush1.msra.mxu0 0.0
        %715 = vmatprep.subr.mxu0 0.0
        %716 = vmatpush1.msra.mxu0 0.0
        %717 = vmatprep.subr.mxu0 0.0
        %718 = vmatpush1.msra.mxu0 0.0
        %719 = vmatprep.subr.mxu0 0.0
        %720 = vmatpush1.msra.mxu0 0.0
        %721 = vmatprep.subr.mxu0 0.0
        %722 = vmatpush1.msra.mxu0 0.0
        %723 = vmatprep.mubr.f32.mxu0 0.0
        %724 = vmatmul.mubr.f32.gmra.mrb[0].mxu0 %v654
        %v725 = vpop.f32.mrb[0].mxu0
        %v726 = vadd.f32 0.0, %v725
        %v727 = vpop.f32.mrb[0].mxu0
        %728 = vmatprep.mubr.f32.mxu0 0.0
        %729 = vmatmul.mubr.f32.gmra.mrb[0].mxu0 %v657
        %v730 = vpop.f32.mrb[0].mxu0
        %v731 = vadd.f32 0.0, %v730
        %v732 = vpop.f32.mrb[0].mxu0
        %733 = vdwg.mxu0
        %734 = vmatprep.subr.mxu0 0.0
        %735 = vmatpush1.msra.mxu0 %v726
        %736 = vmatprep.subr.mxu0 0.0
        %737 = vmatpush1.msra.mxu0 %v731
        %738 = vmatprep.subr.mxu0 0.0
        %739 = vmatpush1.msra.mxu0 0.0
        %740 = vmatprep.subr.mxu0 0.0
        %741 = vmatpush1.msra.mxu0 0.0
        %742 = vmatprep.subr.mxu0 0.0
        %743 = vmatpush1.msra.mxu0 0.0
        %744 = vmatprep.subr.mxu0 0.0
        %745 = vmatpush1.msra.mxu0 0.0
        %746 = vmatprep.subr.mxu0 0.0
        %747 = vmatpush1.msra.mxu0 0.0
        %748 = vmatprep.subr.mxu0 0.0
        %749 = vmatpush1.msra.mxu0 0.0
        %750 = vmatprep.subr.mxu0 0.0
        %751 = vmatpush1.msra.mxu0 0.0
        %752 = vmatprep.subr.mxu0 0.0
        %753 = vmatpush1.msra.mxu0 0.0
        %754 = vmatprep.subr.mxu0 0.0
        %755 = vmatpush1.msra.mxu0 0.0
        %756 = vmatprep.subr.mxu0 0.0
        %757 = vmatpush1.msra.mxu0 0.0
        %758 = vmatprep.subr.mxu0 0.0
        %759 = vmatpush1.msra.mxu0 0.0
        %760 = vmatprep.subr.mxu0 0.0
        %761 = vmatpush1.msra.mxu0 0.0
        %762 = vmatprep.subr.mxu0 0.0
        %763 = vmatpush1.msra.mxu0 0.0
        %764 = vmatprep.subr.mxu0 0.0
        %765 = vmatpush1.msra.mxu0 0.0
        %766 = vmatprep.subr.mxu0 0.0
        %767 = vmatpush1.msra.mxu0 0.0
        %768 = vmatprep.subr.mxu0 0.0
        %769 = vmatpush1.msra.mxu0 0.0
        %770 = vmatprep.subr.mxu0 0.0
        %771 = vmatpush1.msra.mxu0 0.0
        %772 = vmatprep.subr.mxu0 0.0
        %773 = vmatpush1.msra.mxu0 0.0
        %774 = vmatprep.subr.mxu0 0.0
        %775 = vmatpush1.msra.mxu0 0.0
        %776 = vmatprep.subr.mxu0 0.0
        %777 = vmatpush1.msra.mxu0 0.0
        %778 = vmatprep.subr.mxu0 0.0
        %779 = vmatpush1.msra.mxu0 0.0
        %780 = vmatprep.subr.mxu0 0.0
        %781 = vmatpush1.msra.mxu0 0.0
        %782 = vmatprep.subr.mxu0 0.0
        %783 = vmatpush1.msra.mxu0 0.0
        %784 = vmatprep.subr.mxu0 0.0
        %785 = vmatpush1.msra.mxu0 0.0
        %786 = vmatprep.subr.mxu0 0.0
        %787 = vmatpush1.msra.mxu0 0.0
        %788 = vmatprep.subr.mxu0 0.0
        %789 = vmatpush1.msra.mxu0 0.0
        %790 = vmatprep.subr.mxu0 0.0
        %791 = vmatpush1.msra.mxu0 0.0
        %792 = vmatprep.subr.mxu0 0.0
        %793 = vmatpush1.msra.mxu0 0.0
        %794 = vmatprep.subr.mxu0 0.0
        %795 = vmatpush1.msra.mxu0 0.0
        %796 = vmatprep.subr.mxu0 0.0
        %797 = vmatpush1.msra.mxu0 0.0
        %798 = vmatprep.mubr.f32.mxu0 0.0
        %799 = vmatmul.mubr.f32.gmra.mrb[0].mxu0 %v581
        %v800 = vpop.f32.mrb[0].mxu0
        %v801 = vadd.f32 0.0, %v800
        %v802 = vpop.f32.mrb[0].mxu0
        %803 = vdwg.mxu0
        %v804 = vmul.f32 %v491, %v491
        %v805 = vmul.f32 %v492, %v492
        %v807 = vsel %vm498, %v804, 0
        %v810 = vsel %vm498, %v805, 0
        %812 = vmatprep.subr.mxu0 0.0
        %813 = vmatpush1.msra.mxu0 %v496
        %814 = vmatprep.subr.mxu0 0.0
        %815 = vmatpush1.msra.mxu0 %v497
        %816 = vmatprep.subr.mxu0 0.0
        %817 = vmatpush1.msra.mxu0 0.0
        %818 = vmatprep.subr.mxu0 0.0
        %819 = vmatpush1.msra.mxu0 0.0
        %820 = vmatprep.subr.mxu0 0.0
        %821 = vmatpush1.msra.mxu0 0.0
        %822 = vmatprep.subr.mxu0 0.0
        %823 = vmatpush1.msra.mxu0 0.0
        %824 = vmatprep.subr.mxu0 0.0
        %825 = vmatpush1.msra.mxu0 0.0
        %826 = vmatprep.subr.mxu0 0.0
        %827 = vmatpush1.msra.mxu0 0.0
        %828 = vmatprep.subr.mxu0 0.0
        %829 = vmatpush1.msra.mxu0 0.0
        %830 = vmatprep.subr.mxu0 0.0
        %831 = vmatpush1.msra.mxu0 0.0
        %832 = vmatprep.subr.mxu0 0.0
        %833 = vmatpush1.msra.mxu0 0.0
        %834 = vmatprep.subr.mxu0 0.0
        %835 = vmatpush1.msra.mxu0 0.0
        %836 = vmatprep.subr.mxu0 0.0
        %837 = vmatpush1.msra.mxu0 0.0
        %838 = vmatprep.subr.mxu0 0.0
        %839 = vmatpush1.msra.mxu0 0.0
        %840 = vmatprep.subr.mxu0 0.0
        %841 = vmatpush1.msra.mxu0 0.0
        %842 = vmatprep.subr.mxu0 0.0
        %843 = vmatpush1.msra.mxu0 0.0
        %844 = vmatprep.subr.mxu0 0.0
        %845 = vmatpush1.msra.mxu0 0.0
        %846 = vmatprep.subr.mxu0 0.0
        %847 = vmatpush1.msra.mxu0 0.0
        %848 = vmatprep.subr.mxu0 0.0
        %849 = vmatpush1.msra.mxu0 0.0
        %850 = vmatprep.subr.mxu0 0.0
        %851 = vmatpush1.msra.mxu0 0.0
        %852 = vmatprep.subr.mxu0 0.0
        %853 = vmatpush1.msra.mxu0 0.0
        %854 = vmatprep.subr.mxu0 0.0
        %855 = vmatpush1.msra.mxu0 0.0
        %856 = vmatprep.subr.mxu0 0.0
        %857 = vmatpush1.msra.mxu0 0.0
        %858 = vmatprep.subr.mxu0 0.0
        %859 = vmatpush1.msra.mxu0 0.0
        %860 = vmatprep.subr.mxu0 0.0
        %861 = vmatpush1.msra.mxu0 0.0
        %862 = vmatprep.subr.mxu0 0.0
        %863 = vmatpush1.msra.mxu0 0.0
        %864 = vmatprep.subr.mxu0 0.0
        %865 = vmatpush1.msra.mxu0 0.0
        %866 = vmatprep.subr.mxu0 0.0
        %867 = vmatpush1.msra.mxu0 0.0
        %868 = vmatprep.subr.mxu0 0.0
        %869 = vmatpush1.msra.mxu0 0.0
        %870 = vmatprep.subr.mxu0 0.0
        %871 = vmatpush1.msra.mxu0 0.0
        %872 = vmatprep.subr.mxu0 0.0
        %873 = vmatpush1.msra.mxu0 0.0
        %874 = vmatprep.subr.mxu0 0.0
        %875 = vmatpush1.msra.mxu0 0.0
        %876 = vmatprep.mubr.f32.mxu0 0.0
        %877 = vmatmul.mubr.f32.gmra.mrb[0].mxu0 %v807
        %v878 = vpop.f32.mrb[0].mxu0
        %v879 = vadd.f32 0.0, %v878
        %v880 = vpop.f32.mrb[0].mxu0
        %881 = vmatprep.mubr.f32.mxu0 0.0
        %882 = vmatmul.mubr.f32.gmra.mrb[0].mxu0 %v810
        %v883 = vpop.f32.mrb[0].mxu0
        %v884 = vadd.f32 0.0, %v883
        %v885 = vpop.f32.mrb[0].mxu0
        %886 = vdwg.mxu0
        %887 = vmatprep.subr.mxu0 0.0
        %888 = vmatpush1.msra.mxu0 %v879
        %889 = vmatprep.subr.mxu0 0.0
        %890 = vmatpush1.msra.mxu0 %v884
        %891 = vmatprep.subr.mxu0 0.0
        %892 = vmatpush1.msra.mxu0 0.0
        %893 = vmatprep.subr.mxu0 0.0
        %894 = vmatpush1.msra.mxu0 0.0
        %895 = vmatprep.subr.mxu0 0.0
        %896 = vmatpush1.msra.mxu0 0.0
        %897 = vmatprep.subr.mxu0 0.0
        %898 = vmatpush1.msra.mxu0 0.0
        %899 = vmatprep.subr.mxu0 0.0
        %900 = vmatpush1.msra.mxu0 0.0
        %901 = vmatprep.subr.mxu0 0.0
        %902 = vmatpush1.msra.mxu0 0.0
        %903 = vmatprep.subr.mxu0 0.0
        %904 = vmatpush1.msra.mxu0 0.0
        %905 = vmatprep.subr.mxu0 0.0
        %906 = vmatpush1.msra.mxu0 0.0
        %907 = vmatprep.subr.mxu0 0.0
        %908 = vmatpush1.msra.mxu0 0.0
        %909 = vmatprep.subr.mxu0 0.0
        %910 = vmatpush1.msra.mxu0 0.0
        %911 = vmatprep.subr.mxu0 0.0
        %912 = vmatpush1.msra.mxu0 0.0
        %913 = vmatprep.subr.mxu0 0.0
        %914 = vmatpush1.msra.mxu0 0.0
        %915 = vmatprep.subr.mxu0 0.0
        %916 = vmatpush1.msra.mxu0 0.0
        %917 = vmatprep.subr.mxu0 0.0
        %918 = vmatpush1.msra.mxu0 0.0
        %919 = vmatprep.subr.mxu0 0.0
        %920 = vmatpush1.msra.mxu0 0.0
        %921 = vmatprep.subr.mxu0 0.0
        %922 = vmatpush1.msra.mxu0 0.0
        %923 = vmatprep.subr.mxu0 0.0
        %924 = vmatpush1.msra.mxu0 0.0
        %925 = vmatprep.subr.mxu0 0.0
        %926 = vmatpush1.msra.mxu0 0.0
        %927 = vmatprep.subr.mxu0 0.0
        %928 = vmatpush1.msra.mxu0 0.0
        %929 = vmatprep.subr.mxu0 0.0
        %930 = vmatpush1.msra.mxu0 0.0
        %931 = vmatprep.subr.mxu0 0.0
        %932 = vmatpush1.msra.mxu0 0.0
        %933 = vmatprep.subr.mxu0 0.0
        %934 = vmatpush1.msra.mxu0 0.0
        %935 = vmatprep.subr.mxu0 0.0
        %936 = vmatpush1.msra.mxu0 0.0
        %937 = vmatprep.subr.mxu0 0.0
        %938 = vmatpush1.msra.mxu0 0.0
        %939 = vmatprep.subr.mxu0 0.0
        %940 = vmatpush1.msra.mxu0 0.0
        %941 = vmatprep.subr.mxu0 0.0
        %942 = vmatpush1.msra.mxu0 0.0
        %943 = vmatprep.subr.mxu0 0.0
        %944 = vmatpush1.msra.mxu0 0.0
        %945 = vmatprep.subr.mxu0 0.0
        %946 = vmatpush1.msra.mxu0 0.0
        %947 = vmatprep.subr.mxu0 0.0
        %948 = vmatpush1.msra.mxu0 0.0
        %949 = vmatprep.subr.mxu0 0.0
        %950 = vmatpush1.msra.mxu0 0.0
        %951 = vmatprep.mubr.f32.mxu0 0.0
        %952 = vmatmul.mubr.f32.gmra.mrb[0].mxu0 %v581
        %v953 = vpop.f32.mrb[0].mxu0
        %v954 = vadd.f32 0.0, %v953
        %v955 = vpop.f32.mrb[0].mxu0
        %956 = vdwg.mxu0
        %v957 = vmul.f32 %v493, %v493
        %v958 = vmul.f32 %v494, %v494
        %v960 = vsel %vm498, %v957, 0
        %v963 = vsel %vm498, %v958, 0
        %965 = vmatprep.subr.mxu0 0.0
        %966 = vmatpush1.msra.mxu0 %v496
        %967 = vmatprep.subr.mxu0 0.0
        %968 = vmatpush1.msra.mxu0 %v497
        %969 = vmatprep.subr.mxu0 0.0
        %970 = vmatpush1.msra.mxu0 0.0
        %971 = vmatprep.subr.mxu0 0.0
        %972 = vmatpush1.msra.mxu0 0.0
        %973 = vmatprep.subr.mxu0 0.0
        %974 = vmatpush1.msra.mxu0 0.0
        %975 = vmatprep.subr.mxu0 0.0
        %976 = vmatpush1.msra.mxu0 0.0
        %977 = vmatprep.subr.mxu0 0.0
        %978 = vmatpush1.msra.mxu0 0.0
        %979 = vmatprep.subr.mxu0 0.0
        %980 = vmatpush1.msra.mxu0 0.0
        %981 = vmatprep.subr.mxu0 0.0
        %982 = vmatpush1.msra.mxu0 0.0
        %983 = vmatprep.subr.mxu0 0.0
        %984 = vmatpush1.msra.mxu0 0.0
        %985 = vmatprep.subr.mxu0 0.0
        %986 = vmatpush1.msra.mxu0 0.0
        %987 = vmatprep.subr.mxu0 0.0
        %988 = vmatpush1.msra.mxu0 0.0
        %989 = vmatprep.subr.mxu0 0.0
        %990 = vmatpush1.msra.mxu0 0.0
        %991 = vmatprep.subr.mxu0 0.0
        %992 = vmatpush1.msra.mxu0 0.0
        %993 = vmatprep.subr.mxu0 0.0
        %994 = vmatpush1.msra.mxu0 0.0
        %995 = vmatprep.subr.mxu0 0.0
        %996 = vmatpush1.msra.mxu0 0.0
        %997 = vmatprep.subr.mxu0 0.0
        %998 = vmatpush1.msra.mxu0 0.0
        %999 = vmatprep.subr.mxu0 0.0
        %1000 = vmatpush1.msra.mxu0 0.0
        %1001 = vmatprep.subr.mxu0 0.0
        %1002 = vmatpush1.msra.mxu0 0.0
        %1003 = vmatprep.subr.mxu0 0.0
        %1004 = vmatpush1.msra.mxu0 0.0
        %1005 = vmatprep.subr.mxu0 0.0
        %1006 = vmatpush1.msra.mxu0 0.0
        %1007 = vmatprep.subr.mxu0 0.0
        %1008 = vmatpush1.msra.mxu0 0.0
        %1009 = vmatprep.subr.mxu0 0.0
        %1010 = vmatpush1.msra.mxu0 0.0
        %1011 = vmatprep.subr.mxu0 0.0
        %1012 = vmatpush1.msra.mxu0 0.0
        %1013 = vmatprep.subr.mxu0 0.0
        %1014 = vmatpush1.msra.mxu0 0.0
        %1015 = vmatprep.subr.mxu0 0.0
        %1016 = vmatpush1.msra.mxu0 0.0
        %1017 = vmatprep.subr.mxu0 0.0
        %1018 = vmatpush1.msra.mxu0 0.0
        %1019 = vmatprep.subr.mxu0 0.0
        %1020 = vmatpush1.msra.mxu0 0.0
        %1021 = vmatprep.subr.mxu0 0.0
        %1022 = vmatpush1.msra.mxu0 0.0
        %1023 = vmatprep.subr.mxu0 0.0
        %1024 = vmatpush1.msra.mxu0 0.0
        %1025 = vmatprep.subr.mxu0 0.0
        %1026 = vmatpush1.msra.mxu0 0.0
        %1027 = vmatprep.subr.mxu0 0.0
        %1028 = vmatpush1.msra.mxu0 0.0
        %1029 = vmatprep.mubr.f32.mxu0 0.0
        %1030 = vmatmul.mubr.f32.gmra.mrb[0].mxu0 %v960
        %v1031 = vpop.f32.mrb[0].mxu0
        %v1032 = vadd.f32 0.0, %v1031
        %v1033 = vpop.f32.mrb[0].mxu0
        %1034 = vmatprep.mubr.f32.mxu0 0.0
        %1035 = vmatmul.mubr.f32.gmra.mrb[0].mxu0 %v963
        %v1036 = vpop.f32.mrb[0].mxu0
        %v1037 = vadd.f32 0.0, %v1036
        %v1038 = vpop.f32.mrb[0].mxu0
        %1039 = vdwg.mxu0
        %1040 = vmatprep.subr.mxu0 0.0
        %1041 = vmatpush1.msra.mxu0 %v1032
        %1042 = vmatprep.subr.mxu0 0.0
        %1043 = vmatpush1.msra.mxu0 %v1037
        %1044 = vmatprep.subr.mxu0 0.0
        %1045 = vmatpush1.msra.mxu0 0.0
        %1046 = vmatprep.subr.mxu0 0.0
        %1047 = vmatpush1.msra.mxu0 0.0
        %1048 = vmatprep.subr.mxu0 0.0
        %1049 = vmatpush1.msra.mxu0 0.0
        %1050 = vmatprep.subr.mxu0 0.0
        %1051 = vmatpush1.msra.mxu0 0.0
        %1052 = vmatprep.subr.mxu0 0.0
        %1053 = vmatpush1.msra.mxu0 0.0
        %1054 = vmatprep.subr.mxu0 0.0
        %1055 = vmatpush1.msra.mxu0 0.0
        %1056 = vmatprep.subr.mxu0 0.0
        %1057 = vmatpush1.msra.mxu0 0.0
        %1058 = vmatprep.subr.mxu0 0.0
        %1059 = vmatpush1.msra.mxu0 0.0
        %1060 = vmatprep.subr.mxu0 0.0
        %1061 = vmatpush1.msra.mxu0 0.0
        %1062 = vmatprep.subr.mxu0 0.0
        %1063 = vmatpush1.msra.mxu0 0.0
        %1064 = vmatprep.subr.mxu0 0.0
        %1065 = vmatpush1.msra.mxu0 0.0
        %1066 = vmatprep.subr.mxu0 0.0
        %1067 = vmatpush1.msra.mxu0 0.0
        %1068 = vmatprep.subr.mxu0 0.0
        %1069 = vmatpush1.msra.mxu0 0.0
        %1070 = vmatprep.subr.mxu0 0.0
        %1071 = vmatpush1.msra.mxu0 0.0
        %1072 = vmatprep.subr.mxu0 0.0
        %1073 = vmatpush1.msra.mxu0 0.0
        %1074 = vmatprep.subr.mxu0 0.0
        %1075 = vmatpush1.msra.mxu0 0.0
        %1076 = vmatprep.subr.mxu0 0.0
        %1077 = vmatpush1.msra.mxu0 0.0
        %1078 = vmatprep.subr.mxu0 0.0
        %1079 = vmatpush1.msra.mxu0 0.0
        %1080 = vmatprep.subr.mxu0 0.0
        %1081 = vmatpush1.msra.mxu0 0.0
        %1082 = vmatprep.subr.mxu0 0.0
        %1083 = vmatpush1.msra.mxu0 0.0
        %1084 = vmatprep.subr.mxu0 0.0
        %1085 = vmatpush1.msra.mxu0 0.0
        %1086 = vmatprep.subr.mxu0 0.0
        %1087 = vmatpush1.msra.mxu0 0.0
        %1088 = vmatprep.subr.mxu0 0.0
        %1089 = vmatpush1.msra.mxu0 0.0
        %1090 = vmatprep.subr.mxu0 0.0
        %1091 = vmatpush1.msra.mxu0 0.0
        %1092 = vmatprep.subr.mxu0 0.0
        %1093 = vmatpush1.msra.mxu0 0.0
        %1094 = vmatprep.subr.mxu0 0.0
        %1095 = vmatpush1.msra.mxu0 0.0
        %1096 = vmatprep.subr.mxu0 0.0
        %1097 = vmatpush1.msra.mxu0 0.0
        %1098 = vmatprep.subr.mxu0 0.0
        %1099 = vmatpush1.msra.mxu0 0.0
        %1100 = vmatprep.subr.mxu0 0.0
        %1101 = vmatpush1.msra.mxu0 0.0
        %1102 = vmatprep.subr.mxu0 0.0
        %1103 = vmatpush1.msra.mxu0 0.0
        %1104 = vmatprep.mubr.f32.mxu0 0.0
        %1105 = vmatmul.mubr.f32.gmra.mrb[0].mxu0 %v581
        %v1106 = vpop.f32.mrb[0].mxu0
        %v1107 = vadd.f32 0.0, %v1106
        %v1108 = vpop.f32.mrb[0].mxu0
        %1109 = vdwg.mxu0
        %v1110 = vmul.f32 %v491, %v493
        %v1111 = vmul.f32 %v492, %v494
        %v1113 = vsel %vm498, %v1110, 0
        %v1116 = vsel %vm498, %v1111, 0
        %1118 = vmatprep.subr.mxu0 0.0
        %1119 = vmatpush1.msra.mxu0 %v496
        %1120 = vmatprep.subr.mxu0 0.0
        %1121 = vmatpush1.msra.mxu0 %v497
        %1122 = vmatprep.subr.mxu0 0.0
        %1123 = vmatpush1.msra.mxu0 0.0
        %1124 = vmatprep.subr.mxu0 0.0
        %1125 = vmatpush1.msra.mxu0 0.0
        %1126 = vmatprep.subr.mxu0 0.0
        %1127 = vmatpush1.msra.mxu0 0.0
        %1128 = vmatprep.subr.mxu0 0.0
        %1129 = vmatpush1.msra.mxu0 0.0
        %1130 = vmatprep.subr.mxu0 0.0
        %1131 = vmatpush1.msra.mxu0 0.0
        %1132 = vmatprep.subr.mxu0 0.0
        %1133 = vmatpush1.msra.mxu0 0.0
        %1134 = vmatprep.subr.mxu0 0.0
        %1135 = vmatpush1.msra.mxu0 0.0
        %1136 = vmatprep.subr.mxu0 0.0
        %1137 = vmatpush1.msra.mxu0 0.0
        %1138 = vmatprep.subr.mxu0 0.0
        %1139 = vmatpush1.msra.mxu0 0.0
        %1140 = vmatprep.subr.mxu0 0.0
        %1141 = vmatpush1.msra.mxu0 0.0
        %1142 = vmatprep.subr.mxu0 0.0
        %1143 = vmatpush1.msra.mxu0 0.0
        %1144 = vmatprep.subr.mxu0 0.0
        %1145 = vmatpush1.msra.mxu0 0.0
        %1146 = vmatprep.subr.mxu0 0.0
        %1147 = vmatpush1.msra.mxu0 0.0
        %1148 = vmatprep.subr.mxu0 0.0
        %1149 = vmatpush1.msra.mxu0 0.0
        %1150 = vmatprep.subr.mxu0 0.0
        %1151 = vmatpush1.msra.mxu0 0.0
        %1152 = vmatprep.subr.mxu0 0.0
        %1153 = vmatpush1.msra.mxu0 0.0
        %1154 = vmatprep.subr.mxu0 0.0
        %1155 = vmatpush1.msra.mxu0 0.0
        %1156 = vmatprep.subr.mxu0 0.0
        %1157 = vmatpush1.msra.mxu0 0.0
        %1158 = vmatprep.subr.mxu0 0.0
        %1159 = vmatpush1.msra.mxu0 0.0
        %1160 = vmatprep.subr.mxu0 0.0
        %1161 = vmatpush1.msra.mxu0 0.0
        %1162 = vmatprep.subr.mxu0 0.0
        %1163 = vmatpush1.msra.mxu0 0.0
        %1164 = vmatprep.subr.mxu0 0.0
        %1165 = vmatpush1.msra.mxu0 0.0
        %1166 = vmatprep.subr.mxu0 0.0
        %1167 = vmatpush1.msra.mxu0 0.0
        %1168 = vmatprep.subr.mxu0 0.0
        %1169 = vmatpush1.msra.mxu0 0.0
        %1170 = vmatprep.subr.mxu0 0.0
        %1171 = vmatpush1.msra.mxu0 0.0
        %1172 = vmatprep.subr.mxu0 0.0
        %1173 = vmatpush1.msra.mxu0 0.0
        %1174 = vmatprep.subr.mxu0 0.0
        %1175 = vmatpush1.msra.mxu0 0.0
        %1176 = vmatprep.subr.mxu0 0.0
        %1177 = vmatpush1.msra.mxu0 0.0
        %1178 = vmatprep.subr.mxu0 0.0
        %1179 = vmatpush1.msra.mxu0 0.0
        %1180 = vmatprep.subr.mxu0 0.0
        %1181 = vmatpush1.msra.mxu0 0.0
        %1182 = vmatprep.mubr.f32.mxu0 0.0
        %1183 = vmatmul.mubr.f32.gmra.mrb[0].mxu0 %v1113
        %v1184 = vpop.f32.mrb[0].mxu0
        %v1185 = vadd.f32 0.0, %v1184
        %v1186 = vpop.f32.mrb[0].mxu0
        %1187 = vmatprep.mubr.f32.mxu0 0.0
        %1188 = vmatmul.mubr.f32.gmra.mrb[0].mxu0 %v1116
        %v1189 = vpop.f32.mrb[0].mxu0
        %v1190 = vadd.f32 0.0, %v1189
        %v1191 = vpop.f32.mrb[0].mxu0
        %1192 = vdwg.mxu0
        %1193 = vmatprep.subr.mxu0 0.0
        %1194 = vmatpush1.msra.mxu0 %v1185
        %1195 = vmatprep.subr.mxu0 0.0
        %1196 = vmatpush1.msra.mxu0 %v1190
        %1197 = vmatprep.subr.mxu0 0.0
        %1198 = vmatpush1.msra.mxu0 0.0
        %1199 = vmatprep.subr.mxu0 0.0
        %1200 = vmatpush1.msra.mxu0 0.0
        %1201 = vmatprep.subr.mxu0 0.0
        %1202 = vmatpush1.msra.mxu0 0.0
        %1203 = vmatprep.subr.mxu0 0.0
        %1204 = vmatpush1.msra.mxu0 0.0
        %1205 = vmatprep.subr.mxu0 0.0
        %1206 = vmatpush1.msra.mxu0 0.0
        %1207 = vmatprep.subr.mxu0 0.0
        %1208 = vmatpush1.msra.mxu0 0.0
        %1209 = vmatprep.subr.mxu0 0.0
        %1210 = vmatpush1.msra.mxu0 0.0
        %1211 = vmatprep.subr.mxu0 0.0
        %1212 = vmatpush1.msra.mxu0 0.0
        %1213 = vmatprep.subr.mxu0 0.0
        %1214 = vmatpush1.msra.mxu0 0.0
        %1215 = vmatprep.subr.mxu0 0.0
        %1216 = vmatpush1.msra.mxu0 0.0
        %1217 = vmatprep.subr.mxu0 0.0
        %1218 = vmatpush1.msra.mxu0 0.0
        %1219 = vmatprep.subr.mxu0 0.0
        %1220 = vmatpush1.msra.mxu0 0.0
        %1221 = vmatprep.subr.mxu0 0.0
        %1222 = vmatpush1.msra.mxu0 0.0
        %1223 = vmatprep.subr.mxu0 0.0
        %1224 = vmatpush1.msra.mxu0 0.0
        %1225 = vmatprep.subr.mxu0 0.0
        %1226 = vmatpush1.msra.mxu0 0.0
        %1227 = vmatprep.subr.mxu0 0.0
        %1228 = vmatpush1.msra.mxu0 0.0
        %1229 = vmatprep.subr.mxu0 0.0
        %1230 = vmatpush1.msra.mxu0 0.0
        %1231 = vmatprep.subr.mxu0 0.0
        %1232 = vmatpush1.msra.mxu0 0.0
        %1233 = vmatprep.subr.mxu0 0.0
        %1234 = vmatpush1.msra.mxu0 0.0
        %1235 = vmatprep.subr.mxu0 0.0
        %1236 = vmatpush1.msra.mxu0 0.0
        %1237 = vmatprep.subr.mxu0 0.0
        %1238 = vmatpush1.msra.mxu0 0.0
        %1239 = vmatprep.subr.mxu0 0.0
        %1240 = vmatpush1.msra.mxu0 0.0
        %1241 = vmatprep.subr.mxu0 0.0
        %1242 = vmatpush1.msra.mxu0 0.0
        %1243 = vmatprep.subr.mxu0 0.0
        %1244 = vmatpush1.msra.mxu0 0.0
        %1245 = vmatprep.subr.mxu0 0.0
        %1246 = vmatpush1.msra.mxu0 0.0
        %1247 = vmatprep.subr.mxu0 0.0
        %1248 = vmatpush1.msra.mxu0 0.0
        %1249 = vmatprep.subr.mxu0 0.0
        %1250 = vmatpush1.msra.mxu0 0.0
        %1251 = vmatprep.subr.mxu0 0.0
        %1252 = vmatpush1.msra.mxu0 0.0
        %1253 = vmatprep.subr.mxu0 0.0
        %1254 = vmatpush1.msra.mxu0 0.0
        %1255 = vmatprep.subr.mxu0 0.0
        %1256 = vmatpush1.msra.mxu0 0.0
        %1257 = vmatprep.mubr.f32.mxu0 0.0
        %1258 = vmatmul.mubr.f32.gmra.mrb[0].mxu0 %v581
        %v1259 = vpop.f32.mrb[0].mxu0
        %v1260 = vadd.f32 0.0, %v1259
        %v1261 = vpop.f32.mrb[0].mxu0
        %1262 = vdwg.mxu0
        %v1263 = vmul.f32 %v650, %v650
        %v1264 = vmul.f32 %v801, %v801
        %v1265 = vmul.f32 %v650, %v801
        %v1266 = vsub.f32 %v954, %v1263
        %v1267 = vsub.f32 %v1107, %v1264
        %v1268 = vsub.f32 %v1260, %v1265
        %v1269 = vmul.f32 %v1268, 2.0
        %v1270 = vstv %s490
        %v1271 = vadd.f32 %v1269, %v1270
        %v1272 = vadd.f32 %v1266, %v1267
        %v1273 = vadd.f32 %v1272, %v1270
        %v1274 = vrcp.pop %v1273
        %v1275 = vmul.f32 %v1271, %v1274
        %v1276 = vadd.f32 %v1263, %v1264
        %v1277 = vstv %s489
        %v1278 = vadd.f32 %v1276, %v1277
        %v1279 = vrcp.pop %v1278
        %v1280 = vmul.f32 %v1265, 2.0
        %v1281 = vadd.f32 %v1280, %v1277
        %v1282 = vmul.f32 %v1281, %v1279
        %v1283 = vmul.f32 %v1282, %v1275
        %vm1284 = vcmask 46080
        %v1285 = vsel %vm1284, %v1283, 0.0
        %1286 = vadd.xlane.f32.xlu0 %v1285
        %v1287 = vpop.xlane.xlu0 %1286
        %v1288 = vrot.slane %v1287, 4
        %v1289 = vadd.f32 %v1287, %v1288
        %v1290 = vrot.slane %v1289, 2
        %v1291 = vadd.f32 %v1289, %v1290
        %v1292 = vrot.slane %v1291, 1
        %v1293 = vadd.f32 %v1291, %v1292
        %s1294 = vtos %v1293
        %v1295 = vstv %s1294
        %vm1296 = vcmask 0
        %1297 = vst.msk [vmem:[%s471] sm:$0x1] %vm1296, %v1295
        %v1298 = vsel %vm1284, %v1275, 0.0
        %1299 = vadd.xlane.f32.xlu0 %v1298
        %v1300 = vpop.xlane.xlu0 %1299
        %v1301 = vrot.slane %v1300, 4
        %v1302 = vadd.f32 %v1300, %v1301
        %v1303 = vrot.slane %v1302, 2
        %v1304 = vadd.f32 %v1302, %v1303
        %v1305 = vrot.slane %v1304, 1
        %v1306 = vadd.f32 %v1304, %v1305
        %s1307 = vtos %v1306
        %v1308 = vstv %s1307
        %1309 = vst.msk [vmem:[%s474] sm:$0x1] %vm1296, %v1308
        %v1310 = vld [vmem:[%s5] sm:$0xff]
        %v1311 = vld [vmem:[%s6] sm:$0xff]
        %v1312 = vld [vmem:[%s6 + $0x8] sm:$0xff]
        %v1314 = vsel %vm498, %v1310, 0
        %1316 = vmatprep.subr.mxu0 0.0
        %1317 = vmatpush1.msra.mxu0 %v491
        %1318 = vmatprep.subr.mxu0 0.0
        %1319 = vmatpush1.msra.mxu0 %v492
        %1320 = vmatprep.subr.mxu0 0.0
        %1321 = vmatpush1.msra.mxu0 0.0
        %1322 = vmatprep.subr.mxu0 0.0
        %1323 = vmatpush1.msra.mxu0 0.0
        %1324 = vmatprep.subr.mxu0 0.0
        %1325 = vmatpush1.msra.mxu0 0.0
        %1326 = vmatprep.subr.mxu0 0.0
        %1327 = vmatpush1.msra.mxu0 0.0
        %1328 = vmatprep.subr.mxu0 0.0
        %1329 = vmatpush1.msra.mxu0 0.0
        %1330 = vmatprep.subr.mxu0 0.0
        %1331 = vmatpush1.msra.mxu0 0.0
        %1332 = vmatprep.subr.mxu0 0.0
        %1333 = vmatpush1.msra.mxu0 0.0
        %1334 = vmatprep.subr.mxu0 0.0
        %1335 = vmatpush1.msra.mxu0 0.0
        %1336 = vmatprep.subr.mxu0 0.0
        %1337 = vmatpush1.msra.mxu0 0.0
        %1338 = vmatprep.subr.mxu0 0.0
        %1339 = vmatpush1.msra.mxu0 0.0
        %1340 = vmatprep.subr.mxu0 0.0
        %1341 = vmatpush1.msra.mxu0 0.0
        %1342 = vmatprep.subr.mxu0 0.0
        %1343 = vmatpush1.msra.mxu0 0.0
        %1344 = vmatprep.subr.mxu0 0.0
        %1345 = vmatpush1.msra.mxu0 0.0
        %1346 = vmatprep.subr.mxu0 0.0
        %1347 = vmatpush1.msra.mxu0 0.0
        %1348 = vmatprep.subr.mxu0 0.0
        %1349 = vmatpush1.msra.mxu0 0.0
        %1350 = vmatprep.subr.mxu0 0.0
        %1351 = vmatpush1.msra.mxu0 0.0
        %1352 = vmatprep.subr.mxu0 0.0
        %1353 = vmatpush1.msra.mxu0 0.0
        %1354 = vmatprep.subr.mxu0 0.0
        %1355 = vmatpush1.msra.mxu0 0.0
        %1356 = vmatprep.subr.mxu0 0.0
        %1357 = vmatpush1.msra.mxu0 0.0
        %1358 = vmatprep.subr.mxu0 0.0
        %1359 = vmatpush1.msra.mxu0 0.0
        %1360 = vmatprep.subr.mxu0 0.0
        %1361 = vmatpush1.msra.mxu0 0.0
        %1362 = vmatprep.subr.mxu0 0.0
        %1363 = vmatpush1.msra.mxu0 0.0
        %1364 = vmatprep.subr.mxu0 0.0
        %1365 = vmatpush1.msra.mxu0 0.0
        %1366 = vmatprep.subr.mxu0 0.0
        %1367 = vmatpush1.msra.mxu0 0.0
        %1368 = vmatprep.subr.mxu0 0.0
        %1369 = vmatpush1.msra.mxu0 0.0
        %1370 = vmatprep.subr.mxu0 0.0
        %1371 = vmatpush1.msra.mxu0 0.0
        %1372 = vmatprep.subr.mxu0 0.0
        %1373 = vmatpush1.msra.mxu0 0.0
        %1374 = vmatprep.subr.mxu0 0.0
        %1375 = vmatpush1.msra.mxu0 0.0
        %1376 = vmatprep.subr.mxu0 0.0
        %1377 = vmatpush1.msra.mxu0 0.0
        %1378 = vmatprep.subr.mxu0 0.0
        %1379 = vmatpush1.msra.mxu0 0.0
        %1380 = vmatprep.mubr.f32.mxu0 0.0
        %1381 = vmatmul.mubr.f32.gmra.mrb[0].mxu0 %v1314
        %v1382 = vpop.f32.mrb[0].mxu0
        %v1383 = vadd.f32 0.0, %v1382
        %v1384 = vpop.f32.mrb[0].mxu0
        %1385 = vdwg.mxu0
        %v1387 = vsel %vm498, %v1383, 0
        %1389 = vmatprep.subr.mxu0 0.0
        %1390 = vmatpush1.msra.mxu0 %v1311
        %1391 = vmatprep.subr.mxu0 0.0
        %1392 = vmatpush1.msra.mxu0 %v1312
        %1393 = vmatprep.subr.mxu0 0.0
        %1394 = vmatpush1.msra.mxu0 0.0
        %1395 = vmatprep.subr.mxu0 0.0
        %1396 = vmatpush1.msra.mxu0 0.0
        %1397 = vmatprep.subr.mxu0 0.0
        %1398 = vmatpush1.msra.mxu0 0.0
        %1399 = vmatprep.subr.mxu0 0.0
        %1400 = vmatpush1.msra.mxu0 0.0
        %1401 = vmatprep.subr.mxu0 0.0
        %1402 = vmatpush1.msra.mxu0 0.0
        %1403 = vmatprep.subr.mxu0 0.0
        %1404 = vmatpush1.msra.mxu0 0.0
        %1405 = vmatprep.subr.mxu0 0.0
        %1406 = vmatpush1.msra.mxu0 0.0
        %1407 = vmatprep.subr.mxu0 0.0
        %1408 = vmatpush1.msra.mxu0 0.0
        %1409 = vmatprep.subr.mxu0 0.0
        %1410 = vmatpush1.msra.mxu0 0.0
        %1411 = vmatprep.subr.mxu0 0.0
        %1412 = vmatpush1.msra.mxu0 0.0
        %1413 = vmatprep.subr.mxu0 0.0
        %1414 = vmatpush1.msra.mxu0 0.0
        %1415 = vmatprep.subr.mxu0 0.0
        %1416 = vmatpush1.msra.mxu0 0.0
        %1417 = vmatprep.subr.mxu0 0.0
        %1418 = vmatpush1.msra.mxu0 0.0
        %1419 = vmatprep.subr.mxu0 0.0
        %1420 = vmatpush1.msra.mxu0 0.0
        %1421 = vmatprep.subr.mxu0 0.0
        %1422 = vmatpush1.msra.mxu0 0.0
        %1423 = vmatprep.subr.mxu0 0.0
        %1424 = vmatpush1.msra.mxu0 0.0
        %1425 = vmatprep.subr.mxu0 0.0
        %1426 = vmatpush1.msra.mxu0 0.0
        %1427 = vmatprep.subr.mxu0 0.0
        %1428 = vmatpush1.msra.mxu0 0.0
        %1429 = vmatprep.subr.mxu0 0.0
        %1430 = vmatpush1.msra.mxu0 0.0
        %1431 = vmatprep.subr.mxu0 0.0
        %1432 = vmatpush1.msra.mxu0 0.0
        %1433 = vmatprep.subr.mxu0 0.0
        %1434 = vmatpush1.msra.mxu0 0.0
        %1435 = vmatprep.subr.mxu0 0.0
        %1436 = vmatpush1.msra.mxu0 0.0
        %1437 = vmatprep.subr.mxu0 0.0
        %1438 = vmatpush1.msra.mxu0 0.0
        %1439 = vmatprep.subr.mxu0 0.0
        %1440 = vmatpush1.msra.mxu0 0.0
        %1441 = vmatprep.subr.mxu0 0.0
        %1442 = vmatpush1.msra.mxu0 0.0
        %1443 = vmatprep.subr.mxu0 0.0
        %1444 = vmatpush1.msra.mxu0 0.0
        %1445 = vmatprep.subr.mxu0 0.0
        %1446 = vmatpush1.msra.mxu0 0.0
        %1447 = vmatprep.subr.mxu0 0.0
        %1448 = vmatpush1.msra.mxu0 0.0
        %1449 = vmatprep.subr.mxu0 0.0
        %1450 = vmatpush1.msra.mxu0 0.0
        %1451 = vmatprep.subr.mxu0 0.0
        %1452 = vmatpush1.msra.mxu0 0.0
        %1453 = vmatprep.mubr.f32.mxu0 0.0
        %1454 = vmatmul.mubr.f32.gmra.mrb[0].mxu0 %v1387
        %v1455 = vpop.f32.mrb[0].mxu0
        %v1456 = vadd.f32 0.0, %v1455
        %v1457 = vpop.f32.mrb[0].mxu0
        %1458 = vdwg.mxu0
        %1459 = vmatprep.subr.mxu0 0.0
        %1460 = vmatpush1.msra.mxu0 %v493
        %1461 = vmatprep.subr.mxu0 0.0
        %1462 = vmatpush1.msra.mxu0 %v494
        %1463 = vmatprep.subr.mxu0 0.0
        %1464 = vmatpush1.msra.mxu0 0.0
        %1465 = vmatprep.subr.mxu0 0.0
        %1466 = vmatpush1.msra.mxu0 0.0
        %1467 = vmatprep.subr.mxu0 0.0
        %1468 = vmatpush1.msra.mxu0 0.0
        %1469 = vmatprep.subr.mxu0 0.0
        %1470 = vmatpush1.msra.mxu0 0.0
        %1471 = vmatprep.subr.mxu0 0.0
        %1472 = vmatpush1.msra.mxu0 0.0
        %1473 = vmatprep.subr.mxu0 0.0
        %1474 = vmatpush1.msra.mxu0 0.0
        %1475 = vmatprep.subr.mxu0 0.0
        %1476 = vmatpush1.msra.mxu0 0.0
        %1477 = vmatprep.subr.mxu0 0.0
        %1478 = vmatpush1.msra.mxu0 0.0
        %1479 = vmatprep.subr.mxu0 0.0
        %1480 = vmatpush1.msra.mxu0 0.0
        %1481 = vmatprep.subr.mxu0 0.0
        %1482 = vmatpush1.msra.mxu0 0.0
        %1483 = vmatprep.subr.mxu0 0.0
        %1484 = vmatpush1.msra.mxu0 0.0
        %1485 = vmatprep.subr.mxu0 0.0
        %1486 = vmatpush1.msra.mxu0 0.0
        %1487 = vmatprep.subr.mxu0 0.0
        %1488 = vmatpush1.msra.mxu0 0.0
        %1489 = vmatprep.subr.mxu0 0.0
        %1490 = vmatpush1.msra.mxu0 0.0
        %1491 = vmatprep.subr.mxu0 0.0
        %1492 = vmatpush1.msra.mxu0 0.0
        %1493 = vmatprep.subr.mxu0 0.0
        %1494 = vmatpush1.msra.mxu0 0.0
        %1495 = vmatprep.subr.mxu0 0.0
        %1496 = vmatpush1.msra.mxu0 0.0
        %1497 = vmatprep.subr.mxu0 0.0
        %1498 = vmatpush1.msra.mxu0 0.0
        %1499 = vmatprep.subr.mxu0 0.0
        %1500 = vmatpush1.msra.mxu0 0.0
        %1501 = vmatprep.subr.mxu0 0.0
        %1502 = vmatpush1.msra.mxu0 0.0
        %1503 = vmatprep.subr.mxu0 0.0
        %1504 = vmatpush1.msra.mxu0 0.0
        %1505 = vmatprep.subr.mxu0 0.0
        %1506 = vmatpush1.msra.mxu0 0.0
        %1507 = vmatprep.subr.mxu0 0.0
        %1508 = vmatpush1.msra.mxu0 0.0
        %1509 = vmatprep.subr.mxu0 0.0
        %1510 = vmatpush1.msra.mxu0 0.0
        %1511 = vmatprep.subr.mxu0 0.0
        %1512 = vmatpush1.msra.mxu0 0.0
        %1513 = vmatprep.subr.mxu0 0.0
        %1514 = vmatpush1.msra.mxu0 0.0
        %1515 = vmatprep.subr.mxu0 0.0
        %1516 = vmatpush1.msra.mxu0 0.0
        %1517 = vmatprep.subr.mxu0 0.0
        %1518 = vmatpush1.msra.mxu0 0.0
        %1519 = vmatprep.subr.mxu0 0.0
        %1520 = vmatpush1.msra.mxu0 0.0
        %1521 = vmatprep.subr.mxu0 0.0
        %1522 = vmatpush1.msra.mxu0 0.0
        %1523 = vmatprep.mubr.f32.mxu0 0.0
        %1524 = vmatmul.mubr.f32.gmra.mrb[0].mxu0 %v1314
        %v1525 = vpop.f32.mrb[0].mxu0
        %v1526 = vadd.f32 0.0, %v1525
        %v1527 = vpop.f32.mrb[0].mxu0
        %1528 = vdwg.mxu0
        %v1530 = vsel %vm498, %v1526, 0
        %1532 = vmatprep.subr.mxu0 0.0
        %1533 = vmatpush1.msra.mxu0 %v1311
        %1534 = vmatprep.subr.mxu0 0.0
        %1535 = vmatpush1.msra.mxu0 %v1312
        %1536 = vmatprep.subr.mxu0 0.0
        %1537 = vmatpush1.msra.mxu0 0.0
        %1538 = vmatprep.subr.mxu0 0.0
        %1539 = vmatpush1.msra.mxu0 0.0
        %1540 = vmatprep.subr.mxu0 0.0
        %1541 = vmatpush1.msra.mxu0 0.0
        %1542 = vmatprep.subr.mxu0 0.0
        %1543 = vmatpush1.msra.mxu0 0.0
        %1544 = vmatprep.subr.mxu0 0.0
        %1545 = vmatpush1.msra.mxu0 0.0
        %1546 = vmatprep.subr.mxu0 0.0
        %1547 = vmatpush1.msra.mxu0 0.0
        %1548 = vmatprep.subr.mxu0 0.0
        %1549 = vmatpush1.msra.mxu0 0.0
        %1550 = vmatprep.subr.mxu0 0.0
        %1551 = vmatpush1.msra.mxu0 0.0
        %1552 = vmatprep.subr.mxu0 0.0
        %1553 = vmatpush1.msra.mxu0 0.0
        %1554 = vmatprep.subr.mxu0 0.0
        %1555 = vmatpush1.msra.mxu0 0.0
        %1556 = vmatprep.subr.mxu0 0.0
        %1557 = vmatpush1.msra.mxu0 0.0
        %1558 = vmatprep.subr.mxu0 0.0
        %1559 = vmatpush1.msra.mxu0 0.0
        %1560 = vmatprep.subr.mxu0 0.0
        %1561 = vmatpush1.msra.mxu0 0.0
        %1562 = vmatprep.subr.mxu0 0.0
        %1563 = vmatpush1.msra.mxu0 0.0
        %1564 = vmatprep.subr.mxu0 0.0
        %1565 = vmatpush1.msra.mxu0 0.0
        %1566 = vmatprep.subr.mxu0 0.0
        %1567 = vmatpush1.msra.mxu0 0.0
        %1568 = vmatprep.subr.mxu0 0.0
        %1569 = vmatpush1.msra.mxu0 0.0
        %1570 = vmatprep.subr.mxu0 0.0
        %1571 = vmatpush1.msra.mxu0 0.0
        %1572 = vmatprep.subr.mxu0 0.0
        %1573 = vmatpush1.msra.mxu0 0.0
        %1574 = vmatprep.subr.mxu0 0.0
        %1575 = vmatpush1.msra.mxu0 0.0
        %1576 = vmatprep.subr.mxu0 0.0
        %1577 = vmatpush1.msra.mxu0 0.0
        %1578 = vmatprep.subr.mxu0 0.0
        %1579 = vmatpush1.msra.mxu0 0.0
        %1580 = vmatprep.subr.mxu0 0.0
        %1581 = vmatpush1.msra.mxu0 0.0
        %1582 = vmatprep.subr.mxu0 0.0
        %1583 = vmatpush1.msra.mxu0 0.0
        %1584 = vmatprep.subr.mxu0 0.0
        %1585 = vmatpush1.msra.mxu0 0.0
        %1586 = vmatprep.subr.mxu0 0.0
        %1587 = vmatpush1.msra.mxu0 0.0
        %1588 = vmatprep.subr.mxu0 0.0
        %1589 = vmatpush1.msra.mxu0 0.0
        %1590 = vmatprep.subr.mxu0 0.0
        %1591 = vmatpush1.msra.mxu0 0.0
        %1592 = vmatprep.subr.mxu0 0.0
        %1593 = vmatpush1.msra.mxu0 0.0
        %1594 = vmatprep.subr.mxu0 0.0
        %1595 = vmatpush1.msra.mxu0 0.0
        %1596 = vmatprep.mubr.f32.mxu0 0.0
        %1597 = vmatmul.mubr.f32.gmra.mrb[0].mxu0 %v1530
        %v1598 = vpop.f32.mrb[0].mxu0
        %v1599 = vadd.f32 0.0, %v1598
        %v1600 = vpop.f32.mrb[0].mxu0
        %1601 = vdwg.mxu0
        %vm1602 = vcmask 64512
        %1603 = vst.msk [vmem:[%s478] sm:$0xff] %vm1602, %v1456
        %1604 = vst.msk [vmem:[%s482] sm:$0xff] %vm1602, %v1599
        %v1605 = vsel %vm1602, %v1456, -inf
        %1606 = vmax.xlane.f32.xlu0 %v1605
        %v1607 = vpop.xlane.xlu0 %1606
        %v1608 = vrot.slane %v1607, 4
        %v1609 = vmax.f32 %v1607, %v1608
        %v1610 = vrot.slane %v1609, 2
        %v1611 = vmax.f32 %v1609, %v1610
        %v1612 = vrot.slane %v1611, 1
        %v1613 = vmax.f32 %v1611, %v1612
        %s1614 = vtos %v1613
        %v1615 = vstv %s1614
        %1616 = vst.msk [vmem:[%s485] sm:$0x1] %vm1296, %v1615
        %v1617 = vsel %vm1602, %v1456, inf
        %1618 = vmin.xlane.f32.xlu0 %v1617
        %v1619 = vpop.xlane.xlu0 %1618
        %v1620 = vrot.slane %v1619, 4
        %v1621 = vmin.f32 %v1619, %v1620
        %v1622 = vrot.slane %v1621, 2
        %v1623 = vmin.f32 %v1621, %v1622
        %v1624 = vrot.slane %v1623, 1
        %v1625 = vmin.f32 %v1623, %v1624
        %s1626 = vtos %v1625
        %v1627 = vstv %s1626
        %1628 = vst.msk [vmem:[%s488] sm:$0x1] %vm1296, %v1627
        %p1629 = scmp.lt.s32.totalorder %s25, 5
        %s1630 = scalar_select %p1629, %s25, 5
        %s1631 = scalar_lea.vmem %s7, %s1630
        %p1632 = scmp.lt.s32.totalorder %s25, 5
        %s1633 = scalar_select %p1632, %s25, 5
        %s1634 = scalar_lea.vmem %s8, %s1633
        %p1635 = scmp.lt.s32.totalorder %s25, 5
        %s1636 = scalar_select %p1635, %s25, 5
        %s1637 = smul.addr %s1636, 8
        %s1638 = scalar_lea.vmem %s9, %s1637
        %p1639 = scmp.lt.s32.totalorder %s25, 5
        %s1640 = scalar_select %p1639, %s25, 5
        %s1641 = smul.addr %s1640, 8
        %s1642 = scalar_lea.vmem %s10, %s1641
        %p1643 = scmp.lt.s32.totalorder %s25, 5
        %s1644 = scalar_select %p1643, %s25, 5
        %s1645 = scalar_lea.vmem %s11, %s1644
        %p1646 = scmp.lt.s32.totalorder %s25, 5
        %s1647 = scalar_select %p1646, %s25, 5
        %s1648 = scalar_lea.vmem %s12, %s1647
        // Predicated region
        $region53: #{a_call__.6} parent=47 // pred_check
          %p1649 = pneg %p200
        $region54: #{a_call__.6} parent=47 // pred_check_branch
          %1651 = sbr.rel (%p1649) target = $region56
        $region55: #{a_call__.6} parent=47 // pred_region
          _
        $region56: #{a_call__.6} parent=47 // pred_fallthru
          _
        // Predicated region
        $region57: #{a_call__.6} parent=47 // pred_check
          %p1652 = pneg %p226
        $region58: #{a_call__.6} parent=47 // pred_check_branch
          %1654 = sbr.rel (%p1652) target = $region60
        $region59: #{a_call__.6} parent=47 // pred_region
          _
        $region60: #{a_call__.6} parent=47 // pred_fallthru
          _
        // Predicated region
        $region61: #{a_call__.6} parent=47 // pred_check
          %p1655 = pneg %p252
        $region62: #{a_call__.6} parent=47 // pred_check_branch
          %1657 = sbr.rel (%p1655) target = $region64
        $region63: #{a_call__.6} parent=47 // pred_region
          _
        $region64: #{a_call__.6} parent=47 // pred_fallthru
          _
        // Predicated region
        $region65: #{a_call__.6} parent=47 // pred_check
          %p1658 = pneg %p278
        $region66: #{a_call__.6} parent=47 // pred_check_branch
          %1660 = sbr.rel (%p1658) target = $region68
        $region67: #{a_call__.6} parent=47 // pred_region
          _
        $region68: #{a_call__.6} parent=47 // pred_fallthru
          _
        // Predicated region
        $region69: #{a_call__.6} parent=47 // pred_check
          %p1661 = pneg %p304
        $region70: #{a_call__.6} parent=47 // pred_check_branch
          %1663 = sbr.rel (%p1661) target = $region72
        $region71: #{a_call__.6} parent=47 // pred_region
          _
        $region72: #{a_call__.6} parent=47 // pred_fallthru
          _
        // Predicated region
        $region73: #{a_call__.6} parent=47 // pred_check
          %p1664 = pneg %p330
        $region74: #{a_call__.6} parent=47 // pred_check_branch
          %1666 = sbr.rel (%p1664) target = $region76
        $region75: #{a_call__.6} parent=47 // pred_region
          _
        $region76: #{a_call__.6} parent=47 // pred_fallthru
          _
      $region48: #{a_call__.6} parent=5 // pred_fallthru
        _
      %p1667 = scmp.le.s32.totalorder 2, %s20
      // Predicated region
      $region77: #{a_call__.6} parent=5 // pred_check
        %p1668 = pneg %p1667
      $region78: #{a_call__.6} parent=5 // pred_check_branch
        %1670 = sbr.rel (%p1668) target = $region80
      $region79: #{a_call__.6} parent=5 // pred_region
        %s1671 = ssub.s32 %s20, 2
        // Predicated region
        $region81: #{a_call__.6} parent=79 // pred_check
          %p1672 = pneg %p206
        $region82: #{a_call__.6} parent=79 // pred_check_branch
          %1674 = sbr.rel (%p1672) target = $region84
        $region83: #{a_call__.6} parent=79 // pred_region
          %p1675 = scmp.lt.s32.totalorder %s26, 5
          %s1676 = scalar_select %p1675, %s26, 5
          %s1677 = scalar_lea.vmem %s7, %s1676
        $region84: #{a_call__.6} parent=79 // pred_fallthru
          _
        // Predicated region
        $region85: #{a_call__.6} parent=79 // pred_check
          %p1678 = pneg %p232
        $region86: #{a_call__.6} parent=79 // pred_check_branch
          %1680 = sbr.rel (%p1678) target = $region88
        $region87: #{a_call__.6} parent=79 // pred_region
          %p1681 = scmp.lt.s32.totalorder %s26, 5
          %s1682 = scalar_select %p1681, %s26, 5
          %s1683 = scalar_lea.vmem %s8, %s1682
        $region88: #{a_call__.6} parent=79 // pred_fallthru
          _
        // Predicated region
        $region89: #{a_call__.6} parent=79 // pred_check
          %p1684 = pneg %p258
        $region90: #{a_call__.6} parent=79 // pred_check_branch
          %1686 = sbr.rel (%p1684) target = $region92
        $region91: #{a_call__.6} parent=79 // pred_region
          %p1687 = scmp.lt.s32.totalorder %s26, 5
          %s1688 = scalar_select %p1687, %s26, 5
          %s1689 = smul.addr %s1688, 8
          %s1690 = scalar_lea.vmem %s9, %s1689
        $region92: #{a_call__.6} parent=79 // pred_fallthru
          _
        // Predicated region
        $region93: #{a_call__.6} parent=79 // pred_check
          %p1691 = pneg %p284
        $region94: #{a_call__.6} parent=79 // pred_check_branch
          %1693 = sbr.rel (%p1691) target = $region96
        $region95: #{a_call__.6} parent=79 // pred_region
          %p1694 = scmp.lt.s32.totalorder %s26, 5
          %s1695 = scalar_select %p1694, %s26, 5
          %s1696 = smul.addr %s1695, 8
          %s1697 = scalar_lea.vmem %s10, %s1696
        $region96: #{a_call__.6} parent=79 // pred_fallthru
          _
        // Predicated region
        $region97: #{a_call__.6} parent=79 // pred_check
          %p1698 = pneg %p310
        $region98: #{a_call__.6} parent=79 // pred_check_branch
          %1700 = sbr.rel (%p1698) target = $region100
        $region99: #{a_call__.6} parent=79 // pred_region
          %p1701 = scmp.lt.s32.totalorder %s26, 5
          %s1702 = scalar_select %p1701, %s26, 5
          %s1703 = scalar_lea.vmem %s11, %s1702
        $region100: #{a_call__.6} parent=79 // pred_fallthru
          _
        // Predicated region
        $region101: #{a_call__.6} parent=79 // pred_check
          %p1704 = pneg %p336
        $region102: #{a_call__.6} parent=79 // pred_check_branch
          %1706 = sbr.rel (%p1704) target = $region104
        $region103: #{a_call__.6} parent=79 // pred_region
          %p1707 = scmp.lt.s32.totalorder %s26, 5
          %s1708 = scalar_select %p1707, %s26, 5
          %s1709 = scalar_lea.vmem %s12, %s1708
        $region104: #{a_call__.6} parent=79 // pred_fallthru
          _
      $region80: #{a_call__.6} parent=5 // pred_fallthru
        _
    $region6: #{a_call__.6} parent=1 // loop_footer
      %s24 = sadd.s32 1, %s20
    $region7: #{a_call__.6} parent=1 // loop_footer_branch
      %19 = sbr.rel target = $region3
    $region8: #{a_call__.6} parent=1 // loop_exit
      _
    %1710 = vsyncpa [#allocation3], 1
    %s1711 = scalar_lea.sflag [#allocation3], 1
    %1712 = vsyncpa %s1711, 1

// kernel: a_call__.8
$region0: #{a_call__.8}
  #allocation0 [shape = 'u32[]', space=smem, size = 0x4, offset = 0x4, fixed_abs, tag = 'smem constant byte address 0x4 - core index']
  #allocation1 [shape = 'u32[144,128]{1,0:T(1,128)}', space=vmem, size = 0x12000, scoped, tag = 'internal scratch']
  %s0 = inlined_call_operand.vmem [shape: f32[2], index: 0, kind: input, shape index: {}]
  %s1 = inlined_call_operand.vmem [shape: f32[6,4,4], index: 1, kind: input, shape index: {}]
  %s2 = inlined_call_operand.vmem [shape: f32[6,4,4], index: 2, kind: input, shape index: {}]
  %s3 = inlined_call_operand.vmem [shape: f32[1,4], index: 3, kind: input, shape index: {}]
  %s4 = inlined_call_operand.vmem [shape: f32[4,1], index: 4, kind: input, shape index: {}]
  %s5 = inlined_call_operand.vmem [shape: f32[2,4], index: 5, kind: input, shape index: {}]
  %s6 = inlined_call_operand.vmem [shape: f32[4,2], index: 6, kind: input, shape index: {}]
  %s7 = inlined_call_operand.vmem [shape: f32[6,1,1], index: 7, kind: output, shape index: {0}]
  %s8 = inlined_call_operand.vmem [shape: f32[6,1,1], index: 8, kind: output, shape index: {1}]
  %s9 = inlined_call_operand.vmem [shape: f32[6,2,2], index: 9, kind: output, shape index: {2}]
  %s10 = inlined_call_operand.vmem [shape: f32[6,2,2], index: 10, kind: output, shape index: {3}]
  %s11 = inlined_call_operand.vmem [shape: f32[6,1,1], index: 11, kind: output, shape index: {4}]
  %s12 = inlined_call_operand.vmem [shape: f32[6,1,1], index: 12, kind: output, shape index: {5}]
  %13 = xla_tuple %s7, %s8, %s9, %s10, %s11, %s12
  %s14 = sld [smem:[#allocation0]]
  $region105: #{a_call__.8} parent=0
    _
  %s16 = ssub.s32 1, %s14
  %s17 = scalar_select 0, %s16, %s14
  $region1: #{a_call__.8} parent=0
    #allocation2 [shape = 'u8[512]{0}', space=smem, size = 0x200, scoped, tag = 'input window, operand 0, single buffered']
    #allocation3 [shape = 's32[2]{0}', space=sflag, size = 0x8, scoped, tag = 'scoped memory for a_call__.8']
    %18 = vsyncpa [#allocation3], 0
    loop: start=0, step=1, limit=8
    $region2: #{a_call__.8} parent=1 // loop_pre_header
      _
    $region3: #{a_call__.8} parent=1 // loop_header
      %s20 = sphi 0, %s24
      %p21 = scmp.ge.s32.totalorder %s20, 8
      %s28 = sphi 0, %s28
      %s30 = sphi 0, %s28
      %s31 = sphi 0, %s30
      %s45 = sphi 0, %s31
      %s51 = sphi 0, %s53
      %s54 = sphi 0, %s51
      %s55 = sphi 0, %s54
      %s71 = sphi 0, %s55
      %s77 = sphi 0, %s79
      %s80 = sphi 0, %s77
      %s81 = sphi 0, %s80
      %s97 = sphi 0, %s81
      %s101 = sphi 0, %s101
      %s103 = sphi 0, %s101
      %s104 = sphi 0, %s103
      %s118 = sphi 0, %s104
      %s122 = sphi 0, %s122
      %s124 = sphi 0, %s122
      %s125 = sphi 0, %s124
      %s139 = sphi 0, %s125
      %s143 = sphi 0, %s143
      %s145 = sphi 0, %s143
      %s146 = sphi 0, %s145
      %s160 = sphi 0, %s146
      %s164 = sphi 0, %s164
      %s166 = sphi 0, %s164
      %s167 = sphi 0, %s166
      %s181 = sphi 0, %s167
      %s187 = sphi 0, %s189
      %s190 = sphi 0, %s187
      %s191 = sphi 0, %s190
      %s207 = sphi 0, %s191
      %s213 = sphi 0, %s215
      %s216 = sphi 0, %s213
      %s217 = sphi 0, %s216
      %s233 = sphi 0, %s217
      %s239 = sphi 0, %s241
      %s242 = sphi 0, %s239
      %s243 = sphi 0, %s242
      %s259 = sphi 0, %s243
      %s265 = sphi 0, %s267
      %s268 = sphi 0, %s265
      %s269 = sphi 0, %s268
      %s285 = sphi 0, %s269
      %s291 = sphi 0, %s293
      %s294 = sphi 0, %s291
      %s295 = sphi 0, %s294
      %s311 = sphi 0, %s295
      %s317 = sphi 0, %s319
      %s320 = sphi 0, %s317
      %s321 = sphi 0, %s320
      %s337 = sphi 0, %s321
    $region4: #{a_call__.8} parent=1 // loop_header_branch
      %23 = sbr.rel (%p21) target = $region8
    $region5: #{a_call__.8} parent=1 // loop_body
      %s25 = ssub.s32 %s20, 1
      %s26 = ssub.s32 %s20, 2
      %s27 = sadd.s32 %s20, 1
      %s29 = sadd.s32 %s28, 1
      %p32 = scmp.eq.s32.totalorder %s20, 5
      %p33 = scmp.ne.s32.totalorder %s28, %s30
      %p34 = scmp.eq.s32.totalorder %s20, 0
      %p35 = por %p33, %p34
      %p36 = scmp.ne.s32.totalorder %s28, %s30
      %p37 = scmp.eq.s32.totalorder %s25, 5
      %p38 = por %p36, %p37
      %p39 = scmp.ne.s32.totalorder %s30, %s31
      %p40 = scmp.eq.s32.totalorder %s25, 0
      %p41 = por %p39, %p40
      %p42 = scmp.ne.s32.totalorder %s30, %s31
      %p43 = scmp.eq.s32.totalorder %s26, 5
      %p44 = por %p42, %p43
      %p46 = scmp.ne.s32.totalorder %s31, %s45
      %p47 = scmp.eq.s32.totalorder %s26, 0
      %p48 = por %p46, %p47
      %s49 = ssub.s32 %s20, %s27
      %p50 = scmp.eq.s32.totalorder %s49, 0
      %s52 = sadd.s32 %s51, 1
      %s53 = scalar_select %p50, %s51, %s52
      %p56 = pneg %p50
      %p57 = scmp.eq.s32.totalorder %s20, 5
      %p58 = por %p56, %p57
      %p59 = scmp.ne.s32.totalorder %s51, %s54
      %p60 = scmp.eq.s32.totalorder %s20, 0
      %p61 = por %p59, %p60
      %p62 = scmp.ne.s32.totalorder %s51, %s54
      %p63 = scmp.eq.s32.totalorder %s25, 5
      %p64 = por %p62, %p63
      %p65 = scmp.ne.s32.totalorder %s54, %s55
      %p66 = scmp.eq.s32.totalorder %s25, 0
      %p67 = por %p65, %p66
      %p68 = scmp.ne.s32.totalorder %s54, %s55
      %p69 = scmp.eq.s32.totalorder %s26, 5
      %p70 = por %p68, %p69
      %p72 = scmp.ne.s32.totalorder %s55, %s71
      %p73 = scmp.eq.s32.totalorder %s26, 0
      %p74 = por %p72, %p73
      %s75 = ssub.s32 %s20, %s27
      %p76 = scmp.eq.s32.totalorder %s75, 0
      %s78 = sadd.s32 %s77, 1
      %s79 = scalar_select %p76, %s77, %s78
      %p82 = pneg %p76
      %p83 = scmp.eq.s32.totalorder %s20, 5
      %p84 = por %p82, %p83
      %p85 = scmp.ne.s32.totalorder %s77, %s80
      %p86 = scmp.eq.s32.totalorder %s20, 0
      %p87 = por %p85, %p86
      %p88 = scmp.ne.s32.totalorder %s77, %s80
      %p89 = scmp.eq.s32.totalorder %s25, 5
      %p90 = por %p88, %p89
      %p91 = scmp.ne.s32.totalorder %s80, %s81
      %p92 = scmp.eq.s32.totalorder %s25, 0
      %p93 = por %p91, %p92
      %p94 = scmp.ne.s32.totalorder %s80, %s81
      %p95 = scmp.eq.s32.totalorder %s26, 5
      %p96 = por %p94, %p95
      %p98 = scmp.ne.s32.totalorder %s81, %s97
      %p99 = scmp.eq.s32.totalorder %s26, 0
      %p100 = por %p98, %p99
      %s102 = sadd.s32 %s101, 1
      %p105 = scmp.eq.s32.totalorder %s20, 5
      %p106 = scmp.ne.s32.totalorder %s101, %s103
      %p107 = scmp.eq.s32.totalorder %s20, 0
      %p108 = por %p106, %p107
      %p109 = scmp.ne.s32.totalorder %s101, %s103
      %p110 = scmp.eq.s32.totalorder %s25, 5
      %p111 = por %p109, %p110
      %p112 = scmp.ne.s32.totalorder %s103, %s104
      %p113 = scmp.eq.s32.totalorder %s25, 0
      %p114 = por %p112, %p113
      %p115 = scmp.ne.s32.totalorder %s103, %s104
      %p116 = scmp.eq.s32.totalorder %s26, 5
      %p117 = por %p115, %p116
      %p119 = scmp.ne.s32.totalorder %s104, %s118
      %p120 = scmp.eq.s32.totalorder %s26, 0
      %p121 = por %p119, %p120
      %s123 = sadd.s32 %s122, 1
      %p126 = scmp.eq.s32.totalorder %s20, 5
      %p127 = scmp.ne.s32.totalorder %s122, %s124
      %p128 = scmp.eq.s32.totalorder %s20, 0
      %p129 = por %p127, %p128
      %p130 = scmp.ne.s32.totalorder %s122, %s124
      %p131 = scmp.eq.s32.totalorder %s25, 5
      %p132 = por %p130, %p131
      %p133 = scmp.ne.s32.totalorder %s124, %s125
      %p134 = scmp.eq.s32.totalorder %s25, 0
      %p135 = por %p133, %p134
      %p136 = scmp.ne.s32.totalorder %s124, %s125
      %p137 = scmp.eq.s32.totalorder %s26, 5
      %p138 = por %p136, %p137
      %p140 = scmp.ne.s32.totalorder %s125, %s139
      %p141 = scmp.eq.s32.totalorder %s26, 0
      %p142 = por %p140, %p141
      %s144 = sadd.s32 %s143, 1
      %p147 = scmp.eq.s32.totalorder %s20, 5
      %p148 = scmp.ne.s32.totalorder %s143, %s145
      %p149 = scmp.eq.s32.totalorder %s20, 0
      %p150 = por %p148, %p149
      %p151 = scmp.ne.s32.totalorder %s143, %s145
      %p152 = scmp.eq.s32.totalorder %s25, 5
      %p153 = por %p151, %p152
      %p154 = scmp.ne.s32.totalorder %s145, %s146
      %p155 = scmp.eq.s32.totalorder %s25, 0
      %p156 = por %p154, %p155
      %p157 = scmp.ne.s32.totalorder %s145, %s146
      %p158 = scmp.eq.s32.totalorder %s26, 5
      %p159 = por %p157, %p158
      %p161 = scmp.ne.s32.totalorder %s146, %s160
      %p162 = scmp.eq.s32.totalorder %s26, 0
      %p163 = por %p161, %p162
      %s165 = sadd.s32 %s164, 1
      %p168 = scmp.eq.s32.totalorder %s20, 5
      %p169 = scmp.ne.s32.totalorder %s164, %s166
      %p170 = scmp.eq.s32.totalorder %s20, 0
      %p171 = por %p169, %p170
      %p172 = scmp.ne.s32.totalorder %s164, %s166
      %p173 = scmp.eq.s32.totalorder %s25, 5
      %p174 = por %p172, %p173
      %p175 = scmp.ne.s32.totalorder %s166, %s167
      %p176 = scmp.eq.s32.totalorder %s25, 0
      %p177 = por %p175, %p176
      %p178 = scmp.ne.s32.totalorder %s166, %s167
      %p179 = scmp.eq.s32.totalorder %s26, 5
      %p180 = por %p178, %p179
      %p182 = scmp.ne.s32.totalorder %s167, %s181
      %p183 = scmp.eq.s32.totalorder %s26, 0
      %p184 = por %p182, %p183
      %s185 = ssub.s32 %s20, %s27
      %p186 = scmp.eq.s32.totalorder %s185, 0
      %s188 = sadd.s32 %s187, 1
      %s189 = scalar_select %p186, %s187, %s188
      %p192 = pneg %p186
      %p193 = scmp.eq.s32.totalorder %s20, 5
      %p194 = por %p192, %p193
      %p195 = scmp.ne.s32.totalorder %s187, %s190
      %p196 = scmp.eq.s32.totalorder %s20, 0
      %p197 = por %p195, %p196
      %p198 = scmp.ne.s32.totalorder %s187, %s190
      %p199 = scmp.eq.s32.totalorder %s25, 5
      %p200 = por %p198, %p199
      %p201 = scmp.ne.s32.totalorder %s190, %s191
      %p202 = scmp.eq.s32.totalorder %s25, 0
      %p203 = por %p201, %p202
      %p204 = scmp.ne.s32.totalorder %s190, %s191
      %p205 = scmp.eq.s32.totalorder %s26, 5
      %p206 = por %p204, %p205
      %p208 = scmp.ne.s32.totalorder %s191, %s207
      %p209 = scmp.eq.s32.totalorder %s26, 0
      %p210 = por %p208, %p209
      %s211 = ssub.s32 %s20, %s27
      %p212 = scmp.eq.s32.totalorder %s211, 0
      %s214 = sadd.s32 %s213, 1
      %s215 = scalar_select %p212, %s213, %s214
      %p218 = pneg %p212
      %p219 = scmp.eq.s32.totalorder %s20, 5
      %p220 = por %p218, %p219
      %p221 = scmp.ne.s32.totalorder %s213, %s216
      %p222 = scmp.eq.s32.totalorder %s20, 0
      %p223 = por %p221, %p222
      %p224 = scmp.ne.s32.totalorder %s213, %s216
      %p225 = scmp.eq.s32.totalorder %s25, 5
      %p226 = por %p224, %p225
      %p227 = scmp.ne.s32.totalorder %s216, %s217
      %p228 = scmp.eq.s32.totalorder %s25, 0
      %p229 = por %p227, %p228
      %p230 = scmp.ne.s32.totalorder %s216, %s217
      %p231 = scmp.eq.s32.totalorder %s26, 5
      %p232 = por %p230, %p231
      %p234 = scmp.ne.s32.totalorder %s217, %s233
      %p235 = scmp.eq.s32.totalorder %s26, 0
      %p236 = por %p234, %p235
      %s237 = ssub.s32 %s20, %s27
      %p238 = scmp.eq.s32.totalorder %s237, 0
      %s240 = sadd.s32 %s239, 1
      %s241 = scalar_select %p238, %s239, %s240
      %p244 = pneg %p238
      %p245 = scmp.eq.s32.totalorder %s20, 5
      %p246 = por %p244, %p245
      %p247 = scmp.ne.s32.totalorder %s239, %s242
      %p248 = scmp.eq.s32.totalorder %s20, 0
      %p249 = por %p247, %p248
      %p250 = scmp.ne.s32.totalorder %s239, %s242
      %p251 = scmp.eq.s32.totalorder %s25, 5
      %p252 = por %p250, %p251
      %p253 = scmp.ne.s32.totalorder %s242, %s243
      %p254 = scmp.eq.s32.totalorder %s25, 0
      %p255 = por %p253, %p254
      %p256 = scmp.ne.s32.totalorder %s242, %s243
      %p257 = scmp.eq.s32.totalorder %s26, 5
      %p258 = por %p256, %p257
      %p260 = scmp.ne.s32.totalorder %s243, %s259
      %p261 = scmp.eq.s32.totalorder %s26, 0
      %p262 = por %p260, %p261
      %s263 = ssub.s32 %s20, %s27
      %p264 = scmp.eq.s32.totalorder %s263, 0
      %s266 = sadd.s32 %s265, 1
      %s267 = scalar_select %p264, %s265, %s266
      %p270 = pneg %p264
      %p271 = scmp.eq.s32.totalorder %s20, 5
      %p272 = por %p270, %p271
      %p273 = scmp.ne.s32.totalorder %s265, %s268
      %p274 = scmp.eq.s32.totalorder %s20, 0
      %p275 = por %p273, %p274
      %p276 = scmp.ne.s32.totalorder %s265, %s268
      %p277 = scmp.eq.s32.totalorder %s25, 5
      %p278 = por %p276, %p277
      %p279 = scmp.ne.s32.totalorder %s268, %s269
      %p280 = scmp.eq.s32.totalorder %s25, 0
      %p281 = por %p279, %p280
      %p282 = scmp.ne.s32.totalorder %s268, %s269
      %p283 = scmp.eq.s32.totalorder %s26, 5
      %p284 = por %p282, %p283
      %p286 = scmp.ne.s32.totalorder %s269, %s285
      %p287 = scmp.eq.s32.totalorder %s26, 0
      %p288 = por %p286, %p287
      %s289 = ssub.s32 %s20, %s27
      %p290 = scmp.eq.s32.totalorder %s289, 0
      %s292 = sadd.s32 %s291, 1
      %s293 = scalar_select %p290, %s291, %s292
      %p296 = pneg %p290
      %p297 = scmp.eq.s32.totalorder %s20, 5
      %p298 = por %p296, %p297
      %p299 = scmp.ne.s32.totalorder %s291, %s294
      %p300 = scmp.eq.s32.totalorder %s20, 0
      %p301 = por %p299, %p300
      %p302 = scmp.ne.s32.totalorder %s291, %s294
      %p303 = scmp.eq.s32.totalorder %s25, 5
      %p304 = por %p302, %p303
      %p305 = scmp.ne.s32.totalorder %s294, %s295
      %p306 = scmp.eq.s32.totalorder %s25, 0
      %p307 = por %p305, %p306
      %p308 = scmp.ne.s32.totalorder %s294, %s295
      %p309 = scmp.eq.s32.totalorder %s26, 5
      %p310 = por %p308, %p309
      %p312 = scmp.ne.s32.totalorder %s295, %s311
      %p313 = scmp.eq.s32.totalorder %s26, 0
      %p314 = por %p312, %p313
      %s315 = ssub.s32 %s20, %s27
      %p316 = scmp.eq.s32.totalorder %s315, 0
      %s318 = sadd.s32 %s317, 1
      %s319 = scalar_select %p316, %s317, %s318
      %p322 = pneg %p316
      %p323 = scmp.eq.s32.totalorder %s20, 5
      %p324 = por %p322, %p323
      %p325 = scmp.ne.s32.totalorder %s317, %s320
      %p326 = scmp.eq.s32.totalorder %s20, 0
      %p327 = por %p325, %p326
      %p328 = scmp.ne.s32.totalorder %s317, %s320
      %p329 = scmp.eq.s32.totalorder %s25, 5
      %p330 = por %p328, %p329
      %p331 = scmp.ne.s32.totalorder %s320, %s321
      %p332 = scmp.eq.s32.totalorder %s25, 0
      %p333 = por %p331, %p332
      %p334 = scmp.ne.s32.totalorder %s320, %s321
      %p335 = scmp.eq.s32.totalorder %s26, 5
      %p336 = por %p334, %p335
      %p338 = scmp.ne.s32.totalorder %s321, %s337
      %p339 = scmp.eq.s32.totalorder %s26, 0
      %p340 = por %p338, %p339
      %p341 = scmp.le.s32.totalorder 1, %s20
      %p342 = scmp.lt.s32.totalorder %s20, 7
      %p343 = pnand %p341, %p342
      %p344 = pneg %p343
      // Predicated region
      $region9: #{a_call__.8} parent=5 // pred_check
        _
      $region10: #{a_call__.8} parent=5 // pred_check_branch
        %346 = sbr.rel (%p343) target = $region12
      $region11: #{a_call__.8} parent=5 // pred_region
        %s347 = ssub.s32 %s20, 1
        // Predicated region
        $region13: #{a_call__.8} parent=11 // pred_check
          %p348 = pneg %p41
        $region14: #{a_call__.8} parent=11 // pred_check_branch
          %350 = sbr.rel (%p348) target = $region16
        $region15: #{a_call__.8} parent=11 // pred_region
          %s352 = ssub.s32 16, 16
          %353 = vsyncadd [#allocation3], %s352
          %s355 = sshll.u32 %s0, 4
          %s356 = int_to_ptr.vmem [resolvable:$true] %s355
          %358 = dma.vmem_to_smem %s356, 16, [#allocation2], [#allocation3]
        $region16: #{a_call__.8} parent=11 // pred_fallthru
          _
        // Predicated region
        $region17: #{a_call__.8} parent=11 // pred_check
          %p359 = pneg %p114
        $region18: #{a_call__.8} parent=11 // pred_check_branch
          %361 = sbr.rel (%p359) target = $region20
        $region19: #{a_call__.8} parent=11 // pred_region
          _
        $region20: #{a_call__.8} parent=11 // pred_fallthru
          _
        // Predicated region
        $region21: #{a_call__.8} parent=11 // pred_check
          %p362 = pneg %p135
        $region22: #{a_call__.8} parent=11 // pred_check_branch
          %364 = sbr.rel (%p362) target = $region24
        $region23: #{a_call__.8} parent=11 // pred_region
          _
        $region24: #{a_call__.8} parent=11 // pred_fallthru
          _
        // Predicated region
        $region25: #{a_call__.8} parent=11 // pred_check
          %p365 = pneg %p156
        $region26: #{a_call__.8} parent=11 // pred_check_branch
          %367 = sbr.rel (%p365) target = $region28
        $region27: #{a_call__.8} parent=11 // pred_region
          _
        $region28: #{a_call__.8} parent=11 // pred_fallthru
          _
        // Predicated region
        $region29: #{a_call__.8} parent=11 // pred_check
          %p368 = pneg %p177
        $region30: #{a_call__.8} parent=11 // pred_check_branch
          %370 = sbr.rel (%p368) target = $region32
        $region31: #{a_call__.8} parent=11 // pred_region
          _
        $region32: #{a_call__.8} parent=11 // pred_fallthru
          _
      $region12: #{a_call__.8} parent=5 // pred_fallthru
        _
      %p371 = scmp.lt.s32.totalorder %s20, 6
      // Predicated region
      $region33: #{a_call__.8} parent=5 // pred_check
        %p372 = pneg %p371
      $region34: #{a_call__.8} parent=5 // pred_check_branch
        %374 = sbr.rel (%p372) target = $region36
      $region35: #{a_call__.8} parent=5 // pred_region
        // Predicated region
        $region37: #{a_call__.8} parent=35 // pred_check
          %p375 = pneg %p61
        $region38: #{a_call__.8} parent=35 // pred_check_branch
          %377 = sbr.rel (%p375) target = $region40
        $region39: #{a_call__.8} parent=35 // pred_region
          %p378 = scmp.lt.s32.totalorder %s20, 5
          %s379 = scalar_select %p378, %s20, 5
          %s380 = smul.addr %s379, 4
          %s381 = scalar_lea.vmem %s1, %s380
        $region40: #{a_call__.8} parent=35 // pred_fallthru
          _
        // Predicated region
        $region41: #{a_call__.8} parent=35 // pred_check
          %p382 = pneg %p87
        $region42: #{a_call__.8} parent=35 // pred_check_branch
          %384 = sbr.rel (%p382) target = $region44
        $region43: #{a_call__.8} parent=35 // pred_region
          %p385 = scmp.lt.s32.totalorder %s20, 5
          %s386 = scalar_select %p385, %s20, 5
          %s387 = smul.addr %s386, 4
          %s388 = scalar_lea.vmem %s2, %s387
        $region44: #{a_call__.8} parent=35 // pred_fallthru
          _
      $region36: #{a_call__.8} parent=5 // pred_fallthru
        _
      %p389 = scmp.le.s32.totalorder 1, %s20
      %p390 = scmp.lt.s32.totalorder %s20, 7
      %p391 = pnand %p389, %p390
      %p392 = pneg %p391
      // Predicated region
      $region45: #{a_call__.8} parent=5 // pred_check
        _
      $region46: #{a_call__.8} parent=5 // pred_check_branch
        %394 = sbr.rel (%p391) target = $region48
      $region47: #{a_call__.8} parent=5 // pred_region
        %s395 = ssub.s32 %s20, 1
        // Predicated region
        $region49: #{a_call__.8} parent=47 // pred_check
          %p396 = pneg %p41
        $region50: #{a_call__.8} parent=47 // pred_check_branch
          %398 = sbr.rel (%p396) target = $region52
        $region51: #{a_call__.8} parent=47 // pred_region
          %399 = dma.done [#allocation3], 16
        $region52: #{a_call__.8} parent=47 // pred_fallthru
          _
        %400 = sfence
        %p401 = pneg %p41
        %p402 = pneg %p38
        %p403 = scmp.lt.s32.totalorder %s25, 5
        %s404 = scalar_select %p403, %s25, 5
        %s405 = smul.addr %s404, 4
        %s406 = scalar_lea.vmem %s1, %s405
        %p407 = pneg %p67
        %p408 = pneg %p64
        %p409 = scmp.lt.s32.totalorder %s25, 5
        %s410 = scalar_select %p409, %s25, 5
        %s411 = smul.addr %s410, 4
        %s412 = scalar_lea.vmem %s2, %s411
        %p413 = pneg %p93
        %p414 = pneg %p90
        %p415 = pneg %p114
        %p416 = pneg %p111
        %p417 = pneg %p135
        %p418 = pneg %p132
        %p419 = pneg %p156
        %p420 = pneg %p153
        %p421 = pneg %p177
        %p422 = pneg %p174
        %p423 = pneg %p203
        %p424 = pneg %p200
        %p425 = scmp.lt.s32.totalorder %s25, 5
        %s426 = scalar_select %p425, %s25, 5
        %s427 = scalar_lea.vmem %s7, %s426
        %p428 = pneg %p229
        %p429 = pneg %p226
        %p430 = scmp.lt.s32.totalorder %s25, 5
        %s431 = scalar_select %p430, %s25, 5
        %s432 = scalar_lea.vmem %s8, %s431
        %p433 = pneg %p255
        %p434 = pneg %p252
        %p435 = scmp.lt.s32.totalorder %s25, 5
        %s436 = scalar_select %p435, %s25, 5
        %s437 = smul.addr %s436, 2
        %s438 = scalar_lea.vmem %s9, %s437
        %p439 = pneg %p281
        %p440 = pneg %p278
        %p441 = scmp.lt.s32.totalorder %s25, 5
        %s442 = scalar_select %p441, %s25, 5
        %s443 = smul.addr %s442, 2
        %s444 = scalar_lea.vmem %s10, %s443
        %p445 = pneg %p307
        %p446 = pneg %p304
        %p447 = scmp.lt.s32.totalorder %s25, 5
        %s448 = scalar_select %p447, %s25, 5
        %s449 = scalar_lea.vmem %s11, %s448
        %p450 = pneg %p333
        %p451 = pneg %p330
        %p452 = scmp.lt.s32.totalorder %s25, 5
        %s453 = scalar_select %p452, %s25, 5
        %s454 = scalar_lea.vmem %s12, %s453
        %p455 = scmp.lt.s32.totalorder %s25, 5
        %s456 = scalar_select %p455, %s25, 5
        %s457 = smul.addr %s456, 4
        %s458 = scalar_lea.vmem %s1, %s457
        %p459 = scmp.lt.s32.totalorder %s25, 5
        %s460 = scalar_select %p459, %s25, 5
        %s461 = smul.addr %s460, 4
        %s462 = scalar_lea.vmem %s2, %s461
        %p463 = scmp.lt.s32.totalorder %s25, 5
        %s464 = scalar_select %p463, %s25, 5
        %s465 = scalar_lea.vmem %s7, %s464
        %p466 = scmp.lt.s32.totalorder %s25, 5
        %s467 = scalar_select %p466, %s25, 5
        %s468 = scalar_lea.vmem %s8, %s467
        %p469 = scmp.lt.s32.totalorder %s25, 5
        %s470 = scalar_select %p469, %s25, 5
        %s471 = smul.addr %s470, 2
        %s472 = scalar_lea.vmem %s9, %s471
        %p473 = scmp.lt.s32.totalorder %s25, 5
        %s474 = scalar_select %p473, %s25, 5
        %s475 = smul.addr %s474, 2
        %s476 = scalar_lea.vmem %s10, %s475
        %p477 = scmp.lt.s32.totalorder %s25, 5
        %s478 = scalar_select %p477, %s25, 5
        %s479 = scalar_lea.vmem %s11, %s478
        %p480 = scmp.lt.s32.totalorder %s25, 5
        %s481 = scalar_select %p480, %s25, 5
        %s482 = scalar_lea.vmem %s12, %s481
        %s483 = sld [smem:[#allocation2]]
        %s484 = sld [smem:[#allocation2 + $0x1]]
        %v485 = vld [vmem:[%s458] sm:$0xf]
        %v486 = vld [vmem:[%s462] sm:$0xf]
        %v487 = vld [vmem:[%s3] sm:$0x1]
        %v488 = vld [vmem:[%s4] sm:$0xf]
        %vm489 = vcmask 31744
        %v491 = vsel %vm489, %v485, 0
        %vm493 = vcmask 1043456
        %v495 = vsel %vm493, %v488, 0
        %497 = vmatprep.subr.mxu0 0.0
        %498 = vmatpush1.msra.mxu0 %v495
        %499 = vmatprep.subr.mxu0 0.0
        %500 = vmatpush1.msra.mxu0 0.0
        %501 = vmatprep.subr.mxu0 0.0
        %502 = vmatpush1.msra.mxu0 0.0
        %503 = vmatprep.subr.mxu0 0.0
        %504 = vmatpush1.msra.mxu0 0.0
        %505 = vmatprep.subr.mxu0 0.0
        %506 = vmatpush1.msra.mxu0 0.0
        %507 = vmatprep.subr.mxu0 0.0
        %508 = vmatpush1.msra.mxu0 0.0
        %509 = vmatprep.subr.mxu0 0.0
        %510 = vmatpush1.msra.mxu0 0.0
        %511 = vmatprep.subr.mxu0 0.0
        %512 = vmatpush1.msra.mxu0 0.0
        %513 = vmatprep.subr.mxu0 0.0
        %514 = vmatpush1.msra.mxu0 0.0
        %515 = vmatprep.subr.mxu0 0.0
        %516 = vmatpush1.msra.mxu0 0.0
        %517 = vmatprep.subr.mxu0 0.0
        %518 = vmatpush1.msra.mxu0 0.0
        %519 = vmatprep.subr.mxu0 0.0
        %520 = vmatpush1.msra.mxu0 0.0
        %521 = vmatprep.subr.mxu0 0.0
        %522 = vmatpush1.msra.mxu0 0.0
        %523 = vmatprep.subr.mxu0 0.0
        %524 = vmatpush1.msra.mxu0 0.0
        %525 = vmatprep.subr.mxu0 0.0
        %526 = vmatpush1.msra.mxu0 0.0
        %527 = vmatprep.subr.mxu0 0.0
        %528 = vmatpush1.msra.mxu0 0.0
        %529 = vmatprep.subr.mxu0 0.0
        %530 = vmatpush1.msra.mxu0 0.0
        %531 = vmatprep.subr.mxu0 0.0
        %532 = vmatpush1.msra.mxu0 0.0
        %533 = vmatprep.subr.mxu0 0.0
        %534 = vmatpush1.msra.mxu0 0.0
        %535 = vmatprep.subr.mxu0 0.0
        %536 = vmatpush1.msra.mxu0 0.0
        %537 = vmatprep.subr.mxu0 0.0
        %538 = vmatpush1.msra.mxu0 0.0
        %539 = vmatprep.subr.mxu0 0.0
        %540 = vmatpush1.msra.mxu0 0.0
        %541 = vmatprep.subr.mxu0 0.0
        %542 = vmatpush1.msra.mxu0 0.0
        %543 = vmatprep.subr.mxu0 0.0
        %544 = vmatpush1.msra.mxu0 0.0
        %545 = vmatprep.subr.mxu0 0.0
        %546 = vmatpush1.msra.mxu0 0.0
        %547 = vmatprep.subr.mxu0 0.0
        %548 = vmatpush1.msra.mxu0 0.0
        %549 = vmatprep.subr.mxu0 0.0
        %550 = vmatpush1.msra.mxu0 0.0
        %551 = vmatprep.subr.mxu0 0.0
        %552 = vmatpush1.msra.mxu0 0.0
        %553 = vmatprep.subr.mxu0 0.0
        %554 = vmatpush1.msra.mxu0 0.0
        %555 = vmatprep.subr.mxu0 0.0
        %556 = vmatpush1.msra.mxu0 0.0
        %557 = vmatprep.subr.mxu0 0.0
        %558 = vmatpush1.msra.mxu0 0.0
        %559 = vmatprep.subr.mxu0 0.0
        %560 = vmatpush1.msra.mxu0 0.0
        %561 = vmatprep.mubr.f32.mxu0 0.0
        %562 = vmatmul.mubr.f32.gmra.mrb[0].mxu0 %v491
        %v563 = vpop.f32.mrb[0].mxu0
        %v564 = vadd.f32 0.0, %v563
        %v565 = vpop.f32.mrb[0].mxu0
        %566 = vdwg.mxu0
        %v568 = vsel %vm489, %v487, 0
        %v571 = vsel %vm493, %v564, 0
        %573 = vmatprep.subr.mxu0 0.0
        %574 = vmatpush1.msra.mxu0 %v571
        %575 = vmatprep.subr.mxu0 0.0
        %576 = vmatpush1.msra.mxu0 0.0
        %577 = vmatprep.subr.mxu0 0.0
        %578 = vmatpush1.msra.mxu0 0.0
        %579 = vmatprep.subr.mxu0 0.0
        %580 = vmatpush1.msra.mxu0 0.0
        %581 = vmatprep.subr.mxu0 0.0
        %582 = vmatpush1.msra.mxu0 0.0
        %583 = vmatprep.subr.mxu0 0.0
        %584 = vmatpush1.msra.mxu0 0.0
        %585 = vmatprep.subr.mxu0 0.0
        %586 = vmatpush1.msra.mxu0 0.0
        %587 = vmatprep.subr.mxu0 0.0
        %588 = vmatpush1.msra.mxu0 0.0
        %589 = vmatprep.subr.mxu0 0.0
        %590 = vmatpush1.msra.mxu0 0.0
        %591 = vmatprep.subr.mxu0 0.0
        %592 = vmatpush1.msra.mxu0 0.0
        %593 = vmatprep.subr.mxu0 0.0
        %594 = vmatpush1.msra.mxu0 0.0
        %595 = vmatprep.subr.mxu0 0.0
        %596 = vmatpush1.msra.mxu0 0.0
        %597 = vmatprep.subr.mxu0 0.0
        %598 = vmatpush1.msra.mxu0 0.0
        %599 = vmatprep.subr.mxu0 0.0
        %600 = vmatpush1.msra.mxu0 0.0
        %601 = vmatprep.subr.mxu0 0.0
        %602 = vmatpush1.msra.mxu0 0.0
        %603 = vmatprep.subr.mxu0 0.0
        %604 = vmatpush1.msra.mxu0 0.0
        %605 = vmatprep.subr.mxu0 0.0
        %606 = vmatpush1.msra.mxu0 0.0
        %607 = vmatprep.subr.mxu0 0.0
        %608 = vmatpush1.msra.mxu0 0.0
        %609 = vmatprep.subr.mxu0 0.0
        %610 = vmatpush1.msra.mxu0 0.0
        %611 = vmatprep.subr.mxu0 0.0
        %612 = vmatpush1.msra.mxu0 0.0
        %613 = vmatprep.subr.mxu0 0.0
        %614 = vmatpush1.msra.mxu0 0.0
        %615 = vmatprep.subr.mxu0 0.0
        %616 = vmatpush1.msra.mxu0 0.0
        %617 = vmatprep.subr.mxu0 0.0
        %618 = vmatpush1.msra.mxu0 0.0
        %619 = vmatprep.subr.mxu0 0.0
        %620 = vmatpush1.msra.mxu0 0.0
        %621 = vmatprep.subr.mxu0 0.0
        %622 = vmatpush1.msra.mxu0 0.0
        %623 = vmatprep.subr.mxu0 0.0
        %624 = vmatpush1.msra.mxu0 0.0
        %625 = vmatprep.subr.mxu0 0.0
        %626 = vmatpush1.msra.mxu0 0.0
        %627 = vmatprep.subr.mxu0 0.0
        %628 = vmatpush1.msra.mxu0 0.0
        %629 = vmatprep.subr.mxu0 0.0
        %630 = vmatpush1.msra.mxu0 0.0
        %631 = vmatprep.subr.mxu0 0.0
        %632 = vmatpush1.msra.mxu0 0.0
        %633 = vmatprep.subr.mxu0 0.0
        %634 = vmatpush1.msra.mxu0 0.0
        %635 = vmatprep.subr.mxu0 0.0
        %636 = vmatpush1.msra.mxu0 0.0
        %637 = vmatprep.mubr.f32.mxu0 0.0
        %638 = vmatmul.mubr.f32.gmra.mrb[0].mxu0 %v568
        %v639 = vpop.f32.mrb[0].mxu0
        %v640 = vadd.f32 0.0, %v639
        %v641 = vpop.f32.mrb[0].mxu0
        %642 = vdwg.mxu0
        %v644 = vsel %vm489, %v486, 0
        %646 = vmatprep.subr.mxu0 0.0
        %647 = vmatpush1.msra.mxu0 %v495
        %648 = vmatprep.subr.mxu0 0.0
        %649 = vmatpush1.msra.mxu0 0.0
        %650 = vmatprep.subr.mxu0 0.0
        %651 = vmatpush1.msra.mxu0 0.0
        %652 = vmatprep.subr.mxu0 0.0
        %653 = vmatpush1.msra.mxu0 0.0
        %654 = vmatprep.subr.mxu0 0.0
        %655 = vmatpush1.msra.mxu0 0.0
        %656 = vmatprep.subr.mxu0 0.0
        %657 = vmatpush1.msra.mxu0 0.0
        %658 = vmatprep.subr.mxu0 0.0
        %659 = vmatpush1.msra.mxu0 0.0
        %660 = vmatprep.subr.mxu0 0.0
        %661 = vmatpush1.msra.mxu0 0.0
        %662 = vmatprep.subr.mxu0 0.0
        %663 = vmatpush1.msra.mxu0 0.0
        %664 = vmatprep.subr.mxu0 0.0
        %665 = vmatpush1.msra.mxu0 0.0
        %666 = vmatprep.subr.mxu0 0.0
        %667 = vmatpush1.msra.mxu0 0.0
        %668 = vmatprep.subr.mxu0 0.0
        %669 = vmatpush1.msra.mxu0 0.0
        %670 = vmatprep.subr.mxu0 0.0
        %671 = vmatpush1.msra.mxu0 0.0
        %672 = vmatprep.subr.mxu0 0.0
        %673 = vmatpush1.msra.mxu0 0.0
        %674 = vmatprep.subr.mxu0 0.0
        %675 = vmatpush1.msra.mxu0 0.0
        %676 = vmatprep.subr.mxu0 0.0
        %677 = vmatpush1.msra.mxu0 0.0
        %678 = vmatprep.subr.mxu0 0.0
        %679 = vmatpush1.msra.mxu0 0.0
        %680 = vmatprep.subr.mxu0 0.0
        %681 = vmatpush1.msra.mxu0 0.0
        %682 = vmatprep.subr.mxu0 0.0
        %683 = vmatpush1.msra.mxu0 0.0
        %684 = vmatprep.subr.mxu0 0.0
        %685 = vmatpush1.msra.mxu0 0.0
        %686 = vmatprep.subr.mxu0 0.0
        %687 = vmatpush1.msra.mxu0 0.0
        %688 = vmatprep.subr.mxu0 0.0
        %689 = vmatpush1.msra.mxu0 0.0
        %690 = vmatprep.subr.mxu0 0.0
        %691 = vmatpush1.msra.mxu0 0.0
        %692 = vmatprep.subr.mxu0 0.0
        %693 = vmatpush1.msra.mxu0 0.0
        %694 = vmatprep.subr.mxu0 0.0
        %695 = vmatpush1.msra.mxu0 0.0
        %696 = vmatprep.subr.mxu0 0.0
        %697 = vmatpush1.msra.mxu0 0.0
        %698 = vmatprep.subr.mxu0 0.0
        %699 = vmatpush1.msra.mxu0 0.0
        %700 = vmatprep.subr.mxu0 0.0
        %701 = vmatpush1.msra.mxu0 0.0
        %702 = vmatprep.subr.mxu0 0.0
        %703 = vmatpush1.msra.mxu0 0.0
        %704 = vmatprep.subr.mxu0 0.0
        %705 = vmatpush1.msra.mxu0 0.0
        %706 = vmatprep.subr.mxu0 0.0
        %707 = vmatpush1.msra.mxu0 0.0
        %708 = vmatprep.subr.mxu0 0.0
        %709 = vmatpush1.msra.mxu0 0.0
        %710 = vmatprep.mubr.f32.mxu0 0.0
        %711 = vmatmul.mubr.f32.gmra.mrb[0].mxu0 %v644
        %v712 = vpop.f32.mrb[0].mxu0
        %v713 = vadd.f32 0.0, %v712
        %v714 = vpop.f32.mrb[0].mxu0
        %715 = vdwg.mxu0
        %v717 = vsel %vm493, %v713, 0
        %719 = vmatprep.subr.mxu0 0.0
        %720 = vmatpush1.msra.mxu0 %v717
        %721 = vmatprep.subr.mxu0 0.0
        %722 = vmatpush1.msra.mxu0 0.0
        %723 = vmatprep.subr.mxu0 0.0
        %724 = vmatpush1.msra.mxu0 0.0
        %725 = vmatprep.subr.mxu0 0.0
        %726 = vmatpush1.msra.mxu0 0.0
        %727 = vmatprep.subr.mxu0 0.0
        %728 = vmatpush1.msra.mxu0 0.0
        %729 = vmatprep.subr.mxu0 0.0
        %730 = vmatpush1.msra.mxu0 0.0
        %731 = vmatprep.subr.mxu0 0.0
        %732 = vmatpush1.msra.mxu0 0.0
        %733 = vmatprep.subr.mxu0 0.0
        %734 = vmatpush1.msra.mxu0 0.0
        %735 = vmatprep.subr.mxu0 0.0
        %736 = vmatpush1.msra.mxu0 0.0
        %737 = vmatprep.subr.mxu0 0.0
        %738 = vmatpush1.msra.mxu0 0.0
        %739 = vmatprep.subr.mxu0 0.0
        %740 = vmatpush1.msra.mxu0 0.0
        %741 = vmatprep.subr.mxu0 0.0
        %742 = vmatpush1.msra.mxu0 0.0
        %743 = vmatprep.subr.mxu0 0.0
        %744 = vmatpush1.msra.mxu0 0.0
        %745 = vmatprep.subr.mxu0 0.0
        %746 = vmatpush1.msra.mxu0 0.0
        %747 = vmatprep.subr.mxu0 0.0
        %748 = vmatpush1.msra.mxu0 0.0
        %749 = vmatprep.subr.mxu0 0.0
        %750 = vmatpush1.msra.mxu0 0.0
        %751 = vmatprep.subr.mxu0 0.0
        %752 = vmatpush1.msra.mxu0 0.0
        %753 = vmatprep.subr.mxu0 0.0
        %754 = vmatpush1.msra.mxu0 0.0
        %755 = vmatprep.subr.mxu0 0.0
        %756 = vmatpush1.msra.mxu0 0.0
        %757 = vmatprep.subr.mxu0 0.0
        %758 = vmatpush1.msra.mxu0 0.0
        %759 = vmatprep.subr.mxu0 0.0
        %760 = vmatpush1.msra.mxu0 0.0
        %761 = vmatprep.subr.mxu0 0.0
        %762 = vmatpush1.msra.mxu0 0.0
        %763 = vmatprep.subr.mxu0 0.0
        %764 = vmatpush1.msra.mxu0 0.0
        %765 = vmatprep.subr.mxu0 0.0
        %766 = vmatpush1.msra.mxu0 0.0
        %767 = vmatprep.subr.mxu0 0.0
        %768 = vmatpush1.msra.mxu0 0.0
        %769 = vmatprep.subr.mxu0 0.0
        %770 = vmatpush1.msra.mxu0 0.0
        %771 = vmatprep.subr.mxu0 0.0
        %772 = vmatpush1.msra.mxu0 0.0
        %773 = vmatprep.subr.mxu0 0.0
        %774 = vmatpush1.msra.mxu0 0.0
        %775 = vmatprep.subr.mxu0 0.0
        %776 = vmatpush1.msra.mxu0 0.0
        %777 = vmatprep.subr.mxu0 0.0
        %778 = vmatpush1.msra.mxu0 0.0
        %779 = vmatprep.subr.mxu0 0.0
        %780 = vmatpush1.msra.mxu0 0.0
        %781 = vmatprep.subr.mxu0 0.0
        %782 = vmatpush1.msra.mxu0 0.0
        %783 = vmatprep.mubr.f32.mxu0 0.0
        %784 = vmatmul.mubr.f32.gmra.mrb[0].mxu0 %v568
        %v785 = vpop.f32.mrb[0].mxu0
        %v786 = vadd.f32 0.0, %v785
        %v787 = vpop.f32.mrb[0].mxu0
        %788 = vdwg.mxu0
        %v789 = vmul.f32 %v485, %v485
        %v791 = vsel %vm489, %v789, 0
        %793 = vmatprep.subr.mxu0 0.0
        %794 = vmatpush1.msra.mxu0 %v495
        %795 = vmatprep.subr.mxu0 0.0
        %796 = vmatpush1.msra.mxu0 0.0
        %797 = vmatprep.subr.mxu0 0.0
        %798 = vmatpush1.msra.mxu0 0.0
        %799 = vmatprep.subr.mxu0 0.0
        %800 = vmatpush1.msra.mxu0 0.0
        %801 = vmatprep.subr.mxu0 0.0
        %802 = vmatpush1.msra.mxu0 0.0
        %803 = vmatprep.subr.mxu0 0.0
        %804 = vmatpush1.msra.mxu0 0.0
        %805 = vmatprep.subr.mxu0 0.0
        %806 = vmatpush1.msra.mxu0 0.0
        %807 = vmatprep.subr.mxu0 0.0
        %808 = vmatpush1.msra.mxu0 0.0
        %809 = vmatprep.subr.mxu0 0.0
        %810 = vmatpush1.msra.mxu0 0.0
        %811 = vmatprep.subr.mxu0 0.0
        %812 = vmatpush1.msra.mxu0 0.0
        %813 = vmatprep.subr.mxu0 0.0
        %814 = vmatpush1.msra.mxu0 0.0
        %815 = vmatprep.subr.mxu0 0.0
        %816 = vmatpush1.msra.mxu0 0.0
        %817 = vmatprep.subr.mxu0 0.0
        %818 = vmatpush1.msra.mxu0 0.0
        %819 = vmatprep.subr.mxu0 0.0
        %820 = vmatpush1.msra.mxu0 0.0
        %821 = vmatprep.subr.mxu0 0.0
        %822 = vmatpush1.msra.mxu0 0.0
        %823 = vmatprep.subr.mxu0 0.0
        %824 = vmatpush1.msra.mxu0 0.0
        %825 = vmatprep.subr.mxu0 0.0
        %826 = vmatpush1.msra.mxu0 0.0
        %827 = vmatprep.subr.mxu0 0.0
        %828 = vmatpush1.msra.mxu0 0.0
        %829 = vmatprep.subr.mxu0 0.0
        %830 = vmatpush1.msra.mxu0 0.0
        %831 = vmatprep.subr.mxu0 0.0
        %832 = vmatpush1.msra.mxu0 0.0
        %833 = vmatprep.subr.mxu0 0.0
        %834 = vmatpush1.msra.mxu0 0.0
        %835 = vmatprep.subr.mxu0 0.0
        %836 = vmatpush1.msra.mxu0 0.0
        %837 = vmatprep.subr.mxu0 0.0
        %838 = vmatpush1.msra.mxu0 0.0
        %839 = vmatprep.subr.mxu0 0.0
        %840 = vmatpush1.msra.mxu0 0.0
        %841 = vmatprep.subr.mxu0 0.0
        %842 = vmatpush1.msra.mxu0 0.0
        %843 = vmatprep.subr.mxu0 0.0
        %844 = vmatpush1.msra.mxu0 0.0
        %845 = vmatprep.subr.mxu0 0.0
        %846 = vmatpush1.msra.mxu0 0.0
        %847 = vmatprep.subr.mxu0 0.0
        %848 = vmatpush1.msra.mxu0 0.0
        %849 = vmatprep.subr.mxu0 0.0
        %850 = vmatpush1.msra.mxu0 0.0
        %851 = vmatprep.subr.mxu0 0.0
        %852 = vmatpush1.msra.mxu0 0.0
        %853 = vmatprep.subr.mxu0 0.0
        %854 = vmatpush1.msra.mxu0 0.0
        %855 = vmatprep.subr.mxu0 0.0
        %856 = vmatpush1.msra.mxu0 0.0
        %857 = vmatprep.mubr.f32.mxu0 0.0
        %858 = vmatmul.mubr.f32.gmra.mrb[0].mxu0 %v791
        %v859 = vpop.f32.mrb[0].mxu0
        %v860 = vadd.f32 0.0, %v859
        %v861 = vpop.f32.mrb[0].mxu0
        %862 = vdwg.mxu0
        %v864 = vsel %vm493, %v860, 0
        %866 = vmatprep.subr.mxu0 0.0
        %867 = vmatpush1.msra.mxu0 %v864
        %868 = vmatprep.subr.mxu0 0.0
        %869 = vmatpush1.msra.mxu0 0.0
        %870 = vmatprep.subr.mxu0 0.0
        %871 = vmatpush1.msra.mxu0 0.0
        %872 = vmatprep.subr.mxu0 0.0
        %873 = vmatpush1.msra.mxu0 0.0
        %874 = vmatprep.subr.mxu0 0.0
        %875 = vmatpush1.msra.mxu0 0.0
        %876 = vmatprep.subr.mxu0 0.0
        %877 = vmatpush1.msra.mxu0 0.0
        %878 = vmatprep.subr.mxu0 0.0
        %879 = vmatpush1.msra.mxu0 0.0
        %880 = vmatprep.subr.mxu0 0.0
        %881 = vmatpush1.msra.mxu0 0.0
        %882 = vmatprep.subr.mxu0 0.0
        %883 = vmatpush1.msra.mxu0 0.0
        %884 = vmatprep.subr.mxu0 0.0
        %885 = vmatpush1.msra.mxu0 0.0
        %886 = vmatprep.subr.mxu0 0.0
        %887 = vmatpush1.msra.mxu0 0.0
        %888 = vmatprep.subr.mxu0 0.0
        %889 = vmatpush1.msra.mxu0 0.0
        %890 = vmatprep.subr.mxu0 0.0
        %891 = vmatpush1.msra.mxu0 0.0
        %892 = vmatprep.subr.mxu0 0.0
        %893 = vmatpush1.msra.mxu0 0.0
        %894 = vmatprep.subr.mxu0 0.0
        %895 = vmatpush1.msra.mxu0 0.0
        %896 = vmatprep.subr.mxu0 0.0
        %897 = vmatpush1.msra.mxu0 0.0
        %898 = vmatprep.subr.mxu0 0.0
        %899 = vmatpush1.msra.mxu0 0.0
        %900 = vmatprep.subr.mxu0 0.0
        %901 = vmatpush1.msra.mxu0 0.0
        %902 = vmatprep.subr.mxu0 0.0
        %903 = vmatpush1.msra.mxu0 0.0
        %904 = vmatprep.subr.mxu0 0.0
        %905 = vmatpush1.msra.mxu0 0.0
        %906 = vmatprep.subr.mxu0 0.0
        %907 = vmatpush1.msra.mxu0 0.0
        %908 = vmatprep.subr.mxu0 0.0
        %909 = vmatpush1.msra.mxu0 0.0
        %910 = vmatprep.subr.mxu0 0.0
        %911 = vmatpush1.msra.mxu0 0.0
        %912 = vmatprep.subr.mxu0 0.0
        %913 = vmatpush1.msra.mxu0 0.0
        %914 = vmatprep.subr.mxu0 0.0
        %915 = vmatpush1.msra.mxu0 0.0
        %916 = vmatprep.subr.mxu0 0.0
        %917 = vmatpush1.msra.mxu0 0.0
        %918 = vmatprep.subr.mxu0 0.0
        %919 = vmatpush1.msra.mxu0 0.0
        %920 = vmatprep.subr.mxu0 0.0
        %921 = vmatpush1.msra.mxu0 0.0
        %922 = vmatprep.subr.mxu0 0.0
        %923 = vmatpush1.msra.mxu0 0.0
        %924 = vmatprep.subr.mxu0 0.0
        %925 = vmatpush1.msra.mxu0 0.0
        %926 = vmatprep.subr.mxu0 0.0
        %927 = vmatpush1.msra.mxu0 0.0
        %928 = vmatprep.subr.mxu0 0.0
        %929 = vmatpush1.msra.mxu0 0.0
        %930 = vmatprep.mubr.f32.mxu0 0.0
        %931 = vmatmul.mubr.f32.gmra.mrb[0].mxu0 %v568
        %v932 = vpop.f32.mrb[0].mxu0
        %v933 = vadd.f32 0.0, %v932
        %v934 = vpop.f32.mrb[0].mxu0
        %935 = vdwg.mxu0
        %v936 = vmul.f32 %v486, %v486
        %v938 = vsel %vm489, %v936, 0
        %940 = vmatprep.subr.mxu0 0.0
        %941 = vmatpush1.msra.mxu0 %v495
        %942 = vmatprep.subr.mxu0 0.0
        %943 = vmatpush1.msra.mxu0 0.0
        %944 = vmatprep.subr.mxu0 0.0
        %945 = vmatpush1.msra.mxu0 0.0
        %946 = vmatprep.subr.mxu0 0.0
        %947 = vmatpush1.msra.mxu0 0.0
        %948 = vmatprep.subr.mxu0 0.0
        %949 = vmatpush1.msra.mxu0 0.0
        %950 = vmatprep.subr.mxu0 0.0
        %951 = vmatpush1.msra.mxu0 0.0
        %952 = vmatprep.subr.mxu0 0.0
        %953 = vmatpush1.msra.mxu0 0.0
        %954 = vmatprep.subr.mxu0 0.0
        %955 = vmatpush1.msra.mxu0 0.0
        %956 = vmatprep.subr.mxu0 0.0
        %957 = vmatpush1.msra.mxu0 0.0
        %958 = vmatprep.subr.mxu0 0.0
        %959 = vmatpush1.msra.mxu0 0.0
        %960 = vmatprep.subr.mxu0 0.0
        %961 = vmatpush1.msra.mxu0 0.0
        %962 = vmatprep.subr.mxu0 0.0
        %963 = vmatpush1.msra.mxu0 0.0
        %964 = vmatprep.subr.mxu0 0.0
        %965 = vmatpush1.msra.mxu0 0.0
        %966 = vmatprep.subr.mxu0 0.0
        %967 = vmatpush1.msra.mxu0 0.0
        %968 = vmatprep.subr.mxu0 0.0
        %969 = vmatpush1.msra.mxu0 0.0
        %970 = vmatprep.subr.mxu0 0.0
        %971 = vmatpush1.msra.mxu0 0.0
        %972 = vmatprep.subr.mxu0 0.0
        %973 = vmatpush1.msra.mxu0 0.0
        %974 = vmatprep.subr.mxu0 0.0
        %975 = vmatpush1.msra.mxu0 0.0
        %976 = vmatprep.subr.mxu0 0.0
        %977 = vmatpush1.msra.mxu0 0.0
        %978 = vmatprep.subr.mxu0 0.0
        %979 = vmatpush1.msra.mxu0 0.0
        %980 = vmatprep.subr.mxu0 0.0
        %981 = vmatpush1.msra.mxu0 0.0
        %982 = vmatprep.subr.mxu0 0.0
        %983 = vmatpush1.msra.mxu0 0.0
        %984 = vmatprep.subr.mxu0 0.0
        %985 = vmatpush1.msra.mxu0 0.0
        %986 = vmatprep.subr.mxu0 0.0
        %987 = vmatpush1.msra.mxu0 0.0
        %988 = vmatprep.subr.mxu0 0.0
        %989 = vmatpush1.msra.mxu0 0.0
        %990 = vmatprep.subr.mxu0 0.0
        %991 = vmatpush1.msra.mxu0 0.0
        %992 = vmatprep.subr.mxu0 0.0
        %993 = vmatpush1.msra.mxu0 0.0
        %994 = vmatprep.subr.mxu0 0.0
        %995 = vmatpush1.msra.mxu0 0.0
        %996 = vmatprep.subr.mxu0 0.0
        %997 = vmatpush1.msra.mxu0 0.0
        %998 = vmatprep.subr.mxu0 0.0
        %999 = vmatpush1.msra.mxu0 0.0
        %1000 = vmatprep.subr.mxu0 0.0
        %1001 = vmatpush1.msra.mxu0 0.0
        %1002 = vmatprep.subr.mxu0 0.0
        %1003 = vmatpush1.msra.mxu0 0.0
        %1004 = vmatprep.mubr.f32.mxu0 0.0
        %1005 = vmatmul.mubr.f32.gmra.mrb[0].mxu0 %v938
        %v1006 = vpop.f32.mrb[0].mxu0
        %v1007 = vadd.f32 0.0, %v1006
        %v1008 = vpop.f32.mrb[0].mxu0
        %1009 = vdwg.mxu0
        %v1011 = vsel %vm493, %v1007, 0
        %1013 = vmatprep.subr.mxu0 0.0
        %1014 = vmatpush1.msra.mxu0 %v1011
        %1015 = vmatprep.subr.mxu0 0.0
        %1016 = vmatpush1.msra.mxu0 0.0
        %1017 = vmatprep.subr.mxu0 0.0
        %1018 = vmatpush1.msra.mxu0 0.0
        %1019 = vmatprep.subr.mxu0 0.0
        %1020 = vmatpush1.msra.mxu0 0.0
        %1021 = vmatprep.subr.mxu0 0.0
        %1022 = vmatpush1.msra.mxu0 0.0
        %1023 = vmatprep.subr.mxu0 0.0
        %1024 = vmatpush1.msra.mxu0 0.0
        %1025 = vmatprep.subr.mxu0 0.0
        %1026 = vmatpush1.msra.mxu0 0.0
        %1027 = vmatprep.subr.mxu0 0.0
        %1028 = vmatpush1.msra.mxu0 0.0
        %1029 = vmatprep.subr.mxu0 0.0
        %1030 = vmatpush1.msra.mxu0 0.0
        %1031 = vmatprep.subr.mxu0 0.0
        %1032 = vmatpush1.msra.mxu0 0.0
        %1033 = vmatprep.subr.mxu0 0.0
        %1034 = vmatpush1.msra.mxu0 0.0
        %1035 = vmatprep.subr.mxu0 0.0
        %1036 = vmatpush1.msra.mxu0 0.0
        %1037 = vmatprep.subr.mxu0 0.0
        %1038 = vmatpush1.msra.mxu0 0.0
        %1039 = vmatprep.subr.mxu0 0.0
        %1040 = vmatpush1.msra.mxu0 0.0
        %1041 = vmatprep.subr.mxu0 0.0
        %1042 = vmatpush1.msra.mxu0 0.0
        %1043 = vmatprep.subr.mxu0 0.0
        %1044 = vmatpush1.msra.mxu0 0.0
        %1045 = vmatprep.subr.mxu0 0.0
        %1046 = vmatpush1.msra.mxu0 0.0
        %1047 = vmatprep.subr.mxu0 0.0
        %1048 = vmatpush1.msra.mxu0 0.0
        %1049 = vmatprep.subr.mxu0 0.0
        %1050 = vmatpush1.msra.mxu0 0.0
        %1051 = vmatprep.subr.mxu0 0.0
        %1052 = vmatpush1.msra.mxu0 0.0
        %1053 = vmatprep.subr.mxu0 0.0
        %1054 = vmatpush1.msra.mxu0 0.0
        %1055 = vmatprep.subr.mxu0 0.0
        %1056 = vmatpush1.msra.mxu0 0.0
        %1057 = vmatprep.subr.mxu0 0.0
        %1058 = vmatpush1.msra.mxu0 0.0
        %1059 = vmatprep.subr.mxu0 0.0
        %1060 = vmatpush1.msra.mxu0 0.0
        %1061 = vmatprep.subr.mxu0 0.0
        %1062 = vmatpush1.msra.mxu0 0.0
        %1063 = vmatprep.subr.mxu0 0.0
        %1064 = vmatpush1.msra.mxu0 0.0
        %1065 = vmatprep.subr.mxu0 0.0
        %1066 = vmatpush1.msra.mxu0 0.0
        %1067 = vmatprep.subr.mxu0 0.0
        %1068 = vmatpush1.msra.mxu0 0.0
        %1069 = vmatprep.subr.mxu0 0.0
        %1070 = vmatpush1.msra.mxu0 0.0
        %1071 = vmatprep.subr.mxu0 0.0
        %1072 = vmatpush1.msra.mxu0 0.0
        %1073 = vmatprep.subr.mxu0 0.0
        %1074 = vmatpush1.msra.mxu0 0.0
        %1075 = vmatprep.subr.mxu0 0.0
        %1076 = vmatpush1.msra.mxu0 0.0
        %1077 = vmatprep.mubr.f32.mxu0 0.0
        %1078 = vmatmul.mubr.f32.gmra.mrb[0].mxu0 %v568
        %v1079 = vpop.f32.mrb[0].mxu0
        %v1080 = vadd.f32 0.0, %v1079
        %v1081 = vpop.f32.mrb[0].mxu0
        %1082 = vdwg.mxu0
        %v1083 = vmul.f32 %v485, %v486
        %v1085 = vsel %vm489, %v1083, 0
        %1087 = vmatprep.subr.mxu0 0.0
        %1088 = vmatpush1.msra.mxu0 %v495
        %1089 = vmatprep.subr.mxu0 0.0
        %1090 = vmatpush1.msra.mxu0 0.0
        %1091 = vmatprep.subr.mxu0 0.0
        %1092 = vmatpush1.msra.mxu0 0.0
        %1093 = vmatprep.subr.mxu0 0.0
        %1094 = vmatpush1.msra.mxu0 0.0
        %1095 = vmatprep.subr.mxu0 0.0
        %1096 = vmatpush1.msra.mxu0 0.0
        %1097 = vmatprep.subr.mxu0 0.0
        %1098 = vmatpush1.msra.mxu0 0.0
        %1099 = vmatprep.subr.mxu0 0.0
        %1100 = vmatpush1.msra.mxu0 0.0
        %1101 = vmatprep.subr.mxu0 0.0
        %1102 = vmatpush1.msra.mxu0 0.0
        %1103 = vmatprep.subr.mxu0 0.0
        %1104 = vmatpush1.msra.mxu0 0.0
        %1105 = vmatprep.subr.mxu0 0.0
        %1106 = vmatpush1.msra.mxu0 0.0
        %1107 = vmatprep.subr.mxu0 0.0
        %1108 = vmatpush1.msra.mxu0 0.0
        %1109 = vmatprep.subr.mxu0 0.0
        %1110 = vmatpush1.msra.mxu0 0.0
        %1111 = vmatprep.subr.mxu0 0.0
        %1112 = vmatpush1.msra.mxu0 0.0
        %1113 = vmatprep.subr.mxu0 0.0
        %1114 = vmatpush1.msra.mxu0 0.0
        %1115 = vmatprep.subr.mxu0 0.0
        %1116 = vmatpush1.msra.mxu0 0.0
        %1117 = vmatprep.subr.mxu0 0.0
        %1118 = vmatpush1.msra.mxu0 0.0
        %1119 = vmatprep.subr.mxu0 0.0
        %1120 = vmatpush1.msra.mxu0 0.0
        %1121 = vmatprep.subr.mxu0 0.0
        %1122 = vmatpush1.msra.mxu0 0.0
        %1123 = vmatprep.subr.mxu0 0.0
        %1124 = vmatpush1.msra.mxu0 0.0
        %1125 = vmatprep.subr.mxu0 0.0
        %1126 = vmatpush1.msra.mxu0 0.0
        %1127 = vmatprep.subr.mxu0 0.0
        %1128 = vmatpush1.msra.mxu0 0.0
        %1129 = vmatprep.subr.mxu0 0.0
        %1130 = vmatpush1.msra.mxu0 0.0
        %1131 = vmatprep.subr.mxu0 0.0
        %1132 = vmatpush1.msra.mxu0 0.0
        %1133 = vmatprep.subr.mxu0 0.0
        %1134 = vmatpush1.msra.mxu0 0.0
        %1135 = vmatprep.subr.mxu0 0.0
        %1136 = vmatpush1.msra.mxu0 0.0
        %1137 = vmatprep.subr.mxu0 0.0
        %1138 = vmatpush1.msra.mxu0 0.0
        %1139 = vmatprep.subr.mxu0 0.0
        %1140 = vmatpush1.msra.mxu0 0.0
        %1141 = vmatprep.subr.mxu0 0.0
        %1142 = vmatpush1.msra.mxu0 0.0
        %1143 = vmatprep.subr.mxu0 0.0
        %1144 = vmatpush1.msra.mxu0 0.0
        %1145 = vmatprep.subr.mxu0 0.0
        %1146 = vmatpush1.msra.mxu0 0.0
        %1147 = vmatprep.subr.mxu0 0.0
        %1148 = vmatpush1.msra.mxu0 0.0
        %1149 = vmatprep.subr.mxu0 0.0
        %1150 = vmatpush1.msra.mxu0 0.0
        %1151 = vmatprep.mubr.f32.mxu0 0.0
        %1152 = vmatmul.mubr.f32.gmra.mrb[0].mxu0 %v1085
        %v1153 = vpop.f32.mrb[0].mxu0
        %v1154 = vadd.f32 0.0, %v1153
        %v1155 = vpop.f32.mrb[0].mxu0
        %1156 = vdwg.mxu0
        %v1158 = vsel %vm493, %v1154, 0
        %1160 = vmatprep.subr.mxu0 0.0
        %1161 = vmatpush1.msra.mxu0 %v1158
        %1162 = vmatprep.subr.mxu0 0.0
        %1163 = vmatpush1.msra.mxu0 0.0
        %1164 = vmatprep.subr.mxu0 0.0
        %1165 = vmatpush1.msra.mxu0 0.0
        %1166 = vmatprep.subr.mxu0 0.0
        %1167 = vmatpush1.msra.mxu0 0.0
        %1168 = vmatprep.subr.mxu0 0.0
        %1169 = vmatpush1.msra.mxu0 0.0
        %1170 = vmatprep.subr.mxu0 0.0
        %1171 = vmatpush1.msra.mxu0 0.0
        %1172 = vmatprep.subr.mxu0 0.0
        %1173 = vmatpush1.msra.mxu0 0.0
        %1174 = vmatprep.subr.mxu0 0.0
        %1175 = vmatpush1.msra.mxu0 0.0
        %1176 = vmatprep.subr.mxu0 0.0
        %1177 = vmatpush1.msra.mxu0 0.0
        %1178 = vmatprep.subr.mxu0 0.0
        %1179 = vmatpush1.msra.mxu0 0.0
        %1180 = vmatprep.subr.mxu0 0.0
        %1181 = vmatpush1.msra.mxu0 0.0
        %1182 = vmatprep.subr.mxu0 0.0
        %1183 = vmatpush1.msra.mxu0 0.0
        %1184 = vmatprep.subr.mxu0 0.0
        %1185 = vmatpush1.msra.mxu0 0.0
        %1186 = vmatprep.subr.mxu0 0.0
        %1187 = vmatpush1.msra.mxu0 0.0
        %1188 = vmatprep.subr.mxu0 0.0
        %1189 = vmatpush1.msra.mxu0 0.0
        %1190 = vmatprep.subr.mxu0 0.0
        %1191 = vmatpush1.msra.mxu0 0.0
        %1192 = vmatprep.subr.mxu0 0.0
        %1193 = vmatpush1.msra.mxu0 0.0
        %1194 = vmatprep.subr.mxu0 0.0
        %1195 = vmatpush1.msra.mxu0 0.0
        %1196 = vmatprep.subr.mxu0 0.0
        %1197 = vmatpush1.msra.mxu0 0.0
        %1198 = vmatprep.subr.mxu0 0.0
        %1199 = vmatpush1.msra.mxu0 0.0
        %1200 = vmatprep.subr.mxu0 0.0
        %1201 = vmatpush1.msra.mxu0 0.0
        %1202 = vmatprep.subr.mxu0 0.0
        %1203 = vmatpush1.msra.mxu0 0.0
        %1204 = vmatprep.subr.mxu0 0.0
        %1205 = vmatpush1.msra.mxu0 0.0
        %1206 = vmatprep.subr.mxu0 0.0
        %1207 = vmatpush1.msra.mxu0 0.0
        %1208 = vmatprep.subr.mxu0 0.0
        %1209 = vmatpush1.msra.mxu0 0.0
        %1210 = vmatprep.subr.mxu0 0.0
        %1211 = vmatpush1.msra.mxu0 0.0
        %1212 = vmatprep.subr.mxu0 0.0
        %1213 = vmatpush1.msra.mxu0 0.0
        %1214 = vmatprep.subr.mxu0 0.0
        %1215 = vmatpush1.msra.mxu0 0.0
        %1216 = vmatprep.subr.mxu0 0.0
        %1217 = vmatpush1.msra.mxu0 0.0
        %1218 = vmatprep.subr.mxu0 0.0
        %1219 = vmatpush1.msra.mxu0 0.0
        %1220 = vmatprep.subr.mxu0 0.0
        %1221 = vmatpush1.msra.mxu0 0.0
        %1222 = vmatprep.subr.mxu0 0.0
        %1223 = vmatpush1.msra.mxu0 0.0
        %1224 = vmatprep.mubr.f32.mxu0 0.0
        %1225 = vmatmul.mubr.f32.gmra.mrb[0].mxu0 %v568
        %v1226 = vpop.f32.mrb[0].mxu0
        %v1227 = vadd.f32 0.0, %v1226
        %v1228 = vpop.f32.mrb[0].mxu0
        %1229 = vdwg.mxu0
        %v1230 = vmul.f32 %v640, %v640
        %v1231 = vmul.f32 %v786, %v786
        %v1232 = vmul.f32 %v640, %v786
        %v1233 = vsub.f32 %v933, %v1230
        %v1234 = vsub.f32 %v1080, %v1231
        %v1235 = vsub.f32 %v1227, %v1232
        %v1236 = vmul.f32 %v1235, 2.0
        %v1237 = vstv %s484
        %v1238 = vadd.f32 %v1236, %v1237
        %v1239 = vadd.f32 %v1233, %v1234
        %v1240 = vadd.f32 %v1239, %v1237
        %v1241 = vrcp.pop %v1240
        %v1242 = vmul.f32 %v1238, %v1241
        %v1243 = vadd.f32 %v1230, %v1231
        %v1244 = vstv %s483
        %v1245 = vadd.f32 %v1243, %v1244
        %v1246 = vrcp.pop %v1245
        %v1247 = vmul.f32 %v1232, 2.0
        %v1248 = vadd.f32 %v1247, %v1244
        %v1249 = vmul.f32 %v1248, %v1246
        %v1250 = vmul.f32 %v1249, %v1242
        %v1251 = vadd.f32 %v1250, 0.0
        %s1252 = vtos %v1251
        %v1253 = vstv %s1252
        %vm1254 = vcmask 0
        %1255 = vst.msk [vmem:[%s465] sm:$0x1] %vm1254, %v1253
        %v1256 = vadd.f32 %v1242, 0.0
        %s1257 = vtos %v1256
        %v1258 = vstv %s1257
        %1259 = vst.msk [vmem:[%s468] sm:$0x1] %vm1254, %v1258
        %v1260 = vld [vmem:[%s5] sm:$0x3]
        %v1261 = vld [vmem:[%s6] sm:$0xf]
        %v1263 = vsel %vm489, %v1260, 0
        %v1265 = vsel %vm493, %v485, 0
        %1267 = vmatprep.subr.mxu0 0.0
        %1268 = vmatpush1.msra.mxu0 %v1265
        %1269 = vmatprep.subr.mxu0 0.0
        %1270 = vmatpush1.msra.mxu0 0.0
        %1271 = vmatprep.subr.mxu0 0.0
        %1272 = vmatpush1.msra.mxu0 0.0
        %1273 = vmatprep.subr.mxu0 0.0
        %1274 = vmatpush1.msra.mxu0 0.0
        %1275 = vmatprep.subr.mxu0 0.0
        %1276 = vmatpush1.msra.mxu0 0.0
        %1277 = vmatprep.subr.mxu0 0.0
        %1278 = vmatpush1.msra.mxu0 0.0
        %1279 = vmatprep.subr.mxu0 0.0
        %1280 = vmatpush1.msra.mxu0 0.0
        %1281 = vmatprep.subr.mxu0 0.0
        %1282 = vmatpush1.msra.mxu0 0.0
        %1283 = vmatprep.subr.mxu0 0.0
        %1284 = vmatpush1.msra.mxu0 0.0
        %1285 = vmatprep.subr.mxu0 0.0
        %1286 = vmatpush1.msra.mxu0 0.0
        %1287 = vmatprep.subr.mxu0 0.0
        %1288 = vmatpush1.msra.mxu0 0.0
        %1289 = vmatprep.subr.mxu0 0.0
        %1290 = vmatpush1.msra.mxu0 0.0
        %1291 = vmatprep.subr.mxu0 0.0
        %1292 = vmatpush1.msra.mxu0 0.0
        %1293 = vmatprep.subr.mxu0 0.0
        %1294 = vmatpush1.msra.mxu0 0.0
        %1295 = vmatprep.subr.mxu0 0.0
        %1296 = vmatpush1.msra.mxu0 0.0
        %1297 = vmatprep.subr.mxu0 0.0
        %1298 = vmatpush1.msra.mxu0 0.0
        %1299 = vmatprep.subr.mxu0 0.0
        %1300 = vmatpush1.msra.mxu0 0.0
        %1301 = vmatprep.subr.mxu0 0.0
        %1302 = vmatpush1.msra.mxu0 0.0
        %1303 = vmatprep.subr.mxu0 0.0
        %1304 = vmatpush1.msra.mxu0 0.0
        %1305 = vmatprep.subr.mxu0 0.0
        %1306 = vmatpush1.msra.mxu0 0.0
        %1307 = vmatprep.subr.mxu0 0.0
        %1308 = vmatpush1.msra.mxu0 0.0
        %1309 = vmatprep.subr.mxu0 0.0
        %1310 = vmatpush1.msra.mxu0 0.0
        %1311 = vmatprep.subr.mxu0 0.0
        %1312 = vmatpush1.msra.mxu0 0.0
        %1313 = vmatprep.subr.mxu0 0.0
        %1314 = vmatpush1.msra.mxu0 0.0
        %1315 = vmatprep.subr.mxu0 0.0
        %1316 = vmatpush1.msra.mxu0 0.0
        %1317 = vmatprep.subr.mxu0 0.0
        %1318 = vmatpush1.msra.mxu0 0.0
        %1319 = vmatprep.subr.mxu0 0.0
        %1320 = vmatpush1.msra.mxu0 0.0
        %1321 = vmatprep.subr.mxu0 0.0
        %1322 = vmatpush1.msra.mxu0 0.0
        %1323 = vmatprep.subr.mxu0 0.0
        %1324 = vmatpush1.msra.mxu0 0.0
        %1325 = vmatprep.subr.mxu0 0.0
        %1326 = vmatpush1.msra.mxu0 0.0
        %1327 = vmatprep.subr.mxu0 0.0
        %1328 = vmatpush1.msra.mxu0 0.0
        %1329 = vmatprep.subr.mxu0 0.0
        %1330 = vmatpush1.msra.mxu0 0.0
        %1331 = vmatprep.mubr.f32.mxu0 0.0
        %1332 = vmatmul.mubr.f32.gmra.mrb[0].mxu0 %v1263
        %v1333 = vpop.f32.mrb[0].mxu0
        %v1334 = vadd.f32 0.0, %v1333
        %v1335 = vpop.f32.mrb[0].mxu0
        %1336 = vdwg.mxu0
        %v1338 = vsel %vm489, %v1334, 0
        %v1341 = vsel %vm493, %v1261, 0
        %1343 = vmatprep.subr.mxu0 0.0
        %1344 = vmatpush1.msra.mxu0 %v1341
        %1345 = vmatprep.subr.mxu0 0.0
        %1346 = vmatpush1.msra.mxu0 0.0
        %1347 = vmatprep.subr.mxu0 0.0
        %1348 = vmatpush1.msra.mxu0 0.0
        %1349 = vmatprep.subr.mxu0 0.0
        %1350 = vmatpush1.msra.mxu0 0.0
        %1351 = vmatprep.subr.mxu0 0.0
        %1352 = vmatpush1.msra.mxu0 0.0
        %1353 = vmatprep.subr.mxu0 0.0
        %1354 = vmatpush1.msra.mxu0 0.0
        %1355 = vmatprep.subr.mxu0 0.0
        %1356 = vmatpush1.msra.mxu0 0.0
        %1357 = vmatprep.subr.mxu0 0.0
        %1358 = vmatpush1.msra.mxu0 0.0
        %1359 = vmatprep.subr.mxu0 0.0
        %1360 = vmatpush1.msra.mxu0 0.0
        %1361 = vmatprep.subr.mxu0 0.0
        %1362 = vmatpush1.msra.mxu0 0.0
        %1363 = vmatprep.subr.mxu0 0.0
        %1364 = vmatpush1.msra.mxu0 0.0
        %1365 = vmatprep.subr.mxu0 0.0
        %1366 = vmatpush1.msra.mxu0 0.0
        %1367 = vmatprep.subr.mxu0 0.0
        %1368 = vmatpush1.msra.mxu0 0.0
        %1369 = vmatprep.subr.mxu0 0.0
        %1370 = vmatpush1.msra.mxu0 0.0
        %1371 = vmatprep.subr.mxu0 0.0
        %1372 = vmatpush1.msra.mxu0 0.0
        %1373 = vmatprep.subr.mxu0 0.0
        %1374 = vmatpush1.msra.mxu0 0.0
        %1375 = vmatprep.subr.mxu0 0.0
        %1376 = vmatpush1.msra.mxu0 0.0
        %1377 = vmatprep.subr.mxu0 0.0
        %1378 = vmatpush1.msra.mxu0 0.0
        %1379 = vmatprep.subr.mxu0 0.0
        %1380 = vmatpush1.msra.mxu0 0.0
        %1381 = vmatprep.subr.mxu0 0.0
        %1382 = vmatpush1.msra.mxu0 0.0
        %1383 = vmatprep.subr.mxu0 0.0
        %1384 = vmatpush1.msra.mxu0 0.0
        %1385 = vmatprep.subr.mxu0 0.0
        %1386 = vmatpush1.msra.mxu0 0.0
        %1387 = vmatprep.subr.mxu0 0.0
        %1388 = vmatpush1.msra.mxu0 0.0
        %1389 = vmatprep.subr.mxu0 0.0
        %1390 = vmatpush1.msra.mxu0 0.0
        %1391 = vmatprep.subr.mxu0 0.0
        %1392 = vmatpush1.msra.mxu0 0.0
        %1393 = vmatprep.subr.mxu0 0.0
        %1394 = vmatpush1.msra.mxu0 0.0
        %1395 = vmatprep.subr.mxu0 0.0
        %1396 = vmatpush1.msra.mxu0 0.0
        %1397 = vmatprep.subr.mxu0 0.0
        %1398 = vmatpush1.msra.mxu0 0.0
        %1399 = vmatprep.subr.mxu0 0.0
        %1400 = vmatpush1.msra.mxu0 0.0
        %1401 = vmatprep.subr.mxu0 0.0
        %1402 = vmatpush1.msra.mxu0 0.0
        %1403 = vmatprep.subr.mxu0 0.0
        %1404 = vmatpush1.msra.mxu0 0.0
        %1405 = vmatprep.subr.mxu0 0.0
        %1406 = vmatpush1.msra.mxu0 0.0
        %1407 = vmatprep.mubr.f32.mxu0 0.0
        %1408 = vmatmul.mubr.f32.gmra.mrb[0].mxu0 %v1338
        %v1409 = vpop.f32.mrb[0].mxu0
        %v1410 = vadd.f32 0.0, %v1409
        %v1411 = vpop.f32.mrb[0].mxu0
        %1412 = vdwg.mxu0
        %v1413 = vsel %vm493, %v486, 0
        %1415 = vmatprep.subr.mxu0 0.0
        %1416 = vmatpush1.msra.mxu0 %v1413
        %1417 = vmatprep.subr.mxu0 0.0
        %1418 = vmatpush1.msra.mxu0 0.0
        %1419 = vmatprep.subr.mxu0 0.0
        %1420 = vmatpush1.msra.mxu0 0.0
        %1421 = vmatprep.subr.mxu0 0.0
        %1422 = vmatpush1.msra.mxu0 0.0
        %1423 = vmatprep.subr.mxu0 0.0
        %1424 = vmatpush1.msra.mxu0 0.0
        %1425 = vmatprep.subr.mxu0 0.0
        %1426 = vmatpush1.msra.mxu0 0.0
        %1427 = vmatprep.subr.mxu0 0.0
        %1428 = vmatpush1.msra.mxu0 0.0
        %1429 = vmatprep.subr.mxu0 0.0
        %1430 = vmatpush1.msra.mxu0 0.0
        %1431 = vmatprep.subr.mxu0 0.0
        %1432 = vmatpush1.msra.mxu0 0.0
        %1433 = vmatprep.subr.mxu0 0.0
        %1434 = vmatpush1.msra.mxu0 0.0
        %1435 = vmatprep.subr.mxu0 0.0
        %1436 = vmatpush1.msra.mxu0 0.0
        %1437 = vmatprep.subr.mxu0 0.0
        %1438 = vmatpush1.msra.mxu0 0.0
        %1439 = vmatprep.subr.mxu0 0.0
        %1440 = vmatpush1.msra.mxu0 0.0
        %1441 = vmatprep.subr.mxu0 0.0
        %1442 = vmatpush1.msra.mxu0 0.0
        %1443 = vmatprep.subr.mxu0 0.0
        %1444 = vmatpush1.msra.mxu0 0.0
        %1445 = vmatprep.subr.mxu0 0.0
        %1446 = vmatpush1.msra.mxu0 0.0
        %1447 = vmatprep.subr.mxu0 0.0
        %1448 = vmatpush1.msra.mxu0 0.0
        %1449 = vmatprep.subr.mxu0 0.0
        %1450 = vmatpush1.msra.mxu0 0.0
        %1451 = vmatprep.subr.mxu0 0.0
        %1452 = vmatpush1.msra.mxu0 0.0
        %1453 = vmatprep.subr.mxu0 0.0
        %1454 = vmatpush1.msra.mxu0 0.0
        %1455 = vmatprep.subr.mxu0 0.0
        %1456 = vmatpush1.msra.mxu0 0.0
        %1457 = vmatprep.subr.mxu0 0.0
        %1458 = vmatpush1.msra.mxu0 0.0
        %1459 = vmatprep.subr.mxu0 0.0
        %1460 = vmatpush1.msra.mxu0 0.0
        %1461 = vmatprep.subr.mxu0 0.0
        %1462 = vmatpush1.msra.mxu0 0.0
        %1463 = vmatprep.subr.mxu0 0.0
        %1464 = vmatpush1.msra.mxu0 0.0
        %1465 = vmatprep.subr.mxu0 0.0
        %1466 = vmatpush1.msra.mxu0 0.0
        %1467 = vmatprep.subr.mxu0 0.0
        %1468 = vmatpush1.msra.mxu0 0.0
        %1469 = vmatprep.subr.mxu0 0.0
        %1470 = vmatpush1.msra.mxu0 0.0
        %1471 = vmatprep.subr.mxu0 0.0
        %1472 = vmatpush1.msra.mxu0 0.0
        %1473 = vmatprep.subr.mxu0 0.0
        %1474 = vmatpush1.msra.mxu0 0.0
        %1475 = vmatprep.subr.mxu0 0.0
        %1476 = vmatpush1.msra.mxu0 0.0
        %1477 = vmatprep.subr.mxu0 0.0
        %1478 = vmatpush1.msra.mxu0 0.0
        %1479 = vmatprep.mubr.f32.mxu0 0.0
        %1480 = vmatmul.mubr.f32.gmra.mrb[0].mxu0 %v1263
        %v1481 = vpop.f32.mrb[0].mxu0
        %v1482 = vadd.f32 0.0, %v1481
        %v1483 = vpop.f32.mrb[0].mxu0
        %1484 = vdwg.mxu0
        %v1486 = vsel %vm489, %v1482, 0
        %1488 = vmatprep.subr.mxu0 0.0
        %1489 = vmatpush1.msra.mxu0 %v1341
        %1490 = vmatprep.subr.mxu0 0.0
        %1491 = vmatpush1.msra.mxu0 0.0
        %1492 = vmatprep.subr.mxu0 0.0
        %1493 = vmatpush1.msra.mxu0 0.0
        %1494 = vmatprep.subr.mxu0 0.0
        %1495 = vmatpush1.msra.mxu0 0.0
        %1496 = vmatprep.subr.mxu0 0.0
        %1497 = vmatpush1.msra.mxu0 0.0
        %1498 = vmatprep.subr.mxu0 0.0
        %1499 = vmatpush1.msra.mxu0 0.0
        %1500 = vmatprep.subr.mxu0 0.0
        %1501 = vmatpush1.msra.mxu0 0.0
        %1502 = vmatprep.subr.mxu0 0.0
        %1503 = vmatpush1.msra.mxu0 0.0
        %1504 = vmatprep.subr.mxu0 0.0
        %1505 = vmatpush1.msra.mxu0 0.0
        %1506 = vmatprep.subr.mxu0 0.0
        %1507 = vmatpush1.msra.mxu0 0.0
        %1508 = vmatprep.subr.mxu0 0.0
        %1509 = vmatpush1.msra.mxu0 0.0
        %1510 = vmatprep.subr.mxu0 0.0
        %1511 = vmatpush1.msra.mxu0 0.0
        %1512 = vmatprep.subr.mxu0 0.0
        %1513 = vmatpush1.msra.mxu0 0.0
        %1514 = vmatprep.subr.mxu0 0.0
        %1515 = vmatpush1.msra.mxu0 0.0
        %1516 = vmatprep.subr.mxu0 0.0
        %1517 = vmatpush1.msra.mxu0 0.0
        %1518 = vmatprep.subr.mxu0 0.0
        %1519 = vmatpush1.msra.mxu0 0.0
        %1520 = vmatprep.subr.mxu0 0.0
        %1521 = vmatpush1.msra.mxu0 0.0
        %1522 = vmatprep.subr.mxu0 0.0
        %1523 = vmatpush1.msra.mxu0 0.0
        %1524 = vmatprep.subr.mxu0 0.0
        %1525 = vmatpush1.msra.mxu0 0.0
        %1526 = vmatprep.subr.mxu0 0.0
        %1527 = vmatpush1.msra.mxu0 0.0
        %1528 = vmatprep.subr.mxu0 0.0
        %1529 = vmatpush1.msra.mxu0 0.0
        %1530 = vmatprep.subr.mxu0 0.0
        %1531 = vmatpush1.msra.mxu0 0.0
        %1532 = vmatprep.subr.mxu0 0.0
        %1533 = vmatpush1.msra.mxu0 0.0
        %1534 = vmatprep.subr.mxu0 0.0
        %1535 = vmatpush1.msra.mxu0 0.0
        %1536 = vmatprep.subr.mxu0 0.0
        %1537 = vmatpush1.msra.mxu0 0.0
        %1538 = vmatprep.subr.mxu0 0.0
        %1539 = vmatpush1.msra.mxu0 0.0
        %1540 = vmatprep.subr.mxu0 0.0
        %1541 = vmatpush1.msra.mxu0 0.0
        %1542 = vmatprep.subr.mxu0 0.0
        %1543 = vmatpush1.msra.mxu0 0.0
        %1544 = vmatprep.subr.mxu0 0.0
        %1545 = vmatpush1.msra.mxu0 0.0
        %1546 = vmatprep.subr.mxu0 0.0
        %1547 = vmatpush1.msra.mxu0 0.0
        %1548 = vmatprep.subr.mxu0 0.0
        %1549 = vmatpush1.msra.mxu0 0.0
        %1550 = vmatprep.subr.mxu0 0.0
        %1551 = vmatpush1.msra.mxu0 0.0
        %1552 = vmatprep.mubr.f32.mxu0 0.0
        %1553 = vmatmul.mubr.f32.gmra.mrb[0].mxu0 %v1486
        %v1554 = vpop.f32.mrb[0].mxu0
        %v1555 = vadd.f32 0.0, %v1554
        %v1556 = vpop.f32.mrb[0].mxu0
        %1557 = vdwg.mxu0
        %vm1558 = vcmask 9216
        %1559 = vst.msk [vmem:[%s472] sm:$0x3] %vm1558, %v1410
        %1560 = vst.msk [vmem:[%s476] sm:$0x3] %vm1558, %v1555
        %v1561 = vsel %vm1558, %v1410, -inf
        %1562 = vmax.xlane.f32.xlu0 %v1561
        %v1563 = vpop.xlane.xlu0 %1562
        %v1564 = vrot.slane %v1563, 4
        %v1565 = vmax.f32 %v1563, %v1564
        %v1566 = vrot.slane %v1565, 2
        %v1567 = vmax.f32 %v1565, %v1566
        %v1568 = vrot.slane %v1567, 1
        %v1569 = vmax.f32 %v1567, %v1568
        %s1570 = vtos %v1569
        %v1571 = vstv %s1570
        %1572 = vst.msk [vmem:[%s479] sm:$0x1] %vm1254, %v1571
        %v1573 = vsel %vm1558, %v1410, inf
        %1574 = vmin.xlane.f32.xlu0 %v1573
        %v1575 = vpop.xlane.xlu0 %1574
        %v1576 = vrot.slane %v1575, 4
        %v1577 = vmin.f32 %v1575, %v1576
        %v1578 = vrot.slane %v1577, 2
        %v1579 = vmin.f32 %v1577, %v1578
        %v1580 = vrot.slane %v1579, 1
        %v1581 = vmin.f32 %v1579, %v1580
        %s1582 = vtos %v1581
        %v1583 = vstv %s1582
        %1584 = vst.msk [vmem:[%s482] sm:$0x1] %vm1254, %v1583
        %p1585 = scmp.lt.s32.totalorder %s25, 5
        %s1586 = scalar_select %p1585, %s25, 5
        %s1587 = scalar_lea.vmem %s7, %s1586
        %p1588 = scmp.lt.s32.totalorder %s25, 5
        %s1589 = scalar_select %p1588, %s25, 5
        %s1590 = scalar_lea.vmem %s8, %s1589
        %p1591 = scmp.lt.s32.totalorder %s25, 5
        %s1592 = scalar_select %p1591, %s25, 5
        %s1593 = smul.addr %s1592, 2
        %s1594 = scalar_lea.vmem %s9, %s1593
        %p1595 = scmp.lt.s32.totalorder %s25, 5
        %s1596 = scalar_select %p1595, %s25, 5
        %s1597 = smul.addr %s1596, 2
        %s1598 = scalar_lea.vmem %s10, %s1597
        %p1599 = scmp.lt.s32.totalorder %s25, 5
        %s1600 = scalar_select %p1599, %s25, 5
        %s1601 = scalar_lea.vmem %s11, %s1600
        %p1602 = scmp.lt.s32.totalorder %s25, 5
        %s1603 = scalar_select %p1602, %s25, 5
        %s1604 = scalar_lea.vmem %s12, %s1603
        // Predicated region
        $region53: #{a_call__.8} parent=47 // pred_check
          %p1605 = pneg %p200
        $region54: #{a_call__.8} parent=47 // pred_check_branch
          %1607 = sbr.rel (%p1605) target = $region56
        $region55: #{a_call__.8} parent=47 // pred_region
          _
        $region56: #{a_call__.8} parent=47 // pred_fallthru
          _
        // Predicated region
        $region57: #{a_call__.8} parent=47 // pred_check
          %p1608 = pneg %p226
        $region58: #{a_call__.8} parent=47 // pred_check_branch
          %1610 = sbr.rel (%p1608) target = $region60
        $region59: #{a_call__.8} parent=47 // pred_region
          _
        $region60: #{a_call__.8} parent=47 // pred_fallthru
          _
        // Predicated region
        $region61: #{a_call__.8} parent=47 // pred_check
          %p1611 = pneg %p252
        $region62: #{a_call__.8} parent=47 // pred_check_branch
          %1613 = sbr.rel (%p1611) target = $region64
        $region63: #{a_call__.8} parent=47 // pred_region
          _
        $region64: #{a_call__.8} parent=47 // pred_fallthru
          _
        // Predicated region
        $region65: #{a_call__.8} parent=47 // pred_check
          %p1614 = pneg %p278
        $region66: #{a_call__.8} parent=47 // pred_check_branch
          %1616 = sbr.rel (%p1614) target = $region68
        $region67: #{a_call__.8} parent=47 // pred_region
          _
        $region68: #{a_call__.8} parent=47 // pred_fallthru
          _
        // Predicated region
        $region69: #{a_call__.8} parent=47 // pred_check
          %p1617 = pneg %p304
        $region70: #{a_call__.8} parent=47 // pred_check_branch
          %1619 = sbr.rel (%p1617) target = $region72
        $region71: #{a_call__.8} parent=47 // pred_region
          _
        $region72: #{a_call__.8} parent=47 // pred_fallthru
          _
        // Predicated region
        $region73: #{a_call__.8} parent=47 // pred_check
          %p1620 = pneg %p330
        $region74: #{a_call__.8} parent=47 // pred_check_branch
          %1622 = sbr.rel (%p1620) target = $region76
        $region75: #{a_call__.8} parent=47 // pred_region
          _
        $region76: #{a_call__.8} parent=47 // pred_fallthru
          _
      $region48: #{a_call__.8} parent=5 // pred_fallthru
        _
      %p1623 = scmp.le.s32.totalorder 2, %s20
      // Predicated region
      $region77: #{a_call__.8} parent=5 // pred_check
        %p1624 = pneg %p1623
      $region78: #{a_call__.8} parent=5 // pred_check_branch
        %1626 = sbr.rel (%p1624) target = $region80
      $region79: #{a_call__.8} parent=5 // pred_region
        %s1627 = ssub.s32 %s20, 2
        // Predicated region
        $region81: #{a_call__.8} parent=79 // pred_check
          %p1628 = pneg %p206
        $region82: #{a_call__.8} parent=79 // pred_check_branch
          %1630 = sbr.rel (%p1628) target = $region84
        $region83: #{a_call__.8} parent=79 // pred_region
          %p1631 = scmp.lt.s32.totalorder %s26, 5
          %s1632 = scalar_select %p1631, %s26, 5
          %s1633 = scalar_lea.vmem %s7, %s1632
        $region84: #{a_call__.8} parent=79 // pred_fallthru
          _
        // Predicated region
        $region85: #{a_call__.8} parent=79 // pred_check
          %p1634 = pneg %p232
        $region86: #{a_call__.8} parent=79 // pred_check_branch
          %1636 = sbr.rel (%p1634) target = $region88
        $region87: #{a_call__.8} parent=79 // pred_region
          %p1637 = scmp.lt.s32.totalorder %s26, 5
          %s1638 = scalar_select %p1637, %s26, 5
          %s1639 = scalar_lea.vmem %s8, %s1638
        $region88: #{a_call__.8} parent=79 // pred_fallthru
          _
        // Predicated region
        $region89: #{a_call__.8} parent=79 // pred_check
          %p1640 = pneg %p258
        $region90: #{a_call__.8} parent=79 // pred_check_branch
          %1642 = sbr.rel (%p1640) target = $region92
        $region91: #{a_call__.8} parent=79 // pred_region
          %p1643 = scmp.lt.s32.totalorder %s26, 5
          %s1644 = scalar_select %p1643, %s26, 5
          %s1645 = smul.addr %s1644, 2
          %s1646 = scalar_lea.vmem %s9, %s1645
        $region92: #{a_call__.8} parent=79 // pred_fallthru
          _
        // Predicated region
        $region93: #{a_call__.8} parent=79 // pred_check
          %p1647 = pneg %p284
        $region94: #{a_call__.8} parent=79 // pred_check_branch
          %1649 = sbr.rel (%p1647) target = $region96
        $region95: #{a_call__.8} parent=79 // pred_region
          %p1650 = scmp.lt.s32.totalorder %s26, 5
          %s1651 = scalar_select %p1650, %s26, 5
          %s1652 = smul.addr %s1651, 2
          %s1653 = scalar_lea.vmem %s10, %s1652
        $region96: #{a_call__.8} parent=79 // pred_fallthru
          _
        // Predicated region
        $region97: #{a_call__.8} parent=79 // pred_check
          %p1654 = pneg %p310
        $region98: #{a_call__.8} parent=79 // pred_check_branch
          %1656 = sbr.rel (%p1654) target = $region100
        $region99: #{a_call__.8} parent=79 // pred_region
          %p1657 = scmp.lt.s32.totalorder %s26, 5
          %s1658 = scalar_select %p1657, %s26, 5
          %s1659 = scalar_lea.vmem %s11, %s1658
        $region100: #{a_call__.8} parent=79 // pred_fallthru
          _
        // Predicated region
        $region101: #{a_call__.8} parent=79 // pred_check
          %p1660 = pneg %p336
        $region102: #{a_call__.8} parent=79 // pred_check_branch
          %1662 = sbr.rel (%p1660) target = $region104
        $region103: #{a_call__.8} parent=79 // pred_region
          %p1663 = scmp.lt.s32.totalorder %s26, 5
          %s1664 = scalar_select %p1663, %s26, 5
          %s1665 = scalar_lea.vmem %s12, %s1664
        $region104: #{a_call__.8} parent=79 // pred_fallthru
          _
      $region80: #{a_call__.8} parent=5 // pred_fallthru
        _
    $region6: #{a_call__.8} parent=1 // loop_footer
      %s24 = sadd.s32 1, %s20
    $region7: #{a_call__.8} parent=1 // loop_footer_branch
      %19 = sbr.rel target = $region3
    $region8: #{a_call__.8} parent=1 // loop_exit
      _
    %1666 = vsyncpa [#allocation3], 1
    %s1667 = scalar_lea.sflag [#allocation3], 1
    %1668 = vsyncpa %s1667, 1

// kernel: a_call__.9
$region0: #{a_call__.9}
  #allocation0 [shape = 'u32[]', space=smem, size = 0x4, offset = 0x4, fixed_abs, tag = 'smem constant byte address 0x4 - core index']
  #allocation1 [shape = 'u32[144,128]{1,0:T(1,128)}', space=vmem, size = 0x12000, scoped, tag = 'internal scratch']
  %s0 = inlined_call_operand.vmem [shape: f32[2], index: 0, kind: input, shape index: {}]
  %s1 = inlined_call_operand.vmem [shape: f32[6,2,2], index: 1, kind: input, shape index: {}]
  %s2 = inlined_call_operand.vmem [shape: f32[6,2,2], index: 2, kind: input, shape index: {}]
  %s3 = inlined_call_operand.vmem [shape: f32[1,2], index: 3, kind: input, shape index: {}]
  %s4 = inlined_call_operand.vmem [shape: f32[2,1], index: 4, kind: input, shape index: {}]
  %s5 = inlined_call_operand.vmem [shape: f32[6,1,1], index: 5, kind: output, shape index: {0}]
  %s6 = inlined_call_operand.vmem [shape: f32[6,1,1], index: 6, kind: output, shape index: {1}]
  %7 = xla_tuple %s5, %s6
  %s8 = sld [smem:[#allocation0]]
  $region65: #{a_call__.9} parent=0
    _
  %s10 = ssub.s32 1, %s8
  %s11 = scalar_select 0, %s10, %s8
  $region1: #{a_call__.9} parent=0
    #allocation2 [shape = 'u8[512]{0}', space=smem, size = 0x200, scoped, tag = 'input window, operand 0, single buffered']
    #allocation3 [shape = 's32[2]{0}', space=sflag, size = 0x8, scoped, tag = 'scoped memory for a_call__.9']
    %12 = vsyncpa [#allocation3], 0
    loop: start=0, step=1, limit=8
    $region2: #{a_call__.9} parent=1 // loop_pre_header
      _
    $region3: #{a_call__.9} parent=1 // loop_header
      %s14 = sphi 0, %s18
      %p15 = scmp.ge.s32.totalorder %s14, 8
      %s22 = sphi 0, %s22
      %s24 = sphi 0, %s22
      %s25 = sphi 0, %s24
      %s39 = sphi 0, %s25
      %s45 = sphi 0, %s47
      %s48 = sphi 0, %s45
      %s49 = sphi 0, %s48
      %s65 = sphi 0, %s49
      %s71 = sphi 0, %s73
      %s74 = sphi 0, %s71
      %s75 = sphi 0, %s74
      %s91 = sphi 0, %s75
      %s95 = sphi 0, %s95
      %s97 = sphi 0, %s95
      %s98 = sphi 0, %s97
      %s112 = sphi 0, %s98
      %s116 = sphi 0, %s116
      %s118 = sphi 0, %s116
      %s119 = sphi 0, %s118
      %s133 = sphi 0, %s119
      %s139 = sphi 0, %s141
      %s142 = sphi 0, %s139
      %s143 = sphi 0, %s142
      %s159 = sphi 0, %s143
      %s165 = sphi 0, %s167
      %s168 = sphi 0, %s165
      %s169 = sphi 0, %s168
      %s185 = sphi 0, %s169
    $region4: #{a_call__.9} parent=1 // loop_header_branch
      %17 = sbr.rel (%p15) target = $region8
    $region5: #{a_call__.9} parent=1 // loop_body
      %s19 = ssub.s32 %s14, 1
      %s20 = ssub.s32 %s14, 2
      %s21 = sadd.s32 %s14, 1
      %s23 = sadd.s32 %s22, 1
      %p26 = scmp.eq.s32.totalorder %s14, 5
      %p27 = scmp.ne.s32.totalorder %s22, %s24
      %p28 = scmp.eq.s32.totalorder %s14, 0
      %p29 = por %p27, %p28
      %p30 = scmp.ne.s32.totalorder %s22, %s24
      %p31 = scmp.eq.s32.totalorder %s19, 5
      %p32 = por %p30, %p31
      %p33 = scmp.ne.s32.totalorder %s24, %s25
      %p34 = scmp.eq.s32.totalorder %s19, 0
      %p35 = por %p33, %p34
      %p36 = scmp.ne.s32.totalorder %s24, %s25
      %p37 = scmp.eq.s32.totalorder %s20, 5
      %p38 = por %p36, %p37
      %p40 = scmp.ne.s32.totalorder %s25, %s39
      %p41 = scmp.eq.s32.totalorder %s20, 0
      %p42 = por %p40, %p41
      %s43 = ssub.s32 %s14, %s21
      %p44 = scmp.eq.s32.totalorder %s43, 0
      %s46 = sadd.s32 %s45, 1
      %s47 = scalar_select %p44, %s45, %s46
      %p50 = pneg %p44
      %p51 = scmp.eq.s32.totalorder %s14, 5
      %p52 = por %p50, %p51
      %p53 = scmp.ne.s32.totalorder %s45, %s48
      %p54 = scmp.eq.s32.totalorder %s14, 0
      %p55 = por %p53, %p54
      %p56 = scmp.ne.s32.totalorder %s45, %s48
      %p57 = scmp.eq.s32.totalorder %s19, 5
      %p58 = por %p56, %p57
      %p59 = scmp.ne.s32.totalorder %s48, %s49
      %p60 = scmp.eq.s32.totalorder %s19, 0
      %p61 = por %p59, %p60
      %p62 = scmp.ne.s32.totalorder %s48, %s49
      %p63 = scmp.eq.s32.totalorder %s20, 5
      %p64 = por %p62, %p63
      %p66 = scmp.ne.s32.totalorder %s49, %s65
      %p67 = scmp.eq.s32.totalorder %s20, 0
      %p68 = por %p66, %p67
      %s69 = ssub.s32 %s14, %s21
      %p70 = scmp.eq.s32.totalorder %s69, 0
      %s72 = sadd.s32 %s71, 1
      %s73 = scalar_select %p70, %s71, %s72
      %p76 = pneg %p70
      %p77 = scmp.eq.s32.totalorder %s14, 5
      %p78 = por %p76, %p77
      %p79 = scmp.ne.s32.totalorder %s71, %s74
      %p80 = scmp.eq.s32.totalorder %s14, 0
      %p81 = por %p79, %p80
      %p82 = scmp.ne.s32.totalorder %s71, %s74
      %p83 = scmp.eq.s32.totalorder %s19, 5
      %p84 = por %p82, %p83
      %p85 = scmp.ne.s32.totalorder %s74, %s75
      %p86 = scmp.eq.s32.totalorder %s19, 0
      %p87 = por %p85, %p86
      %p88 = scmp.ne.s32.totalorder %s74, %s75
      %p89 = scmp.eq.s32.totalorder %s20, 5
      %p90 = por %p88, %p89
      %p92 = scmp.ne.s32.totalorder %s75, %s91
      %p93 = scmp.eq.s32.totalorder %s20, 0
      %p94 = por %p92, %p93
      %s96 = sadd.s32 %s95, 1
      %p99 = scmp.eq.s32.totalorder %s14, 5
      %p100 = scmp.ne.s32.totalorder %s95, %s97
      %p101 = scmp.eq.s32.totalorder %s14, 0
      %p102 = por %p100, %p101
      %p103 = scmp.ne.s32.totalorder %s95, %s97
      %p104 = scmp.eq.s32.totalorder %s19, 5
      %p105 = por %p103, %p104
      %p106 = scmp.ne.s32.totalorder %s97, %s98
      %p107 = scmp.eq.s32.totalorder %s19, 0
      %p108 = por %p106, %p107
      %p109 = scmp.ne.s32.totalorder %s97, %s98
      %p110 = scmp.eq.s32.totalorder %s20, 5
      %p111 = por %p109, %p110
      %p113 = scmp.ne.s32.totalorder %s98, %s112
      %p114 = scmp.eq.s32.totalorder %s20, 0
      %p115 = por %p113, %p114
      %s117 = sadd.s32 %s116, 1
      %p120 = scmp.eq.s32.totalorder %s14, 5
      %p121 = scmp.ne.s32.totalorder %s116, %s118
      %p122 = scmp.eq.s32.totalorder %s14, 0
      %p123 = por %p121, %p122
      %p124 = scmp.ne.s32.totalorder %s116, %s118
      %p125 = scmp.eq.s32.totalorder %s19, 5
      %p126 = por %p124, %p125
      %p127 = scmp.ne.s32.totalorder %s118, %s119
      %p128 = scmp.eq.s32.totalorder %s19, 0
      %p129 = por %p127, %p128
      %p130 = scmp.ne.s32.totalorder %s118, %s119
      %p131 = scmp.eq.s32.totalorder %s20, 5
      %p132 = por %p130, %p131
      %p134 = scmp.ne.s32.totalorder %s119, %s133
      %p135 = scmp.eq.s32.totalorder %s20, 0
      %p136 = por %p134, %p135
      %s137 = ssub.s32 %s14, %s21
      %p138 = scmp.eq.s32.totalorder %s137, 0
      %s140 = sadd.s32 %s139, 1
      %s141 = scalar_select %p138, %s139, %s140
      %p144 = pneg %p138
      %p145 = scmp.eq.s32.totalorder %s14, 5
      %p146 = por %p144, %p145
      %p147 = scmp.ne.s32.totalorder %s139, %s142
      %p148 = scmp.eq.s32.totalorder %s14, 0
      %p149 = por %p147, %p148
      %p150 = scmp.ne.s32.totalorder %s139, %s142
      %p151 = scmp.eq.s32.totalorder %s19, 5
      %p152 = por %p150, %p151
      %p153 = scmp.ne.s32.totalorder %s142, %s143
      %p154 = scmp.eq.s32.totalorder %s19, 0
      %p155 = por %p153, %p154
      %p156 = scmp.ne.s32.totalorder %s142, %s143
      %p157 = scmp.eq.s32.totalorder %s20, 5
      %p158 = por %p156, %p157
      %p160 = scmp.ne.s32.totalorder %s143, %s159
      %p161 = scmp.eq.s32.totalorder %s20, 0
      %p162 = por %p160, %p161
      %s163 = ssub.s32 %s14, %s21
      %p164 = scmp.eq.s32.totalorder %s163, 0
      %s166 = sadd.s32 %s165, 1
      %s167 = scalar_select %p164, %s165, %s166
      %p170 = pneg %p164
      %p171 = scmp.eq.s32.totalorder %s14, 5
      %p172 = por %p170, %p171
      %p173 = scmp.ne.s32.totalorder %s165, %s168
      %p174 = scmp.eq.s32.totalorder %s14, 0
      %p175 = por %p173, %p174
      %p176 = scmp.ne.s32.totalorder %s165, %s168
      %p177 = scmp.eq.s32.totalorder %s19, 5
      %p178 = por %p176, %p177
      %p179 = scmp.ne.s32.totalorder %s168, %s169
      %p180 = scmp.eq.s32.totalorder %s19, 0
      %p181 = por %p179, %p180
      %p182 = scmp.ne.s32.totalorder %s168, %s169
      %p183 = scmp.eq.s32.totalorder %s20, 5
      %p184 = por %p182, %p183
      %p186 = scmp.ne.s32.totalorder %s169, %s185
      %p187 = scmp.eq.s32.totalorder %s20, 0
      %p188 = por %p186, %p187
      %p189 = scmp.le.s32.totalorder 1, %s14
      %p190 = scmp.lt.s32.totalorder %s14, 7
      %p191 = pnand %p189, %p190
      %p192 = pneg %p191
      // Predicated region
      $region9: #{a_call__.9} parent=5 // pred_check
        _
      $region10: #{a_call__.9} parent=5 // pred_check_branch
        %194 = sbr.rel (%p191) target = $region12
      $region11: #{a_call__.9} parent=5 // pred_region
        %s195 = ssub.s32 %s14, 1
        // Predicated region
        $region13: #{a_call__.9} parent=11 // pred_check
          %p196 = pneg %p35
        $region14: #{a_call__.9} parent=11 // pred_check_branch
          %198 = sbr.rel (%p196) target = $region16
        $region15: #{a_call__.9} parent=11 // pred_region
          %s200 = ssub.s32 16, 16
          %201 = vsyncadd [#allocation3], %s200
          %s203 = sshll.u32 %s0, 4
          %s204 = int_to_ptr.vmem [resolvable:$true] %s203
          %206 = dma.vmem_to_smem %s204, 16, [#allocation2], [#allocation3]
        $region16: #{a_call__.9} parent=11 // pred_fallthru
          _
        // Predicated region
        $region17: #{a_call__.9} parent=11 // pred_check
          %p207 = pneg %p108
        $region18: #{a_call__.9} parent=11 // pred_check_branch
          %209 = sbr.rel (%p207) target = $region20
        $region19: #{a_call__.9} parent=11 // pred_region
          _
        $region20: #{a_call__.9} parent=11 // pred_fallthru
          _
        // Predicated region
        $region21: #{a_call__.9} parent=11 // pred_check
          %p210 = pneg %p129
        $region22: #{a_call__.9} parent=11 // pred_check_branch
          %212 = sbr.rel (%p210) target = $region24
        $region23: #{a_call__.9} parent=11 // pred_region
          _
        $region24: #{a_call__.9} parent=11 // pred_fallthru
          _
      $region12: #{a_call__.9} parent=5 // pred_fallthru
        _
      %p213 = scmp.lt.s32.totalorder %s14, 6
      // Predicated region
      $region25: #{a_call__.9} parent=5 // pred_check
        %p214 = pneg %p213
      $region26: #{a_call__.9} parent=5 // pred_check_branch
        %216 = sbr.rel (%p214) target = $region28
      $region27: #{a_call__.9} parent=5 // pred_region
        // Predicated region
        $region29: #{a_call__.9} parent=27 // pred_check
          %p217 = pneg %p55
        $region30: #{a_call__.9} parent=27 // pred_check_branch
          %219 = sbr.rel (%p217) target = $region32
        $region31: #{a_call__.9} parent=27 // pred_region
          %p220 = scmp.lt.s32.totalorder %s14, 5
          %s221 = scalar_select %p220, %s14, 5
          %s222 = smul.addr %s221, 2
          %s223 = scalar_lea.vmem %s1, %s222
        $region32: #{a_call__.9} parent=27 // pred_fallthru
          _
        // Predicated region
        $region33: #{a_call__.9} parent=27 // pred_check
          %p224 = pneg %p81
        $region34: #{a_call__.9} parent=27 // pred_check_branch
          %226 = sbr.rel (%p224) target = $region36
        $region35: #{a_call__.9} parent=27 // pred_region
          %p227 = scmp.lt.s32.totalorder %s14, 5
          %s228 = scalar_select %p227, %s14, 5
          %s229 = smul.addr %s228, 2
          %s230 = scalar_lea.vmem %s2, %s229
        $region36: #{a_call__.9} parent=27 // pred_fallthru
          _
      $region28: #{a_call__.9} parent=5 // pred_fallthru
        _
      %p231 = scmp.le.s32.totalorder 1, %s14
      %p232 = scmp.lt.s32.totalorder %s14, 7
      %p233 = pnand %p231, %p232
      %p234 = pneg %p233
      // Predicated region
      $region37: #{a_call__.9} parent=5 // pred_check
        _
      $region38: #{a_call__.9} parent=5 // pred_check_branch
        %236 = sbr.rel (%p233) target = $region40
      $region39: #{a_call__.9} parent=5 // pred_region
        %s237 = ssub.s32 %s14, 1
        // Predicated region
        $region41: #{a_call__.9} parent=39 // pred_check
          %p238 = pneg %p35
        $region42: #{a_call__.9} parent=39 // pred_check_branch
          %240 = sbr.rel (%p238) target = $region44
        $region43: #{a_call__.9} parent=39 // pred_region
          %241 = dma.done [#allocation3], 16
        $region44: #{a_call__.9} parent=39 // pred_fallthru
          _
        %242 = sfence
        %p243 = pneg %p35
        %p244 = pneg %p32
        %p245 = scmp.lt.s32.totalorder %s19, 5
        %s246 = scalar_select %p245, %s19, 5
        %s247 = smul.addr %s246, 2
        %s248 = scalar_lea.vmem %s1, %s247
        %p249 = pneg %p61
        %p250 = pneg %p58
        %p251 = scmp.lt.s32.totalorder %s19, 5
        %s252 = scalar_select %p251, %s19, 5
        %s253 = smul.addr %s252, 2
        %s254 = scalar_lea.vmem %s2, %s253
        %p255 = pneg %p87
        %p256 = pneg %p84
        %p257 = pneg %p108
        %p258 = pneg %p105
        %p259 = pneg %p129
        %p260 = pneg %p126
        %p261 = pneg %p155
        %p262 = pneg %p152
        %p263 = scmp.lt.s32.totalorder %s19, 5
        %s264 = scalar_select %p263, %s19, 5
        %s265 = scalar_lea.vmem %s5, %s264
        %p266 = pneg %p181
        %p267 = pneg %p178
        %p268 = scmp.lt.s32.totalorder %s19, 5
        %s269 = scalar_select %p268, %s19, 5
        %s270 = scalar_lea.vmem %s6, %s269
        %p271 = scmp.lt.s32.totalorder %s19, 5
        %s272 = scalar_select %p271, %s19, 5
        %s273 = smul.addr %s272, 2
        %s274 = scalar_lea.vmem %s1, %s273
        %p275 = scmp.lt.s32.totalorder %s19, 5
        %s276 = scalar_select %p275, %s19, 5
        %s277 = smul.addr %s276, 2
        %s278 = scalar_lea.vmem %s2, %s277
        %p279 = scmp.lt.s32.totalorder %s19, 5
        %s280 = scalar_select %p279, %s19, 5
        %s281 = scalar_lea.vmem %s5, %s280
        %p282 = scmp.lt.s32.totalorder %s19, 5
        %s283 = scalar_select %p282, %s19, 5
        %s284 = scalar_lea.vmem %s6, %s283
        %s285 = sld [smem:[#allocation2]]
        %s286 = sld [smem:[#allocation2 + $0x1]]
        %v287 = vld [vmem:[%s274] sm:$0x3]
        %v288 = vld [vmem:[%s278] sm:$0x3]
        %v289 = vld [vmem:[%s3] sm:$0x1]
        %v290 = vld [vmem:[%s4] sm:$0x3]
        %vm291 = vcmask 15360
        %v293 = vsel %vm291, %v287, 0
        %vm295 = vcmask 1041408
        %v297 = vsel %vm295, %v290, 0
        %299 = vmatprep.subr.mxu0 0.0
        %300 = vmatpush1.msra.mxu0 %v297
        %301 = vmatprep.subr.mxu0 0.0
        %302 = vmatpush1.msra.mxu0 0.0
        %303 = vmatprep.subr.mxu0 0.0
        %304 = vmatpush1.msra.mxu0 0.0
        %305 = vmatprep.subr.mxu0 0.0
        %306 = vmatpush1.msra.mxu0 0.0
        %307 = vmatprep.subr.mxu0 0.0
        %308 = vmatpush1.msra.mxu0 0.0
        %309 = vmatprep.subr.mxu0 0.0
        %310 = vmatpush1.msra.mxu0 0.0
        %311 = vmatprep.subr.mxu0 0.0
        %312 = vmatpush1.msra.mxu0 0.0
        %313 = vmatprep.subr.mxu0 0.0
        %314 = vmatpush1.msra.mxu0 0.0
        %315 = vmatprep.subr.mxu0 0.0
        %316 = vmatpush1.msra.mxu0 0.0
        %317 = vmatprep.subr.mxu0 0.0
        %318 = vmatpush1.msra.mxu0 0.0
        %319 = vmatprep.subr.mxu0 0.0
        %320 = vmatpush1.msra.mxu0 0.0
        %321 = vmatprep.subr.mxu0 0.0
        %322 = vmatpush1.msra.mxu0 0.0
        %323 = vmatprep.subr.mxu0 0.0
        %324 = vmatpush1.msra.mxu0 0.0
        %325 = vmatprep.subr.mxu0 0.0
        %326 = vmatpush1.msra.mxu0 0.0
        %327 = vmatprep.subr.mxu0 0.0
        %328 = vmatpush1.msra.mxu0 0.0
        %329 = vmatprep.subr.mxu0 0.0
        %330 = vmatpush1.msra.mxu0 0.0
        %331 = vmatprep.subr.mxu0 0.0
        %332 = vmatpush1.msra.mxu0 0.0
        %333 = vmatprep.subr.mxu0 0.0
        %334 = vmatpush1.msra.mxu0 0.0
        %335 = vmatprep.subr.mxu0 0.0
        %336 = vmatpush1.msra.mxu0 0.0
        %337 = vmatprep.subr.mxu0 0.0
        %338 = vmatpush1.msra.mxu0 0.0
        %339 = vmatprep.subr.mxu0 0.0
        %340 = vmatpush1.msra.mxu0 0.0
        %341 = vmatprep.subr.mxu0 0.0
        %342 = vmatpush1.msra.mxu0 0.0
        %343 = vmatprep.subr.mxu0 0.0
        %344 = vmatpush1.msra.mxu0 0.0
        %345 = vmatprep.subr.mxu0 0.0
        %346 = vmatpush1.msra.mxu0 0.0
        %347 = vmatprep.subr.mxu0 0.0
        %348 = vmatpush1.msra.mxu0 0.0
        %349 = vmatprep.subr.mxu0 0.0
        %350 = vmatpush1.msra.mxu0 0.0
        %351 = vmatprep.subr.mxu0 0.0
        %352 = vmatpush1.msra.mxu0 0.0
        %353 = vmatprep.subr.mxu0 0.0
        %354 = vmatpush1.msra.mxu0 0.0
        %355 = vmatprep.subr.mxu0 0.0
        %356 = vmatpush1.msra.mxu0 0.0
        %357 = vmatprep.subr.mxu0 0.0
        %358 = vmatpush1.msra.mxu0 0.0
        %359 = vmatprep.subr.mxu0 0.0
        %360 = vmatpush1.msra.mxu0 0.0
        %361 = vmatprep.subr.mxu0 0.0
        %362 = vmatpush1.msra.mxu0 0.0
        %363 = vmatprep.mubr.f32.mxu0 0.0
        %364 = vmatmul.mubr.f32.gmra.mrb[0].mxu0 %v293
        %v365 = vpop.f32.mrb[0].mxu0
        %v366 = vadd.f32 0.0, %v365
        %v367 = vpop.f32.mrb[0].mxu0
        %368 = vdwg.mxu0
        %v370 = vsel %vm291, %v289, 0
        %v373 = vsel %vm295, %v366, 0
        %375 = vmatprep.subr.mxu0 0.0
        %376 = vmatpush1.msra.mxu0 %v373
        %377 = vmatprep.subr.mxu0 0.0
        %378 = vmatpush1.msra.mxu0 0.0
        %379 = vmatprep.subr.mxu0 0.0
        %380 = vmatpush1.msra.mxu0 0.0
        %381 = vmatprep.subr.mxu0 0.0
        %382 = vmatpush1.msra.mxu0 0.0
        %383 = vmatprep.subr.mxu0 0.0
        %384 = vmatpush1.msra.mxu0 0.0
        %385 = vmatprep.subr.mxu0 0.0
        %386 = vmatpush1.msra.mxu0 0.0
        %387 = vmatprep.subr.mxu0 0.0
        %388 = vmatpush1.msra.mxu0 0.0
        %389 = vmatprep.subr.mxu0 0.0
        %390 = vmatpush1.msra.mxu0 0.0
        %391 = vmatprep.subr.mxu0 0.0
        %392 = vmatpush1.msra.mxu0 0.0
        %393 = vmatprep.subr.mxu0 0.0
        %394 = vmatpush1.msra.mxu0 0.0
        %395 = vmatprep.subr.mxu0 0.0
        %396 = vmatpush1.msra.mxu0 0.0
        %397 = vmatprep.subr.mxu0 0.0
        %398 = vmatpush1.msra.mxu0 0.0
        %399 = vmatprep.subr.mxu0 0.0
        %400 = vmatpush1.msra.mxu0 0.0
        %401 = vmatprep.subr.mxu0 0.0
        %402 = vmatpush1.msra.mxu0 0.0
        %403 = vmatprep.subr.mxu0 0.0
        %404 = vmatpush1.msra.mxu0 0.0
        %405 = vmatprep.subr.mxu0 0.0
        %406 = vmatpush1.msra.mxu0 0.0
        %407 = vmatprep.subr.mxu0 0.0
        %408 = vmatpush1.msra.mxu0 0.0
        %409 = vmatprep.subr.mxu0 0.0
        %410 = vmatpush1.msra.mxu0 0.0
        %411 = vmatprep.subr.mxu0 0.0
        %412 = vmatpush1.msra.mxu0 0.0
        %413 = vmatprep.subr.mxu0 0.0
        %414 = vmatpush1.msra.mxu0 0.0
        %415 = vmatprep.subr.mxu0 0.0
        %416 = vmatpush1.msra.mxu0 0.0
        %417 = vmatprep.subr.mxu0 0.0
        %418 = vmatpush1.msra.mxu0 0.0
        %419 = vmatprep.subr.mxu0 0.0
        %420 = vmatpush1.msra.mxu0 0.0
        %421 = vmatprep.subr.mxu0 0.0
        %422 = vmatpush1.msra.mxu0 0.0
        %423 = vmatprep.subr.mxu0 0.0
        %424 = vmatpush1.msra.mxu0 0.0
        %425 = vmatprep.subr.mxu0 0.0
        %426 = vmatpush1.msra.mxu0 0.0
        %427 = vmatprep.subr.mxu0 0.0
        %428 = vmatpush1.msra.mxu0 0.0
        %429 = vmatprep.subr.mxu0 0.0
        %430 = vmatpush1.msra.mxu0 0.0
        %431 = vmatprep.subr.mxu0 0.0
        %432 = vmatpush1.msra.mxu0 0.0
        %433 = vmatprep.subr.mxu0 0.0
        %434 = vmatpush1.msra.mxu0 0.0
        %435 = vmatprep.subr.mxu0 0.0
        %436 = vmatpush1.msra.mxu0 0.0
        %437 = vmatprep.subr.mxu0 0.0
        %438 = vmatpush1.msra.mxu0 0.0
        %439 = vmatprep.mubr.f32.mxu0 0.0
        %440 = vmatmul.mubr.f32.gmra.mrb[0].mxu0 %v370
        %v441 = vpop.f32.mrb[0].mxu0
        %v442 = vadd.f32 0.0, %v441
        %v443 = vpop.f32.mrb[0].mxu0
        %444 = vdwg.mxu0
        %v446 = vsel %vm291, %v288, 0
        %448 = vmatprep.subr.mxu0 0.0
        %449 = vmatpush1.msra.mxu0 %v297
        %450 = vmatprep.subr.mxu0 0.0
        %451 = vmatpush1.msra.mxu0 0.0
        %452 = vmatprep.subr.mxu0 0.0
        %453 = vmatpush1.msra.mxu0 0.0
        %454 = vmatprep.subr.mxu0 0.0
        %455 = vmatpush1.msra.mxu0 0.0
        %456 = vmatprep.subr.mxu0 0.0
        %457 = vmatpush1.msra.mxu0 0.0
        %458 = vmatprep.subr.mxu0 0.0
        %459 = vmatpush1.msra.mxu0 0.0
        %460 = vmatprep.subr.mxu0 0.0
        %461 = vmatpush1.msra.mxu0 0.0
        %462 = vmatprep.subr.mxu0 0.0
        %463 = vmatpush1.msra.mxu0 0.0
        %464 = vmatprep.subr.mxu0 0.0
        %465 = vmatpush1.msra.mxu0 0.0
        %466 = vmatprep.subr.mxu0 0.0
        %467 = vmatpush1.msra.mxu0 0.0
        %468 = vmatprep.subr.mxu0 0.0
        %469 = vmatpush1.msra.mxu0 0.0
        %470 = vmatprep.subr.mxu0 0.0
        %471 = vmatpush1.msra.mxu0 0.0
        %472 = vmatprep.subr.mxu0 0.0
        %473 = vmatpush1.msra.mxu0 0.0
        %474 = vmatprep.subr.mxu0 0.0
        %475 = vmatpush1.msra.mxu0 0.0
        %476 = vmatprep.subr.mxu0 0.0
        %477 = vmatpush1.msra.mxu0 0.0
        %478 = vmatprep.subr.mxu0 0.0
        %479 = vmatpush1.msra.mxu0 0.0
        %480 = vmatprep.subr.mxu0 0.0
        %481 = vmatpush1.msra.mxu0 0.0
        %482 = vmatprep.subr.mxu0 0.0
        %483 = vmatpush1.msra.mxu0 0.0
        %484 = vmatprep.subr.mxu0 0.0
        %485 = vmatpush1.msra.mxu0 0.0
        %486 = vmatprep.subr.mxu0 0.0
        %487 = vmatpush1.msra.mxu0 0.0
        %488 = vmatprep.subr.mxu0 0.0
        %489 = vmatpush1.msra.mxu0 0.0
        %490 = vmatprep.subr.mxu0 0.0
        %491 = vmatpush1.msra.mxu0 0.0
        %492 = vmatprep.subr.mxu0 0.0
        %493 = vmatpush1.msra.mxu0 0.0
        %494 = vmatprep.subr.mxu0 0.0
        %495 = vmatpush1.msra.mxu0 0.0
        %496 = vmatprep.subr.mxu0 0.0
        %497 = vmatpush1.msra.mxu0 0.0
        %498 = vmatprep.subr.mxu0 0.0
        %499 = vmatpush1.msra.mxu0 0.0
        %500 = vmatprep.subr.mxu0 0.0
        %501 = vmatpush1.msra.mxu0 0.0
        %502 = vmatprep.subr.mxu0 0.0
        %503 = vmatpush1.msra.mxu0 0.0
        %504 = vmatprep.subr.mxu0 0.0
        %505 = vmatpush1.msra.mxu0 0.0
        %506 = vmatprep.subr.mxu0 0.0
        %507 = vmatpush1.msra.mxu0 0.0
        %508 = vmatprep.subr.mxu0 0.0
        %509 = vmatpush1.msra.mxu0 0.0
        %510 = vmatprep.subr.mxu0 0.0
        %511 = vmatpush1.msra.mxu0 0.0
        %512 = vmatprep.mubr.f32.mxu0 0.0
        %513 = vmatmul.mubr.f32.gmra.mrb[0].mxu0 %v446
        %v514 = vpop.f32.mrb[0].mxu0
        %v515 = vadd.f32 0.0, %v514
        %v516 = vpop.f32.mrb[0].mxu0
        %517 = vdwg.mxu0
        %v519 = vsel %vm295, %v515, 0
        %521 = vmatprep.subr.mxu0 0.0
        %522 = vmatpush1.msra.mxu0 %v519
        %523 = vmatprep.subr.mxu0 0.0
        %524 = vmatpush1.msra.mxu0 0.0
        %525 = vmatprep.subr.mxu0 0.0
        %526 = vmatpush1.msra.mxu0 0.0
        %527 = vmatprep.subr.mxu0 0.0
        %528 = vmatpush1.msra.mxu0 0.0
        %529 = vmatprep.subr.mxu0 0.0
        %530 = vmatpush1.msra.mxu0 0.0
        %531 = vmatprep.subr.mxu0 0.0
        %532 = vmatpush1.msra.mxu0 0.0
        %533 = vmatprep.subr.mxu0 0.0
        %534 = vmatpush1.msra.mxu0 0.0
        %535 = vmatprep.subr.mxu0 0.0
        %536 = vmatpush1.msra.mxu0 0.0
        %537 = vmatprep.subr.mxu0 0.0
        %538 = vmatpush1.msra.mxu0 0.0
        %539 = vmatprep.subr.mxu0 0.0
        %540 = vmatpush1.msra.mxu0 0.0
        %541 = vmatprep.subr.mxu0 0.0
        %542 = vmatpush1.msra.mxu0 0.0
        %543 = vmatprep.subr.mxu0 0.0
        %544 = vmatpush1.msra.mxu0 0.0
        %545 = vmatprep.subr.mxu0 0.0
        %546 = vmatpush1.msra.mxu0 0.0
        %547 = vmatprep.subr.mxu0 0.0
        %548 = vmatpush1.msra.mxu0 0.0
        %549 = vmatprep.subr.mxu0 0.0
        %550 = vmatpush1.msra.mxu0 0.0
        %551 = vmatprep.subr.mxu0 0.0
        %552 = vmatpush1.msra.mxu0 0.0
        %553 = vmatprep.subr.mxu0 0.0
        %554 = vmatpush1.msra.mxu0 0.0
        %555 = vmatprep.subr.mxu0 0.0
        %556 = vmatpush1.msra.mxu0 0.0
        %557 = vmatprep.subr.mxu0 0.0
        %558 = vmatpush1.msra.mxu0 0.0
        %559 = vmatprep.subr.mxu0 0.0
        %560 = vmatpush1.msra.mxu0 0.0
        %561 = vmatprep.subr.mxu0 0.0
        %562 = vmatpush1.msra.mxu0 0.0
        %563 = vmatprep.subr.mxu0 0.0
        %564 = vmatpush1.msra.mxu0 0.0
        %565 = vmatprep.subr.mxu0 0.0
        %566 = vmatpush1.msra.mxu0 0.0
        %567 = vmatprep.subr.mxu0 0.0
        %568 = vmatpush1.msra.mxu0 0.0
        %569 = vmatprep.subr.mxu0 0.0
        %570 = vmatpush1.msra.mxu0 0.0
        %571 = vmatprep.subr.mxu0 0.0
        %572 = vmatpush1.msra.mxu0 0.0
        %573 = vmatprep.subr.mxu0 0.0
        %574 = vmatpush1.msra.mxu0 0.0
        %575 = vmatprep.subr.mxu0 0.0
        %576 = vmatpush1.msra.mxu0 0.0
        %577 = vmatprep.subr.mxu0 0.0
        %578 = vmatpush1.msra.mxu0 0.0
        %579 = vmatprep.subr.mxu0 0.0
        %580 = vmatpush1.msra.mxu0 0.0
        %581 = vmatprep.subr.mxu0 0.0
        %582 = vmatpush1.msra.mxu0 0.0
        %583 = vmatprep.subr.mxu0 0.0
        %584 = vmatpush1.msra.mxu0 0.0
        %585 = vmatprep.mubr.f32.mxu0 0.0
        %586 = vmatmul.mubr.f32.gmra.mrb[0].mxu0 %v370
        %v587 = vpop.f32.mrb[0].mxu0
        %v588 = vadd.f32 0.0, %v587
        %v589 = vpop.f32.mrb[0].mxu0
        %590 = vdwg.mxu0
        %v591 = vmul.f32 %v287, %v287
        %v593 = vsel %vm291, %v591, 0
        %595 = vmatprep.subr.mxu0 0.0
        %596 = vmatpush1.msra.mxu0 %v297
        %597 = vmatprep.subr.mxu0 0.0
        %598 = vmatpush1.msra.mxu0 0.0
        %599 = vmatprep.subr.mxu0 0.0
        %600 = vmatpush1.msra.mxu0 0.0
        %601 = vmatprep.subr.mxu0 0.0
        %602 = vmatpush1.msra.mxu0 0.0
        %603 = vmatprep.subr.mxu0 0.0
        %604 = vmatpush1.msra.mxu0 0.0
        %605 = vmatprep.subr.mxu0 0.0
        %606 = vmatpush1.msra.mxu0 0.0
        %607 = vmatprep.subr.mxu0 0.0
        %608 = vmatpush1.msra.mxu0 0.0
        %609 = vmatprep.subr.mxu0 0.0
        %610 = vmatpush1.msra.mxu0 0.0
        %611 = vmatprep.subr.mxu0 0.0
        %612 = vmatpush1.msra.mxu0 0.0
        %613 = vmatprep.subr.mxu0 0.0
        %614 = vmatpush1.msra.mxu0 0.0
        %615 = vmatprep.subr.mxu0 0.0
        %616 = vmatpush1.msra.mxu0 0.0
        %617 = vmatprep.subr.mxu0 0.0
        %618 = vmatpush1.msra.mxu0 0.0
        %619 = vmatprep.subr.mxu0 0.0
        %620 = vmatpush1.msra.mxu0 0.0
        %621 = vmatprep.subr.mxu0 0.0
        %622 = vmatpush1.msra.mxu0 0.0
        %623 = vmatprep.subr.mxu0 0.0
        %624 = vmatpush1.msra.mxu0 0.0
        %625 = vmatprep.subr.mxu0 0.0
        %626 = vmatpush1.msra.mxu0 0.0
        %627 = vmatprep.subr.mxu0 0.0
        %628 = vmatpush1.msra.mxu0 0.0
        %629 = vmatprep.subr.mxu0 0.0
        %630 = vmatpush1.msra.mxu0 0.0
        %631 = vmatprep.subr.mxu0 0.0
        %632 = vmatpush1.msra.mxu0 0.0
        %633 = vmatprep.subr.mxu0 0.0
        %634 = vmatpush1.msra.mxu0 0.0
        %635 = vmatprep.subr.mxu0 0.0
        %636 = vmatpush1.msra.mxu0 0.0
        %637 = vmatprep.subr.mxu0 0.0
        %638 = vmatpush1.msra.mxu0 0.0
        %639 = vmatprep.subr.mxu0 0.0
        %640 = vmatpush1.msra.mxu0 0.0
        %641 = vmatprep.subr.mxu0 0.0
        %642 = vmatpush1.msra.mxu0 0.0
        %643 = vmatprep.subr.mxu0 0.0
        %644 = vmatpush1.msra.mxu0 0.0
        %645 = vmatprep.subr.mxu0 0.0
        %646 = vmatpush1.msra.mxu0 0.0
        %647 = vmatprep.subr.mxu0 0.0
        %648 = vmatpush1.msra.mxu0 0.0
        %649 = vmatprep.subr.mxu0 0.0
        %650 = vmatpush1.msra.mxu0 0.0
        %651 = vmatprep.subr.mxu0 0.0
        %652 = vmatpush1.msra.mxu0 0.0
        %653 = vmatprep.subr.mxu0 0.0
        %654 = vmatpush1.msra.mxu0 0.0
        %655 = vmatprep.subr.mxu0 0.0
        %656 = vmatpush1.msra.mxu0 0.0
        %657 = vmatprep.subr.mxu0 0.0
        %658 = vmatpush1.msra.mxu0 0.0
        %659 = vmatprep.mubr.f32.mxu0 0.0
        %660 = vmatmul.mubr.f32.gmra.mrb[0].mxu0 %v593
        %v661 = vpop.f32.mrb[0].mxu0
        %v662 = vadd.f32 0.0, %v661
        %v663 = vpop.f32.mrb[0].mxu0
        %664 = vdwg.mxu0
        %v666 = vsel %vm295, %v662, 0
        %668 = vmatprep.subr.mxu0 0.0
        %669 = vmatpush1.msra.mxu0 %v666
        %670 = vmatprep.subr.mxu0 0.0
        %671 = vmatpush1.msra.mxu0 0.0
        %672 = vmatprep.subr.mxu0 0.0
        %673 = vmatpush1.msra.mxu0 0.0
        %674 = vmatprep.subr.mxu0 0.0
        %675 = vmatpush1.msra.mxu0 0.0
        %676 = vmatprep.subr.mxu0 0.0
        %677 = vmatpush1.msra.mxu0 0.0
        %678 = vmatprep.subr.mxu0 0.0
        %679 = vmatpush1.msra.mxu0 0.0
        %680 = vmatprep.subr.mxu0 0.0
        %681 = vmatpush1.msra.mxu0 0.0
        %682 = vmatprep.subr.mxu0 0.0
        %683 = vmatpush1.msra.mxu0 0.0
        %684 = vmatprep.subr.mxu0 0.0
        %685 = vmatpush1.msra.mxu0 0.0
        %686 = vmatprep.subr.mxu0 0.0
        %687 = vmatpush1.msra.mxu0 0.0
        %688 = vmatprep.subr.mxu0 0.0
        %689 = vmatpush1.msra.mxu0 0.0
        %690 = vmatprep.subr.mxu0 0.0
        %691 = vmatpush1.msra.mxu0 0.0
        %692 = vmatprep.subr.mxu0 0.0
        %693 = vmatpush1.msra.mxu0 0.0
        %694 = vmatprep.subr.mxu0 0.0
        %695 = vmatpush1.msra.mxu0 0.0
        %696 = vmatprep.subr.mxu0 0.0
        %697 = vmatpush1.msra.mxu0 0.0
        %698 = vmatprep.subr.mxu0 0.0
        %699 = vmatpush1.msra.mxu0 0.0
        %700 = vmatprep.subr.mxu0 0.0
        %701 = vmatpush1.msra.mxu0 0.0
        %702 = vmatprep.subr.mxu0 0.0
        %703 = vmatpush1.msra.mxu0 0.0
        %704 = vmatprep.subr.mxu0 0.0
        %705 = vmatpush1.msra.mxu0 0.0
        %706 = vmatprep.subr.mxu0 0.0
        %707 = vmatpush1.msra.mxu0 0.0
        %708 = vmatprep.subr.mxu0 0.0
        %709 = vmatpush1.msra.mxu0 0.0
        %710 = vmatprep.subr.mxu0 0.0
        %711 = vmatpush1.msra.mxu0 0.0
        %712 = vmatprep.subr.mxu0 0.0
        %713 = vmatpush1.msra.mxu0 0.0
        %714 = vmatprep.subr.mxu0 0.0
        %715 = vmatpush1.msra.mxu0 0.0
        %716 = vmatprep.subr.mxu0 0.0
        %717 = vmatpush1.msra.mxu0 0.0
        %718 = vmatprep.subr.mxu0 0.0
        %719 = vmatpush1.msra.mxu0 0.0
        %720 = vmatprep.subr.mxu0 0.0
        %721 = vmatpush1.msra.mxu0 0.0
        %722 = vmatprep.subr.mxu0 0.0
        %723 = vmatpush1.msra.mxu0 0.0
        %724 = vmatprep.subr.mxu0 0.0
        %725 = vmatpush1.msra.mxu0 0.0
        %726 = vmatprep.subr.mxu0 0.0
        %727 = vmatpush1.msra.mxu0 0.0
        %728 = vmatprep.subr.mxu0 0.0
        %729 = vmatpush1.msra.mxu0 0.0
        %730 = vmatprep.subr.mxu0 0.0
        %731 = vmatpush1.msra.mxu0 0.0
        %732 = vmatprep.mubr.f32.mxu0 0.0
        %733 = vmatmul.mubr.f32.gmra.mrb[0].mxu0 %v370
        %v734 = vpop.f32.mrb[0].mxu0
        %v735 = vadd.f32 0.0, %v734
        %v736 = vpop.f32.mrb[0].mxu0
        %737 = vdwg.mxu0
        %v738 = vmul.f32 %v288, %v288
        %v740 = vsel %vm291, %v738, 0
        %742 = vmatprep.subr.mxu0 0.0
        %743 = vmatpush1.msra.mxu0 %v297
        %744 = vmatprep.subr.mxu0 0.0
        %745 = vmatpush1.msra.mxu0 0.0
        %746 = vmatprep.subr.mxu0 0.0
        %747 = vmatpush1.msra.mxu0 0.0
        %748 = vmatprep.subr.mxu0 0.0
        %749 = vmatpush1.msra.mxu0 0.0
        %750 = vmatprep.subr.mxu0 0.0
        %751 = vmatpush1.msra.mxu0 0.0
        %752 = vmatprep.subr.mxu0 0.0
        %753 = vmatpush1.msra.mxu0 0.0
        %754 = vmatprep.subr.mxu0 0.0
        %755 = vmatpush1.msra.mxu0 0.0
        %756 = vmatprep.subr.mxu0 0.0
        %757 = vmatpush1.msra.mxu0 0.0
        %758 = vmatprep.subr.mxu0 0.0
        %759 = vmatpush1.msra.mxu0 0.0
        %760 = vmatprep.subr.mxu0 0.0
        %761 = vmatpush1.msra.mxu0 0.0
        %762 = vmatprep.subr.mxu0 0.0
        %763 = vmatpush1.msra.mxu0 0.0
        %764 = vmatprep.subr.mxu0 0.0
        %765 = vmatpush1.msra.mxu0 0.0
        %766 = vmatprep.subr.mxu0 0.0
        %767 = vmatpush1.msra.mxu0 0.0
        %768 = vmatprep.subr.mxu0 0.0
        %769 = vmatpush1.msra.mxu0 0.0
        %770 = vmatprep.subr.mxu0 0.0
        %771 = vmatpush1.msra.mxu0 0.0
        %772 = vmatprep.subr.mxu0 0.0
        %773 = vmatpush1.msra.mxu0 0.0
        %774 = vmatprep.subr.mxu0 0.0
        %775 = vmatpush1.msra.mxu0 0.0
        %776 = vmatprep.subr.mxu0 0.0
        %777 = vmatpush1.msra.mxu0 0.0
        %778 = vmatprep.subr.mxu0 0.0
        %779 = vmatpush1.msra.mxu0 0.0
        %780 = vmatprep.subr.mxu0 0.0
        %781 = vmatpush1.msra.mxu0 0.0
        %782 = vmatprep.subr.mxu0 0.0
        %783 = vmatpush1.msra.mxu0 0.0
        %784 = vmatprep.subr.mxu0 0.0
        %785 = vmatpush1.msra.mxu0 0.0
        %786 = vmatprep.subr.mxu0 0.0
        %787 = vmatpush1.msra.mxu0 0.0
        %788 = vmatprep.subr.mxu0 0.0
        %789 = vmatpush1.msra.mxu0 0.0
        %790 = vmatprep.subr.mxu0 0.0
        %791 = vmatpush1.msra.mxu0 0.0
        %792 = vmatprep.subr.mxu0 0.0
        %793 = vmatpush1.msra.mxu0 0.0
        %794 = vmatprep.subr.mxu0 0.0
        %795 = vmatpush1.msra.mxu0 0.0
        %796 = vmatprep.subr.mxu0 0.0
        %797 = vmatpush1.msra.mxu0 0.0
        %798 = vmatprep.subr.mxu0 0.0
        %799 = vmatpush1.msra.mxu0 0.0
        %800 = vmatprep.subr.mxu0 0.0
        %801 = vmatpush1.msra.mxu0 0.0
        %802 = vmatprep.subr.mxu0 0.0
        %803 = vmatpush1.msra.mxu0 0.0
        %804 = vmatprep.subr.mxu0 0.0
        %805 = vmatpush1.msra.mxu0 0.0
        %806 = vmatprep.mubr.f32.mxu0 0.0
        %807 = vmatmul.mubr.f32.gmra.mrb[0].mxu0 %v740
        %v808 = vpop.f32.mrb[0].mxu0
        %v809 = vadd.f32 0.0, %v808
        %v810 = vpop.f32.mrb[0].mxu0
        %811 = vdwg.mxu0
        %v813 = vsel %vm295, %v809, 0
        %815 = vmatprep.subr.mxu0 0.0
        %816 = vmatpush1.msra.mxu0 %v813
        %817 = vmatprep.subr.mxu0 0.0
        %818 = vmatpush1.msra.mxu0 0.0
        %819 = vmatprep.subr.mxu0 0.0
        %820 = vmatpush1.msra.mxu0 0.0
        %821 = vmatprep.subr.mxu0 0.0
        %822 = vmatpush1.msra.mxu0 0.0
        %823 = vmatprep.subr.mxu0 0.0
        %824 = vmatpush1.msra.mxu0 0.0
        %825 = vmatprep.subr.mxu0 0.0
        %826 = vmatpush1.msra.mxu0 0.0
        %827 = vmatprep.subr.mxu0 0.0
        %828 = vmatpush1.msra.mxu0 0.0
        %829 = vmatprep.subr.mxu0 0.0
        %830 = vmatpush1.msra.mxu0 0.0
        %831 = vmatprep.subr.mxu0 0.0
        %832 = vmatpush1.msra.mxu0 0.0
        %833 = vmatprep.subr.mxu0 0.0
        %834 = vmatpush1.msra.mxu0 0.0
        %835 = vmatprep.subr.mxu0 0.0
        %836 = vmatpush1.msra.mxu0 0.0
        %837 = vmatprep.subr.mxu0 0.0
        %838 = vmatpush1.msra.mxu0 0.0
        %839 = vmatprep.subr.mxu0 0.0
        %840 = vmatpush1.msra.mxu0 0.0
        %841 = vmatprep.subr.mxu0 0.0
        %842 = vmatpush1.msra.mxu0 0.0
        %843 = vmatprep.subr.mxu0 0.0
        %844 = vmatpush1.msra.mxu0 0.0
        %845 = vmatprep.subr.mxu0 0.0
        %846 = vmatpush1.msra.mxu0 0.0
        %847 = vmatprep.subr.mxu0 0.0
        %848 = vmatpush1.msra.mxu0 0.0
        %849 = vmatprep.subr.mxu0 0.0
        %850 = vmatpush1.msra.mxu0 0.0
        %851 = vmatprep.subr.mxu0 0.0
        %852 = vmatpush1.msra.mxu0 0.0
        %853 = vmatprep.subr.mxu0 0.0
        %854 = vmatpush1.msra.mxu0 0.0
        %855 = vmatprep.subr.mxu0 0.0
        %856 = vmatpush1.msra.mxu0 0.0
        %857 = vmatprep.subr.mxu0 0.0
        %858 = vmatpush1.msra.mxu0 0.0
        %859 = vmatprep.subr.mxu0 0.0
        %860 = vmatpush1.msra.mxu0 0.0
        %861 = vmatprep.subr.mxu0 0.0
        %862 = vmatpush1.msra.mxu0 0.0
        %863 = vmatprep.subr.mxu0 0.0
        %864 = vmatpush1.msra.mxu0 0.0
        %865 = vmatprep.subr.mxu0 0.0
        %866 = vmatpush1.msra.mxu0 0.0
        %867 = vmatprep.subr.mxu0 0.0
        %868 = vmatpush1.msra.mxu0 0.0
        %869 = vmatprep.subr.mxu0 0.0
        %870 = vmatpush1.msra.mxu0 0.0
        %871 = vmatprep.subr.mxu0 0.0
        %872 = vmatpush1.msra.mxu0 0.0
        %873 = vmatprep.subr.mxu0 0.0
        %874 = vmatpush1.msra.mxu0 0.0
        %875 = vmatprep.subr.mxu0 0.0
        %876 = vmatpush1.msra.mxu0 0.0
        %877 = vmatprep.subr.mxu0 0.0
        %878 = vmatpush1.msra.mxu0 0.0
        %879 = vmatprep.mubr.f32.mxu0 0.0
        %880 = vmatmul.mubr.f32.gmra.mrb[0].mxu0 %v370
        %v881 = vpop.f32.mrb[0].mxu0
        %v882 = vadd.f32 0.0, %v881
        %v883 = vpop.f32.mrb[0].mxu0
        %884 = vdwg.mxu0
        %v885 = vmul.f32 %v287, %v288
        %v887 = vsel %vm291, %v885, 0
        %889 = vmatprep.subr.mxu0 0.0
        %890 = vmatpush1.msra.mxu0 %v297
        %891 = vmatprep.subr.mxu0 0.0
        %892 = vmatpush1.msra.mxu0 0.0
        %893 = vmatprep.subr.mxu0 0.0
        %894 = vmatpush1.msra.mxu0 0.0
        %895 = vmatprep.subr.mxu0 0.0
        %896 = vmatpush1.msra.mxu0 0.0
        %897 = vmatprep.subr.mxu0 0.0
        %898 = vmatpush1.msra.mxu0 0.0
        %899 = vmatprep.subr.mxu0 0.0
        %900 = vmatpush1.msra.mxu0 0.0
        %901 = vmatprep.subr.mxu0 0.0
        %902 = vmatpush1.msra.mxu0 0.0
        %903 = vmatprep.subr.mxu0 0.0
        %904 = vmatpush1.msra.mxu0 0.0
        %905 = vmatprep.subr.mxu0 0.0
        %906 = vmatpush1.msra.mxu0 0.0
        %907 = vmatprep.subr.mxu0 0.0
        %908 = vmatpush1.msra.mxu0 0.0
        %909 = vmatprep.subr.mxu0 0.0
        %910 = vmatpush1.msra.mxu0 0.0
        %911 = vmatprep.subr.mxu0 0.0
        %912 = vmatpush1.msra.mxu0 0.0
        %913 = vmatprep.subr.mxu0 0.0
        %914 = vmatpush1.msra.mxu0 0.0
        %915 = vmatprep.subr.mxu0 0.0
        %916 = vmatpush1.msra.mxu0 0.0
        %917 = vmatprep.subr.mxu0 0.0
        %918 = vmatpush1.msra.mxu0 0.0
        %919 = vmatprep.subr.mxu0 0.0
        %920 = vmatpush1.msra.mxu0 0.0
        %921 = vmatprep.subr.mxu0 0.0
        %922 = vmatpush1.msra.mxu0 0.0
        %923 = vmatprep.subr.mxu0 0.0
        %924 = vmatpush1.msra.mxu0 0.0
        %925 = vmatprep.subr.mxu0 0.0
        %926 = vmatpush1.msra.mxu0 0.0
        %927 = vmatprep.subr.mxu0 0.0
        %928 = vmatpush1.msra.mxu0 0.0
        %929 = vmatprep.subr.mxu0 0.0
        %930 = vmatpush1.msra.mxu0 0.0
        %931 = vmatprep.subr.mxu0 0.0
        %932 = vmatpush1.msra.mxu0 0.0
        %933 = vmatprep.subr.mxu0 0.0
        %934 = vmatpush1.msra.mxu0 0.0
        %935 = vmatprep.subr.mxu0 0.0
        %936 = vmatpush1.msra.mxu0 0.0
        %937 = vmatprep.subr.mxu0 0.0
        %938 = vmatpush1.msra.mxu0 0.0
        %939 = vmatprep.subr.mxu0 0.0
        %940 = vmatpush1.msra.mxu0 0.0
        %941 = vmatprep.subr.mxu0 0.0
        %942 = vmatpush1.msra.mxu0 0.0
        %943 = vmatprep.subr.mxu0 0.0
        %944 = vmatpush1.msra.mxu0 0.0
        %945 = vmatprep.subr.mxu0 0.0
        %946 = vmatpush1.msra.mxu0 0.0
        %947 = vmatprep.subr.mxu0 0.0
        %948 = vmatpush1.msra.mxu0 0.0
        %949 = vmatprep.subr.mxu0 0.0
        %950 = vmatpush1.msra.mxu0 0.0
        %951 = vmatprep.subr.mxu0 0.0
        %952 = vmatpush1.msra.mxu0 0.0
        %953 = vmatprep.mubr.f32.mxu0 0.0
        %954 = vmatmul.mubr.f32.gmra.mrb[0].mxu0 %v887
        %v955 = vpop.f32.mrb[0].mxu0
        %v956 = vadd.f32 0.0, %v955
        %v957 = vpop.f32.mrb[0].mxu0
        %958 = vdwg.mxu0
        %v960 = vsel %vm295, %v956, 0
        %962 = vmatprep.subr.mxu0 0.0
        %963 = vmatpush1.msra.mxu0 %v960
        %964 = vmatprep.subr.mxu0 0.0
        %965 = vmatpush1.msra.mxu0 0.0
        %966 = vmatprep.subr.mxu0 0.0
        %967 = vmatpush1.msra.mxu0 0.0
        %968 = vmatprep.subr.mxu0 0.0
        %969 = vmatpush1.msra.mxu0 0.0
        %970 = vmatprep.subr.mxu0 0.0
        %971 = vmatpush1.msra.mxu0 0.0
        %972 = vmatprep.subr.mxu0 0.0
        %973 = vmatpush1.msra.mxu0 0.0
        %974 = vmatprep.subr.mxu0 0.0
        %975 = vmatpush1.msra.mxu0 0.0
        %976 = vmatprep.subr.mxu0 0.0
        %977 = vmatpush1.msra.mxu0 0.0
        %978 = vmatprep.subr.mxu0 0.0
        %979 = vmatpush1.msra.mxu0 0.0
        %980 = vmatprep.subr.mxu0 0.0
        %981 = vmatpush1.msra.mxu0 0.0
        %982 = vmatprep.subr.mxu0 0.0
        %983 = vmatpush1.msra.mxu0 0.0
        %984 = vmatprep.subr.mxu0 0.0
        %985 = vmatpush1.msra.mxu0 0.0
        %986 = vmatprep.subr.mxu0 0.0
        %987 = vmatpush1.msra.mxu0 0.0
        %988 = vmatprep.subr.mxu0 0.0
        %989 = vmatpush1.msra.mxu0 0.0
        %990 = vmatprep.subr.mxu0 0.0
        %991 = vmatpush1.msra.mxu0 0.0
        %992 = vmatprep.subr.mxu0 0.0
        %993 = vmatpush1.msra.mxu0 0.0
        %994 = vmatprep.subr.mxu0 0.0
        %995 = vmatpush1.msra.mxu0 0.0
        %996 = vmatprep.subr.mxu0 0.0
        %997 = vmatpush1.msra.mxu0 0.0
        %998 = vmatprep.subr.mxu0 0.0
        %999 = vmatpush1.msra.mxu0 0.0
        %1000 = vmatprep.subr.mxu0 0.0
        %1001 = vmatpush1.msra.mxu0 0.0
        %1002 = vmatprep.subr.mxu0 0.0
        %1003 = vmatpush1.msra.mxu0 0.0
        %1004 = vmatprep.subr.mxu0 0.0
        %1005 = vmatpush1.msra.mxu0 0.0
        %1006 = vmatprep.subr.mxu0 0.0
        %1007 = vmatpush1.msra.mxu0 0.0
        %1008 = vmatprep.subr.mxu0 0.0
        %1009 = vmatpush1.msra.mxu0 0.0
        %1010 = vmatprep.subr.mxu0 0.0
        %1011 = vmatpush1.msra.mxu0 0.0
        %1012 = vmatprep.subr.mxu0 0.0
        %1013 = vmatpush1.msra.mxu0 0.0
        %1014 = vmatprep.subr.mxu0 0.0
        %1015 = vmatpush1.msra.mxu0 0.0
        %1016 = vmatprep.subr.mxu0 0.0
        %1017 = vmatpush1.msra.mxu0 0.0
        %1018 = vmatprep.subr.mxu0 0.0
        %1019 = vmatpush1.msra.mxu0 0.0
        %1020 = vmatprep.subr.mxu0 0.0
        %1021 = vmatpush1.msra.mxu0 0.0
        %1022 = vmatprep.subr.mxu0 0.0
        %1023 = vmatpush1.msra.mxu0 0.0
        %1024 = vmatprep.subr.mxu0 0.0
        %1025 = vmatpush1.msra.mxu0 0.0
        %1026 = vmatprep.mubr.f32.mxu0 0.0
        %1027 = vmatmul.mubr.f32.gmra.mrb[0].mxu0 %v370
        %v1028 = vpop.f32.mrb[0].mxu0
        %v1029 = vadd.f32 0.0, %v1028
        %v1030 = vpop.f32.mrb[0].mxu0
        %1031 = vdwg.mxu0
        %v1032 = vmul.f32 %v442, %v442
        %v1033 = vmul.f32 %v588, %v588
        %v1034 = vmul.f32 %v442, %v588
        %v1035 = vsub.f32 %v735, %v1032
        %v1036 = vsub.f32 %v882, %v1033
        %v1037 = vsub.f32 %v1029, %v1034
        %v1038 = vmul.f32 %v1037, 2.0
        %v1039 = vstv %s286
        %v1040 = vadd.f32 %v1038, %v1039
        %v1041 = vadd.f32 %v1035, %v1036
        %v1042 = vadd.f32 %v1041, %v1039
        %v1043 = vrcp.pop %v1042
        %v1044 = vmul.f32 %v1040, %v1043
        %v1045 = vadd.f32 %v1032, %v1033
        %v1046 = vstv %s285
        %v1047 = vadd.f32 %v1045, %v1046
        %v1048 = vrcp.pop %v1047
        %v1049 = vmul.f32 %v1034, 2.0
        %v1050 = vadd.f32 %v1049, %v1046
        %v1051 = vmul.f32 %v1050, %v1048
        %v1052 = vmul.f32 %v1051, %v1044
        %v1053 = vadd.f32 %v1052, 0.0
        %s1054 = vtos %v1053
        %v1055 = vstv %s1054
        %vm1056 = vcmask 0
        %1057 = vst.msk [vmem:[%s281] sm:$0x1] %vm1056, %v1055
        %v1058 = vadd.f32 %v1044, 0.0
        %s1059 = vtos %v1058
        %v1060 = vstv %s1059
        %1061 = vst.msk [vmem:[%s284] sm:$0x1] %vm1056, %v1060
        %p1062 = scmp.lt.s32.totalorder %s19, 5
        %s1063 = scalar_select %p1062, %s19, 5
        %s1064 = scalar_lea.vmem %s5, %s1063
        %p1065 = scmp.lt.s32.totalorder %s19, 5
        %s1066 = scalar_select %p1065, %s19, 5
        %s1067 = scalar_lea.vmem %s6, %s1066
        // Predicated region
        $region45: #{a_call__.9} parent=39 // pred_check
          %p1068 = pneg %p152
        $region46: #{a_call__.9} parent=39 // pred_check_branch
          %1070 = sbr.rel (%p1068) target = $region48
        $region47: #{a_call__.9} parent=39 // pred_region
          _
        $region48: #{a_call__.9} parent=39 // pred_fallthru
          _
        // Predicated region
        $region49: #{a_call__.9} parent=39 // pred_check
          %p1071 = pneg %p178
        $region50: #{a_call__.9} parent=39 // pred_check_branch
          %1073 = sbr.rel (%p1071) target = $region52
        $region51: #{a_call__.9} parent=39 // pred_region
          _
        $region52: #{a_call__.9} parent=39 // pred_fallthru
          _
      $region40: #{a_call__.9} parent=5 // pred_fallthru
        _
      %p1074 = scmp.le.s32.totalorder 2, %s14
      // Predicated region
      $region53: #{a_call__.9} parent=5 // pred_check
        %p1075 = pneg %p1074
      $region54: #{a_call__.9} parent=5 // pred_check_branch
        %1077 = sbr.rel (%p1075) target = $region56
      $region55: #{a_call__.9} parent=5 // pred_region
        %s1078 = ssub.s32 %s14, 2
        // Predicated region
        $region57: #{a_call__.9} parent=55 // pred_check
          %p1079 = pneg %p158
        $region58: #{a_call__.9} parent=55 // pred_check_branch
          %1081 = sbr.rel (%p1079) target = $region60
        $region59: #{a_call__.9} parent=55 // pred_region
          %p1082 = scmp.lt.s32.totalorder %s20, 5
          %s1083 = scalar_select %p1082, %s20, 5
          %s1084 = scalar_lea.vmem %s5, %s1083
        $region60: #{a_call__.9} parent=55 // pred_fallthru
          _
        // Predicated region
        $region61: #{a_call__.9} parent=55 // pred_check
          %p1085 = pneg %p184
        $region62: #{a_call__.9} parent=55 // pred_check_branch
          %1087 = sbr.rel (%p1085) target = $region64
        $region63: #{a_call__.9} parent=55 // pred_region
          %p1088 = scmp.lt.s32.totalorder %s20, 5
          %s1089 = scalar_select %p1088, %s20, 5
          %s1090 = scalar_lea.vmem %s6, %s1089
        $region64: #{a_call__.9} parent=55 // pred_fallthru
          _
      $region56: #{a_call__.9} parent=5 // pred_fallthru
        _
    $region6: #{a_call__.9} parent=1 // loop_footer
      %s18 = sadd.s32 1, %s14
    $region7: #{a_call__.9} parent=1 // loop_footer_branch
      %13 = sbr.rel target = $region3
    $region8: #{a_call__.9} parent=1 // loop_exit
      _
    %1091 = vsyncpa [#allocation3], 1
    %s1092 = scalar_lea.sflag [#allocation3], 1
    %1093 = vsyncpa %s1092, 1

</llo_original>
